<compile_context>
chip_gen: v5e
topology: v5e:2x2
jax: 0.10.0
libtpu: 0.0.40
codegen_flags: <defaults>
</compile_context>

<pallas_src>
import functools
import numpy as np

import jax
import jax.numpy as jnp
from jax.experimental import pallas as pl
from jax.experimental.pallas import tpu as pltpu

CP = 128     # padded channel width (lane-dense)
KPAD = 16    # stem conv-tap K padded 9 -> 16
PTAP = 16    # stem pool-tap count padded 9 -> 16


# ------------------------------------------------------------------
# Kernels
# ------------------------------------------------------------------

def _make_stem_kernel(ph, pw):
    """Fused stem: conv3x3(1->C) + BN + ReLU + maxpool3x3/s2 -> padded output."""
    chunk = PTAP * pw

    def kernel(p_ref, w_ref, s_ref, b_ref, o_ref):
        # p_ref: (1, ph*PTAP*pw, KPAD) f32, rows ordered (out_row, pool_tap, out_col)
        # w_ref: (KPAD, CP) bf16 ; s_ref/b_ref: (1, CP) f32
        # o_ref: (1, ph+2, pw+2, CP) f32, zero spatial border for the next conv
        o_ref[...] = jnp.zeros_like(o_ref)
        for i in range(ph):                                   # one output row / step
            p = p_ref[0, pl.ds(i * chunk, chunk), :].astype(jnp.bfloat16)
            conv = jnp.dot(p, w_ref[...], preferred_element_type=jnp.float32)
            conv = jnp.maximum(conv * s_ref[...] + b_ref[...], 0.0)
            mx = conv[0:pw, :]                                # max over pool taps
            for t in range(1, PTAP):
                mx = jnp.maximum(mx, conv[t * pw:(t + 1) * pw, :])
            o_ref[0, pl.ds(1 + i, 1), pl.ds(1, pw), :] = mx.reshape(1, pw, CP)
    return kernel


def _make_block_kernel(h, w, has_ds, pool):
    """Fully fused BasicBlock (+ optional fused global average pool)."""
    m = h * w

    def kernel(xp_ref, w1_ref, s1_ref, b1_ref, w2_ref, s2_ref, b2_ref, *rest):
        if has_ds:
            wd_ref, sd_ref, bd_ref, o_ref, hid_ref = rest
        else:
            o_ref, hid_ref = rest

        # conv1 + bn1 + relu : sum of 9 shifted-tap bf16 matmuls, f32 accumulate
        acc = None
        for t in range(9):
            kh, kw = divmod(t, 3)
            tap = xp_ref[0, pl.ds(kh, h), pl.ds(kw, w), :].reshape(m, CP)
            d = jnp.dot(tap.astype(jnp.bfloat16), w1_ref[t],
                        preferred_element_type=jnp.float32)
            acc = d if acc is None else acc + d
        hidden = jnp.maximum(acc * s1_ref[...] + b1_ref[...], 0.0)

        # keep padded hidden in VMEM scratch for conv2's shifted reads
        hid_ref[...] = jnp.zeros_like(hid_ref)
        hid_ref[pl.ds(1, h), pl.ds(1, w), :] = hidden.reshape(h, w, CP)

        # conv2 + bn2
        acc2 = None
        for t in range(9):
            kh, kw = divmod(t, 3)
            tap = hid_ref[pl.ds(kh, h), pl.ds(kw, w), :].reshape(m, CP)
            d = jnp.dot(tap.astype(jnp.bfloat16), w2_ref[t],
                        preferred_element_type=jnp.float32)
            acc2 = d if acc2 is None else acc2 + d
        out = acc2 * s2_ref[...] + b2_ref[...]

        # identity / 1x1-conv-BN downsample, residual add, ReLU
        xc = xp_ref[0, pl.ds(1, h), pl.ds(1, w), :].reshape(m, CP)
        if has_ds:
            ident = jnp.dot(xc.astype(jnp.bfloat16), wd_ref[...],
                            preferred_element_type=jnp.float32)
            ident = ident * sd_ref[...] + bd_ref[...]
        else:
            ident = xc
        out = jnp.maximum(out + ident, 0.0)

        if pool:
            # fused AdaptiveAvgPool2d((1,1)): reduce over rows, channels on lanes
            o_ref[...] = (jnp.sum(out, axis=0, keepdims=True)
                          * (1.0 / m)).reshape(1, 1, CP)
        else:
            o_ref[...] = jnp.zeros_like(o_ref)
            o_ref[0, pl.ds(1, h), pl.ds(1, w), :] = out.reshape(h, w, CP)
    return kernel


# ------------------------------------------------------------------
# pallas_call wrappers
# ------------------------------------------------------------------

def _stem_patch_indices(h, w):
    """Static gather indices: padded input -> stem patch rows.

    Row order is (out_row, pool_tap, out_col); border pool taps are clamped to
    in-window positions (valid because values are post-ReLU, max is unchanged).
    """
    ph, pw = h // 2, w // 2
    pt = np.arange(3)
    kt = np.arange(3)
    r = np.clip(2 * np.arange(ph)[:, None] + pt[None, :] - 1, 0, h - 1)   # (ph,3)
    c = np.clip(2 * np.arange(pw)[:, None] + pt[None, :] - 1, 0, w - 1)   # (pw,3)
    rr = r[:, :, None] + kt[None, None, :]                                # (ph,3(pi),3(kh))
    cc = c[:, :, None] + kt[None, None, :]                                # (pw,3(pj),3(kw))
    # target dims: (wi, pi, pj, wj, kh, kw)
    R = np.broadcast_to(rr[:, :, None, None, :, None], (ph, 3, 3, pw, 3, 3))
    C = np.broadcast_to(cc.transpose(1, 0, 2)[None, None, :, :, None, :],
                        (ph, 3, 3, pw, 3, 3))
    R = R.reshape(ph, 9, pw, 9)   # (wi, pool_tap, wj, conv_tap)
    C = C.reshape(ph, 9, pw, 9)
    # pad pool taps 9->PTAP by duplicating tap 0; pad conv taps 9->KPAD with 0
    R = np.concatenate([R, np.repeat(R[:, :1], PTAP - 9, axis=1)], axis=1)
    C = np.concatenate([C, np.repeat(C[:, :1], PTAP - 9, axis=1)], axis=1)
    R = np.concatenate([R, np.zeros((ph, PTAP, pw, KPAD - 9), R.dtype)], axis=3)
    C = np.concatenate([C, np.zeros((ph, PTAP, pw, KPAD - 9), C.dtype)], axis=3)
    return (R.reshape(ph * PTAP * pw, KPAD).astype(np.int32),
            C.reshape(ph * PTAP * pw, KPAD).astype(np.int32))


def _stem_call(x, w, s, b):
    bsz, h, wd = x.shape
    ph, pw = h // 2, wd // 2
    ridx, cidx = _stem_patch_indices(h, wd)
    xp1 = jnp.pad(x, ((0, 0), (1, 1), (1, 1)))
    patches = xp1[:, ridx, cidx]                          # (B, ph*PTAP*pw, KPAD)
    m = ph * PTAP * pw
    return pl.pallas_call(
        _make_stem_kernel(ph, pw),
        out_shape=jax.ShapeDtypeStruct((bsz, ph + 2, pw + 2, CP), jnp.float32),
        grid=(bsz,),
        in_specs=[pl.BlockSpec((1, m, KPAD), lambda i: (i, 0, 0)),
                  pl.BlockSpec((KPAD, CP), lambda i: (0, 0)),
                  pl.BlockSpec((1, CP), lambda i: (0, 0)),
                  pl.BlockSpec((1, CP), lambda i: (0, 0))],
        out_specs=pl.BlockSpec((1, ph + 2, pw + 2, CP), lambda i: (i, 0, 0, 0)),
        compiler_params=pltpu.CompilerParams(dimension_semantics=("parallel",)),
    )(patches, w, s, b)


def _block_call(act, blk, pool):
    bsz, hp2, wp2, _ = act.shape
    h, w = hp2 - 2, wp2 - 2
    has_ds = "wd" in blk
    args = [act, blk["w1"], blk["s1"], blk["b1"], blk["w2"], blk["s2"], blk["b2"]]
    in_specs = [pl.BlockSpec((1, hp2, wp2, CP), lambda i: (i, 0, 0, 0)),
                pl.BlockSpec((9, CP, CP), lambda i: (0, 0, 0)),
                pl.BlockSpec((1, CP), lambda i: (0, 0)),
                pl.BlockSpec((1, CP), lambda i: (0, 0)),
                pl.BlockSpec((9, CP, CP), lambda i: (0, 0, 0)),
                pl.BlockSpec((1, CP), lambda i: (0, 0)),
                pl.BlockSpec((1, CP), lambda i: (0, 0))]
    if has_ds:
        args += [blk["wd"], blk["sd"], blk["bd"]]
        in_specs += [pl.BlockSpec((CP, CP), lambda i: (0, 0)),
                     pl.BlockSpec((1, CP), lambda i: (0, 0)),
                     pl.BlockSpec((1, CP), lambda i: (0, 0))]
    if pool:
        out_shape = jax.ShapeDtypeStruct((bsz, 1, CP), jnp.float32)
        out_spec = pl.BlockSpec((1, 1, CP), lambda i: (i, 0, 0))
    else:
        out_shape = jax.ShapeDtypeStruct((bsz, hp2, wp2, CP), jnp.float32)
        out_spec = pl.BlockSpec((1, hp2, wp2, CP), lambda i: (i, 0, 0, 0))
    return pl.pallas_call(
        _make_block_kernel(h, w, has_ds, pool),
        out_shape=out_shape,
        grid=(bsz,),
        in_specs=in_specs,
        out_specs=out_spec,
        scratch_shapes=[pltpu.VMEM((hp2, wp2, CP), jnp.float32)],
        compiler_params=pltpu.CompilerParams(dimension_semantics=("parallel",)),
    )(*args)


def resnet_forward_pallas(x, prep, c_final):
    """x: (B, S, F) f32 -> (B, 1, c_final) f32 (matches PyTorch forward())."""
    bsz, s, f = x.shape
    assert s % 2 == 0 and f % 2 == 0
    # PyTorch: view(B,S,1,F).transpose(1,2) == NCHW (B,1,S,F) == grayscale SxF.
    act = _stem_call(x, prep["stem_w"], prep["stem_s"], prep["stem_b"])
    blocks = [blk for layer in prep["layers"] for blk in layer]
    for idx, blk in enumerate(blocks):
        act = _block_call(act, blk, pool=(idx == len(blocks) - 1))
    return act[:, :, :c_final]          # strip lane padding -> (B, 1, C_final)


# ------------------------------------------------------------------
# Parameters: raw (for reference) + prepared (padded / bf16 for Pallas)
# ------------------------------------------------------------------

def _fold_bn(gamma, beta, eps=1e-5):
    # inference BN with running_mean=0, running_var=1
    return gamma / jnp.sqrt(1.0 + eps), beta


def init_raw_params(key, channels=(8, 16, 32), n_blocks=(1, 1, 1)):
    state = {"k": key}

    def nxt():
        state["k"], sub = jax.random.split(state["k"])
        return sub

    def conv_w(cin, cout, k):
        w = jax.random.normal(nxt(), (k, k, cin, cout), jnp.float32)
        return w * (2.0 / (k * k * cin)) ** 0.5 * 0.5

    def bn(c):
        gamma = 1.0 + 0.1 * jax.random.normal(nxt(), (c,), jnp.float32)
        beta = 0.1 * jax.random.normal(nxt(), (c,), jnp.float32)
        return _fold_bn(gamma, beta)

    raw = {}
    c0 = channels[0]
    raw["stem_w"] = conv_w(1, c0, 3)
    raw["stem_s"], raw["stem_b"] = bn(c0)
    layers = []
    in_c = c0
    for nb, c in zip(n_blocks, channels):
        blocks = []
        for bi in range(nb):
            cin = in_c if bi == 0 else c
            blk = {"w1": conv_w(cin, c, 3), "w2": conv_w(c, c, 3)}
            blk["s1"], blk["b1"] = bn(c)
            blk["s2"], blk["b2"] = bn(c)
            if bi == 0 and cin != c:                 # 1x1 conv + BN downsample
                blk["wd"] = conv_w(cin, c, 1)[0, 0]  # (cin, cout)
                blk["sd"], blk["bd"] = bn(c)
            blocks.append(blk)
        layers.append(blocks)
        in_c = c
    raw["layers"] = layers
    return raw


def prepare_params(raw):
    def pad_w3(w):                               # (3,3,cin,cout) -> (9,CP,CP) bf16
        cin, cout = w.shape[2], w.shape[3]
        assert cin <= CP and cout <= CP
        wp = jnp.zeros((9, CP, CP), jnp.float32).at[:, :cin, :cout].set(
            w.reshape(9, cin, cout))
        return wp.astype(jnp.bfloat16)

    def pad_w1(w):                               # (cin,cout) -> (CP,CP) bf16
        cin, cout = w.shape
        return (jnp.zeros((CP, CP), jnp.float32)
                .at[:cin, :cout].set(w).astype(jnp.bfloat16))

    def pad_v(v):                                # (c,) -> (1,CP) f32
        return jnp.zeros((1, CP), jnp.float32).at[0, :v.shape[0]].set(v)

    prep = {}
    sw = raw["stem_w"]                           # (3,3,1,c0)
    c0 = sw.shape[-1]
    stem = jnp.zeros((KPAD, CP), jnp.float32).at[:9, :c0].set(sw.reshape(9, c0))
    prep["stem_w"] = stem.astype(jnp.bfloat16)
    prep["stem_s"] = pad_v(raw["stem_s"])
    prep["stem_b"] = pad_v(raw["stem_b"])
    layers = []
    for blocks in raw["layers"]:
        pb = []
        for blk in blocks:
            p = {"w1": pad_w3(blk["w1"]), "s1": pad_v(blk["s1"]), "b1": pad_v(blk["b1"]),
                 "w2": pad_w3(blk["w2"]), "s2": pad_v(blk["s2"]), "b2": pad_v(blk["b2"])}
            if "wd" in blk:
                p["wd"] = pad_w1(blk["wd"])
                p["sd"] = pad_v(blk["sd"])
                p["bd"] = pad_v(blk["bd"])
            pb.append(p)
        layers.append(pb)
    prep["layers"] = layers
    return prep


# ------------------------------------------------------------------
# Pure-JAX reference (same math: bf16 matmul operands, f32 accumulate)
# ------------------------------------------------------------------

def _ref_conv3x3(x, w, scale, bias, relu):
    b, h, wd, _ = x.shape
    xp = jnp.pad(x, ((0, 0), (1, 1), (1, 1), (0, 0)))
    acc = None
    for kh in range(3):
        for kw in range(3):
            tap = xp[:, kh:kh + h, kw:kw + wd, :].astype(jnp.bfloat16)
            d = jax.lax.dot_general(tap, w[kh, kw].astype(jnp.bfloat16),
                                    (((3,), (0,)), ((), ())),
                                    preferred_element_type=jnp.float32)
            acc = d if acc is None else acc + d
    out = acc * scale + bias
    return jnp.maximum(out, 0.0) if relu else out


def _ref_maxpool3x3s2(x):
    b, h, w, c = x.shape
    ho, wo = h // 2, w // 2
    xp = jnp.pad(x, ((0, 0), (1, 1), (1, 1), (0, 0)), constant_values=-jnp.inf)
    taps = []
    for kh in range(3):
        for kw in range(3):
            taps.append(xp[:, kh:kh + 2 * ho - 1:2, kw:kw + 2 * wo - 1:2, :])
    return jnp.max(jnp.stack(taps, axis=0), axis=0)


def _ref_block(x, blk):
    hidden = _ref_conv3x3(x, blk["w1"], blk["s1"], blk["b1"], relu=True)
    out = _ref_conv3x3(hidden, blk["w2"], blk["s2"], blk["b2"], relu=False)
    if "wd" in blk:
        ident = jax.lax.dot_general(x.astype(jnp.bfloat16),
                                    blk["wd"].astype(jnp.bfloat16),
                                    (((3,), (0,)), ((), ())),
                                    preferred_element_type=jnp.float32)
        ident = ident * blk["sd"] + blk["bd"]
    else:
        ident = x
    return jnp.maximum(out + ident, 0.0)


def resnet_forward_reference(x, raw):
    b, s, f = x.shape
    h = x.reshape(b, s, f, 1)
    h = _ref_conv3x3(h, raw["stem_w"], raw["stem_s"], raw["stem_b"], relu=True)
    h = _ref_maxpool3x3s2(h)
    for blocks in raw["layers"]:
        for blk in blocks:
            h = _ref_block(h, blk)
    pooled = jnp.mean(h, axis=(1, 2))
    return pooled.reshape(b, 1, -1)


# ------------------------------------------------------------------

if __name__ == "__main__":
    key = jax.random.PRNGKey(0)
    kx, kp = jax.random.split(key)

    B, S, F = 2, 16, 16                     # input as PyTorch forward expects: (B, S, F)
    channels = (8, 16, 32)
    n_blocks = (1, 1, 1)

    x = jax.random.normal(kx, (B, S, F), jnp.float32)
    raw = init_raw_params(kp, channels=channels, n_blocks=n_blocks)
    prep = prepare_params(raw)

    fwd = jax.jit(functools.partial(resnet_forward_pallas, c_final=channels[-1]))
    out = jax.block_until_ready(fwd(x, prep))
    assert out.shape == (B, 1, channels[-1]), out.shape

    ref = resnet_forward_reference(x, raw)
    np.testing.assert_allclose(np.asarray(out), np.asarray(ref),
                               rtol=1e-2, atol=1e-2)

    print("KERNEL_OK")
</pallas_src>

<mosaic_0001>
module attributes {stable_mosaic.version = 11 : i64} {
  func.func @kernel(%arg0: i32, %arg1: memref<1x1024x16xf32, #tpu.memory_space<vmem>>, %arg2: memref<16x128xbf16, #tpu.memory_space<vmem>>, %arg3: memref<1x128xf32, #tpu.memory_space<vmem>>, %arg4: memref<1x128xf32, #tpu.memory_space<vmem>>, %arg5: memref<1x10x10x128xf32, #tpu.memory_space<vmem>>) attributes {dimension_semantics = [#tpu.dimension_semantics<parallel>], iteration_bounds = array<i64: 2>, scalar_prefetch = 0 : i64, scratch_operands = 0 : i64, tpu.core_type = #tpu.core_type<tc>, window_params = [{transform_indices = @transform_0, window_bounds = array<i64: 1, 1024, 16>}, {pipeline_mode = #tpu.pipeline_mode<synchronous>, transform_indices = @transform_1, window_bounds = array<i64: 16, 128>}, {pipeline_mode = #tpu.pipeline_mode<synchronous>, transform_indices = @transform_2, window_bounds = array<i64: 1, 128>}, {pipeline_mode = #tpu.pipeline_mode<synchronous>, transform_indices = @transform_3, window_bounds = array<i64: 1, 128>}, {transform_indices = @transform_4, window_bounds = array<i64: 1, 10, 10, 128>}]} {
    %cst = arith.constant 0.000000e+00 : f32
    %0 = vector.broadcast %cst : f32 to vector<1x10x10x128xf32>
    %c0 = arith.constant 0 : index
    %c0_0 = arith.constant 0 : index
    %c0_1 = arith.constant 0 : index
    %c0_2 = arith.constant 0 : index
    %1 = vector.load %arg5[%c0, %c0_0, %c0_1, %c0_2] : memref<1x10x10x128xf32, #tpu.memory_space<vmem>>, vector<1x10x10x128xf32>
    tpu.vector_store %arg5[%c0, %c0_0, %c0_1, %c0_2], %0 {strides = array<i32>} : memref<1x10x10x128xf32, #tpu.memory_space<vmem>>, vector<1x10x10x128xf32>,
    %c0_3 = arith.constant 0 : index
    %c0_4 = arith.constant 0 : index
    %c0_5 = arith.constant 0 : index
    %2 = vector.load %arg1[%c0_3, %c0_4, %c0_5] : memref<1x1024x16xf32, #tpu.memory_space<vmem>>, vector<1x128x16xf32>
    %3 = vector.shape_cast %2 : vector<1x128x16xf32> to vector<128x16xf32>
    %4 = arith.truncf %3 : vector<128x16xf32> to vector<128x16xbf16>
    %c0_6 = arith.constant 0 : index
    %c0_7 = arith.constant 0 : index
    %5 = vector.load %arg2[%c0_6, %c0_7] : memref<16x128xbf16, #tpu.memory_space<vmem>>, vector<16x128xbf16>
    %cst_8 = arith.constant dense<0.000000e+00> : vector<128x128xf32>
    %6 = tpu.matmul %4, %5, %cst_8 {dimension_numbers = #tpu.dot_dimension_numbers<[1], [0], [0], [1], [0, 0, 1, 1], [], []>} : vector<128x16xbf16>, vector<16x128xbf16>, vector<128x128xf32> -> vector<128x128xf32>
    %c0_9 = arith.constant 0 : index
    %c0_10 = arith.constant 0 : index
    %7 = vector.load %arg3[%c0_9, %c0_10] : memref<1x128xf32, #tpu.memory_space<vmem>>, vector<1x128xf32>
    %8 = vector.broadcast %7 : vector<1x128xf32> to vector<128x128xf32>
    %9 = arith.mulf %6, %8 : vector<128x128xf32>
    %c0_11 = arith.constant 0 : index
    %c0_12 = arith.constant 0 : index
    %10 = vector.load %arg4[%c0_11, %c0_12] : memref<1x128xf32, #tpu.memory_space<vmem>>, vector<1x128xf32>
    %11 = vector.broadcast %10 : vector<1x128xf32> to vector<128x128xf32>
    %12 = arith.addf %9, %11 : vector<128x128xf32>
    %cst_13 = arith.constant 0.000000e+00 : f32
    %13 = vector.broadcast %cst_13 : f32 to vector<128x128xf32>
    %14 = arith.maximumf %12, %13 : vector<128x128xf32>
    %15 = vector.extract_strided_slice %14 {offsets = [0, 0], sizes = [8, 128], strides = [1, 1]} : vector<128x128xf32> to vector<8x128xf32>
    %16 = vector.extract_strided_slice %14 {offsets = [8, 0], sizes = [8, 128], strides = [1, 1]} : vector<128x128xf32> to vector<8x128xf32>
    %17 = arith.maximumf %15, %16 : vector<8x128xf32>
    %18 = vector.extract_strided_slice %14 {offsets = [16, 0], sizes = [8, 128], strides = [1, 1]} : vector<128x128xf32> to vector<8x128xf32>
    %19 = arith.maximumf %17, %18 : vector<8x128xf32>
    %20 = vector.extract_strided_slice %14 {offsets = [24, 0], sizes = [8, 128], strides = [1, 1]} : vector<128x128xf32> to vector<8x128xf32>
    %21 = arith.maximumf %19, %20 : vector<8x128xf32>
    %22 = vector.extract_strided_slice %14 {offsets = [32, 0], sizes = [8, 128], strides = [1, 1]} : vector<128x128xf32> to vector<8x128xf32>
    %23 = arith.maximumf %21, %22 : vector<8x128xf32>
    %24 = vector.extract_strided_slice %14 {offsets = [40, 0], sizes = [8, 128], strides = [1, 1]} : vector<128x128xf32> to vector<8x128xf32>
    %25 = arith.maximumf %23, %24 : vector<8x128xf32>
    %26 = vector.extract_strided_slice %14 {offsets = [48, 0], sizes = [8, 128], strides = [1, 1]} : vector<128x128xf32> to vector<8x128xf32>
    %27 = arith.maximumf %25, %26 : vector<8x128xf32>
    %28 = vector.extract_strided_slice %14 {offsets = [56, 0], sizes = [8, 128], strides = [1, 1]} : vector<128x128xf32> to vector<8x128xf32>
    %29 = arith.maximumf %27, %28 : vector<8x128xf32>
    %30 = vector.extract_strided_slice %14 {offsets = [64, 0], sizes = [8, 128], strides = [1, 1]} : vector<128x128xf32> to vector<8x128xf32>
    %31 = arith.maximumf %29, %30 : vector<8x128xf32>
    %32 = vector.extract_strided_slice %14 {offsets = [72, 0], sizes = [8, 128], strides = [1, 1]} : vector<128x128xf32> to vector<8x128xf32>
    %33 = arith.maximumf %31, %32 : vector<8x128xf32>
    %34 = vector.extract_strided_slice %14 {offsets = [80, 0], sizes = [8, 128], strides = [1, 1]} : vector<128x128xf32> to vector<8x128xf32>
    %35 = arith.maximumf %33, %34 : vector<8x128xf32>
    %36 = vector.extract_strided_slice %14 {offsets = [88, 0], sizes = [8, 128], strides = [1, 1]} : vector<128x128xf32> to vector<8x128xf32>
    %37 = arith.maximumf %35, %36 : vector<8x128xf32>
    %38 = vector.extract_strided_slice %14 {offsets = [96, 0], sizes = [8, 128], strides = [1, 1]} : vector<128x128xf32> to vector<8x128xf32>
    %39 = arith.maximumf %37, %38 : vector<8x128xf32>
    %40 = vector.extract_strided_slice %14 {offsets = [104, 0], sizes = [8, 128], strides = [1, 1]} : vector<128x128xf32> to vector<8x128xf32>
    %41 = arith.maximumf %39, %40 : vector<8x128xf32>
    %42 = vector.extract_strided_slice %14 {offsets = [112, 0], sizes = [8, 128], strides = [1, 1]} : vector<128x128xf32> to vector<8x128xf32>
    %43 = arith.maximumf %41, %42 : vector<8x128xf32>
    %44 = vector.extract_strided_slice %14 {offsets = [120, 0], sizes = [8, 128], strides = [1, 1]} : vector<128x128xf32> to vector<8x128xf32>
    %45 = arith.maximumf %43, %44 : vector<8x128xf32>
    %46 = vector.shape_cast %45 : vector<8x128xf32> to vector<1x8x128xf32>
    %c0_14 = arith.constant 0 : index
    %c1 = arith.constant 1 : index
    %c1_15 = arith.constant 1 : index
    %c0_16 = arith.constant 0 : index
    %47 = vector.load %arg5[%c0_14, %c1, %c1_15, %c0_16] : memref<1x10x10x128xf32, #tpu.memory_space<vmem>>, vector<1x1x8x128xf32>
    %48 = vector.shape_cast %47 : vector<1x1x8x128xf32> to vector<1x8x128xf32>
    %49 = vector.shape_cast %46 : vector<1x8x128xf32> to vector<1x1x8x128xf32>
    tpu.vector_store %arg5[%c0_14, %c1, %c1_15, %c0_16], %49 {strides = array<i32>} : memref<1x10x10x128xf32, #tpu.memory_space<vmem>>, vector<1x1x8x128xf32>,
    %c0_17 = arith.constant 0 : index
    %c128 = arith.constant 128 : index
    %c0_18 = arith.constant 0 : index
    %50 = vector.load %arg1[%c0_17, %c128, %c0_18] : memref<1x1024x16xf32, #tpu.memory_space<vmem>>, vector<1x128x16xf32>
    %51 = vector.shape_cast %50 : vector<1x128x16xf32> to vector<128x16xf32>
    %52 = arith.truncf %51 : vector<128x16xf32> to vector<128x16xbf16>
    %c0_19 = arith.constant 0 : index
    %c0_20 = arith.constant 0 : index
    %53 = vector.load %arg2[%c0_19, %c0_20] : memref<16x128xbf16, #tpu.memory_space<vmem>>, vector<16x128xbf16>
    %cst_21 = arith.constant dense<0.000000e+00> : vector<128x128xf32>
    %54 = tpu.matmul %52, %53, %cst_21 {dimension_numbers = #tpu.dot_dimension_numbers<[1], [0], [0], [1], [0, 0, 1, 1], [], []>} : vector<128x16xbf16>, vector<16x128xbf16>, vector<128x128xf32> -> vector<128x128xf32>
    %c0_22 = arith.constant 0 : index
    %c0_23 = arith.constant 0 : index
    %55 = vector.load %arg3[%c0_22, %c0_23] : memref<1x128xf32, #tpu.memory_space<vmem>>, vector<1x128xf32>
    %56 = vector.broadcast %55 : vector<1x128xf32> to vector<128x128xf32>
    %57 = arith.mulf %54, %56 : vector<128x128xf32>
    %c0_24 = arith.constant 0 : index
    %c0_25 = arith.constant 0 : index
    %58 = vector.load %arg4[%c0_24, %c0_25] : memref<1x128xf32, #tpu.memory_space<vmem>>, vector<1x128xf32>
    %59 = vector.broadcast %58 : vector<1x128xf32> to vector<128x128xf32>
    %60 = arith.addf %57, %59 : vector<128x128xf32>
    %cst_26 = arith.constant 0.000000e+00 : f32
    %61 = vector.broadcast %cst_26 : f32 to vector<128x128xf32>
    %62 = arith.maximumf %60, %61 : vector<128x128xf32>
    %63 = vector.extract_strided_slice %62 {offsets = [0, 0], sizes = [8, 128], strides = [1, 1]} : vector<128x128xf32> to vector<8x128xf32>
    %64 = vector.extract_strided_slice %62 {offsets = [8, 0], sizes = [8, 128], strides = [1, 1]} : vector<128x128xf32> to vector<8x128xf32>
    %65 = arith.maximumf %63, %64 : vector<8x128xf32>
    %66 = vector.extract_strided_slice %62 {offsets = [16, 0], sizes = [8, 128], strides = [1, 1]} : vector<128x128xf32> to vector<8x128xf32>
    %67 = arith.maximumf %65, %66 : vector<8x128xf32>
    %68 = vector.extract_strided_slice %62 {offsets = [24, 0], sizes = [8, 128], strides = [1, 1]} : vector<128x128xf32> to vector<8x128xf32>
    %69 = arith.maximumf %67, %68 : vector<8x128xf32>
    %70 = vector.extract_strided_slice %62 {offsets = [32, 0], sizes = [8, 128], strides = [1, 1]} : vector<128x128xf32> to vector<8x128xf32>
    %71 = arith.maximumf %69, %70 : vector<8x128xf32>
    %72 = vector.extract_strided_slice %62 {offsets = [40, 0], sizes = [8, 128], strides = [1, 1]} : vector<128x128xf32> to vector<8x128xf32>
    %73 = arith.maximumf %71, %72 : vector<8x128xf32>
    %74 = vector.extract_strided_slice %62 {offsets = [48, 0], sizes = [8, 128], strides = [1, 1]} : vector<128x128xf32> to vector<8x128xf32>
    %75 = arith.maximumf %73, %74 : vector<8x128xf32>
    %76 = vector.extract_strided_slice %62 {offsets = [56, 0], sizes = [8, 128], strides = [1, 1]} : vector<128x128xf32> to vector<8x128xf32>
    %77 = arith.maximumf %75, %76 : vector<8x128xf32>
    %78 = vector.extract_strided_slice %62 {offsets = [64, 0], sizes = [8, 128], strides = [1, 1]} : vector<128x128xf32> to vector<8x128xf32>
    %79 = arith.maximumf %77, %78 : vector<8x128xf32>
    %80 = vector.extract_strided_slice %62 {offsets = [72, 0], sizes = [8, 128], strides = [1, 1]} : vector<128x128xf32> to vector<8x128xf32>
    %81 = arith.maximumf %79, %80 : vector<8x128xf32>
    %82 = vector.extract_strided_slice %62 {offsets = [80, 0], sizes = [8, 128], strides = [1, 1]} : vector<128x128xf32> to vector<8x128xf32>
    %83 = arith.maximumf %81, %82 : vector<8x128xf32>
    %84 = vector.extract_strided_slice %62 {offsets = [88, 0], sizes = [8, 128], strides = [1, 1]} : vector<128x128xf32> to vector<8x128xf32>
    %85 = arith.maximumf %83, %84 : vector<8x128xf32>
    %86 = vector.extract_strided_slice %62 {offsets = [96, 0], sizes = [8, 128], strides = [1, 1]} : vector<128x128xf32> to vector<8x128xf32>
    %87 = arith.maximumf %85, %86 : vector<8x128xf32>
    %88 = vector.extract_strided_slice %62 {offsets = [104, 0], sizes = [8, 128], strides = [1, 1]} : vector<128x128xf32> to vector<8x128xf32>
    %89 = arith.maximumf %87, %88 : vector<8x128xf32>
    %90 = vector.extract_strided_slice %62 {offsets = [112, 0], sizes = [8, 128], strides = [1, 1]} : vector<128x128xf32> to vector<8x128xf32>
    %91 = arith.maximumf %89, %90 : vector<8x128xf32>
    %92 = vector.extract_strided_slice %62 {offsets = [120, 0], sizes = [8, 128], strides = [1, 1]} : vector<128x128xf32> to vector<8x128xf32>
    %93 = arith.maximumf %91, %92 : vector<8x128xf32>
    %94 = vector.shape_cast %93 : vector<8x128xf32> to vector<1x8x128xf32>
    %c0_27 = arith.constant 0 : index
    %c2 = arith.constant 2 : index
    %c1_28 = arith.constant 1 : index
    %c0_29 = arith.constant 0 : index
    %95 = vector.load %arg5[%c0_27, %c2, %c1_28, %c0_29] : memref<1x10x10x128xf32, #tpu.memory_space<vmem>>, vector<1x1x8x128xf32>
    %96 = vector.shape_cast %95 : vector<1x1x8x128xf32> to vector<1x8x128xf32>
    %97 = vector.shape_cast %94 : vector<1x8x128xf32> to vector<1x1x8x128xf32>
    tpu.vector_store %arg5[%c0_27, %c2, %c1_28, %c0_29], %97 {strides = array<i32>} : memref<1x10x10x128xf32, #tpu.memory_space<vmem>>, vector<1x1x8x128xf32>,
    %c0_30 = arith.constant 0 : index
    %c256 = arith.constant 256 : index
    %c0_31 = arith.constant 0 : index
    %98 = vector.load %arg1[%c0_30, %c256, %c0_31] : memref<1x1024x16xf32, #tpu.memory_space<vmem>>, vector<1x128x16xf32>
    %99 = vector.shape_cast %98 : vector<1x128x16xf32> to vector<128x16xf32>
    %100 = arith.truncf %99 : vector<128x16xf32> to vector<128x16xbf16>
    %c0_32 = arith.constant 0 : index
    %c0_33 = arith.constant 0 : index
    %101 = vector.load %arg2[%c0_32, %c0_33] : memref<16x128xbf16, #tpu.memory_space<vmem>>, vector<16x128xbf16>
    %cst_34 = arith.constant dense<0.000000e+00> : vector<128x128xf32>
    %102 = tpu.matmul %100, %101, %cst_34 {dimension_numbers = #tpu.dot_dimension_numbers<[1], [0], [0], [1], [0, 0, 1, 1], [], []>} : vector<128x16xbf16>, vector<16x128xbf16>, vector<128x128xf32> -> vector<128x128xf32>
    %c0_35 = arith.constant 0 : index
    %c0_36 = arith.constant 0 : index
    %103 = vector.load %arg3[%c0_35, %c0_36] : memref<1x128xf32, #tpu.memory_space<vmem>>, vector<1x128xf32>
    %104 = vector.broadcast %103 : vector<1x128xf32> to vector<128x128xf32>
    %105 = arith.mulf %102, %104 : vector<128x128xf32>
    %c0_37 = arith.constant 0 : index
    %c0_38 = arith.constant 0 : index
    %106 = vector.load %arg4[%c0_37, %c0_38] : memref<1x128xf32, #tpu.memory_space<vmem>>, vector<1x128xf32>
    %107 = vector.broadcast %106 : vector<1x128xf32> to vector<128x128xf32>
    %108 = arith.addf %105, %107 : vector<128x128xf32>
    %cst_39 = arith.constant 0.000000e+00 : f32
    %109 = vector.broadcast %cst_39 : f32 to vector<128x128xf32>
    %110 = arith.maximumf %108, %109 : vector<128x128xf32>
    %111 = vector.extract_strided_slice %110 {offsets = [0, 0], sizes = [8, 128], strides = [1, 1]} : vector<128x128xf32> to vector<8x128xf32>
    %112 = vector.extract_strided_slice %110 {offsets = [8, 0], sizes = [8, 128], strides = [1, 1]} : vector<128x128xf32> to vector<8x128xf32>
    %113 = arith.maximumf %111, %112 : vector<8x128xf32>
    %114 = vector.extract_strided_slice %110 {offsets = [16, 0], sizes = [8, 128], strides = [1, 1]} : vector<128x128xf32> to vector<8x128xf32>
    %115 = arith.maximumf %113, %114 : vector<8x128xf32>
    %116 = vector.extract_strided_slice %110 {offsets = [24, 0], sizes = [8, 128], strides = [1, 1]} : vector<128x128xf32> to vector<8x128xf32>
    %117 = arith.maximumf %115, %116 : vector<8x128xf32>
    %118 = vector.extract_strided_slice %110 {offsets = [32, 0], sizes = [8, 128], strides = [1, 1]} : vector<128x128xf32> to vector<8x128xf32>
    %119 = arith.maximumf %117, %118 : vector<8x128xf32>
    %120 = vector.extract_strided_slice %110 {offsets = [40, 0], sizes = [8, 128], strides = [1, 1]} : vector<128x128xf32> to vector<8x128xf32>
    %121 = arith.maximumf %119, %120 : vector<8x128xf32>
    %122 = vector.extract_strided_slice %110 {offsets = [48, 0], sizes = [8, 128], strides = [1, 1]} : vector<128x128xf32> to vector<8x128xf32>
    %123 = arith.maximumf %121, %122 : vector<8x128xf32>
    %124 = vector.extract_strided_slice %110 {offsets = [56, 0], sizes = [8, 128], strides = [1, 1]} : vector<128x128xf32> to vector<8x128xf32>
    %125 = arith.maximumf %123, %124 : vector<8x128xf32>
    %126 = vector.extract_strided_slice %110 {offsets = [64, 0], sizes = [8, 128], strides = [1, 1]} : vector<128x128xf32> to vector<8x128xf32>
    %127 = arith.maximumf %125, %126 : vector<8x128xf32>
    %128 = vector.extract_strided_slice %110 {offsets = [72, 0], sizes = [8, 128], strides = [1, 1]} : vector<128x128xf32> to vector<8x128xf32>
    %129 = arith.maximumf %127, %128 : vector<8x128xf32>
    %130 = vector.extract_strided_slice %110 {offsets = [80, 0], sizes = [8, 128], strides = [1, 1]} : vector<128x128xf32> to vector<8x128xf32>
    %131 = arith.maximumf %129, %130 : vector<8x128xf32>
    %132 = vector.extract_strided_slice %110 {offsets = [88, 0], sizes = [8, 128], strides = [1, 1]} : vector<128x128xf32> to vector<8x128xf32>
    %133 = arith.maximumf %131, %132 : vector<8x128xf32>
    %134 = vector.extract_strided_slice %110 {offsets = [96, 0], sizes = [8, 128], strides = [1, 1]} : vector<128x128xf32> to vector<8x128xf32>
    %135 = arith.maximumf %133, %134 : vector<8x128xf32>
    %136 = vector.extract_strided_slice %110 {offsets = [104, 0], sizes = [8, 128], strides = [1, 1]} : vector<128x128xf32> to vector<8x128xf32>
    %137 = arith.maximumf %135, %136 : vector<8x128xf32>
    %138 = vector.extract_strided_slice %110 {offsets = [112, 0], sizes = [8, 128], strides = [1, 1]} : vector<128x128xf32> to vector<8x128xf32>
    %139 = arith.maximumf %137, %138 : vector<8x128xf32>
    %140 = vector.extract_strided_slice %110 {offsets = [120, 0], sizes = [8, 128], strides = [1, 1]} : vector<128x128xf32> to vector<8x128xf32>
    %141 = arith.maximumf %139, %140 : vector<8x128xf32>
    %142 = vector.shape_cast %141 : vector<8x128xf32> to vector<1x8x128xf32>
    %c0_40 = arith.constant 0 : index
    %c3 = arith.constant 3 : index
    %c1_41 = arith.constant 1 : index
    %c0_42 = arith.constant 0 : index
    %143 = vector.load %arg5[%c0_40, %c3, %c1_41, %c0_42] : memref<1x10x10x128xf32, #tpu.memory_space<vmem>>, vector<1x1x8x128xf32>
    %144 = vector.shape_cast %143 : vector<1x1x8x128xf32> to vector<1x8x128xf32>
    %145 = vector.shape_cast %142 : vector<1x8x128xf32> to vector<1x1x8x128xf32>
    tpu.vector_store %arg5[%c0_40, %c3, %c1_41, %c0_42], %145 {strides = array<i32>} : memref<1x10x10x128xf32, #tpu.memory_space<vmem>>, vector<1x1x8x128xf32>,
    %c0_43 = arith.constant 0 : index
    %c384 = arith.constant 384 : index
    %c0_44 = arith.constant 0 : index
    %146 = vector.load %arg1[%c0_43, %c384, %c0_44] : memref<1x1024x16xf32, #tpu.memory_space<vmem>>, vector<1x128x16xf32>
    %147 = vector.shape_cast %146 : vector<1x128x16xf32> to vector<128x16xf32>
    %148 = arith.truncf %147 : vector<128x16xf32> to vector<128x16xbf16>
    %c0_45 = arith.constant 0 : index
    %c0_46 = arith.constant 0 : index
    %149 = vector.load %arg2[%c0_45, %c0_46] : memref<16x128xbf16, #tpu.memory_space<vmem>>, vector<16x128xbf16>
    %cst_47 = arith.constant dense<0.000000e+00> : vector<128x128xf32>
    %150 = tpu.matmul %148, %149, %cst_47 {dimension_numbers = #tpu.dot_dimension_numbers<[1], [0], [0], [1], [0, 0, 1, 1], [], []>} : vector<128x16xbf16>, vector<16x128xbf16>, vector<128x128xf32> -> vector<128x128xf32>
    %c0_48 = arith.constant 0 : index
    %c0_49 = arith.constant 0 : index
    %151 = vector.load %arg3[%c0_48, %c0_49] : memref<1x128xf32, #tpu.memory_space<vmem>>, vector<1x128xf32>
    %152 = vector.broadcast %151 : vector<1x128xf32> to vector<128x128xf32>
    %153 = arith.mulf %150, %152 : vector<128x128xf32>
    %c0_50 = arith.constant 0 : index
    %c0_51 = arith.constant 0 : index
    %154 = vector.load %arg4[%c0_50, %c0_51] : memref<1x128xf32, #tpu.memory_space<vmem>>, vector<1x128xf32>
    %155 = vector.broadcast %154 : vector<1x128xf32> to vector<128x128xf32>
    %156 = arith.addf %153, %155 : vector<128x128xf32>
    %cst_52 = arith.constant 0.000000e+00 : f32
    %157 = vector.broadcast %cst_52 : f32 to vector<128x128xf32>
    %158 = arith.maximumf %156, %157 : vector<128x128xf32>
    %159 = vector.extract_strided_slice %158 {offsets = [0, 0], sizes = [8, 128], strides = [1, 1]} : vector<128x128xf32> to vector<8x128xf32>
    %160 = vector.extract_strided_slice %158 {offsets = [8, 0], sizes = [8, 128], strides = [1, 1]} : vector<128x128xf32> to vector<8x128xf32>
    %161 = arith.maximumf %159, %160 : vector<8x128xf32>
    %162 = vector.extract_strided_slice %158 {offsets = [16, 0], sizes = [8, 128], strides = [1, 1]} : vector<128x128xf32> to vector<8x128xf32>
    %163 = arith.maximumf %161, %162 : vector<8x128xf32>
    %164 = vector.extract_strided_slice %158 {offsets = [24, 0], sizes = [8, 128], strides = [1, 1]} : vector<128x128xf32> to vector<8x128xf32>
    %165 = arith.maximumf %163, %164 : vector<8x128xf32>
    %166 = vector.extract_strided_slice %158 {offsets = [32, 0], sizes = [8, 128], strides = [1, 1]} : vector<128x128xf32> to vector<8x128xf32>
    %167 = arith.maximumf %165, %166 : vector<8x128xf32>
    %168 = vector.extract_strided_slice %158 {offsets = [40, 0], sizes = [8, 128], strides = [1, 1]} : vector<128x128xf32> to vector<8x128xf32>
    %169 = arith.maximumf %167, %168 : vector<8x128xf32>
    %170 = vector.extract_strided_slice %158 {offsets = [48, 0], sizes = [8, 128], strides = [1, 1]} : vector<128x128xf32> to vector<8x128xf32>
    %171 = arith.maximumf %169, %170 : vector<8x128xf32>
    %172 = vector.extract_strided_slice %158 {offsets = [56, 0], sizes = [8, 128], strides = [1, 1]} : vector<128x128xf32> to vector<8x128xf32>
    %173 = arith.maximumf %171, %172 : vector<8x128xf32>
    %174 = vector.extract_strided_slice %158 {offsets = [64, 0], sizes = [8, 128], strides = [1, 1]} : vector<128x128xf32> to vector<8x128xf32>
    %175 = arith.maximumf %173, %174 : vector<8x128xf32>
    %176 = vector.extract_strided_slice %158 {offsets = [72, 0], sizes = [8, 128], strides = [1, 1]} : vector<128x128xf32> to vector<8x128xf32>
    %177 = arith.maximumf %175, %176 : vector<8x128xf32>
    %178 = vector.extract_strided_slice %158 {offsets = [80, 0], sizes = [8, 128], strides = [1, 1]} : vector<128x128xf32> to vector<8x128xf32>
    %179 = arith.maximumf %177, %178 : vector<8x128xf32>
    %180 = vector.extract_strided_slice %158 {offsets = [88, 0], sizes = [8, 128], strides = [1, 1]} : vector<128x128xf32> to vector<8x128xf32>
    %181 = arith.maximumf %179, %180 : vector<8x128xf32>
    %182 = vector.extract_strided_slice %158 {offsets = [96, 0], sizes = [8, 128], strides = [1, 1]} : vector<128x128xf32> to vector<8x128xf32>
    %183 = arith.maximumf %181, %182 : vector<8x128xf32>
    %184 = vector.extract_strided_slice %158 {offsets = [104, 0], sizes = [8, 128], strides = [1, 1]} : vector<128x128xf32> to vector<8x128xf32>
    %185 = arith.maximumf %183, %184 : vector<8x128xf32>
    %186 = vector.extract_strided_slice %158 {offsets = [112, 0], sizes = [8, 128], strides = [1, 1]} : vector<128x128xf32> to vector<8x128xf32>
    %187 = arith.maximumf %185, %186 : vector<8x128xf32>
    %188 = vector.extract_strided_slice %158 {offsets = [120, 0], sizes = [8, 128], strides = [1, 1]} : vector<128x128xf32> to vector<8x128xf32>
    %189 = arith.maximumf %187, %188 : vector<8x128xf32>
    %190 = vector.shape_cast %189 : vector<8x128xf32> to vector<1x8x128xf32>
    %c0_53 = arith.constant 0 : index
    %c4 = arith.constant 4 : index
    %c1_54 = arith.constant 1 : index
    %c0_55 = arith.constant 0 : index
    %191 = vector.load %arg5[%c0_53, %c4, %c1_54, %c0_55] : memref<1x10x10x128xf32, #tpu.memory_space<vmem>>, vector<1x1x8x128xf32>
    %192 = vector.shape_cast %191 : vector<1x1x8x128xf32> to vector<1x8x128xf32>
    %193 = vector.shape_cast %190 : vector<1x8x128xf32> to vector<1x1x8x128xf32>
    tpu.vector_store %arg5[%c0_53, %c4, %c1_54, %c0_55], %193 {strides = array<i32>} : memref<1x10x10x128xf32, #tpu.memory_space<vmem>>, vector<1x1x8x128xf32>,
    %c0_56 = arith.constant 0 : index
    %c512 = arith.constant 512 : index
    %c0_57 = arith.constant 0 : index
    %194 = vector.load %arg1[%c0_56, %c512, %c0_57] : memref<1x1024x16xf32, #tpu.memory_space<vmem>>, vector<1x128x16xf32>
    %195 = vector.shape_cast %194 : vector<1x128x16xf32> to vector<128x16xf32>
    %196 = arith.truncf %195 : vector<128x16xf32> to vector<128x16xbf16>
    %c0_58 = arith.constant 0 : index
    %c0_59 = arith.constant 0 : index
    %197 = vector.load %arg2[%c0_58, %c0_59] : memref<16x128xbf16, #tpu.memory_space<vmem>>, vector<16x128xbf16>
    %cst_60 = arith.constant dense<0.000000e+00> : vector<128x128xf32>
    %198 = tpu.matmul %196, %197, %cst_60 {dimension_numbers = #tpu.dot_dimension_numbers<[1], [0], [0], [1], [0, 0, 1, 1], [], []>} : vector<128x16xbf16>, vector<16x128xbf16>, vector<128x128xf32> -> vector<128x128xf32>
    %c0_61 = arith.constant 0 : index
    %c0_62 = arith.constant 0 : index
    %199 = vector.load %arg3[%c0_61, %c0_62] : memref<1x128xf32, #tpu.memory_space<vmem>>, vector<1x128xf32>
    %200 = vector.broadcast %199 : vector<1x128xf32> to vector<128x128xf32>
    %201 = arith.mulf %198, %200 : vector<128x128xf32>
    %c0_63 = arith.constant 0 : index
    %c0_64 = arith.constant 0 : index
    %202 = vector.load %arg4[%c0_63, %c0_64] : memref<1x128xf32, #tpu.memory_space<vmem>>, vector<1x128xf32>
    %203 = vector.broadcast %202 : vector<1x128xf32> to vector<128x128xf32>
    %204 = arith.addf %201, %203 : vector<128x128xf32>
    %cst_65 = arith.constant 0.000000e+00 : f32
    %205 = vector.broadcast %cst_65 : f32 to vector<128x128xf32>
    %206 = arith.maximumf %204, %205 : vector<128x128xf32>
    %207 = vector.extract_strided_slice %206 {offsets = [0, 0], sizes = [8, 128], strides = [1, 1]} : vector<128x128xf32> to vector<8x128xf32>
    %208 = vector.extract_strided_slice %206 {offsets = [8, 0], sizes = [8, 128], strides = [1, 1]} : vector<128x128xf32> to vector<8x128xf32>
    %209 = arith.maximumf %207, %208 : vector<8x128xf32>
    %210 = vector.extract_strided_slice %206 {offsets = [16, 0], sizes = [8, 128], strides = [1, 1]} : vector<128x128xf32> to vector<8x128xf32>
    %211 = arith.maximumf %209, %210 : vector<8x128xf32>
    %212 = vector.extract_strided_slice %206 {offsets = [24, 0], sizes = [8, 128], strides = [1, 1]} : vector<128x128xf32> to vector<8x128xf32>
    %213 = arith.maximumf %211, %212 : vector<8x128xf32>
    %214 = vector.extract_strided_slice %206 {offsets = [32, 0], sizes = [8, 128], strides = [1, 1]} : vector<128x128xf32> to vector<8x128xf32>
    %215 = arith.maximumf %213, %214 : vector<8x128xf32>
    %216 = vector.extract_strided_slice %206 {offsets = [40, 0], sizes = [8, 128], strides = [1, 1]} : vector<128x128xf32> to vector<8x128xf32>
    %217 = arith.maximumf %215, %216 : vector<8x128xf32>
    %218 = vector.extract_strided_slice %206 {offsets = [48, 0], sizes = [8, 128], strides = [1, 1]} : vector<128x128xf32> to vector<8x128xf32>
    %219 = arith.maximumf %217, %218 : vector<8x128xf32>
    %220 = vector.extract_strided_slice %206 {offsets = [56, 0], sizes = [8, 128], strides = [1, 1]} : vector<128x128xf32> to vector<8x128xf32>
    %221 = arith.maximumf %219, %220 : vector<8x128xf32>
    %222 = vector.extract_strided_slice %206 {offsets = [64, 0], sizes = [8, 128], strides = [1, 1]} : vector<128x128xf32> to vector<8x128xf32>
    %223 = arith.maximumf %221, %222 : vector<8x128xf32>
    %224 = vector.extract_strided_slice %206 {offsets = [72, 0], sizes = [8, 128], strides = [1, 1]} : vector<128x128xf32> to vector<8x128xf32>
    %225 = arith.maximumf %223, %224 : vector<8x128xf32>
    %226 = vector.extract_strided_slice %206 {offsets = [80, 0], sizes = [8, 128], strides = [1, 1]} : vector<128x128xf32> to vector<8x128xf32>
    %227 = arith.maximumf %225, %226 : vector<8x128xf32>
    %228 = vector.extract_strided_slice %206 {offsets = [88, 0], sizes = [8, 128], strides = [1, 1]} : vector<128x128xf32> to vector<8x128xf32>
    %229 = arith.maximumf %227, %228 : vector<8x128xf32>
    %230 = vector.extract_strided_slice %206 {offsets = [96, 0], sizes = [8, 128], strides = [1, 1]} : vector<128x128xf32> to vector<8x128xf32>
    %231 = arith.maximumf %229, %230 : vector<8x128xf32>
    %232 = vector.extract_strided_slice %206 {offsets = [104, 0], sizes = [8, 128], strides = [1, 1]} : vector<128x128xf32> to vector<8x128xf32>
    %233 = arith.maximumf %231, %232 : vector<8x128xf32>
    %234 = vector.extract_strided_slice %206 {offsets = [112, 0], sizes = [8, 128], strides = [1, 1]} : vector<128x128xf32> to vector<8x128xf32>
    %235 = arith.maximumf %233, %234 : vector<8x128xf32>
    %236 = vector.extract_strided_slice %206 {offsets = [120, 0], sizes = [8, 128], strides = [1, 1]} : vector<128x128xf32> to vector<8x128xf32>
    %237 = arith.maximumf %235, %236 : vector<8x128xf32>
    %238 = vector.shape_cast %237 : vector<8x128xf32> to vector<1x8x128xf32>
    %c0_66 = arith.constant 0 : index
    %c5 = arith.constant 5 : index
    %c1_67 = arith.constant 1 : index
    %c0_68 = arith.constant 0 : index
    %239 = vector.load %arg5[%c0_66, %c5, %c1_67, %c0_68] : memref<1x10x10x128xf32, #tpu.memory_space<vmem>>, vector<1x1x8x128xf32>
    %240 = vector.shape_cast %239 : vector<1x1x8x128xf32> to vector<1x8x128xf32>
    %241 = vector.shape_cast %238 : vector<1x8x128xf32> to vector<1x1x8x128xf32>
    tpu.vector_store %arg5[%c0_66, %c5, %c1_67, %c0_68], %241 {strides = array<i32>} : memref<1x10x10x128xf32, #tpu.memory_space<vmem>>, vector<1x1x8x128xf32>,
    %c0_69 = arith.constant 0 : index
    %c640 = arith.constant 640 : index
    %c0_70 = arith.constant 0 : index
    %242 = vector.load %arg1[%c0_69, %c640, %c0_70] : memref<1x1024x16xf32, #tpu.memory_space<vmem>>, vector<1x128x16xf32>
    %243 = vector.shape_cast %242 : vector<1x128x16xf32> to vector<128x16xf32>
    %244 = arith.truncf %243 : vector<128x16xf32> to vector<128x16xbf16>
    %c0_71 = arith.constant 0 : index
    %c0_72 = arith.constant 0 : index
    %245 = vector.load %arg2[%c0_71, %c0_72] : memref<16x128xbf16, #tpu.memory_space<vmem>>, vector<16x128xbf16>
    %cst_73 = arith.constant dense<0.000000e+00> : vector<128x128xf32>
    %246 = tpu.matmul %244, %245, %cst_73 {dimension_numbers = #tpu.dot_dimension_numbers<[1], [0], [0], [1], [0, 0, 1, 1], [], []>} : vector<128x16xbf16>, vector<16x128xbf16>, vector<128x128xf32> -> vector<128x128xf32>
    %c0_74 = arith.constant 0 : index
    %c0_75 = arith.constant 0 : index
    %247 = vector.load %arg3[%c0_74, %c0_75] : memref<1x128xf32, #tpu.memory_space<vmem>>, vector<1x128xf32>
    %248 = vector.broadcast %247 : vector<1x128xf32> to vector<128x128xf32>
    %249 = arith.mulf %246, %248 : vector<128x128xf32>
    %c0_76 = arith.constant 0 : index
    %c0_77 = arith.constant 0 : index
    %250 = vector.load %arg4[%c0_76, %c0_77] : memref<1x128xf32, #tpu.memory_space<vmem>>, vector<1x128xf32>
    %251 = vector.broadcast %250 : vector<1x128xf32> to vector<128x128xf32>
    %252 = arith.addf %249, %251 : vector<128x128xf32>
    %cst_78 = arith.constant 0.000000e+00 : f32
    %253 = vector.broadcast %cst_78 : f32 to vector<128x128xf32>
    %254 = arith.maximumf %252, %253 : vector<128x128xf32>
    %255 = vector.extract_strided_slice %254 {offsets = [0, 0], sizes = [8, 128], strides = [1, 1]} : vector<128x128xf32> to vector<8x128xf32>
    %256 = vector.extract_strided_slice %254 {offsets = [8, 0], sizes = [8, 128], strides = [1, 1]} : vector<128x128xf32> to vector<8x128xf32>
    %257 = arith.maximumf %255, %256 : vector<8x128xf32>
    %258 = vector.extract_strided_slice %254 {offsets = [16, 0], sizes = [8, 128], strides = [1, 1]} : vector<128x128xf32> to vector<8x128xf32>
    %259 = arith.maximumf %257, %258 : vector<8x128xf32>
    %260 = vector.extract_strided_slice %254 {offsets = [24, 0], sizes = [8, 128], strides = [1, 1]} : vector<128x128xf32> to vector<8x128xf32>
    %261 = arith.maximumf %259, %260 : vector<8x128xf32>
    %262 = vector.extract_strided_slice %254 {offsets = [32, 0], sizes = [8, 128], strides = [1, 1]} : vector<128x128xf32> to vector<8x128xf32>
    %263 = arith.maximumf %261, %262 : vector<8x128xf32>
    %264 = vector.extract_strided_slice %254 {offsets = [40, 0], sizes = [8, 128], strides = [1, 1]} : vector<128x128xf32> to vector<8x128xf32>
    %265 = arith.maximumf %263, %264 : vector<8x128xf32>
    %266 = vector.extract_strided_slice %254 {offsets = [48, 0], sizes = [8, 128], strides = [1, 1]} : vector<128x128xf32> to vector<8x128xf32>
    %267 = arith.maximumf %265, %266 : vector<8x128xf32>
    %268 = vector.extract_strided_slice %254 {offsets = [56, 0], sizes = [8, 128], strides = [1, 1]} : vector<128x128xf32> to vector<8x128xf32>
    %269 = arith.maximumf %267, %268 : vector<8x128xf32>
    %270 = vector.extract_strided_slice %254 {offsets = [64, 0], sizes = [8, 128], strides = [1, 1]} : vector<128x128xf32> to vector<8x128xf32>
    %271 = arith.maximumf %269, %270 : vector<8x128xf32>
    %272 = vector.extract_strided_slice %254 {offsets = [72, 0], sizes = [8, 128], strides = [1, 1]} : vector<128x128xf32> to vector<8x128xf32>
    %273 = arith.maximumf %271, %272 : vector<8x128xf32>
    %274 = vector.extract_strided_slice %254 {offsets = [80, 0], sizes = [8, 128], strides = [1, 1]} : vector<128x128xf32> to vector<8x128xf32>
    %275 = arith.maximumf %273, %274 : vector<8x128xf32>
    %276 = vector.extract_strided_slice %254 {offsets = [88, 0], sizes = [8, 128], strides = [1, 1]} : vector<128x128xf32> to vector<8x128xf32>
    %277 = arith.maximumf %275, %276 : vector<8x128xf32>
    %278 = vector.extract_strided_slice %254 {offsets = [96, 0], sizes = [8, 128], strides = [1, 1]} : vector<128x128xf32> to vector<8x128xf32>
    %279 = arith.maximumf %277, %278 : vector<8x128xf32>
    %280 = vector.extract_strided_slice %254 {offsets = [104, 0], sizes = [8, 128], strides = [1, 1]} : vector<128x128xf32> to vector<8x128xf32>
    %281 = arith.maximumf %279, %280 : vector<8x128xf32>
    %282 = vector.extract_strided_slice %254 {offsets = [112, 0], sizes = [8, 128], strides = [1, 1]} : vector<128x128xf32> to vector<8x128xf32>
    %283 = arith.maximumf %281, %282 : vector<8x128xf32>
    %284 = vector.extract_strided_slice %254 {offsets = [120, 0], sizes = [8, 128], strides = [1, 1]} : vector<128x128xf32> to vector<8x128xf32>
    %285 = arith.maximumf %283, %284 : vector<8x128xf32>
    %286 = vector.shape_cast %285 : vector<8x128xf32> to vector<1x8x128xf32>
    %c0_79 = arith.constant 0 : index
    %c6 = arith.constant 6 : index
    %c1_80 = arith.constant 1 : index
    %c0_81 = arith.constant 0 : index
    %287 = vector.load %arg5[%c0_79, %c6, %c1_80, %c0_81] : memref<1x10x10x128xf32, #tpu.memory_space<vmem>>, vector<1x1x8x128xf32>
    %288 = vector.shape_cast %287 : vector<1x1x8x128xf32> to vector<1x8x128xf32>
    %289 = vector.shape_cast %286 : vector<1x8x128xf32> to vector<1x1x8x128xf32>
    tpu.vector_store %arg5[%c0_79, %c6, %c1_80, %c0_81], %289 {strides = array<i32>} : memref<1x10x10x128xf32, #tpu.memory_space<vmem>>, vector<1x1x8x128xf32>,
    %c0_82 = arith.constant 0 : index
    %c768 = arith.constant 768 : index
    %c0_83 = arith.constant 0 : index
    %290 = vector.load %arg1[%c0_82, %c768, %c0_83] : memref<1x1024x16xf32, #tpu.memory_space<vmem>>, vector<1x128x16xf32>
    %291 = vector.shape_cast %290 : vector<1x128x16xf32> to vector<128x16xf32>
    %292 = arith.truncf %291 : vector<128x16xf32> to vector<128x16xbf16>
    %c0_84 = arith.constant 0 : index
    %c0_85 = arith.constant 0 : index
    %293 = vector.load %arg2[%c0_84, %c0_85] : memref<16x128xbf16, #tpu.memory_space<vmem>>, vector<16x128xbf16>
    %cst_86 = arith.constant dense<0.000000e+00> : vector<128x128xf32>
    %294 = tpu.matmul %292, %293, %cst_86 {dimension_numbers = #tpu.dot_dimension_numbers<[1], [0], [0], [1], [0, 0, 1, 1], [], []>} : vector<128x16xbf16>, vector<16x128xbf16>, vector<128x128xf32> -> vector<128x128xf32>
    %c0_87 = arith.constant 0 : index
    %c0_88 = arith.constant 0 : index
    %295 = vector.load %arg3[%c0_87, %c0_88] : memref<1x128xf32, #tpu.memory_space<vmem>>, vector<1x128xf32>
    %296 = vector.broadcast %295 : vector<1x128xf32> to vector<128x128xf32>
    %297 = arith.mulf %294, %296 : vector<128x128xf32>
    %c0_89 = arith.constant 0 : index
    %c0_90 = arith.constant 0 : index
    %298 = vector.load %arg4[%c0_89, %c0_90] : memref<1x128xf32, #tpu.memory_space<vmem>>, vector<1x128xf32>
    %299 = vector.broadcast %298 : vector<1x128xf32> to vector<128x128xf32>
    %300 = arith.addf %297, %299 : vector<128x128xf32>
    %cst_91 = arith.constant 0.000000e+00 : f32
    %301 = vector.broadcast %cst_91 : f32 to vector<128x128xf32>
    %302 = arith.maximumf %300, %301 : vector<128x128xf32>
    %303 = vector.extract_strided_slice %302 {offsets = [0, 0], sizes = [8, 128], strides = [1, 1]} : vector<128x128xf32> to vector<8x128xf32>
    %304 = vector.extract_strided_slice %302 {offsets = [8, 0], sizes = [8, 128], strides = [1, 1]} : vector<128x128xf32> to vector<8x128xf32>
    %305 = arith.maximumf %303, %304 : vector<8x128xf32>
    %306 = vector.extract_strided_slice %302 {offsets = [16, 0], sizes = [8, 128], strides = [1, 1]} : vector<128x128xf32> to vector<8x128xf32>
    %307 = arith.maximumf %305, %306 : vector<8x128xf32>
    %308 = vector.extract_strided_slice %302 {offsets = [24, 0], sizes = [8, 128], strides = [1, 1]} : vector<128x128xf32> to vector<8x128xf32>
    %309 = arith.maximumf %307, %308 : vector<8x128xf32>
    %310 = vector.extract_strided_slice %302 {offsets = [32, 0], sizes = [8, 128], strides = [1, 1]} : vector<128x128xf32> to vector<8x128xf32>
    %311 = arith.maximumf %309, %310 : vector<8x128xf32>
    %312 = vector.extract_strided_slice %302 {offsets = [40, 0], sizes = [8, 128], strides = [1, 1]} : vector<128x128xf32> to vector<8x128xf32>
    %313 = arith.maximumf %311, %312 : vector<8x128xf32>
    %314 = vector.extract_strided_slice %302 {offsets = [48, 0], sizes = [8, 128], strides = [1, 1]} : vector<128x128xf32> to vector<8x128xf32>
    %315 = arith.maximumf %313, %314 : vector<8x128xf32>
    %316 = vector.extract_strided_slice %302 {offsets = [56, 0], sizes = [8, 128], strides = [1, 1]} : vector<128x128xf32> to vector<8x128xf32>
    %317 = arith.maximumf %315, %316 : vector<8x128xf32>
    %318 = vector.extract_strided_slice %302 {offsets = [64, 0], sizes = [8, 128], strides = [1, 1]} : vector<128x128xf32> to vector<8x128xf32>
    %319 = arith.maximumf %317, %318 : vector<8x128xf32>
    %320 = vector.extract_strided_slice %302 {offsets = [72, 0], sizes = [8, 128], strides = [1, 1]} : vector<128x128xf32> to vector<8x128xf32>
    %321 = arith.maximumf %319, %320 : vector<8x128xf32>
    %322 = vector.extract_strided_slice %302 {offsets = [80, 0], sizes = [8, 128], strides = [1, 1]} : vector<128x128xf32> to vector<8x128xf32>
    %323 = arith.maximumf %321, %322 : vector<8x128xf32>
    %324 = vector.extract_strided_slice %302 {offsets = [88, 0], sizes = [8, 128], strides = [1, 1]} : vector<128x128xf32> to vector<8x128xf32>
    %325 = arith.maximumf %323, %324 : vector<8x128xf32>
    %326 = vector.extract_strided_slice %302 {offsets = [96, 0], sizes = [8, 128], strides = [1, 1]} : vector<128x128xf32> to vector<8x128xf32>
    %327 = arith.maximumf %325, %326 : vector<8x128xf32>
    %328 = vector.extract_strided_slice %302 {offsets = [104, 0], sizes = [8, 128], strides = [1, 1]} : vector<128x128xf32> to vector<8x128xf32>
    %329 = arith.maximumf %327, %328 : vector<8x128xf32>
    %330 = vector.extract_strided_slice %302 {offsets = [112, 0], sizes = [8, 128], strides = [1, 1]} : vector<128x128xf32> to vector<8x128xf32>
    %331 = arith.maximumf %329, %330 : vector<8x128xf32>
    %332 = vector.extract_strided_slice %302 {offsets = [120, 0], sizes = [8, 128], strides = [1, 1]} : vector<128x128xf32> to vector<8x128xf32>
    %333 = arith.maximumf %331, %332 : vector<8x128xf32>
    %334 = vector.shape_cast %333 : vector<8x128xf32> to vector<1x8x128xf32>
    %c0_92 = arith.constant 0 : index
    %c7 = arith.constant 7 : index
    %c1_93 = arith.constant 1 : index
    %c0_94 = arith.constant 0 : index
    %335 = vector.load %arg5[%c0_92, %c7, %c1_93, %c0_94] : memref<1x10x10x128xf32, #tpu.memory_space<vmem>>, vector<1x1x8x128xf32>
    %336 = vector.shape_cast %335 : vector<1x1x8x128xf32> to vector<1x8x128xf32>
    %337 = vector.shape_cast %334 : vector<1x8x128xf32> to vector<1x1x8x128xf32>
    tpu.vector_store %arg5[%c0_92, %c7, %c1_93, %c0_94], %337 {strides = array<i32>} : memref<1x10x10x128xf32, #tpu.memory_space<vmem>>, vector<1x1x8x128xf32>,
    %c0_95 = arith.constant 0 : index
    %c896 = arith.constant 896 : index
    %c0_96 = arith.constant 0 : index
    %338 = vector.load %arg1[%c0_95, %c896, %c0_96] : memref<1x1024x16xf32, #tpu.memory_space<vmem>>, vector<1x128x16xf32>
    %339 = vector.shape_cast %338 : vector<1x128x16xf32> to vector<128x16xf32>
    %340 = arith.truncf %339 : vector<128x16xf32> to vector<128x16xbf16>
    %c0_97 = arith.constant 0 : index
    %c0_98 = arith.constant 0 : index
    %341 = vector.load %arg2[%c0_97, %c0_98] : memref<16x128xbf16, #tpu.memory_space<vmem>>, vector<16x128xbf16>
    %cst_99 = arith.constant dense<0.000000e+00> : vector<128x128xf32>
    %342 = tpu.matmul %340, %341, %cst_99 {dimension_numbers = #tpu.dot_dimension_numbers<[1], [0], [0], [1], [0, 0, 1, 1], [], []>} : vector<128x16xbf16>, vector<16x128xbf16>, vector<128x128xf32> -> vector<128x128xf32>
    %c0_100 = arith.constant 0 : index
    %c0_101 = arith.constant 0 : index
    %343 = vector.load %arg3[%c0_100, %c0_101] : memref<1x128xf32, #tpu.memory_space<vmem>>, vector<1x128xf32>
    %344 = vector.broadcast %343 : vector<1x128xf32> to vector<128x128xf32>
    %345 = arith.mulf %342, %344 : vector<128x128xf32>
    %c0_102 = arith.constant 0 : index
    %c0_103 = arith.constant 0 : index
    %346 = vector.load %arg4[%c0_102, %c0_103] : memref<1x128xf32, #tpu.memory_space<vmem>>, vector<1x128xf32>
    %347 = vector.broadcast %346 : vector<1x128xf32> to vector<128x128xf32>
    %348 = arith.addf %345, %347 : vector<128x128xf32>
    %cst_104 = arith.constant 0.000000e+00 : f32
    %349 = vector.broadcast %cst_104 : f32 to vector<128x128xf32>
    %350 = arith.maximumf %348, %349 : vector<128x128xf32>
    %351 = vector.extract_strided_slice %350 {offsets = [0, 0], sizes = [8, 128], strides = [1, 1]} : vector<128x128xf32> to vector<8x128xf32>
    %352 = vector.extract_strided_slice %350 {offsets = [8, 0], sizes = [8, 128], strides = [1, 1]} : vector<128x128xf32> to vector<8x128xf32>
    %353 = arith.maximumf %351, %352 : vector<8x128xf32>
    %354 = vector.extract_strided_slice %350 {offsets = [16, 0], sizes = [8, 128], strides = [1, 1]} : vector<128x128xf32> to vector<8x128xf32>
    %355 = arith.maximumf %353, %354 : vector<8x128xf32>
    %356 = vector.extract_strided_slice %350 {offsets = [24, 0], sizes = [8, 128], strides = [1, 1]} : vector<128x128xf32> to vector<8x128xf32>
    %357 = arith.maximumf %355, %356 : vector<8x128xf32>
    %358 = vector.extract_strided_slice %350 {offsets = [32, 0], sizes = [8, 128], strides = [1, 1]} : vector<128x128xf32> to vector<8x128xf32>
    %359 = arith.maximumf %357, %358 : vector<8x128xf32>
    %360 = vector.extract_strided_slice %350 {offsets = [40, 0], sizes = [8, 128], strides = [1, 1]} : vector<128x128xf32> to vector<8x128xf32>
    %361 = arith.maximumf %359, %360 : vector<8x128xf32>
    %362 = vector.extract_strided_slice %350 {offsets = [48, 0], sizes = [8, 128], strides = [1, 1]} : vector<128x128xf32> to vector<8x128xf32>
    %363 = arith.maximumf %361, %362 : vector<8x128xf32>
    %364 = vector.extract_strided_slice %350 {offsets = [56, 0], sizes = [8, 128], strides = [1, 1]} : vector<128x128xf32> to vector<8x128xf32>
    %365 = arith.maximumf %363, %364 : vector<8x128xf32>
    %366 = vector.extract_strided_slice %350 {offsets = [64, 0], sizes = [8, 128], strides = [1, 1]} : vector<128x128xf32> to vector<8x128xf32>
    %367 = arith.maximumf %365, %366 : vector<8x128xf32>
    %368 = vector.extract_strided_slice %350 {offsets = [72, 0], sizes = [8, 128], strides = [1, 1]} : vector<128x128xf32> to vector<8x128xf32>
    %369 = arith.maximumf %367, %368 : vector<8x128xf32>
    %370 = vector.extract_strided_slice %350 {offsets = [80, 0], sizes = [8, 128], strides = [1, 1]} : vector<128x128xf32> to vector<8x128xf32>
    %371 = arith.maximumf %369, %370 : vector<8x128xf32>
    %372 = vector.extract_strided_slice %350 {offsets = [88, 0], sizes = [8, 128], strides = [1, 1]} : vector<128x128xf32> to vector<8x128xf32>
    %373 = arith.maximumf %371, %372 : vector<8x128xf32>
    %374 = vector.extract_strided_slice %350 {offsets = [96, 0], sizes = [8, 128], strides = [1, 1]} : vector<128x128xf32> to vector<8x128xf32>
    %375 = arith.maximumf %373, %374 : vector<8x128xf32>
    %376 = vector.extract_strided_slice %350 {offsets = [104, 0], sizes = [8, 128], strides = [1, 1]} : vector<128x128xf32> to vector<8x128xf32>
    %377 = arith.maximumf %375, %376 : vector<8x128xf32>
    %378 = vector.extract_strided_slice %350 {offsets = [112, 0], sizes = [8, 128], strides = [1, 1]} : vector<128x128xf32> to vector<8x128xf32>
    %379 = arith.maximumf %377, %378 : vector<8x128xf32>
    %380 = vector.extract_strided_slice %350 {offsets = [120, 0], sizes = [8, 128], strides = [1, 1]} : vector<128x128xf32> to vector<8x128xf32>
    %381 = arith.maximumf %379, %380 : vector<8x128xf32>
    %382 = vector.shape_cast %381 : vector<8x128xf32> to vector<1x8x128xf32>
    %c0_105 = arith.constant 0 : index
    %c8 = arith.constant 8 : index
    %c1_106 = arith.constant 1 : index
    %c0_107 = arith.constant 0 : index
    %383 = vector.load %arg5[%c0_105, %c8, %c1_106, %c0_107] : memref<1x10x10x128xf32, #tpu.memory_space<vmem>>, vector<1x1x8x128xf32>
    %384 = vector.shape_cast %383 : vector<1x1x8x128xf32> to vector<1x8x128xf32>
    %385 = vector.shape_cast %382 : vector<1x8x128xf32> to vector<1x1x8x128xf32>
    tpu.vector_store %arg5[%c0_105, %c8, %c1_106, %c0_107], %385 {strides = array<i32>} : memref<1x10x10x128xf32, #tpu.memory_space<vmem>>, vector<1x1x8x128xf32>,
    return
  }
  func.func @transform_0(%arg0: i32) -> (i32, i32, i32) {
    %c0_i32 = arith.constant 0 : i32
    %c0_i32_0 = arith.constant 0 : i32
    %c0_i32_1 = arith.constant 0 : i32
    return %arg0, %c0_i32, %c0_i32_0 : i32, i32, i32
  }
  func.func @transform_1(%arg0: i32) -> (i32, i32) {
    %c0_i32 = arith.constant 0 : i32
    %c0_i32_0 = arith.constant 0 : i32
    %c0_i32_1 = arith.constant 0 : i32
    return %c0_i32, %c0_i32_0 : i32, i32
  }
  func.func @transform_2(%arg0: i32) -> (i32, i32) {
    %c0_i32 = arith.constant 0 : i32
    %c0_i32_0 = arith.constant 0 : i32
    %c0_i32_1 = arith.constant 0 : i32
    return %c0_i32, %c0_i32_0 : i32, i32
  }
  func.func @transform_3(%arg0: i32) -> (i32, i32) {
    %c0_i32 = arith.constant 0 : i32
    %c0_i32_0 = arith.constant 0 : i32
    %c0_i32_1 = arith.constant 0 : i32
    return %c0_i32, %c0_i32_0 : i32, i32
  }
  func.func @transform_4(%arg0: i32) -> (i32, i32, i32, i32) {
    %c0_i32 = arith.constant 0 : i32
    %c0_i32_0 = arith.constant 0 : i32
    %c0_i32_1 = arith.constant 0 : i32
    %c0_i32_2 = arith.constant 0 : i32
    return %arg0, %c0_i32, %c0_i32_0, %c0_i32_1 : i32, i32, i32, i32
  }
}

module attributes {stable_mosaic.version = 11 : i64} {
  func.func @kernel(%arg0: i32, %arg1: memref<1x10x10x128xf32, #tpu.memory_space<vmem>>, %arg2: memref<9x128x128xbf16, #tpu.memory_space<vmem>>, %arg3: memref<1x128xf32, #tpu.memory_space<vmem>>, %arg4: memref<1x128xf32, #tpu.memory_space<vmem>>, %arg5: memref<9x128x128xbf16, #tpu.memory_space<vmem>>, %arg6: memref<1x128xf32, #tpu.memory_space<vmem>>, %arg7: memref<1x128xf32, #tpu.memory_space<vmem>>, %arg8: memref<1x10x10x128xf32, #tpu.memory_space<vmem>>, %arg9: memref<10x10x128xf32, #tpu.memory_space<vmem>>) attributes {dimension_semantics = [#tpu.dimension_semantics<parallel>], iteration_bounds = array<i64: 2>, scalar_prefetch = 0 : i64, scratch_operands = 1 : i64, tpu.core_type = #tpu.core_type<tc>, window_params = [{transform_indices = @transform_0, window_bounds = array<i64: 1, 10, 10, 128>}, {pipeline_mode = #tpu.pipeline_mode<synchronous>, transform_indices = @transform_1, window_bounds = array<i64: 9, 128, 128>}, {pipeline_mode = #tpu.pipeline_mode<synchronous>, transform_indices = @transform_2, window_bounds = array<i64: 1, 128>}, {pipeline_mode = #tpu.pipeline_mode<synchronous>, transform_indices = @transform_3, window_bounds = array<i64: 1, 128>}, {pipeline_mode = #tpu.pipeline_mode<synchronous>, transform_indices = @transform_4, window_bounds = array<i64: 9, 128, 128>}, {pipeline_mode = #tpu.pipeline_mode<synchronous>, transform_indices = @transform_5, window_bounds = array<i64: 1, 128>}, {pipeline_mode = #tpu.pipeline_mode<synchronous>, transform_indices = @transform_6, window_bounds = array<i64: 1, 128>}, {transform_indices = @transform_7, window_bounds = array<i64: 1, 10, 10, 128>}]} {
    %c0 = arith.constant 0 : index
    %c0_0 = arith.constant 0 : index
    %c0_1 = arith.constant 0 : index
    %c0_2 = arith.constant 0 : index
    %0 = vector.load %arg1[%c0, %c0_0, %c0_1, %c0_2] : memref<1x10x10x128xf32, #tpu.memory_space<vmem>>, vector<1x8x8x128xf32>
    %1 = vector.shape_cast %0 : vector<1x8x8x128xf32> to vector<8x8x128xf32>
    %2 = vector.shape_cast %1 : vector<8x8x128xf32> to vector<64x128xf32>
    %3 = arith.truncf %2 : vector<64x128xf32> to vector<64x128xbf16>
    %c0_3 = arith.constant 0 : index
    %c0_4 = arith.constant 0 : index
    %c0_5 = arith.constant 0 : index
    %4 = vector.load %arg2[%c0_3, %c0_4, %c0_5] : memref<9x128x128xbf16, #tpu.memory_space<vmem>>, vector<1x128x128xbf16>
    %5 = vector.shape_cast %4 : vector<1x128x128xbf16> to vector<128x128xbf16>
    %cst = arith.constant dense<0.000000e+00> : vector<64x128xf32>
    %6 = tpu.matmul %3, %5, %cst {dimension_numbers = #tpu.dot_dimension_numbers<[1], [0], [0], [1], [0, 0, 1, 1], [], []>} : vector<64x128xbf16>, vector<128x128xbf16>, vector<64x128xf32> -> vector<64x128xf32>
    %c0_6 = arith.constant 0 : index
    %c0_7 = arith.constant 0 : index
    %c1 = arith.constant 1 : index
    %c0_8 = arith.constant 0 : index
    %7 = vector.load %arg1[%c0_6, %c0_7, %c1, %c0_8] : memref<1x10x10x128xf32, #tpu.memory_space<vmem>>, vector<1x8x8x128xf32>
    %8 = vector.shape_cast %7 : vector<1x8x8x128xf32> to vector<8x8x128xf32>
    %9 = vector.shape_cast %8 : vector<8x8x128xf32> to vector<64x128xf32>
    %10 = arith.truncf %9 : vector<64x128xf32> to vector<64x128xbf16>
    %c1_9 = arith.constant 1 : index
    %c0_10 = arith.constant 0 : index
    %c0_11 = arith.constant 0 : index
    %11 = vector.load %arg2[%c1_9, %c0_10, %c0_11] : memref<9x128x128xbf16, #tpu.memory_space<vmem>>, vector<1x128x128xbf16>
    %12 = vector.shape_cast %11 : vector<1x128x128xbf16> to vector<128x128xbf16>
    %cst_12 = arith.constant dense<0.000000e+00> : vector<64x128xf32>
    %13 = tpu.matmul %10, %12, %cst_12 {dimension_numbers = #tpu.dot_dimension_numbers<[1], [0], [0], [1], [0, 0, 1, 1], [], []>} : vector<64x128xbf16>, vector<128x128xbf16>, vector<64x128xf32> -> vector<64x128xf32>
    %14 = arith.addf %6, %13 : vector<64x128xf32>
    %c0_13 = arith.constant 0 : index
    %c0_14 = arith.constant 0 : index
    %c2 = arith.constant 2 : index
    %c0_15 = arith.constant 0 : index
    %15 = vector.load %arg1[%c0_13, %c0_14, %c2, %c0_15] : memref<1x10x10x128xf32, #tpu.memory_space<vmem>>, vector<1x8x8x128xf32>
    %16 = vector.shape_cast %15 : vector<1x8x8x128xf32> to vector<8x8x128xf32>
    %17 = vector.shape_cast %16 : vector<8x8x128xf32> to vector<64x128xf32>
    %18 = arith.truncf %17 : vector<64x128xf32> to vector<64x128xbf16>
    %c2_16 = arith.constant 2 : index
    %c0_17 = arith.constant 0 : index
    %c0_18 = arith.constant 0 : index
    %19 = vector.load %arg2[%c2_16, %c0_17, %c0_18] : memref<9x128x128xbf16, #tpu.memory_space<vmem>>, vector<1x128x128xbf16>
    %20 = vector.shape_cast %19 : vector<1x128x128xbf16> to vector<128x128xbf16>
    %cst_19 = arith.constant dense<0.000000e+00> : vector<64x128xf32>
    %21 = tpu.matmul %18, %20, %cst_19 {dimension_numbers = #tpu.dot_dimension_numbers<[1], [0], [0], [1], [0, 0, 1, 1], [], []>} : vector<64x128xbf16>, vector<128x128xbf16>, vector<64x128xf32> -> vector<64x128xf32>
    %22 = arith.addf %14, %21 : vector<64x128xf32>
    %c0_20 = arith.constant 0 : index
    %c1_21 = arith.constant 1 : index
    %c0_22 = arith.constant 0 : index
    %c0_23 = arith.constant 0 : index
    %23 = vector.load %arg1[%c0_20, %c1_21, %c0_22, %c0_23] : memref<1x10x10x128xf32, #tpu.memory_space<vmem>>, vector<1x8x8x128xf32>
    %24 = vector.shape_cast %23 : vector<1x8x8x128xf32> to vector<8x8x128xf32>
    %25 = vector.shape_cast %24 : vector<8x8x128xf32> to vector<64x128xf32>
    %26 = arith.truncf %25 : vector<64x128xf32> to vector<64x128xbf16>
    %c3 = arith.constant 3 : index
    %c0_24 = arith.constant 0 : index
    %c0_25 = arith.constant 0 : index
    %27 = vector.load %arg2[%c3, %c0_24, %c0_25] : memref<9x128x128xbf16, #tpu.memory_space<vmem>>, vector<1x128x128xbf16>
    %28 = vector.shape_cast %27 : vector<1x128x128xbf16> to vector<128x128xbf16>
    %cst_26 = arith.constant dense<0.000000e+00> : vector<64x128xf32>
    %29 = tpu.matmul %26, %28, %cst_26 {dimension_numbers = #tpu.dot_dimension_numbers<[1], [0], [0], [1], [0, 0, 1, 1], [], []>} : vector<64x128xbf16>, vector<128x128xbf16>, vector<64x128xf32> -> vector<64x128xf32>
    %30 = arith.addf %22, %29 : vector<64x128xf32>
    %c0_27 = arith.constant 0 : index
    %c1_28 = arith.constant 1 : index
    %c1_29 = arith.constant 1 : index
    %c0_30 = arith.constant 0 : index
    %31 = vector.load %arg1[%c0_27, %c1_28, %c1_29, %c0_30] : memref<1x10x10x128xf32, #tpu.memory_space<vmem>>, vector<1x8x8x128xf32>
    %32 = vector.shape_cast %31 : vector<1x8x8x128xf32> to vector<8x8x128xf32>
    %33 = vector.shape_cast %32 : vector<8x8x128xf32> to vector<64x128xf32>
    %34 = arith.truncf %33 : vector<64x128xf32> to vector<64x128xbf16>
    %c4 = arith.constant 4 : index
    %c0_31 = arith.constant 0 : index
    %c0_32 = arith.constant 0 : index
    %35 = vector.load %arg2[%c4, %c0_31, %c0_32] : memref<9x128x128xbf16, #tpu.memory_space<vmem>>, vector<1x128x128xbf16>
    %36 = vector.shape_cast %35 : vector<1x128x128xbf16> to vector<128x128xbf16>
    %cst_33 = arith.constant dense<0.000000e+00> : vector<64x128xf32>
    %37 = tpu.matmul %34, %36, %cst_33 {dimension_numbers = #tpu.dot_dimension_numbers<[1], [0], [0], [1], [0, 0, 1, 1], [], []>} : vector<64x128xbf16>, vector<128x128xbf16>, vector<64x128xf32> -> vector<64x128xf32>
    %38 = arith.addf %30, %37 : vector<64x128xf32>
    %c0_34 = arith.constant 0 : index
    %c1_35 = arith.constant 1 : index
    %c2_36 = arith.constant 2 : index
    %c0_37 = arith.constant 0 : index
    %39 = vector.load %arg1[%c0_34, %c1_35, %c2_36, %c0_37] : memref<1x10x10x128xf32, #tpu.memory_space<vmem>>, vector<1x8x8x128xf32>
    %40 = vector.shape_cast %39 : vector<1x8x8x128xf32> to vector<8x8x128xf32>
    %41 = vector.shape_cast %40 : vector<8x8x128xf32> to vector<64x128xf32>
    %42 = arith.truncf %41 : vector<64x128xf32> to vector<64x128xbf16>
    %c5 = arith.constant 5 : index
    %c0_38 = arith.constant 0 : index
    %c0_39 = arith.constant 0 : index
    %43 = vector.load %arg2[%c5, %c0_38, %c0_39] : memref<9x128x128xbf16, #tpu.memory_space<vmem>>, vector<1x128x128xbf16>
    %44 = vector.shape_cast %43 : vector<1x128x128xbf16> to vector<128x128xbf16>
    %cst_40 = arith.constant dense<0.000000e+00> : vector<64x128xf32>
    %45 = tpu.matmul %42, %44, %cst_40 {dimension_numbers = #tpu.dot_dimension_numbers<[1], [0], [0], [1], [0, 0, 1, 1], [], []>} : vector<64x128xbf16>, vector<128x128xbf16>, vector<64x128xf32> -> vector<64x128xf32>
    %46 = arith.addf %38, %45 : vector<64x128xf32>
    %c0_41 = arith.constant 0 : index
    %c2_42 = arith.constant 2 : index
    %c0_43 = arith.constant 0 : index
    %c0_44 = arith.constant 0 : index
    %47 = vector.load %arg1[%c0_41, %c2_42, %c0_43, %c0_44] : memref<1x10x10x128xf32, #tpu.memory_space<vmem>>, vector<1x8x8x128xf32>
    %48 = vector.shape_cast %47 : vector<1x8x8x128xf32> to vector<8x8x128xf32>
    %49 = vector.shape_cast %48 : vector<8x8x128xf32> to vector<64x128xf32>
    %50 = arith.truncf %49 : vector<64x128xf32> to vector<64x128xbf16>
    %c6 = arith.constant 6 : index
    %c0_45 = arith.constant 0 : index
    %c0_46 = arith.constant 0 : index
    %51 = vector.load %arg2[%c6, %c0_45, %c0_46] : memref<9x128x128xbf16, #tpu.memory_space<vmem>>, vector<1x128x128xbf16>
    %52 = vector.shape_cast %51 : vector<1x128x128xbf16> to vector<128x128xbf16>
    %cst_47 = arith.constant dense<0.000000e+00> : vector<64x128xf32>
    %53 = tpu.matmul %50, %52, %cst_47 {dimension_numbers = #tpu.dot_dimension_numbers<[1], [0], [0], [1], [0, 0, 1, 1], [], []>} : vector<64x128xbf16>, vector<128x128xbf16>, vector<64x128xf32> -> vector<64x128xf32>
    %54 = arith.addf %46, %53 : vector<64x128xf32>
    %c0_48 = arith.constant 0 : index
    %c2_49 = arith.constant 2 : index
    %c1_50 = arith.constant 1 : index
    %c0_51 = arith.constant 0 : index
    %55 = vector.load %arg1[%c0_48, %c2_49, %c1_50, %c0_51] : memref<1x10x10x128xf32, #tpu.memory_space<vmem>>, vector<1x8x8x128xf32>
    %56 = vector.shape_cast %55 : vector<1x8x8x128xf32> to vector<8x8x128xf32>
    %57 = vector.shape_cast %56 : vector<8x8x128xf32> to vector<64x128xf32>
    %58 = arith.truncf %57 : vector<64x128xf32> to vector<64x128xbf16>
    %c7 = arith.constant 7 : index
    %c0_52 = arith.constant 0 : index
    %c0_53 = arith.constant 0 : index
    %59 = vector.load %arg2[%c7, %c0_52, %c0_53] : memref<9x128x128xbf16, #tpu.memory_space<vmem>>, vector<1x128x128xbf16>
    %60 = vector.shape_cast %59 : vector<1x128x128xbf16> to vector<128x128xbf16>
    %cst_54 = arith.constant dense<0.000000e+00> : vector<64x128xf32>
    %61 = tpu.matmul %58, %60, %cst_54 {dimension_numbers = #tpu.dot_dimension_numbers<[1], [0], [0], [1], [0, 0, 1, 1], [], []>} : vector<64x128xbf16>, vector<128x128xbf16>, vector<64x128xf32> -> vector<64x128xf32>
    %62 = arith.addf %54, %61 : vector<64x128xf32>
    %c0_55 = arith.constant 0 : index
    %c2_56 = arith.constant 2 : index
    %c2_57 = arith.constant 2 : index
    %c0_58 = arith.constant 0 : index
    %63 = vector.load %arg1[%c0_55, %c2_56, %c2_57, %c0_58] : memref<1x10x10x128xf32, #tpu.memory_space<vmem>>, vector<1x8x8x128xf32>
    %64 = vector.shape_cast %63 : vector<1x8x8x128xf32> to vector<8x8x128xf32>
    %65 = vector.shape_cast %64 : vector<8x8x128xf32> to vector<64x128xf32>
    %66 = arith.truncf %65 : vector<64x128xf32> to vector<64x128xbf16>
    %c8 = arith.constant 8 : index
    %c0_59 = arith.constant 0 : index
    %c0_60 = arith.constant 0 : index
    %67 = vector.load %arg2[%c8, %c0_59, %c0_60] : memref<9x128x128xbf16, #tpu.memory_space<vmem>>, vector<1x128x128xbf16>
    %68 = vector.shape_cast %67 : vector<1x128x128xbf16> to vector<128x128xbf16>
    %cst_61 = arith.constant dense<0.000000e+00> : vector<64x128xf32>
    %69 = tpu.matmul %66, %68, %cst_61 {dimension_numbers = #tpu.dot_dimension_numbers<[1], [0], [0], [1], [0, 0, 1, 1], [], []>} : vector<64x128xbf16>, vector<128x128xbf16>, vector<64x128xf32> -> vector<64x128xf32>
    %70 = arith.addf %62, %69 : vector<64x128xf32>
    %c0_62 = arith.constant 0 : index
    %c0_63 = arith.constant 0 : index
    %71 = vector.load %arg3[%c0_62, %c0_63] : memref<1x128xf32, #tpu.memory_space<vmem>>, vector<1x128xf32>
    %72 = vector.broadcast %71 : vector<1x128xf32> to vector<64x128xf32>
    %73 = arith.mulf %70, %72 : vector<64x128xf32>
    %c0_64 = arith.constant 0 : index
    %c0_65 = arith.constant 0 : index
    %74 = vector.load %arg4[%c0_64, %c0_65] : memref<1x128xf32, #tpu.memory_space<vmem>>, vector<1x128xf32>
    %75 = vector.broadcast %74 : vector<1x128xf32> to vector<64x128xf32>
    %76 = arith.addf %73, %75 : vector<64x128xf32>
    %cst_66 = arith.constant 0.000000e+00 : f32
    %77 = vector.broadcast %cst_66 : f32 to vector<64x128xf32>
    %78 = arith.maximumf %76, %77 : vector<64x128xf32>
    %cst_67 = arith.constant 0.000000e+00 : f32
    %79 = vector.broadcast %cst_67 : f32 to vector<10x10x128xf32>
    %c0_68 = arith.constant 0 : index
    %c0_69 = arith.constant 0 : index
    %c0_70 = arith.constant 0 : index
    %80 = vector.load %arg9[%c0_68, %c0_69, %c0_70] : memref<10x10x128xf32, #tpu.memory_space<vmem>>, vector<10x10x128xf32>
    tpu.vector_store %arg9[%c0_68, %c0_69, %c0_70], %79 {strides = array<i32>} : memref<10x10x128xf32, #tpu.memory_space<vmem>>, vector<10x10x128xf32>,
    %81 = vector.shape_cast %78 : vector<64x128xf32> to vector<8x8x128xf32>
    %c1_71 = arith.constant 1 : index
    %c1_72 = arith.constant 1 : index
    %c0_73 = arith.constant 0 : index
    %82 = vector.load %arg9[%c1_71, %c1_72, %c0_73] : memref<10x10x128xf32, #tpu.memory_space<vmem>>, vector<8x8x128xf32>
    tpu.vector_store %arg9[%c1_71, %c1_72, %c0_73], %81 {strides = array<i32>} : memref<10x10x128xf32, #tpu.memory_space<vmem>>, vector<8x8x128xf32>,
    %c0_74 = arith.constant 0 : index
    %c0_75 = arith.constant 0 : index
    %c0_76 = arith.constant 0 : index
    %83 = vector.load %arg9[%c0_74, %c0_75, %c0_76] : memref<10x10x128xf32, #tpu.memory_space<vmem>>, vector<8x8x128xf32>
    %84 = vector.shape_cast %83 : vector<8x8x128xf32> to vector<64x128xf32>
    %85 = arith.truncf %84 : vector<64x128xf32> to vector<64x128xbf16>
    %c0_77 = arith.constant 0 : index
    %c0_78 = arith.constant 0 : index
    %c0_79 = arith.constant 0 : index
    %86 = vector.load %arg5[%c0_77, %c0_78, %c0_79] : memref<9x128x128xbf16, #tpu.memory_space<vmem>>, vector<1x128x128xbf16>
    %87 = vector.shape_cast %86 : vector<1x128x128xbf16> to vector<128x128xbf16>
    %cst_80 = arith.constant dense<0.000000e+00> : vector<64x128xf32>
    %88 = tpu.matmul %85, %87, %cst_80 {dimension_numbers = #tpu.dot_dimension_numbers<[1], [0], [0], [1], [0, 0, 1, 1], [], []>} : vector<64x128xbf16>, vector<128x128xbf16>, vector<64x128xf32> -> vector<64x128xf32>
    %c0_81 = arith.constant 0 : index
    %c1_82 = arith.constant 1 : index
    %c0_83 = arith.constant 0 : index
    %89 = vector.load %arg9[%c0_81, %c1_82, %c0_83] : memref<10x10x128xf32, #tpu.memory_space<vmem>>, vector<8x8x128xf32>
    %90 = vector.shape_cast %89 : vector<8x8x128xf32> to vector<64x128xf32>
    %91 = arith.truncf %90 : vector<64x128xf32> to vector<64x128xbf16>
    %c1_84 = arith.constant 1 : index
    %c0_85 = arith.constant 0 : index
    %c0_86 = arith.constant 0 : index
    %92 = vector.load %arg5[%c1_84, %c0_85, %c0_86] : memref<9x128x128xbf16, #tpu.memory_space<vmem>>, vector<1x128x128xbf16>
    %93 = vector.shape_cast %92 : vector<1x128x128xbf16> to vector<128x128xbf16>
    %cst_87 = arith.constant dense<0.000000e+00> : vector<64x128xf32>
    %94 = tpu.matmul %91, %93, %cst_87 {dimension_numbers = #tpu.dot_dimension_numbers<[1], [0], [0], [1], [0, 0, 1, 1], [], []>} : vector<64x128xbf16>, vector<128x128xbf16>, vector<64x128xf32> -> vector<64x128xf32>
    %95 = arith.addf %88, %94 : vector<64x128xf32>
    %c0_88 = arith.constant 0 : index
    %c2_89 = arith.constant 2 : index
    %c0_90 = arith.constant 0 : index
    %96 = vector.load %arg9[%c0_88, %c2_89, %c0_90] : memref<10x10x128xf32, #tpu.memory_space<vmem>>, vector<8x8x128xf32>
    %97 = vector.shape_cast %96 : vector<8x8x128xf32> to vector<64x128xf32>
    %98 = arith.truncf %97 : vector<64x128xf32> to vector<64x128xbf16>
    %c2_91 = arith.constant 2 : index
    %c0_92 = arith.constant 0 : index
    %c0_93 = arith.constant 0 : index
    %99 = vector.load %arg5[%c2_91, %c0_92, %c0_93] : memref<9x128x128xbf16, #tpu.memory_space<vmem>>, vector<1x128x128xbf16>
    %100 = vector.shape_cast %99 : vector<1x128x128xbf16> to vector<128x128xbf16>
    %cst_94 = arith.constant dense<0.000000e+00> : vector<64x128xf32>
    %101 = tpu.matmul %98, %100, %cst_94 {dimension_numbers = #tpu.dot_dimension_numbers<[1], [0], [0], [1], [0, 0, 1, 1], [], []>} : vector<64x128xbf16>, vector<128x128xbf16>, vector<64x128xf32> -> vector<64x128xf32>
    %102 = arith.addf %95, %101 : vector<64x128xf32>
    %c1_95 = arith.constant 1 : index
    %c0_96 = arith.constant 0 : index
    %c0_97 = arith.constant 0 : index
    %103 = vector.load %arg9[%c1_95, %c0_96, %c0_97] : memref<10x10x128xf32, #tpu.memory_space<vmem>>, vector<8x8x128xf32>
    %104 = vector.shape_cast %103 : vector<8x8x128xf32> to vector<64x128xf32>
    %105 = arith.truncf %104 : vector<64x128xf32> to vector<64x128xbf16>
    %c3_98 = arith.constant 3 : index
    %c0_99 = arith.constant 0 : index
    %c0_100 = arith.constant 0 : index
    %106 = vector.load %arg5[%c3_98, %c0_99, %c0_100] : memref<9x128x128xbf16, #tpu.memory_space<vmem>>, vector<1x128x128xbf16>
    %107 = vector.shape_cast %106 : vector<1x128x128xbf16> to vector<128x128xbf16>
    %cst_101 = arith.constant dense<0.000000e+00> : vector<64x128xf32>
    %108 = tpu.matmul %105, %107, %cst_101 {dimension_numbers = #tpu.dot_dimension_numbers<[1], [0], [0], [1], [0, 0, 1, 1], [], []>} : vector<64x128xbf16>, vector<128x128xbf16>, vector<64x128xf32> -> vector<64x128xf32>
    %109 = arith.addf %102, %108 : vector<64x128xf32>
    %c1_102 = arith.constant 1 : index
    %c1_103 = arith.constant 1 : index
    %c0_104 = arith.constant 0 : index
    %110 = vector.load %arg9[%c1_102, %c1_103, %c0_104] : memref<10x10x128xf32, #tpu.memory_space<vmem>>, vector<8x8x128xf32>
    %111 = vector.shape_cast %110 : vector<8x8x128xf32> to vector<64x128xf32>
    %112 = arith.truncf %111 : vector<64x128xf32> to vector<64x128xbf16>
    %c4_105 = arith.constant 4 : index
    %c0_106 = arith.constant 0 : index
    %c0_107 = arith.constant 0 : index
    %113 = vector.load %arg5[%c4_105, %c0_106, %c0_107] : memref<9x128x128xbf16, #tpu.memory_space<vmem>>, vector<1x128x128xbf16>
    %114 = vector.shape_cast %113 : vector<1x128x128xbf16> to vector<128x128xbf16>
    %cst_108 = arith.constant dense<0.000000e+00> : vector<64x128xf32>
    %115 = tpu.matmul %112, %114, %cst_108 {dimension_numbers = #tpu.dot_dimension_numbers<[1], [0], [0], [1], [0, 0, 1, 1], [], []>} : vector<64x128xbf16>, vector<128x128xbf16>, vector<64x128xf32> -> vector<64x128xf32>
    %116 = arith.addf %109, %115 : vector<64x128xf32>
    %c1_109 = arith.constant 1 : index
    %c2_110 = arith.constant 2 : index
    %c0_111 = arith.constant 0 : index
    %117 = vector.load %arg9[%c1_109, %c2_110, %c0_111] : memref<10x10x128xf32, #tpu.memory_space<vmem>>, vector<8x8x128xf32>
    %118 = vector.shape_cast %117 : vector<8x8x128xf32> to vector<64x128xf32>
    %119 = arith.truncf %118 : vector<64x128xf32> to vector<64x128xbf16>
    %c5_112 = arith.constant 5 : index
    %c0_113 = arith.constant 0 : index
    %c0_114 = arith.constant 0 : index
    %120 = vector.load %arg5[%c5_112, %c0_113, %c0_114] : memref<9x128x128xbf16, #tpu.memory_space<vmem>>, vector<1x128x128xbf16>
    %121 = vector.shape_cast %120 : vector<1x128x128xbf16> to vector<128x128xbf16>
    %cst_115 = arith.constant dense<0.000000e+00> : vector<64x128xf32>
    %122 = tpu.matmul %119, %121, %cst_115 {dimension_numbers = #tpu.dot_dimension_numbers<[1], [0], [0], [1], [0, 0, 1, 1], [], []>} : vector<64x128xbf16>, vector<128x128xbf16>, vector<64x128xf32> -> vector<64x128xf32>
    %123 = arith.addf %116, %122 : vector<64x128xf32>
    %c2_116 = arith.constant 2 : index
    %c0_117 = arith.constant 0 : index
    %c0_118 = arith.constant 0 : index
    %124 = vector.load %arg9[%c2_116, %c0_117, %c0_118] : memref<10x10x128xf32, #tpu.memory_space<vmem>>, vector<8x8x128xf32>
    %125 = vector.shape_cast %124 : vector<8x8x128xf32> to vector<64x128xf32>
    %126 = arith.truncf %125 : vector<64x128xf32> to vector<64x128xbf16>
    %c6_119 = arith.constant 6 : index
    %c0_120 = arith.constant 0 : index
    %c0_121 = arith.constant 0 : index
    %127 = vector.load %arg5[%c6_119, %c0_120, %c0_121] : memref<9x128x128xbf16, #tpu.memory_space<vmem>>, vector<1x128x128xbf16>
    %128 = vector.shape_cast %127 : vector<1x128x128xbf16> to vector<128x128xbf16>
    %cst_122 = arith.constant dense<0.000000e+00> : vector<64x128xf32>
    %129 = tpu.matmul %126, %128, %cst_122 {dimension_numbers = #tpu.dot_dimension_numbers<[1], [0], [0], [1], [0, 0, 1, 1], [], []>} : vector<64x128xbf16>, vector<128x128xbf16>, vector<64x128xf32> -> vector<64x128xf32>
    %130 = arith.addf %123, %129 : vector<64x128xf32>
    %c2_123 = arith.constant 2 : index
    %c1_124 = arith.constant 1 : index
    %c0_125 = arith.constant 0 : index
    %131 = vector.load %arg9[%c2_123, %c1_124, %c0_125] : memref<10x10x128xf32, #tpu.memory_space<vmem>>, vector<8x8x128xf32>
    %132 = vector.shape_cast %131 : vector<8x8x128xf32> to vector<64x128xf32>
    %133 = arith.truncf %132 : vector<64x128xf32> to vector<64x128xbf16>
    %c7_126 = arith.constant 7 : index
    %c0_127 = arith.constant 0 : index
    %c0_128 = arith.constant 0 : index
    %134 = vector.load %arg5[%c7_126, %c0_127, %c0_128] : memref<9x128x128xbf16, #tpu.memory_space<vmem>>, vector<1x128x128xbf16>
    %135 = vector.shape_cast %134 : vector<1x128x128xbf16> to vector<128x128xbf16>
    %cst_129 = arith.constant dense<0.000000e+00> : vector<64x128xf32>
    %136 = tpu.matmul %133, %135, %cst_129 {dimension_numbers = #tpu.dot_dimension_numbers<[1], [0], [0], [1], [0, 0, 1, 1], [], []>} : vector<64x128xbf16>, vector<128x128xbf16>, vector<64x128xf32> -> vector<64x128xf32>
    %137 = arith.addf %130, %136 : vector<64x128xf32>
    %c2_130 = arith.constant 2 : index
    %c2_131 = arith.constant 2 : index
    %c0_132 = arith.constant 0 : index
    %138 = vector.load %arg9[%c2_130, %c2_131, %c0_132] : memref<10x10x128xf32, #tpu.memory_space<vmem>>, vector<8x8x128xf32>
    %139 = vector.shape_cast %138 : vector<8x8x128xf32> to vector<64x128xf32>
    %140 = arith.truncf %139 : vector<64x128xf32> to vector<64x128xbf16>
    %c8_133 = arith.constant 8 : index
    %c0_134 = arith.constant 0 : index
    %c0_135 = arith.constant 0 : index
    %141 = vector.load %arg5[%c8_133, %c0_134, %c0_135] : memref<9x128x128xbf16, #tpu.memory_space<vmem>>, vector<1x128x128xbf16>
    %142 = vector.shape_cast %141 : vector<1x128x128xbf16> to vector<128x128xbf16>
    %cst_136 = arith.constant dense<0.000000e+00> : vector<64x128xf32>
    %143 = tpu.matmul %140, %142, %cst_136 {dimension_numbers = #tpu.dot_dimension_numbers<[1], [0], [0], [1], [0, 0, 1, 1], [], []>} : vector<64x128xbf16>, vector<128x128xbf16>, vector<64x128xf32> -> vector<64x128xf32>
    %144 = arith.addf %137, %143 : vector<64x128xf32>
    %c0_137 = arith.constant 0 : index
    %c0_138 = arith.constant 0 : index
    %145 = vector.load %arg6[%c0_137, %c0_138] : memref<1x128xf32, #tpu.memory_space<vmem>>, vector<1x128xf32>
    %146 = vector.broadcast %145 : vector<1x128xf32> to vector<64x128xf32>
    %147 = arith.mulf %144, %146 : vector<64x128xf32>
    %c0_139 = arith.constant 0 : index
    %c0_140 = arith.constant 0 : index
    %148 = vector.load %arg7[%c0_139, %c0_140] : memref<1x128xf32, #tpu.memory_space<vmem>>, vector<1x128xf32>
    %149 = vector.broadcast %148 : vector<1x128xf32> to vector<64x128xf32>
    %150 = arith.addf %147, %149 : vector<64x128xf32>
    %c0_141 = arith.constant 0 : index
    %c1_142 = arith.constant 1 : index
    %c1_143 = arith.constant 1 : index
    %c0_144 = arith.constant 0 : index
    %151 = vector.load %arg1[%c0_141, %c1_142, %c1_143, %c0_144] : memref<1x10x10x128xf32, #tpu.memory_space<vmem>>, vector<1x8x8x128xf32>
    %152 = vector.shape_cast %151 : vector<1x8x8x128xf32> to vector<8x8x128xf32>
    %153 = vector.shape_cast %152 : vector<8x8x128xf32> to vector<64x128xf32>
    %154 = arith.addf %150, %153 : vector<64x128xf32>
    %cst_145 = arith.constant 0.000000e+00 : f32
    %155 = vector.broadcast %cst_145 : f32 to vector<64x128xf32>
    %156 = arith.maximumf %154, %155 : vector<64x128xf32>
    %cst_146 = arith.constant 0.000000e+00 : f32
    %157 = vector.broadcast %cst_146 : f32 to vector<1x10x10x128xf32>
    %c0_147 = arith.constant 0 : index
    %c0_148 = arith.constant 0 : index
    %c0_149 = arith.constant 0 : index
    %c0_150 = arith.constant 0 : index
    %158 = vector.load %arg8[%c0_147, %c0_148, %c0_149, %c0_150] : memref<1x10x10x128xf32, #tpu.memory_space<vmem>>, vector<1x10x10x128xf32>
    tpu.vector_store %arg8[%c0_147, %c0_148, %c0_149, %c0_150], %157 {strides = array<i32>} : memref<1x10x10x128xf32, #tpu.memory_space<vmem>>, vector<1x10x10x128xf32>,
    %159 = vector.shape_cast %156 : vector<64x128xf32> to vector<8x8x128xf32>
    %c0_151 = arith.constant 0 : index
    %c1_152 = arith.constant 1 : index
    %c1_153 = arith.constant 1 : index
    %c0_154 = arith.constant 0 : index
    %160 = vector.load %arg8[%c0_151, %c1_152, %c1_153, %c0_154] : memref<1x10x10x128xf32, #tpu.memory_space<vmem>>, vector<1x8x8x128xf32>
    %161 = vector.shape_cast %160 : vector<1x8x8x128xf32> to vector<8x8x128xf32>
    %162 = vector.shape_cast %159 : vector<8x8x128xf32> to vector<1x8x8x128xf32>
    tpu.vector_store %arg8[%c0_151, %c1_152, %c1_153, %c0_154], %162 {strides = array<i32>} : memref<1x10x10x128xf32, #tpu.memory_space<vmem>>, vector<1x8x8x128xf32>,
    return
  }
  func.func @transform_0(%arg0: i32) -> (i32, i32, i32, i32) {
    %c0_i32 = arith.constant 0 : i32
    %c0_i32_0 = arith.constant 0 : i32
    %c0_i32_1 = arith.constant 0 : i32
    %c0_i32_2 = arith.constant 0 : i32
    return %arg0, %c0_i32, %c0_i32_0, %c0_i32_1 : i32, i32, i32, i32
  }
  func.func @transform_1(%arg0: i32) -> (i32, i32, i32) {
    %c0_i32 = arith.constant 0 : i32
    %c0_i32_0 = arith.constant 0 : i32
    %c0_i32_1 = arith.constant 0 : i32
    %c0_i32_2 = arith.constant 0 : i32
    return %c0_i32, %c0_i32_0, %c0_i32_1 : i32, i32, i32
  }
  func.func @transform_2(%arg0: i32) -> (i32, i32) {
    %c0_i32 = arith.constant 0 : i32
    %c0_i32_0 = arith.constant 0 : i32
    %c0_i32_1 = arith.constant 0 : i32
    return %c0_i32, %c0_i32_0 : i32, i32
  }
  func.func @transform_3(%arg0: i32) -> (i32, i32) {
    %c0_i32 = arith.constant 0 : i32
    %c0_i32_0 = arith.constant 0 : i32
    %c0_i32_1 = arith.constant 0 : i32
    return %c0_i32, %c0_i32_0 : i32, i32
  }
  func.func @transform_4(%arg0: i32) -> (i32, i32, i32) {
    %c0_i32 = arith.constant 0 : i32
    %c0_i32_0 = arith.constant 0 : i32
    %c0_i32_1 = arith.constant 0 : i32
    %c0_i32_2 = arith.constant 0 : i32
    return %c0_i32, %c0_i32_0, %c0_i32_1 : i32, i32, i32
  }
  func.func @transform_5(%arg0: i32) -> (i32, i32) {
    %c0_i32 = arith.constant 0 : i32
    %c0_i32_0 = arith.constant 0 : i32
    %c0_i32_1 = arith.constant 0 : i32
    return %c0_i32, %c0_i32_0 : i32, i32
  }
  func.func @transform_6(%arg0: i32) -> (i32, i32) {
    %c0_i32 = arith.constant 0 : i32
    %c0_i32_0 = arith.constant 0 : i32
    %c0_i32_1 = arith.constant 0 : i32
    return %c0_i32, %c0_i32_0 : i32, i32
  }
  func.func @transform_7(%arg0: i32) -> (i32, i32, i32, i32) {
    %c0_i32 = arith.constant 0 : i32
    %c0_i32_0 = arith.constant 0 : i32
    %c0_i32_1 = arith.constant 0 : i32
    %c0_i32_2 = arith.constant 0 : i32
    return %arg0, %c0_i32, %c0_i32_0, %c0_i32_1 : i32, i32, i32, i32
  }
}

module attributes {stable_mosaic.version = 11 : i64} {
  func.func @kernel(%arg0: i32, %arg1: memref<1x10x10x128xf32, #tpu.memory_space<vmem>>, %arg2: memref<9x128x128xbf16, #tpu.memory_space<vmem>>, %arg3: memref<1x128xf32, #tpu.memory_space<vmem>>, %arg4: memref<1x128xf32, #tpu.memory_space<vmem>>, %arg5: memref<9x128x128xbf16, #tpu.memory_space<vmem>>, %arg6: memref<1x128xf32, #tpu.memory_space<vmem>>, %arg7: memref<1x128xf32, #tpu.memory_space<vmem>>, %arg8: memref<128x128xbf16, #tpu.memory_space<vmem>>, %arg9: memref<1x128xf32, #tpu.memory_space<vmem>>, %arg10: memref<1x128xf32, #tpu.memory_space<vmem>>, %arg11: memref<1x10x10x128xf32, #tpu.memory_space<vmem>>, %arg12: memref<10x10x128xf32, #tpu.memory_space<vmem>>) attributes {dimension_semantics = [#tpu.dimension_semantics<parallel>], iteration_bounds = array<i64: 2>, scalar_prefetch = 0 : i64, scratch_operands = 1 : i64, tpu.core_type = #tpu.core_type<tc>, window_params = [{transform_indices = @transform_0, window_bounds = array<i64: 1, 10, 10, 128>}, {pipeline_mode = #tpu.pipeline_mode<synchronous>, transform_indices = @transform_1, window_bounds = array<i64: 9, 128, 128>}, {pipeline_mode = #tpu.pipeline_mode<synchronous>, transform_indices = @transform_2, window_bounds = array<i64: 1, 128>}, {pipeline_mode = #tpu.pipeline_mode<synchronous>, transform_indices = @transform_3, window_bounds = array<i64: 1, 128>}, {pipeline_mode = #tpu.pipeline_mode<synchronous>, transform_indices = @transform_4, window_bounds = array<i64: 9, 128, 128>}, {pipeline_mode = #tpu.pipeline_mode<synchronous>, transform_indices = @transform_5, window_bounds = array<i64: 1, 128>}, {pipeline_mode = #tpu.pipeline_mode<synchronous>, transform_indices = @transform_6, window_bounds = array<i64: 1, 128>}, {pipeline_mode = #tpu.pipeline_mode<synchronous>, transform_indices = @transform_7, window_bounds = array<i64: 128, 128>}, {pipeline_mode = #tpu.pipeline_mode<synchronous>, transform_indices = @transform_8, window_bounds = array<i64: 1, 128>}, {pipeline_mode = #tpu.pipeline_mode<synchronous>, transform_indices = @transform_9, window_bounds = array<i64: 1, 128>}, {transform_indices = @transform_10, window_bounds = array<i64: 1, 10, 10, 128>}]} {
    %c0 = arith.constant 0 : index
    %c0_0 = arith.constant 0 : index
    %c0_1 = arith.constant 0 : index
    %c0_2 = arith.constant 0 : index
    %0 = vector.load %arg1[%c0, %c0_0, %c0_1, %c0_2] : memref<1x10x10x128xf32, #tpu.memory_space<vmem>>, vector<1x8x8x128xf32>
    %1 = vector.shape_cast %0 : vector<1x8x8x128xf32> to vector<8x8x128xf32>
    %2 = vector.shape_cast %1 : vector<8x8x128xf32> to vector<64x128xf32>
    %3 = arith.truncf %2 : vector<64x128xf32> to vector<64x128xbf16>
    %c0_3 = arith.constant 0 : index
    %c0_4 = arith.constant 0 : index
    %c0_5 = arith.constant 0 : index
    %4 = vector.load %arg2[%c0_3, %c0_4, %c0_5] : memref<9x128x128xbf16, #tpu.memory_space<vmem>>, vector<1x128x128xbf16>
    %5 = vector.shape_cast %4 : vector<1x128x128xbf16> to vector<128x128xbf16>
    %cst = arith.constant dense<0.000000e+00> : vector<64x128xf32>
    %6 = tpu.matmul %3, %5, %cst {dimension_numbers = #tpu.dot_dimension_numbers<[1], [0], [0], [1], [0, 0, 1, 1], [], []>} : vector<64x128xbf16>, vector<128x128xbf16>, vector<64x128xf32> -> vector<64x128xf32>
    %c0_6 = arith.constant 0 : index
    %c0_7 = arith.constant 0 : index
    %c1 = arith.constant 1 : index
    %c0_8 = arith.constant 0 : index
    %7 = vector.load %arg1[%c0_6, %c0_7, %c1, %c0_8] : memref<1x10x10x128xf32, #tpu.memory_space<vmem>>, vector<1x8x8x128xf32>
    %8 = vector.shape_cast %7 : vector<1x8x8x128xf32> to vector<8x8x128xf32>
    %9 = vector.shape_cast %8 : vector<8x8x128xf32> to vector<64x128xf32>
    %10 = arith.truncf %9 : vector<64x128xf32> to vector<64x128xbf16>
    %c1_9 = arith.constant 1 : index
    %c0_10 = arith.constant 0 : index
    %c0_11 = arith.constant 0 : index
    %11 = vector.load %arg2[%c1_9, %c0_10, %c0_11] : memref<9x128x128xbf16, #tpu.memory_space<vmem>>, vector<1x128x128xbf16>
    %12 = vector.shape_cast %11 : vector<1x128x128xbf16> to vector<128x128xbf16>
    %cst_12 = arith.constant dense<0.000000e+00> : vector<64x128xf32>
    %13 = tpu.matmul %10, %12, %cst_12 {dimension_numbers = #tpu.dot_dimension_numbers<[1], [0], [0], [1], [0, 0, 1, 1], [], []>} : vector<64x128xbf16>, vector<128x128xbf16>, vector<64x128xf32> -> vector<64x128xf32>
    %14 = arith.addf %6, %13 : vector<64x128xf32>
    %c0_13 = arith.constant 0 : index
    %c0_14 = arith.constant 0 : index
    %c2 = arith.constant 2 : index
    %c0_15 = arith.constant 0 : index
    %15 = vector.load %arg1[%c0_13, %c0_14, %c2, %c0_15] : memref<1x10x10x128xf32, #tpu.memory_space<vmem>>, vector<1x8x8x128xf32>
    %16 = vector.shape_cast %15 : vector<1x8x8x128xf32> to vector<8x8x128xf32>
    %17 = vector.shape_cast %16 : vector<8x8x128xf32> to vector<64x128xf32>
    %18 = arith.truncf %17 : vector<64x128xf32> to vector<64x128xbf16>
    %c2_16 = arith.constant 2 : index
    %c0_17 = arith.constant 0 : index
    %c0_18 = arith.constant 0 : index
    %19 = vector.load %arg2[%c2_16, %c0_17, %c0_18] : memref<9x128x128xbf16, #tpu.memory_space<vmem>>, vector<1x128x128xbf16>
    %20 = vector.shape_cast %19 : vector<1x128x128xbf16> to vector<128x128xbf16>
    %cst_19 = arith.constant dense<0.000000e+00> : vector<64x128xf32>
    %21 = tpu.matmul %18, %20, %cst_19 {dimension_numbers = #tpu.dot_dimension_numbers<[1], [0], [0], [1], [0, 0, 1, 1], [], []>} : vector<64x128xbf16>, vector<128x128xbf16>, vector<64x128xf32> -> vector<64x128xf32>
    %22 = arith.addf %14, %21 : vector<64x128xf32>
    %c0_20 = arith.constant 0 : index
    %c1_21 = arith.constant 1 : index
    %c0_22 = arith.constant 0 : index
    %c0_23 = arith.constant 0 : index
    %23 = vector.load %arg1[%c0_20, %c1_21, %c0_22, %c0_23] : memref<1x10x10x128xf32, #tpu.memory_space<vmem>>, vector<1x8x8x128xf32>
    %24 = vector.shape_cast %23 : vector<1x8x8x128xf32> to vector<8x8x128xf32>
    %25 = vector.shape_cast %24 : vector<8x8x128xf32> to vector<64x128xf32>
    %26 = arith.truncf %25 : vector<64x128xf32> to vector<64x128xbf16>
    %c3 = arith.constant 3 : index
    %c0_24 = arith.constant 0 : index
    %c0_25 = arith.constant 0 : index
    %27 = vector.load %arg2[%c3, %c0_24, %c0_25] : memref<9x128x128xbf16, #tpu.memory_space<vmem>>, vector<1x128x128xbf16>
    %28 = vector.shape_cast %27 : vector<1x128x128xbf16> to vector<128x128xbf16>
    %cst_26 = arith.constant dense<0.000000e+00> : vector<64x128xf32>
    %29 = tpu.matmul %26, %28, %cst_26 {dimension_numbers = #tpu.dot_dimension_numbers<[1], [0], [0], [1], [0, 0, 1, 1], [], []>} : vector<64x128xbf16>, vector<128x128xbf16>, vector<64x128xf32> -> vector<64x128xf32>
    %30 = arith.addf %22, %29 : vector<64x128xf32>
    %c0_27 = arith.constant 0 : index
    %c1_28 = arith.constant 1 : index
    %c1_29 = arith.constant 1 : index
    %c0_30 = arith.constant 0 : index
    %31 = vector.load %arg1[%c0_27, %c1_28, %c1_29, %c0_30] : memref<1x10x10x128xf32, #tpu.memory_space<vmem>>, vector<1x8x8x128xf32>
    %32 = vector.shape_cast %31 : vector<1x8x8x128xf32> to vector<8x8x128xf32>
    %33 = vector.shape_cast %32 : vector<8x8x128xf32> to vector<64x128xf32>
    %34 = arith.truncf %33 : vector<64x128xf32> to vector<64x128xbf16>
    %c4 = arith.constant 4 : index
    %c0_31 = arith.constant 0 : index
    %c0_32 = arith.constant 0 : index
    %35 = vector.load %arg2[%c4, %c0_31, %c0_32] : memref<9x128x128xbf16, #tpu.memory_space<vmem>>, vector<1x128x128xbf16>
    %36 = vector.shape_cast %35 : vector<1x128x128xbf16> to vector<128x128xbf16>
    %cst_33 = arith.constant dense<0.000000e+00> : vector<64x128xf32>
    %37 = tpu.matmul %34, %36, %cst_33 {dimension_numbers = #tpu.dot_dimension_numbers<[1], [0], [0], [1], [0, 0, 1, 1], [], []>} : vector<64x128xbf16>, vector<128x128xbf16>, vector<64x128xf32> -> vector<64x128xf32>
    %38 = arith.addf %30, %37 : vector<64x128xf32>
    %c0_34 = arith.constant 0 : index
    %c1_35 = arith.constant 1 : index
    %c2_36 = arith.constant 2 : index
    %c0_37 = arith.constant 0 : index
    %39 = vector.load %arg1[%c0_34, %c1_35, %c2_36, %c0_37] : memref<1x10x10x128xf32, #tpu.memory_space<vmem>>, vector<1x8x8x128xf32>
    %40 = vector.shape_cast %39 : vector<1x8x8x128xf32> to vector<8x8x128xf32>
    %41 = vector.shape_cast %40 : vector<8x8x128xf32> to vector<64x128xf32>
    %42 = arith.truncf %41 : vector<64x128xf32> to vector<64x128xbf16>
    %c5 = arith.constant 5 : index
    %c0_38 = arith.constant 0 : index
    %c0_39 = arith.constant 0 : index
    %43 = vector.load %arg2[%c5, %c0_38, %c0_39] : memref<9x128x128xbf16, #tpu.memory_space<vmem>>, vector<1x128x128xbf16>
    %44 = vector.shape_cast %43 : vector<1x128x128xbf16> to vector<128x128xbf16>
    %cst_40 = arith.constant dense<0.000000e+00> : vector<64x128xf32>
    %45 = tpu.matmul %42, %44, %cst_40 {dimension_numbers = #tpu.dot_dimension_numbers<[1], [0], [0], [1], [0, 0, 1, 1], [], []>} : vector<64x128xbf16>, vector<128x128xbf16>, vector<64x128xf32> -> vector<64x128xf32>
    %46 = arith.addf %38, %45 : vector<64x128xf32>
    %c0_41 = arith.constant 0 : index
    %c2_42 = arith.constant 2 : index
    %c0_43 = arith.constant 0 : index
    %c0_44 = arith.constant 0 : index
    %47 = vector.load %arg1[%c0_41, %c2_42, %c0_43, %c0_44] : memref<1x10x10x128xf32, #tpu.memory_space<vmem>>, vector<1x8x8x128xf32>
    %48 = vector.shape_cast %47 : vector<1x8x8x128xf32> to vector<8x8x128xf32>
    %49 = vector.shape_cast %48 : vector<8x8x128xf32> to vector<64x128xf32>
    %50 = arith.truncf %49 : vector<64x128xf32> to vector<64x128xbf16>
    %c6 = arith.constant 6 : index
    %c0_45 = arith.constant 0 : index
    %c0_46 = arith.constant 0 : index
    %51 = vector.load %arg2[%c6, %c0_45, %c0_46] : memref<9x128x128xbf16, #tpu.memory_space<vmem>>, vector<1x128x128xbf16>
    %52 = vector.shape_cast %51 : vector<1x128x128xbf16> to vector<128x128xbf16>
    %cst_47 = arith.constant dense<0.000000e+00> : vector<64x128xf32>
    %53 = tpu.matmul %50, %52, %cst_47 {dimension_numbers = #tpu.dot_dimension_numbers<[1], [0], [0], [1], [0, 0, 1, 1], [], []>} : vector<64x128xbf16>, vector<128x128xbf16>, vector<64x128xf32> -> vector<64x128xf32>
    %54 = arith.addf %46, %53 : vector<64x128xf32>
    %c0_48 = arith.constant 0 : index
    %c2_49 = arith.constant 2 : index
    %c1_50 = arith.constant 1 : index
    %c0_51 = arith.constant 0 : index
    %55 = vector.load %arg1[%c0_48, %c2_49, %c1_50, %c0_51] : memref<1x10x10x128xf32, #tpu.memory_space<vmem>>, vector<1x8x8x128xf32>
    %56 = vector.shape_cast %55 : vector<1x8x8x128xf32> to vector<8x8x128xf32>
    %57 = vector.shape_cast %56 : vector<8x8x128xf32> to vector<64x128xf32>
    %58 = arith.truncf %57 : vector<64x128xf32> to vector<64x128xbf16>
    %c7 = arith.constant 7 : index
    %c0_52 = arith.constant 0 : index
    %c0_53 = arith.constant 0 : index
    %59 = vector.load %arg2[%c7, %c0_52, %c0_53] : memref<9x128x128xbf16, #tpu.memory_space<vmem>>, vector<1x128x128xbf16>
    %60 = vector.shape_cast %59 : vector<1x128x128xbf16> to vector<128x128xbf16>
    %cst_54 = arith.constant dense<0.000000e+00> : vector<64x128xf32>
    %61 = tpu.matmul %58, %60, %cst_54 {dimension_numbers = #tpu.dot_dimension_numbers<[1], [0], [0], [1], [0, 0, 1, 1], [], []>} : vector<64x128xbf16>, vector<128x128xbf16>, vector<64x128xf32> -> vector<64x128xf32>
    %62 = arith.addf %54, %61 : vector<64x128xf32>
    %c0_55 = arith.constant 0 : index
    %c2_56 = arith.constant 2 : index
    %c2_57 = arith.constant 2 : index
    %c0_58 = arith.constant 0 : index
    %63 = vector.load %arg1[%c0_55, %c2_56, %c2_57, %c0_58] : memref<1x10x10x128xf32, #tpu.memory_space<vmem>>, vector<1x8x8x128xf32>
    %64 = vector.shape_cast %63 : vector<1x8x8x128xf32> to vector<8x8x128xf32>
    %65 = vector.shape_cast %64 : vector<8x8x128xf32> to vector<64x128xf32>
    %66 = arith.truncf %65 : vector<64x128xf32> to vector<64x128xbf16>
    %c8 = arith.constant 8 : index
    %c0_59 = arith.constant 0 : index
    %c0_60 = arith.constant 0 : index
    %67 = vector.load %arg2[%c8, %c0_59, %c0_60] : memref<9x128x128xbf16, #tpu.memory_space<vmem>>, vector<1x128x128xbf16>
    %68 = vector.shape_cast %67 : vector<1x128x128xbf16> to vector<128x128xbf16>
    %cst_61 = arith.constant dense<0.000000e+00> : vector<64x128xf32>
    %69 = tpu.matmul %66, %68, %cst_61 {dimension_numbers = #tpu.dot_dimension_numbers<[1], [0], [0], [1], [0, 0, 1, 1], [], []>} : vector<64x128xbf16>, vector<128x128xbf16>, vector<64x128xf32> -> vector<64x128xf32>
    %70 = arith.addf %62, %69 : vector<64x128xf32>
    %c0_62 = arith.constant 0 : index
    %c0_63 = arith.constant 0 : index
    %71 = vector.load %arg3[%c0_62, %c0_63] : memref<1x128xf32, #tpu.memory_space<vmem>>, vector<1x128xf32>
    %72 = vector.broadcast %71 : vector<1x128xf32> to vector<64x128xf32>
    %73 = arith.mulf %70, %72 : vector<64x128xf32>
    %c0_64 = arith.constant 0 : index
    %c0_65 = arith.constant 0 : index
    %74 = vector.load %arg4[%c0_64, %c0_65] : memref<1x128xf32, #tpu.memory_space<vmem>>, vector<1x128xf32>
    %75 = vector.broadcast %74 : vector<1x128xf32> to vector<64x128xf32>
    %76 = arith.addf %73, %75 : vector<64x128xf32>
    %cst_66 = arith.constant 0.000000e+00 : f32
    %77 = vector.broadcast %cst_66 : f32 to vector<64x128xf32>
    %78 = arith.maximumf %76, %77 : vector<64x128xf32>
    %cst_67 = arith.constant 0.000000e+00 : f32
    %79 = vector.broadcast %cst_67 : f32 to vector<10x10x128xf32>
    %c0_68 = arith.constant 0 : index
    %c0_69 = arith.constant 0 : index
    %c0_70 = arith.constant 0 : index
    %80 = vector.load %arg12[%c0_68, %c0_69, %c0_70] : memref<10x10x128xf32, #tpu.memory_space<vmem>>, vector<10x10x128xf32>
    tpu.vector_store %arg12[%c0_68, %c0_69, %c0_70], %79 {strides = array<i32>} : memref<10x10x128xf32, #tpu.memory_space<vmem>>, vector<10x10x128xf32>,
    %81 = vector.shape_cast %78 : vector<64x128xf32> to vector<8x8x128xf32>
    %c1_71 = arith.constant 1 : index
    %c1_72 = arith.constant 1 : index
    %c0_73 = arith.constant 0 : index
    %82 = vector.load %arg12[%c1_71, %c1_72, %c0_73] : memref<10x10x128xf32, #tpu.memory_space<vmem>>, vector<8x8x128xf32>
    tpu.vector_store %arg12[%c1_71, %c1_72, %c0_73], %81 {strides = array<i32>} : memref<10x10x128xf32, #tpu.memory_space<vmem>>, vector<8x8x128xf32>,
    %c0_74 = arith.constant 0 : index
    %c0_75 = arith.constant 0 : index
    %c0_76 = arith.constant 0 : index
    %83 = vector.load %arg12[%c0_74, %c0_75, %c0_76] : memref<10x10x128xf32, #tpu.memory_space<vmem>>, vector<8x8x128xf32>
    %84 = vector.shape_cast %83 : vector<8x8x128xf32> to vector<64x128xf32>
    %85 = arith.truncf %84 : vector<64x128xf32> to vector<64x128xbf16>
    %c0_77 = arith.constant 0 : index
    %c0_78 = arith.constant 0 : index
    %c0_79 = arith.constant 0 : index
    %86 = vector.load %arg5[%c0_77, %c0_78, %c0_79] : memref<9x128x128xbf16, #tpu.memory_space<vmem>>, vector<1x128x128xbf16>
    %87 = vector.shape_cast %86 : vector<1x128x128xbf16> to vector<128x128xbf16>
    %cst_80 = arith.constant dense<0.000000e+00> : vector<64x128xf32>
    %88 = tpu.matmul %85, %87, %cst_80 {dimension_numbers = #tpu.dot_dimension_numbers<[1], [0], [0], [1], [0, 0, 1, 1], [], []>} : vector<64x128xbf16>, vector<128x128xbf16>, vector<64x128xf32> -> vector<64x128xf32>
    %c0_81 = arith.constant 0 : index
    %c1_82 = arith.constant 1 : index
    %c0_83 = arith.constant 0 : index
    %89 = vector.load %arg12[%c0_81, %c1_82, %c0_83] : memref<10x10x128xf32, #tpu.memory_space<vmem>>, vector<8x8x128xf32>
    %90 = vector.shape_cast %89 : vector<8x8x128xf32> to vector<64x128xf32>
    %91 = arith.truncf %90 : vector<64x128xf32> to vector<64x128xbf16>
    %c1_84 = arith.constant 1 : index
    %c0_85 = arith.constant 0 : index
    %c0_86 = arith.constant 0 : index
    %92 = vector.load %arg5[%c1_84, %c0_85, %c0_86] : memref<9x128x128xbf16, #tpu.memory_space<vmem>>, vector<1x128x128xbf16>
    %93 = vector.shape_cast %92 : vector<1x128x128xbf16> to vector<128x128xbf16>
    %cst_87 = arith.constant dense<0.000000e+00> : vector<64x128xf32>
    %94 = tpu.matmul %91, %93, %cst_87 {dimension_numbers = #tpu.dot_dimension_numbers<[1], [0], [0], [1], [0, 0, 1, 1], [], []>} : vector<64x128xbf16>, vector<128x128xbf16>, vector<64x128xf32> -> vector<64x128xf32>
    %95 = arith.addf %88, %94 : vector<64x128xf32>
    %c0_88 = arith.constant 0 : index
    %c2_89 = arith.constant 2 : index
    %c0_90 = arith.constant 0 : index
    %96 = vector.load %arg12[%c0_88, %c2_89, %c0_90] : memref<10x10x128xf32, #tpu.memory_space<vmem>>, vector<8x8x128xf32>
    %97 = vector.shape_cast %96 : vector<8x8x128xf32> to vector<64x128xf32>
    %98 = arith.truncf %97 : vector<64x128xf32> to vector<64x128xbf16>
    %c2_91 = arith.constant 2 : index
    %c0_92 = arith.constant 0 : index
    %c0_93 = arith.constant 0 : index
    %99 = vector.load %arg5[%c2_91, %c0_92, %c0_93] : memref<9x128x128xbf16, #tpu.memory_space<vmem>>, vector<1x128x128xbf16>
    %100 = vector.shape_cast %99 : vector<1x128x128xbf16> to vector<128x128xbf16>
    %cst_94 = arith.constant dense<0.000000e+00> : vector<64x128xf32>
    %101 = tpu.matmul %98, %100, %cst_94 {dimension_numbers = #tpu.dot_dimension_numbers<[1], [0], [0], [1], [0, 0, 1, 1], [], []>} : vector<64x128xbf16>, vector<128x128xbf16>, vector<64x128xf32> -> vector<64x128xf32>
    %102 = arith.addf %95, %101 : vector<64x128xf32>
    %c1_95 = arith.constant 1 : index
    %c0_96 = arith.constant 0 : index
    %c0_97 = arith.constant 0 : index
    %103 = vector.load %arg12[%c1_95, %c0_96, %c0_97] : memref<10x10x128xf32, #tpu.memory_space<vmem>>, vector<8x8x128xf32>
    %104 = vector.shape_cast %103 : vector<8x8x128xf32> to vector<64x128xf32>
    %105 = arith.truncf %104 : vector<64x128xf32> to vector<64x128xbf16>
    %c3_98 = arith.constant 3 : index
    %c0_99 = arith.constant 0 : index
    %c0_100 = arith.constant 0 : index
    %106 = vector.load %arg5[%c3_98, %c0_99, %c0_100] : memref<9x128x128xbf16, #tpu.memory_space<vmem>>, vector<1x128x128xbf16>
    %107 = vector.shape_cast %106 : vector<1x128x128xbf16> to vector<128x128xbf16>
    %cst_101 = arith.constant dense<0.000000e+00> : vector<64x128xf32>
    %108 = tpu.matmul %105, %107, %cst_101 {dimension_numbers = #tpu.dot_dimension_numbers<[1], [0], [0], [1], [0, 0, 1, 1], [], []>} : vector<64x128xbf16>, vector<128x128xbf16>, vector<64x128xf32> -> vector<64x128xf32>
    %109 = arith.addf %102, %108 : vector<64x128xf32>
    %c1_102 = arith.constant 1 : index
    %c1_103 = arith.constant 1 : index
    %c0_104 = arith.constant 0 : index
    %110 = vector.load %arg12[%c1_102, %c1_103, %c0_104] : memref<10x10x128xf32, #tpu.memory_space<vmem>>, vector<8x8x128xf32>
    %111 = vector.shape_cast %110 : vector<8x8x128xf32> to vector<64x128xf32>
    %112 = arith.truncf %111 : vector<64x128xf32> to vector<64x128xbf16>
    %c4_105 = arith.constant 4 : index
    %c0_106 = arith.constant 0 : index
    %c0_107 = arith.constant 0 : index
    %113 = vector.load %arg5[%c4_105, %c0_106, %c0_107] : memref<9x128x128xbf16, #tpu.memory_space<vmem>>, vector<1x128x128xbf16>
    %114 = vector.shape_cast %113 : vector<1x128x128xbf16> to vector<128x128xbf16>
    %cst_108 = arith.constant dense<0.000000e+00> : vector<64x128xf32>
    %115 = tpu.matmul %112, %114, %cst_108 {dimension_numbers = #tpu.dot_dimension_numbers<[1], [0], [0], [1], [0, 0, 1, 1], [], []>} : vector<64x128xbf16>, vector<128x128xbf16>, vector<64x128xf32> -> vector<64x128xf32>
    %116 = arith.addf %109, %115 : vector<64x128xf32>
    %c1_109 = arith.constant 1 : index
    %c2_110 = arith.constant 2 : index
    %c0_111 = arith.constant 0 : index
    %117 = vector.load %arg12[%c1_109, %c2_110, %c0_111] : memref<10x10x128xf32, #tpu.memory_space<vmem>>, vector<8x8x128xf32>
    %118 = vector.shape_cast %117 : vector<8x8x128xf32> to vector<64x128xf32>
    %119 = arith.truncf %118 : vector<64x128xf32> to vector<64x128xbf16>
    %c5_112 = arith.constant 5 : index
    %c0_113 = arith.constant 0 : index
    %c0_114 = arith.constant 0 : index
    %120 = vector.load %arg5[%c5_112, %c0_113, %c0_114] : memref<9x128x128xbf16, #tpu.memory_space<vmem>>, vector<1x128x128xbf16>
    %121 = vector.shape_cast %120 : vector<1x128x128xbf16> to vector<128x128xbf16>
    %cst_115 = arith.constant dense<0.000000e+00> : vector<64x128xf32>
    %122 = tpu.matmul %119, %121, %cst_115 {dimension_numbers = #tpu.dot_dimension_numbers<[1], [0], [0], [1], [0, 0, 1, 1], [], []>} : vector<64x128xbf16>, vector<128x128xbf16>, vector<64x128xf32> -> vector<64x128xf32>
    %123 = arith.addf %116, %122 : vector<64x128xf32>
    %c2_116 = arith.constant 2 : index
    %c0_117 = arith.constant 0 : index
    %c0_118 = arith.constant 0 : index
    %124 = vector.load %arg12[%c2_116, %c0_117, %c0_118] : memref<10x10x128xf32, #tpu.memory_space<vmem>>, vector<8x8x128xf32>
    %125 = vector.shape_cast %124 : vector<8x8x128xf32> to vector<64x128xf32>
    %126 = arith.truncf %125 : vector<64x128xf32> to vector<64x128xbf16>
    %c6_119 = arith.constant 6 : index
    %c0_120 = arith.constant 0 : index
    %c0_121 = arith.constant 0 : index
    %127 = vector.load %arg5[%c6_119, %c0_120, %c0_121] : memref<9x128x128xbf16, #tpu.memory_space<vmem>>, vector<1x128x128xbf16>
    %128 = vector.shape_cast %127 : vector<1x128x128xbf16> to vector<128x128xbf16>
    %cst_122 = arith.constant dense<0.000000e+00> : vector<64x128xf32>
    %129 = tpu.matmul %126, %128, %cst_122 {dimension_numbers = #tpu.dot_dimension_numbers<[1], [0], [0], [1], [0, 0, 1, 1], [], []>} : vector<64x128xbf16>, vector<128x128xbf16>, vector<64x128xf32> -> vector<64x128xf32>
    %130 = arith.addf %123, %129 : vector<64x128xf32>
    %c2_123 = arith.constant 2 : index
    %c1_124 = arith.constant 1 : index
    %c0_125 = arith.constant 0 : index
    %131 = vector.load %arg12[%c2_123, %c1_124, %c0_125] : memref<10x10x128xf32, #tpu.memory_space<vmem>>, vector<8x8x128xf32>
    %132 = vector.shape_cast %131 : vector<8x8x128xf32> to vector<64x128xf32>
    %133 = arith.truncf %132 : vector<64x128xf32> to vector<64x128xbf16>
    %c7_126 = arith.constant 7 : index
    %c0_127 = arith.constant 0 : index
    %c0_128 = arith.constant 0 : index
    %134 = vector.load %arg5[%c7_126, %c0_127, %c0_128] : memref<9x128x128xbf16, #tpu.memory_space<vmem>>, vector<1x128x128xbf16>
    %135 = vector.shape_cast %134 : vector<1x128x128xbf16> to vector<128x128xbf16>
    %cst_129 = arith.constant dense<0.000000e+00> : vector<64x128xf32>
    %136 = tpu.matmul %133, %135, %cst_129 {dimension_numbers = #tpu.dot_dimension_numbers<[1], [0], [0], [1], [0, 0, 1, 1], [], []>} : vector<64x128xbf16>, vector<128x128xbf16>, vector<64x128xf32> -> vector<64x128xf32>
    %137 = arith.addf %130, %136 : vector<64x128xf32>
    %c2_130 = arith.constant 2 : index
    %c2_131 = arith.constant 2 : index
    %c0_132 = arith.constant 0 : index
    %138 = vector.load %arg12[%c2_130, %c2_131, %c0_132] : memref<10x10x128xf32, #tpu.memory_space<vmem>>, vector<8x8x128xf32>
    %139 = vector.shape_cast %138 : vector<8x8x128xf32> to vector<64x128xf32>
    %140 = arith.truncf %139 : vector<64x128xf32> to vector<64x128xbf16>
    %c8_133 = arith.constant 8 : index
    %c0_134 = arith.constant 0 : index
    %c0_135 = arith.constant 0 : index
    %141 = vector.load %arg5[%c8_133, %c0_134, %c0_135] : memref<9x128x128xbf16, #tpu.memory_space<vmem>>, vector<1x128x128xbf16>
    %142 = vector.shape_cast %141 : vector<1x128x128xbf16> to vector<128x128xbf16>
    %cst_136 = arith.constant dense<0.000000e+00> : vector<64x128xf32>
    %143 = tpu.matmul %140, %142, %cst_136 {dimension_numbers = #tpu.dot_dimension_numbers<[1], [0], [0], [1], [0, 0, 1, 1], [], []>} : vector<64x128xbf16>, vector<128x128xbf16>, vector<64x128xf32> -> vector<64x128xf32>
    %144 = arith.addf %137, %143 : vector<64x128xf32>
    %c0_137 = arith.constant 0 : index
    %c0_138 = arith.constant 0 : index
    %145 = vector.load %arg6[%c0_137, %c0_138] : memref<1x128xf32, #tpu.memory_space<vmem>>, vector<1x128xf32>
    %146 = vector.broadcast %145 : vector<1x128xf32> to vector<64x128xf32>
    %147 = arith.mulf %144, %146 : vector<64x128xf32>
    %c0_139 = arith.constant 0 : index
    %c0_140 = arith.constant 0 : index
    %148 = vector.load %arg7[%c0_139, %c0_140] : memref<1x128xf32, #tpu.memory_space<vmem>>, vector<1x128xf32>
    %149 = vector.broadcast %148 : vector<1x128xf32> to vector<64x128xf32>
    %150 = arith.addf %147, %149 : vector<64x128xf32>
    %c0_141 = arith.constant 0 : index
    %c1_142 = arith.constant 1 : index
    %c1_143 = arith.constant 1 : index
    %c0_144 = arith.constant 0 : index
    %151 = vector.load %arg1[%c0_141, %c1_142, %c1_143, %c0_144] : memref<1x10x10x128xf32, #tpu.memory_space<vmem>>, vector<1x8x8x128xf32>
    %152 = vector.shape_cast %151 : vector<1x8x8x128xf32> to vector<8x8x128xf32>
    %153 = vector.shape_cast %152 : vector<8x8x128xf32> to vector<64x128xf32>
    %154 = arith.truncf %153 : vector<64x128xf32> to vector<64x128xbf16>
    %c0_145 = arith.constant 0 : index
    %c0_146 = arith.constant 0 : index
    %155 = vector.load %arg8[%c0_145, %c0_146] : memref<128x128xbf16, #tpu.memory_space<vmem>>, vector<128x128xbf16>
    %cst_147 = arith.constant dense<0.000000e+00> : vector<64x128xf32>
    %156 = tpu.matmul %154, %155, %cst_147 {dimension_numbers = #tpu.dot_dimension_numbers<[1], [0], [0], [1], [0, 0, 1, 1], [], []>} : vector<64x128xbf16>, vector<128x128xbf16>, vector<64x128xf32> -> vector<64x128xf32>
    %c0_148 = arith.constant 0 : index
    %c0_149 = arith.constant 0 : index
    %157 = vector.load %arg9[%c0_148, %c0_149] : memref<1x128xf32, #tpu.memory_space<vmem>>, vector<1x128xf32>
    %158 = vector.broadcast %157 : vector<1x128xf32> to vector<64x128xf32>
    %159 = arith.mulf %156, %158 : vector<64x128xf32>
    %c0_150 = arith.constant 0 : index
    %c0_151 = arith.constant 0 : index
    %160 = vector.load %arg10[%c0_150, %c0_151] : memref<1x128xf32, #tpu.memory_space<vmem>>, vector<1x128xf32>
    %161 = vector.broadcast %160 : vector<1x128xf32> to vector<64x128xf32>
    %162 = arith.addf %159, %161 : vector<64x128xf32>
    %163 = arith.addf %150, %162 : vector<64x128xf32>
    %cst_152 = arith.constant 0.000000e+00 : f32
    %164 = vector.broadcast %cst_152 : f32 to vector<64x128xf32>
    %165 = arith.maximumf %163, %164 : vector<64x128xf32>
    %cst_153 = arith.constant 0.000000e+00 : f32
    %166 = vector.broadcast %cst_153 : f32 to vector<1x10x10x128xf32>
    %c0_154 = arith.constant 0 : index
    %c0_155 = arith.constant 0 : index
    %c0_156 = arith.constant 0 : index
    %c0_157 = arith.constant 0 : index
    %167 = vector.load %arg11[%c0_154, %c0_155, %c0_156, %c0_157] : memref<1x10x10x128xf32, #tpu.memory_space<vmem>>, vector<1x10x10x128xf32>
    tpu.vector_store %arg11[%c0_154, %c0_155, %c0_156, %c0_157], %166 {strides = array<i32>} : memref<1x10x10x128xf32, #tpu.memory_space<vmem>>, vector<1x10x10x128xf32>,
    %168 = vector.shape_cast %165 : vector<64x128xf32> to vector<8x8x128xf32>
    %c0_158 = arith.constant 0 : index
    %c1_159 = arith.constant 1 : index
    %c1_160 = arith.constant 1 : index
    %c0_161 = arith.constant 0 : index
    %169 = vector.load %arg11[%c0_158, %c1_159, %c1_160, %c0_161] : memref<1x10x10x128xf32, #tpu.memory_space<vmem>>, vector<1x8x8x128xf32>
    %170 = vector.shape_cast %169 : vector<1x8x8x128xf32> to vector<8x8x128xf32>
    %171 = vector.shape_cast %168 : vector<8x8x128xf32> to vector<1x8x8x128xf32>
    tpu.vector_store %arg11[%c0_158, %c1_159, %c1_160, %c0_161], %171 {strides = array<i32>} : memref<1x10x10x128xf32, #tpu.memory_space<vmem>>, vector<1x8x8x128xf32>,
    return
  }
  func.func @transform_0(%arg0: i32) -> (i32, i32, i32, i32) {
    %c0_i32 = arith.constant 0 : i32
    %c0_i32_0 = arith.constant 0 : i32
    %c0_i32_1 = arith.constant 0 : i32
    %c0_i32_2 = arith.constant 0 : i32
    return %arg0, %c0_i32, %c0_i32_0, %c0_i32_1 : i32, i32, i32, i32
  }
  func.func @transform_1(%arg0: i32) -> (i32, i32, i32) {
    %c0_i32 = arith.constant 0 : i32
    %c0_i32_0 = arith.constant 0 : i32
    %c0_i32_1 = arith.constant 0 : i32
    %c0_i32_2 = arith.constant 0 : i32
    return %c0_i32, %c0_i32_0, %c0_i32_1 : i32, i32, i32
  }
  func.func @transform_2(%arg0: i32) -> (i32, i32) {
    %c0_i32 = arith.constant 0 : i32
    %c0_i32_0 = arith.constant 0 : i32
    %c0_i32_1 = arith.constant 0 : i32
    return %c0_i32, %c0_i32_0 : i32, i32
  }
  func.func @transform_3(%arg0: i32) -> (i32, i32) {
    %c0_i32 = arith.constant 0 : i32
    %c0_i32_0 = arith.constant 0 : i32
    %c0_i32_1 = arith.constant 0 : i32
    return %c0_i32, %c0_i32_0 : i32, i32
  }
  func.func @transform_4(%arg0: i32) -> (i32, i32, i32) {
    %c0_i32 = arith.constant 0 : i32
    %c0_i32_0 = arith.constant 0 : i32
    %c0_i32_1 = arith.constant 0 : i32
    %c0_i32_2 = arith.constant 0 : i32
    return %c0_i32, %c0_i32_0, %c0_i32_1 : i32, i32, i32
  }
  func.func @transform_5(%arg0: i32) -> (i32, i32) {
    %c0_i32 = arith.constant 0 : i32
    %c0_i32_0 = arith.constant 0 : i32
    %c0_i32_1 = arith.constant 0 : i32
    return %c0_i32, %c0_i32_0 : i32, i32
  }
  func.func @transform_6(%arg0: i32) -> (i32, i32) {
    %c0_i32 = arith.constant 0 : i32
    %c0_i32_0 = arith.constant 0 : i32
    %c0_i32_1 = arith.constant 0 : i32
    return %c0_i32, %c0_i32_0 : i32, i32
  }
  func.func @transform_7(%arg0: i32) -> (i32, i32) {
    %c0_i32 = arith.constant 0 : i32
    %c0_i32_0 = arith.constant 0 : i32
    %c0_i32_1 = arith.constant 0 : i32
    return %c0_i32, %c0_i32_0 : i32, i32
  }
  func.func @transform_8(%arg0: i32) -> (i32, i32) {
    %c0_i32 = arith.constant 0 : i32
    %c0_i32_0 = arith.constant 0 : i32
    %c0_i32_1 = arith.constant 0 : i32
    return %c0_i32, %c0_i32_0 : i32, i32
  }
  func.func @transform_9(%arg0: i32) -> (i32, i32) {
    %c0_i32 = arith.constant 0 : i32
    %c0_i32_0 = arith.constant 0 : i32
    %c0_i32_1 = arith.constant 0 : i32
    return %c0_i32, %c0_i32_0 : i32, i32
  }
  func.func @transform_10(%arg0: i32) -> (i32, i32, i32, i32) {
    %c0_i32 = arith.constant 0 : i32
    %c0_i32_0 = arith.constant 0 : i32
    %c0_i32_1 = arith.constant 0 : i32
    %c0_i32_2 = arith.constant 0 : i32
    return %arg0, %c0_i32, %c0_i32_0, %c0_i32_1 : i32, i32, i32, i32
  }
}

module attributes {stable_mosaic.version = 11 : i64} {
  func.func @kernel(%arg0: i32, %arg1: memref<1x10x10x128xf32, #tpu.memory_space<vmem>>, %arg2: memref<9x128x128xbf16, #tpu.memory_space<vmem>>, %arg3: memref<1x128xf32, #tpu.memory_space<vmem>>, %arg4: memref<1x128xf32, #tpu.memory_space<vmem>>, %arg5: memref<9x128x128xbf16, #tpu.memory_space<vmem>>, %arg6: memref<1x128xf32, #tpu.memory_space<vmem>>, %arg7: memref<1x128xf32, #tpu.memory_space<vmem>>, %arg8: memref<128x128xbf16, #tpu.memory_space<vmem>>, %arg9: memref<1x128xf32, #tpu.memory_space<vmem>>, %arg10: memref<1x128xf32, #tpu.memory_space<vmem>>, %arg11: memref<1x1x128xf32, #tpu.memory_space<vmem>>, %arg12: memref<10x10x128xf32, #tpu.memory_space<vmem>>) attributes {dimension_semantics = [#tpu.dimension_semantics<parallel>], iteration_bounds = array<i64: 2>, scalar_prefetch = 0 : i64, scratch_operands = 1 : i64, tpu.core_type = #tpu.core_type<tc>, window_params = [{transform_indices = @transform_0, window_bounds = array<i64: 1, 10, 10, 128>}, {pipeline_mode = #tpu.pipeline_mode<synchronous>, transform_indices = @transform_1, window_bounds = array<i64: 9, 128, 128>}, {pipeline_mode = #tpu.pipeline_mode<synchronous>, transform_indices = @transform_2, window_bounds = array<i64: 1, 128>}, {pipeline_mode = #tpu.pipeline_mode<synchronous>, transform_indices = @transform_3, window_bounds = array<i64: 1, 128>}, {pipeline_mode = #tpu.pipeline_mode<synchronous>, transform_indices = @transform_4, window_bounds = array<i64: 9, 128, 128>}, {pipeline_mode = #tpu.pipeline_mode<synchronous>, transform_indices = @transform_5, window_bounds = array<i64: 1, 128>}, {pipeline_mode = #tpu.pipeline_mode<synchronous>, transform_indices = @transform_6, window_bounds = array<i64: 1, 128>}, {pipeline_mode = #tpu.pipeline_mode<synchronous>, transform_indices = @transform_7, window_bounds = array<i64: 128, 128>}, {pipeline_mode = #tpu.pipeline_mode<synchronous>, transform_indices = @transform_8, window_bounds = array<i64: 1, 128>}, {pipeline_mode = #tpu.pipeline_mode<synchronous>, transform_indices = @transform_9, window_bounds = array<i64: 1, 128>}, {transform_indices = @transform_10, window_bounds = array<i64: 1, 1, 128>}]} {
    %c0 = arith.constant 0 : index
    %c0_0 = arith.constant 0 : index
    %c0_1 = arith.constant 0 : index
    %c0_2 = arith.constant 0 : index
    %0 = vector.load %arg1[%c0, %c0_0, %c0_1, %c0_2] : memref<1x10x10x128xf32, #tpu.memory_space<vmem>>, vector<1x8x8x128xf32>
    %1 = vector.shape_cast %0 : vector<1x8x8x128xf32> to vector<8x8x128xf32>
    %2 = vector.shape_cast %1 : vector<8x8x128xf32> to vector<64x128xf32>
    %3 = arith.truncf %2 : vector<64x128xf32> to vector<64x128xbf16>
    %c0_3 = arith.constant 0 : index
    %c0_4 = arith.constant 0 : index
    %c0_5 = arith.constant 0 : index
    %4 = vector.load %arg2[%c0_3, %c0_4, %c0_5] : memref<9x128x128xbf16, #tpu.memory_space<vmem>>, vector<1x128x128xbf16>
    %5 = vector.shape_cast %4 : vector<1x128x128xbf16> to vector<128x128xbf16>
    %cst = arith.constant dense<0.000000e+00> : vector<64x128xf32>
    %6 = tpu.matmul %3, %5, %cst {dimension_numbers = #tpu.dot_dimension_numbers<[1], [0], [0], [1], [0, 0, 1, 1], [], []>} : vector<64x128xbf16>, vector<128x128xbf16>, vector<64x128xf32> -> vector<64x128xf32>
    %c0_6 = arith.constant 0 : index
    %c0_7 = arith.constant 0 : index
    %c1 = arith.constant 1 : index
    %c0_8 = arith.constant 0 : index
    %7 = vector.load %arg1[%c0_6, %c0_7, %c1, %c0_8] : memref<1x10x10x128xf32, #tpu.memory_space<vmem>>, vector<1x8x8x128xf32>
    %8 = vector.shape_cast %7 : vector<1x8x8x128xf32> to vector<8x8x128xf32>
    %9 = vector.shape_cast %8 : vector<8x8x128xf32> to vector<64x128xf32>
    %10 = arith.truncf %9 : vector<64x128xf32> to vector<64x128xbf16>
    %c1_9 = arith.constant 1 : index
    %c0_10 = arith.constant 0 : index
    %c0_11 = arith.constant 0 : index
    %11 = vector.load %arg2[%c1_9, %c0_10, %c0_11] : memref<9x128x128xbf16, #tpu.memory_space<vmem>>, vector<1x128x128xbf16>
    %12 = vector.shape_cast %11 : vector<1x128x128xbf16> to vector<128x128xbf16>
    %cst_12 = arith.constant dense<0.000000e+00> : vector<64x128xf32>
    %13 = tpu.matmul %10, %12, %cst_12 {dimension_numbers = #tpu.dot_dimension_numbers<[1], [0], [0], [1], [0, 0, 1, 1], [], []>} : vector<64x128xbf16>, vector<128x128xbf16>, vector<64x128xf32> -> vector<64x128xf32>
    %14 = arith.addf %6, %13 : vector<64x128xf32>
    %c0_13 = arith.constant 0 : index
    %c0_14 = arith.constant 0 : index
    %c2 = arith.constant 2 : index
    %c0_15 = arith.constant 0 : index
    %15 = vector.load %arg1[%c0_13, %c0_14, %c2, %c0_15] : memref<1x10x10x128xf32, #tpu.memory_space<vmem>>, vector<1x8x8x128xf32>
    %16 = vector.shape_cast %15 : vector<1x8x8x128xf32> to vector<8x8x128xf32>
    %17 = vector.shape_cast %16 : vector<8x8x128xf32> to vector<64x128xf32>
    %18 = arith.truncf %17 : vector<64x128xf32> to vector<64x128xbf16>
    %c2_16 = arith.constant 2 : index
    %c0_17 = arith.constant 0 : index
    %c0_18 = arith.constant 0 : index
    %19 = vector.load %arg2[%c2_16, %c0_17, %c0_18] : memref<9x128x128xbf16, #tpu.memory_space<vmem>>, vector<1x128x128xbf16>
    %20 = vector.shape_cast %19 : vector<1x128x128xbf16> to vector<128x128xbf16>
    %cst_19 = arith.constant dense<0.000000e+00> : vector<64x128xf32>
    %21 = tpu.matmul %18, %20, %cst_19 {dimension_numbers = #tpu.dot_dimension_numbers<[1], [0], [0], [1], [0, 0, 1, 1], [], []>} : vector<64x128xbf16>, vector<128x128xbf16>, vector<64x128xf32> -> vector<64x128xf32>
    %22 = arith.addf %14, %21 : vector<64x128xf32>
    %c0_20 = arith.constant 0 : index
    %c1_21 = arith.constant 1 : index
    %c0_22 = arith.constant 0 : index
    %c0_23 = arith.constant 0 : index
    %23 = vector.load %arg1[%c0_20, %c1_21, %c0_22, %c0_23] : memref<1x10x10x128xf32, #tpu.memory_space<vmem>>, vector<1x8x8x128xf32>
    %24 = vector.shape_cast %23 : vector<1x8x8x128xf32> to vector<8x8x128xf32>
    %25 = vector.shape_cast %24 : vector<8x8x128xf32> to vector<64x128xf32>
    %26 = arith.truncf %25 : vector<64x128xf32> to vector<64x128xbf16>
    %c3 = arith.constant 3 : index
    %c0_24 = arith.constant 0 : index
    %c0_25 = arith.constant 0 : index
    %27 = vector.load %arg2[%c3, %c0_24, %c0_25] : memref<9x128x128xbf16, #tpu.memory_space<vmem>>, vector<1x128x128xbf16>
    %28 = vector.shape_cast %27 : vector<1x128x128xbf16> to vector<128x128xbf16>
    %cst_26 = arith.constant dense<0.000000e+00> : vector<64x128xf32>
    %29 = tpu.matmul %26, %28, %cst_26 {dimension_numbers = #tpu.dot_dimension_numbers<[1], [0], [0], [1], [0, 0, 1, 1], [], []>} : vector<64x128xbf16>, vector<128x128xbf16>, vector<64x128xf32> -> vector<64x128xf32>
    %30 = arith.addf %22, %29 : vector<64x128xf32>
    %c0_27 = arith.constant 0 : index
    %c1_28 = arith.constant 1 : index
    %c1_29 = arith.constant 1 : index
    %c0_30 = arith.constant 0 : index
    %31 = vector.load %arg1[%c0_27, %c1_28, %c1_29, %c0_30] : memref<1x10x10x128xf32, #tpu.memory_space<vmem>>, vector<1x8x8x128xf32>
    %32 = vector.shape_cast %31 : vector<1x8x8x128xf32> to vector<8x8x128xf32>
    %33 = vector.shape_cast %32 : vector<8x8x128xf32> to vector<64x128xf32>
    %34 = arith.truncf %33 : vector<64x128xf32> to vector<64x128xbf16>
    %c4 = arith.constant 4 : index
    %c0_31 = arith.constant 0 : index
    %c0_32 = arith.constant 0 : index
    %35 = vector.load %arg2[%c4, %c0_31, %c0_32] : memref<9x128x128xbf16, #tpu.memory_space<vmem>>, vector<1x128x128xbf16>
    %36 = vector.shape_cast %35 : vector<1x128x128xbf16> to vector<128x128xbf16>
    %cst_33 = arith.constant dense<0.000000e+00> : vector<64x128xf32>
    %37 = tpu.matmul %34, %36, %cst_33 {dimension_numbers = #tpu.dot_dimension_numbers<[1], [0], [0], [1], [0, 0, 1, 1], [], []>} : vector<64x128xbf16>, vector<128x128xbf16>, vector<64x128xf32> -> vector<64x128xf32>
    %38 = arith.addf %30, %37 : vector<64x128xf32>
    %c0_34 = arith.constant 0 : index
    %c1_35 = arith.constant 1 : index
    %c2_36 = arith.constant 2 : index
    %c0_37 = arith.constant 0 : index
    %39 = vector.load %arg1[%c0_34, %c1_35, %c2_36, %c0_37] : memref<1x10x10x128xf32, #tpu.memory_space<vmem>>, vector<1x8x8x128xf32>
    %40 = vector.shape_cast %39 : vector<1x8x8x128xf32> to vector<8x8x128xf32>
    %41 = vector.shape_cast %40 : vector<8x8x128xf32> to vector<64x128xf32>
    %42 = arith.truncf %41 : vector<64x128xf32> to vector<64x128xbf16>
    %c5 = arith.constant 5 : index
    %c0_38 = arith.constant 0 : index
    %c0_39 = arith.constant 0 : index
    %43 = vector.load %arg2[%c5, %c0_38, %c0_39] : memref<9x128x128xbf16, #tpu.memory_space<vmem>>, vector<1x128x128xbf16>
    %44 = vector.shape_cast %43 : vector<1x128x128xbf16> to vector<128x128xbf16>
    %cst_40 = arith.constant dense<0.000000e+00> : vector<64x128xf32>
    %45 = tpu.matmul %42, %44, %cst_40 {dimension_numbers = #tpu.dot_dimension_numbers<[1], [0], [0], [1], [0, 0, 1, 1], [], []>} : vector<64x128xbf16>, vector<128x128xbf16>, vector<64x128xf32> -> vector<64x128xf32>
    %46 = arith.addf %38, %45 : vector<64x128xf32>
    %c0_41 = arith.constant 0 : index
    %c2_42 = arith.constant 2 : index
    %c0_43 = arith.constant 0 : index
    %c0_44 = arith.constant 0 : index
    %47 = vector.load %arg1[%c0_41, %c2_42, %c0_43, %c0_44] : memref<1x10x10x128xf32, #tpu.memory_space<vmem>>, vector<1x8x8x128xf32>
    %48 = vector.shape_cast %47 : vector<1x8x8x128xf32> to vector<8x8x128xf32>
    %49 = vector.shape_cast %48 : vector<8x8x128xf32> to vector<64x128xf32>
    %50 = arith.truncf %49 : vector<64x128xf32> to vector<64x128xbf16>
    %c6 = arith.constant 6 : index
    %c0_45 = arith.constant 0 : index
    %c0_46 = arith.constant 0 : index
    %51 = vector.load %arg2[%c6, %c0_45, %c0_46] : memref<9x128x128xbf16, #tpu.memory_space<vmem>>, vector<1x128x128xbf16>
    %52 = vector.shape_cast %51 : vector<1x128x128xbf16> to vector<128x128xbf16>
    %cst_47 = arith.constant dense<0.000000e+00> : vector<64x128xf32>
    %53 = tpu.matmul %50, %52, %cst_47 {dimension_numbers = #tpu.dot_dimension_numbers<[1], [0], [0], [1], [0, 0, 1, 1], [], []>} : vector<64x128xbf16>, vector<128x128xbf16>, vector<64x128xf32> -> vector<64x128xf32>
    %54 = arith.addf %46, %53 : vector<64x128xf32>
    %c0_48 = arith.constant 0 : index
    %c2_49 = arith.constant 2 : index
    %c1_50 = arith.constant 1 : index
    %c0_51 = arith.constant 0 : index
    %55 = vector.load %arg1[%c0_48, %c2_49, %c1_50, %c0_51] : memref<1x10x10x128xf32, #tpu.memory_space<vmem>>, vector<1x8x8x128xf32>
    %56 = vector.shape_cast %55 : vector<1x8x8x128xf32> to vector<8x8x128xf32>
    %57 = vector.shape_cast %56 : vector<8x8x128xf32> to vector<64x128xf32>
    %58 = arith.truncf %57 : vector<64x128xf32> to vector<64x128xbf16>
    %c7 = arith.constant 7 : index
    %c0_52 = arith.constant 0 : index
    %c0_53 = arith.constant 0 : index
    %59 = vector.load %arg2[%c7, %c0_52, %c0_53] : memref<9x128x128xbf16, #tpu.memory_space<vmem>>, vector<1x128x128xbf16>
    %60 = vector.shape_cast %59 : vector<1x128x128xbf16> to vector<128x128xbf16>
    %cst_54 = arith.constant dense<0.000000e+00> : vector<64x128xf32>
    %61 = tpu.matmul %58, %60, %cst_54 {dimension_numbers = #tpu.dot_dimension_numbers<[1], [0], [0], [1], [0, 0, 1, 1], [], []>} : vector<64x128xbf16>, vector<128x128xbf16>, vector<64x128xf32> -> vector<64x128xf32>
    %62 = arith.addf %54, %61 : vector<64x128xf32>
    %c0_55 = arith.constant 0 : index
    %c2_56 = arith.constant 2 : index
    %c2_57 = arith.constant 2 : index
    %c0_58 = arith.constant 0 : index
    %63 = vector.load %arg1[%c0_55, %c2_56, %c2_57, %c0_58] : memref<1x10x10x128xf32, #tpu.memory_space<vmem>>, vector<1x8x8x128xf32>
    %64 = vector.shape_cast %63 : vector<1x8x8x128xf32> to vector<8x8x128xf32>
    %65 = vector.shape_cast %64 : vector<8x8x128xf32> to vector<64x128xf32>
    %66 = arith.truncf %65 : vector<64x128xf32> to vector<64x128xbf16>
    %c8 = arith.constant 8 : index
    %c0_59 = arith.constant 0 : index
    %c0_60 = arith.constant 0 : index
    %67 = vector.load %arg2[%c8, %c0_59, %c0_60] : memref<9x128x128xbf16, #tpu.memory_space<vmem>>, vector<1x128x128xbf16>
    %68 = vector.shape_cast %67 : vector<1x128x128xbf16> to vector<128x128xbf16>
    %cst_61 = arith.constant dense<0.000000e+00> : vector<64x128xf32>
    %69 = tpu.matmul %66, %68, %cst_61 {dimension_numbers = #tpu.dot_dimension_numbers<[1], [0], [0], [1], [0, 0, 1, 1], [], []>} : vector<64x128xbf16>, vector<128x128xbf16>, vector<64x128xf32> -> vector<64x128xf32>
    %70 = arith.addf %62, %69 : vector<64x128xf32>
    %c0_62 = arith.constant 0 : index
    %c0_63 = arith.constant 0 : index
    %71 = vector.load %arg3[%c0_62, %c0_63] : memref<1x128xf32, #tpu.memory_space<vmem>>, vector<1x128xf32>
    %72 = vector.broadcast %71 : vector<1x128xf32> to vector<64x128xf32>
    %73 = arith.mulf %70, %72 : vector<64x128xf32>
    %c0_64 = arith.constant 0 : index
    %c0_65 = arith.constant 0 : index
    %74 = vector.load %arg4[%c0_64, %c0_65] : memref<1x128xf32, #tpu.memory_space<vmem>>, vector<1x128xf32>
    %75 = vector.broadcast %74 : vector<1x128xf32> to vector<64x128xf32>
    %76 = arith.addf %73, %75 : vector<64x128xf32>
    %cst_66 = arith.constant 0.000000e+00 : f32
    %77 = vector.broadcast %cst_66 : f32 to vector<64x128xf32>
    %78 = arith.maximumf %76, %77 : vector<64x128xf32>
    %cst_67 = arith.constant 0.000000e+00 : f32
    %79 = vector.broadcast %cst_67 : f32 to vector<10x10x128xf32>
    %c0_68 = arith.constant 0 : index
    %c0_69 = arith.constant 0 : index
    %c0_70 = arith.constant 0 : index
    %80 = vector.load %arg12[%c0_68, %c0_69, %c0_70] : memref<10x10x128xf32, #tpu.memory_space<vmem>>, vector<10x10x128xf32>
    tpu.vector_store %arg12[%c0_68, %c0_69, %c0_70], %79 {strides = array<i32>} : memref<10x10x128xf32, #tpu.memory_space<vmem>>, vector<10x10x128xf32>,
    %81 = vector.shape_cast %78 : vector<64x128xf32> to vector<8x8x128xf32>
    %c1_71 = arith.constant 1 : index
    %c1_72 = arith.constant 1 : index
    %c0_73 = arith.constant 0 : index
    %82 = vector.load %arg12[%c1_71, %c1_72, %c0_73] : memref<10x10x128xf32, #tpu.memory_space<vmem>>, vector<8x8x128xf32>
    tpu.vector_store %arg12[%c1_71, %c1_72, %c0_73], %81 {strides = array<i32>} : memref<10x10x128xf32, #tpu.memory_space<vmem>>, vector<8x8x128xf32>,
    %c0_74 = arith.constant 0 : index
    %c0_75 = arith.constant 0 : index
    %c0_76 = arith.constant 0 : index
    %83 = vector.load %arg12[%c0_74, %c0_75, %c0_76] : memref<10x10x128xf32, #tpu.memory_space<vmem>>, vector<8x8x128xf32>
    %84 = vector.shape_cast %83 : vector<8x8x128xf32> to vector<64x128xf32>
    %85 = arith.truncf %84 : vector<64x128xf32> to vector<64x128xbf16>
    %c0_77 = arith.constant 0 : index
    %c0_78 = arith.constant 0 : index
    %c0_79 = arith.constant 0 : index
    %86 = vector.load %arg5[%c0_77, %c0_78, %c0_79] : memref<9x128x128xbf16, #tpu.memory_space<vmem>>, vector<1x128x128xbf16>
    %87 = vector.shape_cast %86 : vector<1x128x128xbf16> to vector<128x128xbf16>
    %cst_80 = arith.constant dense<0.000000e+00> : vector<64x128xf32>
    %88 = tpu.matmul %85, %87, %cst_80 {dimension_numbers = #tpu.dot_dimension_numbers<[1], [0], [0], [1], [0, 0, 1, 1], [], []>} : vector<64x128xbf16>, vector<128x128xbf16>, vector<64x128xf32> -> vector<64x128xf32>
    %c0_81 = arith.constant 0 : index
    %c1_82 = arith.constant 1 : index
    %c0_83 = arith.constant 0 : index
    %89 = vector.load %arg12[%c0_81, %c1_82, %c0_83] : memref<10x10x128xf32, #tpu.memory_space<vmem>>, vector<8x8x128xf32>
    %90 = vector.shape_cast %89 : vector<8x8x128xf32> to vector<64x128xf32>
    %91 = arith.truncf %90 : vector<64x128xf32> to vector<64x128xbf16>
    %c1_84 = arith.constant 1 : index
    %c0_85 = arith.constant 0 : index
    %c0_86 = arith.constant 0 : index
    %92 = vector.load %arg5[%c1_84, %c0_85, %c0_86] : memref<9x128x128xbf16, #tpu.memory_space<vmem>>, vector<1x128x128xbf16>
    %93 = vector.shape_cast %92 : vector<1x128x128xbf16> to vector<128x128xbf16>
    %cst_87 = arith.constant dense<0.000000e+00> : vector<64x128xf32>
    %94 = tpu.matmul %91, %93, %cst_87 {dimension_numbers = #tpu.dot_dimension_numbers<[1], [0], [0], [1], [0, 0, 1, 1], [], []>} : vector<64x128xbf16>, vector<128x128xbf16>, vector<64x128xf32> -> vector<64x128xf32>
    %95 = arith.addf %88, %94 : vector<64x128xf32>
    %c0_88 = arith.constant 0 : index
    %c2_89 = arith.constant 2 : index
    %c0_90 = arith.constant 0 : index
    %96 = vector.load %arg12[%c0_88, %c2_89, %c0_90] : memref<10x10x128xf32, #tpu.memory_space<vmem>>, vector<8x8x128xf32>
    %97 = vector.shape_cast %96 : vector<8x8x128xf32> to vector<64x128xf32>
    %98 = arith.truncf %97 : vector<64x128xf32> to vector<64x128xbf16>
    %c2_91 = arith.constant 2 : index
    %c0_92 = arith.constant 0 : index
    %c0_93 = arith.constant 0 : index
    %99 = vector.load %arg5[%c2_91, %c0_92, %c0_93] : memref<9x128x128xbf16, #tpu.memory_space<vmem>>, vector<1x128x128xbf16>
    %100 = vector.shape_cast %99 : vector<1x128x128xbf16> to vector<128x128xbf16>
    %cst_94 = arith.constant dense<0.000000e+00> : vector<64x128xf32>
    %101 = tpu.matmul %98, %100, %cst_94 {dimension_numbers = #tpu.dot_dimension_numbers<[1], [0], [0], [1], [0, 0, 1, 1], [], []>} : vector<64x128xbf16>, vector<128x128xbf16>, vector<64x128xf32> -> vector<64x128xf32>
    %102 = arith.addf %95, %101 : vector<64x128xf32>
    %c1_95 = arith.constant 1 : index
    %c0_96 = arith.constant 0 : index
    %c0_97 = arith.constant 0 : index
    %103 = vector.load %arg12[%c1_95, %c0_96, %c0_97] : memref<10x10x128xf32, #tpu.memory_space<vmem>>, vector<8x8x128xf32>
    %104 = vector.shape_cast %103 : vector<8x8x128xf32> to vector<64x128xf32>
    %105 = arith.truncf %104 : vector<64x128xf32> to vector<64x128xbf16>
    %c3_98 = arith.constant 3 : index
    %c0_99 = arith.constant 0 : index
    %c0_100 = arith.constant 0 : index
    %106 = vector.load %arg5[%c3_98, %c0_99, %c0_100] : memref<9x128x128xbf16, #tpu.memory_space<vmem>>, vector<1x128x128xbf16>
    %107 = vector.shape_cast %106 : vector<1x128x128xbf16> to vector<128x128xbf16>
    %cst_101 = arith.constant dense<0.000000e+00> : vector<64x128xf32>
    %108 = tpu.matmul %105, %107, %cst_101 {dimension_numbers = #tpu.dot_dimension_numbers<[1], [0], [0], [1], [0, 0, 1, 1], [], []>} : vector<64x128xbf16>, vector<128x128xbf16>, vector<64x128xf32> -> vector<64x128xf32>
    %109 = arith.addf %102, %108 : vector<64x128xf32>
    %c1_102 = arith.constant 1 : index
    %c1_103 = arith.constant 1 : index
    %c0_104 = arith.constant 0 : index
    %110 = vector.load %arg12[%c1_102, %c1_103, %c0_104] : memref<10x10x128xf32, #tpu.memory_space<vmem>>, vector<8x8x128xf32>
    %111 = vector.shape_cast %110 : vector<8x8x128xf32> to vector<64x128xf32>
    %112 = arith.truncf %111 : vector<64x128xf32> to vector<64x128xbf16>
    %c4_105 = arith.constant 4 : index
    %c0_106 = arith.constant 0 : index
    %c0_107 = arith.constant 0 : index
    %113 = vector.load %arg5[%c4_105, %c0_106, %c0_107] : memref<9x128x128xbf16, #tpu.memory_space<vmem>>, vector<1x128x128xbf16>
    %114 = vector.shape_cast %113 : vector<1x128x128xbf16> to vector<128x128xbf16>
    %cst_108 = arith.constant dense<0.000000e+00> : vector<64x128xf32>
    %115 = tpu.matmul %112, %114, %cst_108 {dimension_numbers = #tpu.dot_dimension_numbers<[1], [0], [0], [1], [0, 0, 1, 1], [], []>} : vector<64x128xbf16>, vector<128x128xbf16>, vector<64x128xf32> -> vector<64x128xf32>
    %116 = arith.addf %109, %115 : vector<64x128xf32>
    %c1_109 = arith.constant 1 : index
    %c2_110 = arith.constant 2 : index
    %c0_111 = arith.constant 0 : index
    %117 = vector.load %arg12[%c1_109, %c2_110, %c0_111] : memref<10x10x128xf32, #tpu.memory_space<vmem>>, vector<8x8x128xf32>
    %118 = vector.shape_cast %117 : vector<8x8x128xf32> to vector<64x128xf32>
    %119 = arith.truncf %118 : vector<64x128xf32> to vector<64x128xbf16>
    %c5_112 = arith.constant 5 : index
    %c0_113 = arith.constant 0 : index
    %c0_114 = arith.constant 0 : index
    %120 = vector.load %arg5[%c5_112, %c0_113, %c0_114] : memref<9x128x128xbf16, #tpu.memory_space<vmem>>, vector<1x128x128xbf16>
    %121 = vector.shape_cast %120 : vector<1x128x128xbf16> to vector<128x128xbf16>
    %cst_115 = arith.constant dense<0.000000e+00> : vector<64x128xf32>
    %122 = tpu.matmul %119, %121, %cst_115 {dimension_numbers = #tpu.dot_dimension_numbers<[1], [0], [0], [1], [0, 0, 1, 1], [], []>} : vector<64x128xbf16>, vector<128x128xbf16>, vector<64x128xf32> -> vector<64x128xf32>
    %123 = arith.addf %116, %122 : vector<64x128xf32>
    %c2_116 = arith.constant 2 : index
    %c0_117 = arith.constant 0 : index
    %c0_118 = arith.constant 0 : index
    %124 = vector.load %arg12[%c2_116, %c0_117, %c0_118] : memref<10x10x128xf32, #tpu.memory_space<vmem>>, vector<8x8x128xf32>
    %125 = vector.shape_cast %124 : vector<8x8x128xf32> to vector<64x128xf32>
    %126 = arith.truncf %125 : vector<64x128xf32> to vector<64x128xbf16>
    %c6_119 = arith.constant 6 : index
    %c0_120 = arith.constant 0 : index
    %c0_121 = arith.constant 0 : index
    %127 = vector.load %arg5[%c6_119, %c0_120, %c0_121] : memref<9x128x128xbf16, #tpu.memory_space<vmem>>, vector<1x128x128xbf16>
    %128 = vector.shape_cast %127 : vector<1x128x128xbf16> to vector<128x128xbf16>
    %cst_122 = arith.constant dense<0.000000e+00> : vector<64x128xf32>
    %129 = tpu.matmul %126, %128, %cst_122 {dimension_numbers = #tpu.dot_dimension_numbers<[1], [0], [0], [1], [0, 0, 1, 1], [], []>} : vector<64x128xbf16>, vector<128x128xbf16>, vector<64x128xf32> -> vector<64x128xf32>
    %130 = arith.addf %123, %129 : vector<64x128xf32>
    %c2_123 = arith.constant 2 : index
    %c1_124 = arith.constant 1 : index
    %c0_125 = arith.constant 0 : index
    %131 = vector.load %arg12[%c2_123, %c1_124, %c0_125] : memref<10x10x128xf32, #tpu.memory_space<vmem>>, vector<8x8x128xf32>
    %132 = vector.shape_cast %131 : vector<8x8x128xf32> to vector<64x128xf32>
    %133 = arith.truncf %132 : vector<64x128xf32> to vector<64x128xbf16>
    %c7_126 = arith.constant 7 : index
    %c0_127 = arith.constant 0 : index
    %c0_128 = arith.constant 0 : index
    %134 = vector.load %arg5[%c7_126, %c0_127, %c0_128] : memref<9x128x128xbf16, #tpu.memory_space<vmem>>, vector<1x128x128xbf16>
    %135 = vector.shape_cast %134 : vector<1x128x128xbf16> to vector<128x128xbf16>
    %cst_129 = arith.constant dense<0.000000e+00> : vector<64x128xf32>
    %136 = tpu.matmul %133, %135, %cst_129 {dimension_numbers = #tpu.dot_dimension_numbers<[1], [0], [0], [1], [0, 0, 1, 1], [], []>} : vector<64x128xbf16>, vector<128x128xbf16>, vector<64x128xf32> -> vector<64x128xf32>
    %137 = arith.addf %130, %136 : vector<64x128xf32>
    %c2_130 = arith.constant 2 : index
    %c2_131 = arith.constant 2 : index
    %c0_132 = arith.constant 0 : index
    %138 = vector.load %arg12[%c2_130, %c2_131, %c0_132] : memref<10x10x128xf32, #tpu.memory_space<vmem>>, vector<8x8x128xf32>
    %139 = vector.shape_cast %138 : vector<8x8x128xf32> to vector<64x128xf32>
    %140 = arith.truncf %139 : vector<64x128xf32> to vector<64x128xbf16>
    %c8_133 = arith.constant 8 : index
    %c0_134 = arith.constant 0 : index
    %c0_135 = arith.constant 0 : index
    %141 = vector.load %arg5[%c8_133, %c0_134, %c0_135] : memref<9x128x128xbf16, #tpu.memory_space<vmem>>, vector<1x128x128xbf16>
    %142 = vector.shape_cast %141 : vector<1x128x128xbf16> to vector<128x128xbf16>
    %cst_136 = arith.constant dense<0.000000e+00> : vector<64x128xf32>
    %143 = tpu.matmul %140, %142, %cst_136 {dimension_numbers = #tpu.dot_dimension_numbers<[1], [0], [0], [1], [0, 0, 1, 1], [], []>} : vector<64x128xbf16>, vector<128x128xbf16>, vector<64x128xf32> -> vector<64x128xf32>
    %144 = arith.addf %137, %143 : vector<64x128xf32>
    %c0_137 = arith.constant 0 : index
    %c0_138 = arith.constant 0 : index
    %145 = vector.load %arg6[%c0_137, %c0_138] : memref<1x128xf32, #tpu.memory_space<vmem>>, vector<1x128xf32>
    %146 = vector.broadcast %145 : vector<1x128xf32> to vector<64x128xf32>
    %147 = arith.mulf %144, %146 : vector<64x128xf32>
    %c0_139 = arith.constant 0 : index
    %c0_140 = arith.constant 0 : index
    %148 = vector.load %arg7[%c0_139, %c0_140] : memref<1x128xf32, #tpu.memory_space<vmem>>, vector<1x128xf32>
    %149 = vector.broadcast %148 : vector<1x128xf32> to vector<64x128xf32>
    %150 = arith.addf %147, %149 : vector<64x128xf32>
    %c0_141 = arith.constant 0 : index
    %c1_142 = arith.constant 1 : index
    %c1_143 = arith.constant 1 : index
    %c0_144 = arith.constant 0 : index
    %151 = vector.load %arg1[%c0_141, %c1_142, %c1_143, %c0_144] : memref<1x10x10x128xf32, #tpu.memory_space<vmem>>, vector<1x8x8x128xf32>
    %152 = vector.shape_cast %151 : vector<1x8x8x128xf32> to vector<8x8x128xf32>
    %153 = vector.shape_cast %152 : vector<8x8x128xf32> to vector<64x128xf32>
    %154 = arith.truncf %153 : vector<64x128xf32> to vector<64x128xbf16>
    %c0_145 = arith.constant 0 : index
    %c0_146 = arith.constant 0 : index
    %155 = vector.load %arg8[%c0_145, %c0_146] : memref<128x128xbf16, #tpu.memory_space<vmem>>, vector<128x128xbf16>
    %cst_147 = arith.constant dense<0.000000e+00> : vector<64x128xf32>
    %156 = tpu.matmul %154, %155, %cst_147 {dimension_numbers = #tpu.dot_dimension_numbers<[1], [0], [0], [1], [0, 0, 1, 1], [], []>} : vector<64x128xbf16>, vector<128x128xbf16>, vector<64x128xf32> -> vector<64x128xf32>
    %c0_148 = arith.constant 0 : index
    %c0_149 = arith.constant 0 : index
    %157 = vector.load %arg9[%c0_148, %c0_149] : memref<1x128xf32, #tpu.memory_space<vmem>>, vector<1x128xf32>
    %158 = vector.broadcast %157 : vector<1x128xf32> to vector<64x128xf32>
    %159 = arith.mulf %156, %158 : vector<64x128xf32>
    %c0_150 = arith.constant 0 : index
    %c0_151 = arith.constant 0 : index
    %160 = vector.load %arg10[%c0_150, %c0_151] : memref<1x128xf32, #tpu.memory_space<vmem>>, vector<1x128xf32>
    %161 = vector.broadcast %160 : vector<1x128xf32> to vector<64x128xf32>
    %162 = arith.addf %159, %161 : vector<64x128xf32>
    %163 = arith.addf %150, %162 : vector<64x128xf32>
    %cst_152 = arith.constant 0.000000e+00 : f32
    %164 = vector.broadcast %cst_152 : f32 to vector<64x128xf32>
    %165 = arith.maximumf %163, %164 : vector<64x128xf32>
    %cst_153 = arith.constant dense<0.000000e+00> : vector<128xf32>
    %166 = vector.multi_reduction <add>, %165, %cst_153 [0] : vector<64x128xf32> to vector<128xf32>
    %167 = vector.shape_cast %166 : vector<128xf32> to vector<1x128xf32>
    %cst_154 = arith.constant 1.562500e-02 : f32
    %168 = vector.broadcast %cst_154 : f32 to vector<1x128xf32>
    %169 = arith.mulf %167, %168 : vector<1x128xf32>
    %170 = vector.shape_cast %169 : vector<1x128xf32> to vector<1x1x128xf32>
    %c0_155 = arith.constant 0 : index
    %c0_156 = arith.constant 0 : index
    %c0_157 = arith.constant 0 : index
    %171 = vector.load %arg11[%c0_155, %c0_156, %c0_157] : memref<1x1x128xf32, #tpu.memory_space<vmem>>, vector<1x1x128xf32>
    tpu.vector_store %arg11[%c0_155, %c0_156, %c0_157], %170 {strides = array<i32>} : memref<1x1x128xf32, #tpu.memory_space<vmem>>, vector<1x1x128xf32>,
    return
  }
  func.func @transform_0(%arg0: i32) -> (i32, i32, i32, i32) {
    %c0_i32 = arith.constant 0 : i32
    %c0_i32_0 = arith.constant 0 : i32
    %c0_i32_1 = arith.constant 0 : i32
    %c0_i32_2 = arith.constant 0 : i32
    return %arg0, %c0_i32, %c0_i32_0, %c0_i32_1 : i32, i32, i32, i32
  }
  func.func @transform_1(%arg0: i32) -> (i32, i32, i32) {
    %c0_i32 = arith.constant 0 : i32
    %c0_i32_0 = arith.constant 0 : i32
    %c0_i32_1 = arith.constant 0 : i32
    %c0_i32_2 = arith.constant 0 : i32
    return %c0_i32, %c0_i32_0, %c0_i32_1 : i32, i32, i32
  }
  func.func @transform_2(%arg0: i32) -> (i32, i32) {
    %c0_i32 = arith.constant 0 : i32
    %c0_i32_0 = arith.constant 0 : i32
    %c0_i32_1 = arith.constant 0 : i32
    return %c0_i32, %c0_i32_0 : i32, i32
  }
  func.func @transform_3(%arg0: i32) -> (i32, i32) {
    %c0_i32 = arith.constant 0 : i32
    %c0_i32_0 = arith.constant 0 : i32
    %c0_i32_1 = arith.constant 0 : i32
    return %c0_i32, %c0_i32_0 : i32, i32
  }
  func.func @transform_4(%arg0: i32) -> (i32, i32, i32) {
    %c0_i32 = arith.constant 0 : i32
    %c0_i32_0 = arith.constant 0 : i32
    %c0_i32_1 = arith.constant 0 : i32
    %c0_i32_2 = arith.constant 0 : i32
    return %c0_i32, %c0_i32_0, %c0_i32_1 : i32, i32, i32
  }
  func.func @transform_5(%arg0: i32) -> (i32, i32) {
    %c0_i32 = arith.constant 0 : i32
    %c0_i32_0 = arith.constant 0 : i32
    %c0_i32_1 = arith.constant 0 : i32
    return %c0_i32, %c0_i32_0 : i32, i32
  }
  func.func @transform_6(%arg0: i32) -> (i32, i32) {
    %c0_i32 = arith.constant 0 : i32
    %c0_i32_0 = arith.constant 0 : i32
    %c0_i32_1 = arith.constant 0 : i32
    return %c0_i32, %c0_i32_0 : i32, i32
  }
  func.func @transform_7(%arg0: i32) -> (i32, i32) {
    %c0_i32 = arith.constant 0 : i32
    %c0_i32_0 = arith.constant 0 : i32
    %c0_i32_1 = arith.constant 0 : i32
    return %c0_i32, %c0_i32_0 : i32, i32
  }
  func.func @transform_8(%arg0: i32) -> (i32, i32) {
    %c0_i32 = arith.constant 0 : i32
    %c0_i32_0 = arith.constant 0 : i32
    %c0_i32_1 = arith.constant 0 : i32
    return %c0_i32, %c0_i32_0 : i32, i32
  }
  func.func @transform_9(%arg0: i32) -> (i32, i32) {
    %c0_i32 = arith.constant 0 : i32
    %c0_i32_0 = arith.constant 0 : i32
    %c0_i32_1 = arith.constant 0 : i32
    return %c0_i32, %c0_i32_0 : i32, i32
  }
  func.func @transform_10(%arg0: i32) -> (i32, i32, i32) {
    %c0_i32 = arith.constant 0 : i32
    %c0_i32_0 = arith.constant 0 : i32
    %c0_i32_1 = arith.constant 0 : i32
    return %arg0, %c0_i32, %c0_i32_0 : i32, i32, i32
  }
}

</mosaic_0001>

<llo_original>
// kernel: resnet_forward_pallas.4
$region0: #{resnet_forward_pallas.4}
  #allocation0 [shape = 'u32[]', space=smem, size = 0x4, offset = 0x4, fixed_abs, tag = 'smem constant byte address 0x4 - core index']
  #allocation1 [shape = 'u32[72,128]{1,0:T(1,128)}', space=vmem, size = 0x9000, scoped, tag = 'internal scratch']
  %s0 = inlined_call_operand.vmem [shape: f32[2,1024,16], index: 0, kind: input, shape index: {}]
  %s1 = inlined_call_operand.vmem [shape: bf16[16,128], index: 1, kind: input, shape index: {}]
  %s2 = inlined_call_operand.vmem [shape: f32[1,128], index: 2, kind: input, shape index: {}]
  %s3 = inlined_call_operand.vmem [shape: f32[1,128], index: 3, kind: input, shape index: {}]
  %s4 = inlined_call_operand.vmem [shape: f32[2,10,10,128], index: 4, kind: output, shape index: {}]
  %s5 = sld [smem:[#allocation0]]
  $region49: #{resnet_forward_pallas.4} parent=0
    _
  %s7 = ssub.s32 1, %s5
  %s8 = scalar_select 0, %s7, %s5
  loop: start=0, step=1, limit=4
  $region2: #{resnet_forward_pallas.4} parent=0 // loop_pre_header
    _
  $region3: #{resnet_forward_pallas.4} parent=0 // loop_header
    %s10 = sphi 0, %s14
    %p11 = scmp.ge.s32.totalorder %s10, 4
    %s20 = sphi 0, %s22
    %s23 = sphi 0, %s20
    %s24 = sphi 0, %s23
    %s40 = sphi 0, %s24
    %s44 = sphi 0, %s44
    %s46 = sphi 0, %s44
    %s47 = sphi 0, %s46
    %s61 = sphi 0, %s47
    %s65 = sphi 0, %s65
    %s67 = sphi 0, %s65
    %s68 = sphi 0, %s67
    %s82 = sphi 0, %s68
    %s86 = sphi 0, %s86
    %s88 = sphi 0, %s86
    %s89 = sphi 0, %s88
    %s103 = sphi 0, %s89
    %s109 = sphi 0, %s111
    %s112 = sphi 0, %s109
    %s113 = sphi 0, %s112
    %s129 = sphi 0, %s113
  $region4: #{resnet_forward_pallas.4} parent=0 // loop_header_branch
    %13 = sbr.rel (%p11) target = $region8
  $region5: #{resnet_forward_pallas.4} parent=0 // loop_body
    %s15 = ssub.s32 %s10, 1
    %s16 = ssub.s32 %s10, 2
    %s17 = sadd.s32 %s10, 1
    %s18 = ssub.s32 %s10, %s17
    %p19 = scmp.eq.s32.totalorder %s18, 0
    %s21 = sadd.s32 %s20, 1
    %s22 = scalar_select %p19, %s20, %s21
    %p25 = pneg %p19
    %p26 = scmp.eq.s32.totalorder %s10, 1
    %p27 = por %p25, %p26
    %p28 = scmp.ne.s32.totalorder %s20, %s23
    %p29 = scmp.eq.s32.totalorder %s10, 0
    %p30 = por %p28, %p29
    %p31 = scmp.ne.s32.totalorder %s20, %s23
    %p32 = scmp.eq.s32.totalorder %s15, 1
    %p33 = por %p31, %p32
    %p34 = scmp.ne.s32.totalorder %s23, %s24
    %p35 = scmp.eq.s32.totalorder %s15, 0
    %p36 = por %p34, %p35
    %p37 = scmp.ne.s32.totalorder %s23, %s24
    %p38 = scmp.eq.s32.totalorder %s16, 1
    %p39 = por %p37, %p38
    %p41 = scmp.ne.s32.totalorder %s24, %s40
    %p42 = scmp.eq.s32.totalorder %s16, 0
    %p43 = por %p41, %p42
    %s45 = sadd.s32 %s44, 1
    %p48 = scmp.eq.s32.totalorder %s10, 1
    %p49 = scmp.ne.s32.totalorder %s44, %s46
    %p50 = scmp.eq.s32.totalorder %s10, 0
    %p51 = por %p49, %p50
    %p52 = scmp.ne.s32.totalorder %s44, %s46
    %p53 = scmp.eq.s32.totalorder %s15, 1
    %p54 = por %p52, %p53
    %p55 = scmp.ne.s32.totalorder %s46, %s47
    %p56 = scmp.eq.s32.totalorder %s15, 0
    %p57 = por %p55, %p56
    %p58 = scmp.ne.s32.totalorder %s46, %s47
    %p59 = scmp.eq.s32.totalorder %s16, 1
    %p60 = por %p58, %p59
    %p62 = scmp.ne.s32.totalorder %s47, %s61
    %p63 = scmp.eq.s32.totalorder %s16, 0
    %p64 = por %p62, %p63
    %s66 = sadd.s32 %s65, 1
    %p69 = scmp.eq.s32.totalorder %s10, 1
    %p70 = scmp.ne.s32.totalorder %s65, %s67
    %p71 = scmp.eq.s32.totalorder %s10, 0
    %p72 = por %p70, %p71
    %p73 = scmp.ne.s32.totalorder %s65, %s67
    %p74 = scmp.eq.s32.totalorder %s15, 1
    %p75 = por %p73, %p74
    %p76 = scmp.ne.s32.totalorder %s67, %s68
    %p77 = scmp.eq.s32.totalorder %s15, 0
    %p78 = por %p76, %p77
    %p79 = scmp.ne.s32.totalorder %s67, %s68
    %p80 = scmp.eq.s32.totalorder %s16, 1
    %p81 = por %p79, %p80
    %p83 = scmp.ne.s32.totalorder %s68, %s82
    %p84 = scmp.eq.s32.totalorder %s16, 0
    %p85 = por %p83, %p84
    %s87 = sadd.s32 %s86, 1
    %p90 = scmp.eq.s32.totalorder %s10, 1
    %p91 = scmp.ne.s32.totalorder %s86, %s88
    %p92 = scmp.eq.s32.totalorder %s10, 0
    %p93 = por %p91, %p92
    %p94 = scmp.ne.s32.totalorder %s86, %s88
    %p95 = scmp.eq.s32.totalorder %s15, 1
    %p96 = por %p94, %p95
    %p97 = scmp.ne.s32.totalorder %s88, %s89
    %p98 = scmp.eq.s32.totalorder %s15, 0
    %p99 = por %p97, %p98
    %p100 = scmp.ne.s32.totalorder %s88, %s89
    %p101 = scmp.eq.s32.totalorder %s16, 1
    %p102 = por %p100, %p101
    %p104 = scmp.ne.s32.totalorder %s89, %s103
    %p105 = scmp.eq.s32.totalorder %s16, 0
    %p106 = por %p104, %p105
    %s107 = ssub.s32 %s10, %s17
    %p108 = scmp.eq.s32.totalorder %s107, 0
    %s110 = sadd.s32 %s109, 1
    %s111 = scalar_select %p108, %s109, %s110
    %p114 = pneg %p108
    %p115 = scmp.eq.s32.totalorder %s10, 1
    %p116 = por %p114, %p115
    %p117 = scmp.ne.s32.totalorder %s109, %s112
    %p118 = scmp.eq.s32.totalorder %s10, 0
    %p119 = por %p117, %p118
    %p120 = scmp.ne.s32.totalorder %s109, %s112
    %p121 = scmp.eq.s32.totalorder %s15, 1
    %p122 = por %p120, %p121
    %p123 = scmp.ne.s32.totalorder %s112, %s113
    %p124 = scmp.eq.s32.totalorder %s15, 0
    %p125 = por %p123, %p124
    %p126 = scmp.ne.s32.totalorder %s112, %s113
    %p127 = scmp.eq.s32.totalorder %s16, 1
    %p128 = por %p126, %p127
    %p130 = scmp.ne.s32.totalorder %s113, %s129
    %p131 = scmp.eq.s32.totalorder %s16, 0
    %p132 = por %p130, %p131
    %p133 = scmp.le.s32.totalorder 1, %s10
    %p134 = scmp.lt.s32.totalorder %s10, 3
    %p135 = pnand %p133, %p134
    %p136 = pneg %p135
    // Predicated region
    $region9: #{resnet_forward_pallas.4} parent=5 // pred_check
      _
    $region10: #{resnet_forward_pallas.4} parent=5 // pred_check_branch
      %138 = sbr.rel (%p135) target = $region12
    $region11: #{resnet_forward_pallas.4} parent=5 // pred_region
      %s139 = ssub.s32 %s10, 1
      // Predicated region
      $region13: #{resnet_forward_pallas.4} parent=11 // pred_check
        %p140 = pneg %p57
      $region14: #{resnet_forward_pallas.4} parent=11 // pred_check_branch
        %142 = sbr.rel (%p140) target = $region16
      $region15: #{resnet_forward_pallas.4} parent=11 // pred_region
        _
      $region16: #{resnet_forward_pallas.4} parent=11 // pred_fallthru
        _
      // Predicated region
      $region17: #{resnet_forward_pallas.4} parent=11 // pred_check
        %p143 = pneg %p78
      $region18: #{resnet_forward_pallas.4} parent=11 // pred_check_branch
        %145 = sbr.rel (%p143) target = $region20
      $region19: #{resnet_forward_pallas.4} parent=11 // pred_region
        _
      $region20: #{resnet_forward_pallas.4} parent=11 // pred_fallthru
        _
      // Predicated region
      $region21: #{resnet_forward_pallas.4} parent=11 // pred_check
        %p146 = pneg %p99
      $region22: #{resnet_forward_pallas.4} parent=11 // pred_check_branch
        %148 = sbr.rel (%p146) target = $region24
      $region23: #{resnet_forward_pallas.4} parent=11 // pred_region
        _
      $region24: #{resnet_forward_pallas.4} parent=11 // pred_fallthru
        _
    $region12: #{resnet_forward_pallas.4} parent=5 // pred_fallthru
      _
    %p149 = scmp.lt.s32.totalorder %s10, 2
    // Predicated region
    $region25: #{resnet_forward_pallas.4} parent=5 // pred_check
      %p150 = pneg %p149
    $region26: #{resnet_forward_pallas.4} parent=5 // pred_check_branch
      %152 = sbr.rel (%p150) target = $region28
    $region27: #{resnet_forward_pallas.4} parent=5 // pred_region
      // Predicated region
      $region29: #{resnet_forward_pallas.4} parent=27 // pred_check
        %p153 = pneg %p30
      $region30: #{resnet_forward_pallas.4} parent=27 // pred_check_branch
        %155 = sbr.rel (%p153) target = $region32
      $region31: #{resnet_forward_pallas.4} parent=27 // pred_region
        %p156 = scmp.lt.s32.totalorder %s10, 1
        %s157 = scalar_select %p156, %s10, 1
        %s158 = smul.addr %s157, 128
        %s159 = smul.addr %s158, 8
        %s160 = scalar_lea.vmem %s0, %s159
      $region32: #{resnet_forward_pallas.4} parent=27 // pred_fallthru
        _
    $region28: #{resnet_forward_pallas.4} parent=5 // pred_fallthru
      _
    %p161 = scmp.le.s32.totalorder 1, %s10
    %p162 = scmp.lt.s32.totalorder %s10, 3
    %p163 = pnand %p161, %p162
    %p164 = pneg %p163
    // Predicated region
    $region33: #{resnet_forward_pallas.4} parent=5 // pred_check
      _
    $region34: #{resnet_forward_pallas.4} parent=5 // pred_check_branch
      %166 = sbr.rel (%p163) target = $region36
    $region35: #{resnet_forward_pallas.4} parent=5 // pred_region
      %s167 = ssub.s32 %s10, 1
      %p168 = scmp.lt.s32.totalorder %s15, 1
      %s169 = scalar_select %p168, %s15, 1
      %s170 = smul.addr %s169, 128
      %s171 = smul.addr %s170, 8
      %s172 = scalar_lea.vmem %s0, %s171
      %p173 = pneg %p36
      %p174 = pneg %p33
      %p175 = pneg %p57
      %p176 = pneg %p54
      %p177 = pneg %p78
      %p178 = pneg %p75
      %p179 = pneg %p99
      %p180 = pneg %p96
      %p181 = pneg %p125
      %p182 = pneg %p122
      %p183 = scmp.lt.s32.totalorder %s15, 1
      %s184 = scalar_select %p183, %s15, 1
      %s185 = smul.addr %s184, 20
      %s186 = smul.addr %s185, 8
      %s187 = scalar_lea.vmem %s4, %s186
      %p188 = scmp.lt.s32.totalorder %s15, 1
      %s189 = scalar_select %p188, %s15, 1
      %s190 = smul.addr %s189, 128
      %s191 = smul.addr %s190, 8
      %s192 = scalar_lea.vmem %s0, %s191
      %p193 = scmp.lt.s32.totalorder %s15, 1
      %s194 = scalar_select %p193, %s15, 1
      %s195 = smul.addr %s194, 20
      %s196 = smul.addr %s195, 8
      %s197 = scalar_lea.vmem %s4, %s196
      %199 = vst [vmem:[%s197] sm:$0xff] 0.0
      %200 = vst [vmem:[%s197 + $0x8] sm:$0x3] 0.0
      %201 = vst [vmem:[%s197 + $0x10] sm:$0xff] 0.0
      %202 = vst [vmem:[%s197 + $0x18] sm:$0x3] 0.0
      %203 = vst [vmem:[%s197 + $0x20] sm:$0xff] 0.0
      %204 = vst [vmem:[%s197 + $0x28] sm:$0x3] 0.0
      %205 = vst [vmem:[%s197 + $0x30] sm:$0xff] 0.0
      %206 = vst [vmem:[%s197 + $0x38] sm:$0x3] 0.0
      %207 = vst [vmem:[%s197 + $0x40] sm:$0xff] 0.0
      %208 = vst [vmem:[%s197 + $0x48] sm:$0x3] 0.0
      %209 = vst [vmem:[%s197 + $0x50] sm:$0xff] 0.0
      %210 = vst [vmem:[%s197 + $0x58] sm:$0x3] 0.0
      %211 = vst [vmem:[%s197 + $0x60] sm:$0xff] 0.0
      %212 = vst [vmem:[%s197 + $0x68] sm:$0x3] 0.0
      %213 = vst [vmem:[%s197 + $0x70] sm:$0xff] 0.0
      %214 = vst [vmem:[%s197 + $0x78] sm:$0x3] 0.0
      %215 = vst [vmem:[%s197 + $0x80] sm:$0xff] 0.0
      %216 = vst [vmem:[%s197 + $0x88] sm:$0x3] 0.0
      %217 = vst [vmem:[%s197 + $0x90] sm:$0xff] 0.0
      %218 = vst [vmem:[%s197 + $0x98] sm:$0x3] 0.0
      %v219 = vld [vmem:[%s192] sm:$0xff]
      %v220 = vld [vmem:[%s192 + $0x8] sm:$0xff]
      %v221 = vld [vmem:[%s192 + $0x10] sm:$0xff]
      %v222 = vld [vmem:[%s192 + $0x18] sm:$0xff]
      %v223 = vld [vmem:[%s192 + $0x20] sm:$0xff]
      %v224 = vld [vmem:[%s192 + $0x28] sm:$0xff]
      %v225 = vld [vmem:[%s192 + $0x30] sm:$0xff]
      %v226 = vld [vmem:[%s192 + $0x38] sm:$0xff]
      %v227 = vld [vmem:[%s192 + $0x40] sm:$0xff]
      %v228 = vld [vmem:[%s192 + $0x48] sm:$0xff]
      %v229 = vld [vmem:[%s192 + $0x50] sm:$0xff]
      %v230 = vld [vmem:[%s192 + $0x58] sm:$0xff]
      %v231 = vld [vmem:[%s192 + $0x60] sm:$0xff]
      %v232 = vld [vmem:[%s192 + $0x68] sm:$0xff]
      %v233 = vld [vmem:[%s192 + $0x70] sm:$0xff]
      %v234 = vld [vmem:[%s192 + $0x78] sm:$0xff]
      %v235 = vpack.c.bf16 %v220, %v219
      %v236 = vpack.c.bf16 %v222, %v221
      %v237 = vpack.c.bf16 %v224, %v223
      %v238 = vpack.c.bf16 %v226, %v225
      %v239 = vpack.c.bf16 %v228, %v227
      %v240 = vpack.c.bf16 %v230, %v229
      %v241 = vpack.c.bf16 %v232, %v231
      %v242 = vpack.c.bf16 %v234, %v233
      %v243 = vld [vmem:[%s1] sm:$0xf]
      %v244 = vld [vmem:[%s1 + $0x4] sm:$0xf]
      %v247 = vunpack.c.l.b16 %v243
      %v248 = vunpack.c.l.b16 %v244
      %v249 = vpack.c.b16 %v248, %v247
      %vm251 = vcmask 130048
      %v253 = vsel %vm251, %v235, 0
      %v256 = vsel %vm251, %v236, 0
      %v259 = vsel %vm251, %v237, 0
      %v262 = vsel %vm251, %v238, 0
      %v265 = vsel %vm251, %v239, 0
      %v268 = vsel %vm251, %v240, 0
      %v271 = vsel %vm251, %v241, 0
      %v274 = vsel %vm251, %v242, 0
      %276 = vmatpush.bf16.msra.mxu0 0
      %277 = vmatpush.bf16.msra.mxu0 0
      %278 = vmatpush.bf16.msra.mxu0 0
      %279 = vmatpush.bf16.msra.mxu0 0
      %280 = vmatpush.bf16.msra.mxu0 0
      %281 = vmatpush.bf16.msra.mxu0 0
      %282 = vmatpush.bf16.msra.mxu0 0
      %283 = vmatpush.bf16.msra.mxu0 %v249
      %284 = vmatmul.bf16.gmra.mxu0 %v253
      %v285 = vpop.f32.mrf.mxu0
      %v286 = vadd.f32 0.0, %v285
      %v287 = vpop.f32.mrf.mxu0
      %v288 = vadd.f32 0.0, %v287
      %289 = vmatmul.bf16.gmra.mxu0 %v256
      %v290 = vpop.f32.mrf.mxu0
      %v291 = vadd.f32 0.0, %v290
      %v292 = vpop.f32.mrf.mxu0
      %v293 = vadd.f32 0.0, %v292
      %294 = vmatmul.bf16.gmra.mxu0 %v259
      %v295 = vpop.f32.mrf.mxu0
      %v296 = vadd.f32 0.0, %v295
      %v297 = vpop.f32.mrf.mxu0
      %v298 = vadd.f32 0.0, %v297
      %299 = vmatmul.bf16.gmra.mxu0 %v262
      %v300 = vpop.f32.mrf.mxu0
      %v301 = vadd.f32 0.0, %v300
      %v302 = vpop.f32.mrf.mxu0
      %v303 = vadd.f32 0.0, %v302
      %304 = vmatmul.bf16.gmra.mxu0 %v265
      %v305 = vpop.f32.mrf.mxu0
      %v306 = vadd.f32 0.0, %v305
      %v307 = vpop.f32.mrf.mxu0
      %v308 = vadd.f32 0.0, %v307
      %309 = vmatmul.bf16.gmra.mxu0 %v268
      %v310 = vpop.f32.mrf.mxu0
      %v311 = vadd.f32 0.0, %v310
      %v312 = vpop.f32.mrf.mxu0
      %v313 = vadd.f32 0.0, %v312
      %314 = vmatmul.bf16.gmra.mxu0 %v271
      %v315 = vpop.f32.mrf.mxu0
      %v316 = vadd.f32 0.0, %v315
      %v317 = vpop.f32.mrf.mxu0
      %v318 = vadd.f32 0.0, %v317
      %319 = vmatmul.bf16.gmra.mxu0 %v274
      %v320 = vpop.f32.mrf.mxu0
      %v321 = vadd.f32 0.0, %v320
      %v322 = vpop.f32.mrf.mxu0
      %v323 = vadd.f32 0.0, %v322
      %324 = vdwg.mxu0
      %v325 = vld [vmem:[%s2] sm:$0x1]
      %v327 = vperm.slane %v325, 0
      %v329 = vmul.f32 %v286, %v327
      %v330 = vmul.f32 %v288, %v327
      %v331 = vmul.f32 %v291, %v327
      %v332 = vmul.f32 %v293, %v327
      %v333 = vmul.f32 %v296, %v327
      %v334 = vmul.f32 %v298, %v327
      %v335 = vmul.f32 %v301, %v327
      %v336 = vmul.f32 %v303, %v327
      %v337 = vmul.f32 %v306, %v327
      %v338 = vmul.f32 %v308, %v327
      %v339 = vmul.f32 %v311, %v327
      %v340 = vmul.f32 %v313, %v327
      %v341 = vmul.f32 %v316, %v327
      %v342 = vmul.f32 %v318, %v327
      %v343 = vmul.f32 %v321, %v327
      %v344 = vmul.f32 %v323, %v327
      %v345 = vld [vmem:[%s3] sm:$0x1]
      %v347 = vperm.slane %v345, 0
      %v349 = vadd.f32 %v329, %v347
      %v350 = vadd.f32 %v330, %v347
      %v351 = vadd.f32 %v331, %v347
      %v352 = vadd.f32 %v332, %v347
      %v353 = vadd.f32 %v333, %v347
      %v354 = vadd.f32 %v334, %v347
      %v355 = vadd.f32 %v335, %v347
      %v356 = vadd.f32 %v336, %v347
      %v357 = vadd.f32 %v337, %v347
      %v358 = vadd.f32 %v338, %v347
      %v359 = vadd.f32 %v339, %v347
      %v360 = vadd.f32 %v340, %v347
      %v361 = vadd.f32 %v341, %v347
      %v362 = vadd.f32 %v342, %v347
      %v363 = vadd.f32 %v343, %v347
      %v364 = vadd.f32 %v344, %v347
      %v365 = vmax.f32 %v349, 0.0
      %v366 = vmax.f32 %v350, 0.0
      %v367 = vmax.f32 %v351, 0.0
      %v368 = vmax.f32 %v352, 0.0
      %v369 = vmax.f32 %v353, 0.0
      %v370 = vmax.f32 %v354, 0.0
      %v371 = vmax.f32 %v355, 0.0
      %v372 = vmax.f32 %v356, 0.0
      %v373 = vmax.f32 %v357, 0.0
      %v374 = vmax.f32 %v358, 0.0
      %v375 = vmax.f32 %v359, 0.0
      %v376 = vmax.f32 %v360, 0.0
      %v377 = vmax.f32 %v361, 0.0
      %v378 = vmax.f32 %v362, 0.0
      %v379 = vmax.f32 %v363, 0.0
      %v380 = vmax.f32 %v364, 0.0
      %v381 = vmax.f32 %v365, %v366
      %v382 = vmax.f32 %v381, %v367
      %v383 = vmax.f32 %v382, %v368
      %v384 = vmax.f32 %v383, %v369
      %v385 = vmax.f32 %v384, %v370
      %v386 = vmax.f32 %v385, %v371
      %v387 = vmax.f32 %v386, %v372
      %v388 = vmax.f32 %v387, %v373
      %v389 = vmax.f32 %v388, %v374
      %v390 = vmax.f32 %v389, %v375
      %v391 = vmax.f32 %v390, %v376
      %v392 = vmax.f32 %v391, %v377
      %v393 = vmax.f32 %v392, %v378
      %v394 = vmax.f32 %v393, %v379
      %v395 = vmax.f32 %v394, %v380
      %s396 = scalar_lea.vmem %s197, 16
      %397 = vst [vmem:[%s396 + $0x1] sm:$0xff] %v395
      %v398 = vld [vmem:[%s192 + $0x80] sm:$0xff]
      %v399 = vld [vmem:[%s192 + $0x88] sm:$0xff]
      %v400 = vld [vmem:[%s192 + $0x90] sm:$0xff]
      %v401 = vld [vmem:[%s192 + $0x98] sm:$0xff]
      %v402 = vld [vmem:[%s192 + $0xa0] sm:$0xff]
      %v403 = vld [vmem:[%s192 + $0xa8] sm:$0xff]
      %v404 = vld [vmem:[%s192 + $0xb0] sm:$0xff]
      %v405 = vld [vmem:[%s192 + $0xb8] sm:$0xff]
      %v406 = vld [vmem:[%s192 + $0xc0] sm:$0xff]
      %v407 = vld [vmem:[%s192 + $0xc8] sm:$0xff]
      %v408 = vld [vmem:[%s192 + $0xd0] sm:$0xff]
      %v409 = vld [vmem:[%s192 + $0xd8] sm:$0xff]
      %v410 = vld [vmem:[%s192 + $0xe0] sm:$0xff]
      %v411 = vld [vmem:[%s192 + $0xe8] sm:$0xff]
      %v412 = vld [vmem:[%s192 + $0xf0] sm:$0xff]
      %v413 = vld [vmem:[%s192 + $0xf8] sm:$0xff]
      %v414 = vpack.c.bf16 %v399, %v398
      %v415 = vpack.c.bf16 %v401, %v400
      %v416 = vpack.c.bf16 %v403, %v402
      %v417 = vpack.c.bf16 %v405, %v404
      %v418 = vpack.c.bf16 %v407, %v406
      %v419 = vpack.c.bf16 %v409, %v408
      %v420 = vpack.c.bf16 %v411, %v410
      %v421 = vpack.c.bf16 %v413, %v412
      %v422 = vld [vmem:[%s1] sm:$0xf]
      %v423 = vld [vmem:[%s1 + $0x4] sm:$0xf]
      %v426 = vunpack.c.l.b16 %v422
      %v427 = vunpack.c.l.b16 %v423
      %v428 = vpack.c.b16 %v427, %v426
      %v431 = vsel %vm251, %v414, 0
      %v434 = vsel %vm251, %v415, 0
      %v437 = vsel %vm251, %v416, 0
      %v440 = vsel %vm251, %v417, 0
      %v443 = vsel %vm251, %v418, 0
      %v446 = vsel %vm251, %v419, 0
      %v449 = vsel %vm251, %v420, 0
      %v452 = vsel %vm251, %v421, 0
      %454 = vmatpush.bf16.msra.mxu0 0
      %455 = vmatpush.bf16.msra.mxu0 0
      %456 = vmatpush.bf16.msra.mxu0 0
      %457 = vmatpush.bf16.msra.mxu0 0
      %458 = vmatpush.bf16.msra.mxu0 0
      %459 = vmatpush.bf16.msra.mxu0 0
      %460 = vmatpush.bf16.msra.mxu0 0
      %461 = vmatpush.bf16.msra.mxu0 %v428
      %462 = vmatmul.bf16.gmra.mxu0 %v431
      %v463 = vpop.f32.mrf.mxu0
      %v464 = vadd.f32 0.0, %v463
      %v465 = vpop.f32.mrf.mxu0
      %v466 = vadd.f32 0.0, %v465
      %467 = vmatmul.bf16.gmra.mxu0 %v434
      %v468 = vpop.f32.mrf.mxu0
      %v469 = vadd.f32 0.0, %v468
      %v470 = vpop.f32.mrf.mxu0
      %v471 = vadd.f32 0.0, %v470
      %472 = vmatmul.bf16.gmra.mxu0 %v437
      %v473 = vpop.f32.mrf.mxu0
      %v474 = vadd.f32 0.0, %v473
      %v475 = vpop.f32.mrf.mxu0
      %v476 = vadd.f32 0.0, %v475
      %477 = vmatmul.bf16.gmra.mxu0 %v440
      %v478 = vpop.f32.mrf.mxu0
      %v479 = vadd.f32 0.0, %v478
      %v480 = vpop.f32.mrf.mxu0
      %v481 = vadd.f32 0.0, %v480
      %482 = vmatmul.bf16.gmra.mxu0 %v443
      %v483 = vpop.f32.mrf.mxu0
      %v484 = vadd.f32 0.0, %v483
      %v485 = vpop.f32.mrf.mxu0
      %v486 = vadd.f32 0.0, %v485
      %487 = vmatmul.bf16.gmra.mxu0 %v446
      %v488 = vpop.f32.mrf.mxu0
      %v489 = vadd.f32 0.0, %v488
      %v490 = vpop.f32.mrf.mxu0
      %v491 = vadd.f32 0.0, %v490
      %492 = vmatmul.bf16.gmra.mxu0 %v449
      %v493 = vpop.f32.mrf.mxu0
      %v494 = vadd.f32 0.0, %v493
      %v495 = vpop.f32.mrf.mxu0
      %v496 = vadd.f32 0.0, %v495
      %497 = vmatmul.bf16.gmra.mxu0 %v452
      %v498 = vpop.f32.mrf.mxu0
      %v499 = vadd.f32 0.0, %v498
      %v500 = vpop.f32.mrf.mxu0
      %v501 = vadd.f32 0.0, %v500
      %502 = vdwg.mxu0
      %v503 = vld [vmem:[%s2] sm:$0x1]
      %v505 = vperm.slane %v503, 0
      %v507 = vmul.f32 %v464, %v505
      %v508 = vmul.f32 %v466, %v505
      %v509 = vmul.f32 %v469, %v505
      %v510 = vmul.f32 %v471, %v505
      %v511 = vmul.f32 %v474, %v505
      %v512 = vmul.f32 %v476, %v505
      %v513 = vmul.f32 %v479, %v505
      %v514 = vmul.f32 %v481, %v505
      %v515 = vmul.f32 %v484, %v505
      %v516 = vmul.f32 %v486, %v505
      %v517 = vmul.f32 %v489, %v505
      %v518 = vmul.f32 %v491, %v505
      %v519 = vmul.f32 %v494, %v505
      %v520 = vmul.f32 %v496, %v505
      %v521 = vmul.f32 %v499, %v505
      %v522 = vmul.f32 %v501, %v505
      %v523 = vld [vmem:[%s3] sm:$0x1]
      %v525 = vperm.slane %v523, 0
      %v527 = vadd.f32 %v507, %v525
      %v528 = vadd.f32 %v508, %v525
      %v529 = vadd.f32 %v509, %v525
      %v530 = vadd.f32 %v510, %v525
      %v531 = vadd.f32 %v511, %v525
      %v532 = vadd.f32 %v512, %v525
      %v533 = vadd.f32 %v513, %v525
      %v534 = vadd.f32 %v514, %v525
      %v535 = vadd.f32 %v515, %v525
      %v536 = vadd.f32 %v516, %v525
      %v537 = vadd.f32 %v517, %v525
      %v538 = vadd.f32 %v518, %v525
      %v539 = vadd.f32 %v519, %v525
      %v540 = vadd.f32 %v520, %v525
      %v541 = vadd.f32 %v521, %v525
      %v542 = vadd.f32 %v522, %v525
      %v543 = vmax.f32 %v527, 0.0
      %v544 = vmax.f32 %v528, 0.0
      %v545 = vmax.f32 %v529, 0.0
      %v546 = vmax.f32 %v530, 0.0
      %v547 = vmax.f32 %v531, 0.0
      %v548 = vmax.f32 %v532, 0.0
      %v549 = vmax.f32 %v533, 0.0
      %v550 = vmax.f32 %v534, 0.0
      %v551 = vmax.f32 %v535, 0.0
      %v552 = vmax.f32 %v536, 0.0
      %v553 = vmax.f32 %v537, 0.0
      %v554 = vmax.f32 %v538, 0.0
      %v555 = vmax.f32 %v539, 0.0
      %v556 = vmax.f32 %v540, 0.0
      %v557 = vmax.f32 %v541, 0.0
      %v558 = vmax.f32 %v542, 0.0
      %v559 = vmax.f32 %v543, %v544
      %v560 = vmax.f32 %v559, %v545
      %v561 = vmax.f32 %v560, %v546
      %v562 = vmax.f32 %v561, %v547
      %v563 = vmax.f32 %v562, %v548
      %v564 = vmax.f32 %v563, %v549
      %v565 = vmax.f32 %v564, %v550
      %v566 = vmax.f32 %v565, %v551
      %v567 = vmax.f32 %v566, %v552
      %v568 = vmax.f32 %v567, %v553
      %v569 = vmax.f32 %v568, %v554
      %v570 = vmax.f32 %v569, %v555
      %v571 = vmax.f32 %v570, %v556
      %v572 = vmax.f32 %v571, %v557
      %v573 = vmax.f32 %v572, %v558
      %s574 = scalar_lea.vmem %s197, 32
      %575 = vst [vmem:[%s574 + $0x1] sm:$0xff] %v573
      %v576 = vld [vmem:[%s192 + $0x100] sm:$0xff]
      %v577 = vld [vmem:[%s192 + $0x108] sm:$0xff]
      %v578 = vld [vmem:[%s192 + $0x110] sm:$0xff]
      %v579 = vld [vmem:[%s192 + $0x118] sm:$0xff]
      %v580 = vld [vmem:[%s192 + $0x120] sm:$0xff]
      %v581 = vld [vmem:[%s192 + $0x128] sm:$0xff]
      %v582 = vld [vmem:[%s192 + $0x130] sm:$0xff]
      %v583 = vld [vmem:[%s192 + $0x138] sm:$0xff]
      %v584 = vld [vmem:[%s192 + $0x140] sm:$0xff]
      %v585 = vld [vmem:[%s192 + $0x148] sm:$0xff]
      %v586 = vld [vmem:[%s192 + $0x150] sm:$0xff]
      %v587 = vld [vmem:[%s192 + $0x158] sm:$0xff]
      %v588 = vld [vmem:[%s192 + $0x160] sm:$0xff]
      %v589 = vld [vmem:[%s192 + $0x168] sm:$0xff]
      %v590 = vld [vmem:[%s192 + $0x170] sm:$0xff]
      %v591 = vld [vmem:[%s192 + $0x178] sm:$0xff]
      %v592 = vpack.c.bf16 %v577, %v576
      %v593 = vpack.c.bf16 %v579, %v578
      %v594 = vpack.c.bf16 %v581, %v580
      %v595 = vpack.c.bf16 %v583, %v582
      %v596 = vpack.c.bf16 %v585, %v584
      %v597 = vpack.c.bf16 %v587, %v586
      %v598 = vpack.c.bf16 %v589, %v588
      %v599 = vpack.c.bf16 %v591, %v590
      %v600 = vld [vmem:[%s1] sm:$0xf]
      %v601 = vld [vmem:[%s1 + $0x4] sm:$0xf]
      %v604 = vunpack.c.l.b16 %v600
      %v605 = vunpack.c.l.b16 %v601
      %v606 = vpack.c.b16 %v605, %v604
      %v609 = vsel %vm251, %v592, 0
      %v612 = vsel %vm251, %v593, 0
      %v615 = vsel %vm251, %v594, 0
      %v618 = vsel %vm251, %v595, 0
      %v621 = vsel %vm251, %v596, 0
      %v624 = vsel %vm251, %v597, 0
      %v627 = vsel %vm251, %v598, 0
      %v630 = vsel %vm251, %v599, 0
      %632 = vmatpush.bf16.msra.mxu0 0
      %633 = vmatpush.bf16.msra.mxu0 0
      %634 = vmatpush.bf16.msra.mxu0 0
      %635 = vmatpush.bf16.msra.mxu0 0
      %636 = vmatpush.bf16.msra.mxu0 0
      %637 = vmatpush.bf16.msra.mxu0 0
      %638 = vmatpush.bf16.msra.mxu0 0
      %639 = vmatpush.bf16.msra.mxu0 %v606
      %640 = vmatmul.bf16.gmra.mxu0 %v609
      %v641 = vpop.f32.mrf.mxu0
      %v642 = vadd.f32 0.0, %v641
      %v643 = vpop.f32.mrf.mxu0
      %v644 = vadd.f32 0.0, %v643
      %645 = vmatmul.bf16.gmra.mxu0 %v612
      %v646 = vpop.f32.mrf.mxu0
      %v647 = vadd.f32 0.0, %v646
      %v648 = vpop.f32.mrf.mxu0
      %v649 = vadd.f32 0.0, %v648
      %650 = vmatmul.bf16.gmra.mxu0 %v615
      %v651 = vpop.f32.mrf.mxu0
      %v652 = vadd.f32 0.0, %v651
      %v653 = vpop.f32.mrf.mxu0
      %v654 = vadd.f32 0.0, %v653
      %655 = vmatmul.bf16.gmra.mxu0 %v618
      %v656 = vpop.f32.mrf.mxu0
      %v657 = vadd.f32 0.0, %v656
      %v658 = vpop.f32.mrf.mxu0
      %v659 = vadd.f32 0.0, %v658
      %660 = vmatmul.bf16.gmra.mxu0 %v621
      %v661 = vpop.f32.mrf.mxu0
      %v662 = vadd.f32 0.0, %v661
      %v663 = vpop.f32.mrf.mxu0
      %v664 = vadd.f32 0.0, %v663
      %665 = vmatmul.bf16.gmra.mxu0 %v624
      %v666 = vpop.f32.mrf.mxu0
      %v667 = vadd.f32 0.0, %v666
      %v668 = vpop.f32.mrf.mxu0
      %v669 = vadd.f32 0.0, %v668
      %670 = vmatmul.bf16.gmra.mxu0 %v627
      %v671 = vpop.f32.mrf.mxu0
      %v672 = vadd.f32 0.0, %v671
      %v673 = vpop.f32.mrf.mxu0
      %v674 = vadd.f32 0.0, %v673
      %675 = vmatmul.bf16.gmra.mxu0 %v630
      %v676 = vpop.f32.mrf.mxu0
      %v677 = vadd.f32 0.0, %v676
      %v678 = vpop.f32.mrf.mxu0
      %v679 = vadd.f32 0.0, %v678
      %680 = vdwg.mxu0
      %v681 = vld [vmem:[%s2] sm:$0x1]
      %v683 = vperm.slane %v681, 0
      %v685 = vmul.f32 %v642, %v683
      %v686 = vmul.f32 %v644, %v683
      %v687 = vmul.f32 %v647, %v683
      %v688 = vmul.f32 %v649, %v683
      %v689 = vmul.f32 %v652, %v683
      %v690 = vmul.f32 %v654, %v683
      %v691 = vmul.f32 %v657, %v683
      %v692 = vmul.f32 %v659, %v683
      %v693 = vmul.f32 %v662, %v683
      %v694 = vmul.f32 %v664, %v683
      %v695 = vmul.f32 %v667, %v683
      %v696 = vmul.f32 %v669, %v683
      %v697 = vmul.f32 %v672, %v683
      %v698 = vmul.f32 %v674, %v683
      %v699 = vmul.f32 %v677, %v683
      %v700 = vmul.f32 %v679, %v683
      %v701 = vld [vmem:[%s3] sm:$0x1]
      %v703 = vperm.slane %v701, 0
      %v705 = vadd.f32 %v685, %v703
      %v706 = vadd.f32 %v686, %v703
      %v707 = vadd.f32 %v687, %v703
      %v708 = vadd.f32 %v688, %v703
      %v709 = vadd.f32 %v689, %v703
      %v710 = vadd.f32 %v690, %v703
      %v711 = vadd.f32 %v691, %v703
      %v712 = vadd.f32 %v692, %v703
      %v713 = vadd.f32 %v693, %v703
      %v714 = vadd.f32 %v694, %v703
      %v715 = vadd.f32 %v695, %v703
      %v716 = vadd.f32 %v696, %v703
      %v717 = vadd.f32 %v697, %v703
      %v718 = vadd.f32 %v698, %v703
      %v719 = vadd.f32 %v699, %v703
      %v720 = vadd.f32 %v700, %v703
      %v721 = vmax.f32 %v705, 0.0
      %v722 = vmax.f32 %v706, 0.0
      %v723 = vmax.f32 %v707, 0.0
      %v724 = vmax.f32 %v708, 0.0
      %v725 = vmax.f32 %v709, 0.0
      %v726 = vmax.f32 %v710, 0.0
      %v727 = vmax.f32 %v711, 0.0
      %v728 = vmax.f32 %v712, 0.0
      %v729 = vmax.f32 %v713, 0.0
      %v730 = vmax.f32 %v714, 0.0
      %v731 = vmax.f32 %v715, 0.0
      %v732 = vmax.f32 %v716, 0.0
      %v733 = vmax.f32 %v717, 0.0
      %v734 = vmax.f32 %v718, 0.0
      %v735 = vmax.f32 %v719, 0.0
      %v736 = vmax.f32 %v720, 0.0
      %v737 = vmax.f32 %v721, %v722
      %v738 = vmax.f32 %v737, %v723
      %v739 = vmax.f32 %v738, %v724
      %v740 = vmax.f32 %v739, %v725
      %v741 = vmax.f32 %v740, %v726
      %v742 = vmax.f32 %v741, %v727
      %v743 = vmax.f32 %v742, %v728
      %v744 = vmax.f32 %v743, %v729
      %v745 = vmax.f32 %v744, %v730
      %v746 = vmax.f32 %v745, %v731
      %v747 = vmax.f32 %v746, %v732
      %v748 = vmax.f32 %v747, %v733
      %v749 = vmax.f32 %v748, %v734
      %v750 = vmax.f32 %v749, %v735
      %v751 = vmax.f32 %v750, %v736
      %s752 = scalar_lea.vmem %s197, 48
      %753 = vst [vmem:[%s752 + $0x1] sm:$0xff] %v751
      %v754 = vld [vmem:[%s192 + $0x180] sm:$0xff]
      %v755 = vld [vmem:[%s192 + $0x188] sm:$0xff]
      %v756 = vld [vmem:[%s192 + $0x190] sm:$0xff]
      %v757 = vld [vmem:[%s192 + $0x198] sm:$0xff]
      %v758 = vld [vmem:[%s192 + $0x1a0] sm:$0xff]
      %v759 = vld [vmem:[%s192 + $0x1a8] sm:$0xff]
      %v760 = vld [vmem:[%s192 + $0x1b0] sm:$0xff]
      %v761 = vld [vmem:[%s192 + $0x1b8] sm:$0xff]
      %v762 = vld [vmem:[%s192 + $0x1c0] sm:$0xff]
      %v763 = vld [vmem:[%s192 + $0x1c8] sm:$0xff]
      %v764 = vld [vmem:[%s192 + $0x1d0] sm:$0xff]
      %v765 = vld [vmem:[%s192 + $0x1d8] sm:$0xff]
      %v766 = vld [vmem:[%s192 + $0x1e0] sm:$0xff]
      %v767 = vld [vmem:[%s192 + $0x1e8] sm:$0xff]
      %v768 = vld [vmem:[%s192 + $0x1f0] sm:$0xff]
      %v769 = vld [vmem:[%s192 + $0x1f8] sm:$0xff]
      %v770 = vpack.c.bf16 %v755, %v754
      %v771 = vpack.c.bf16 %v757, %v756
      %v772 = vpack.c.bf16 %v759, %v758
      %v773 = vpack.c.bf16 %v761, %v760
      %v774 = vpack.c.bf16 %v763, %v762
      %v775 = vpack.c.bf16 %v765, %v764
      %v776 = vpack.c.bf16 %v767, %v766
      %v777 = vpack.c.bf16 %v769, %v768
      %v778 = vld [vmem:[%s1] sm:$0xf]
      %v779 = vld [vmem:[%s1 + $0x4] sm:$0xf]
      %v782 = vunpack.c.l.b16 %v778
      %v783 = vunpack.c.l.b16 %v779
      %v784 = vpack.c.b16 %v783, %v782
      %v787 = vsel %vm251, %v770, 0
      %v790 = vsel %vm251, %v771, 0
      %v793 = vsel %vm251, %v772, 0
      %v796 = vsel %vm251, %v773, 0
      %v799 = vsel %vm251, %v774, 0
      %v802 = vsel %vm251, %v775, 0
      %v805 = vsel %vm251, %v776, 0
      %v808 = vsel %vm251, %v777, 0
      %810 = vmatpush.bf16.msra.mxu0 0
      %811 = vmatpush.bf16.msra.mxu0 0
      %812 = vmatpush.bf16.msra.mxu0 0
      %813 = vmatpush.bf16.msra.mxu0 0
      %814 = vmatpush.bf16.msra.mxu0 0
      %815 = vmatpush.bf16.msra.mxu0 0
      %816 = vmatpush.bf16.msra.mxu0 0
      %817 = vmatpush.bf16.msra.mxu0 %v784
      %818 = vmatmul.bf16.gmra.mxu0 %v787
      %v819 = vpop.f32.mrf.mxu0
      %v820 = vadd.f32 0.0, %v819
      %v821 = vpop.f32.mrf.mxu0
      %v822 = vadd.f32 0.0, %v821
      %823 = vmatmul.bf16.gmra.mxu0 %v790
      %v824 = vpop.f32.mrf.mxu0
      %v825 = vadd.f32 0.0, %v824
      %v826 = vpop.f32.mrf.mxu0
      %v827 = vadd.f32 0.0, %v826
      %828 = vmatmul.bf16.gmra.mxu0 %v793
      %v829 = vpop.f32.mrf.mxu0
      %v830 = vadd.f32 0.0, %v829
      %v831 = vpop.f32.mrf.mxu0
      %v832 = vadd.f32 0.0, %v831
      %833 = vmatmul.bf16.gmra.mxu0 %v796
      %v834 = vpop.f32.mrf.mxu0
      %v835 = vadd.f32 0.0, %v834
      %v836 = vpop.f32.mrf.mxu0
      %v837 = vadd.f32 0.0, %v836
      %838 = vmatmul.bf16.gmra.mxu0 %v799
      %v839 = vpop.f32.mrf.mxu0
      %v840 = vadd.f32 0.0, %v839
      %v841 = vpop.f32.mrf.mxu0
      %v842 = vadd.f32 0.0, %v841
      %843 = vmatmul.bf16.gmra.mxu0 %v802
      %v844 = vpop.f32.mrf.mxu0
      %v845 = vadd.f32 0.0, %v844
      %v846 = vpop.f32.mrf.mxu0
      %v847 = vadd.f32 0.0, %v846
      %848 = vmatmul.bf16.gmra.mxu0 %v805
      %v849 = vpop.f32.mrf.mxu0
      %v850 = vadd.f32 0.0, %v849
      %v851 = vpop.f32.mrf.mxu0
      %v852 = vadd.f32 0.0, %v851
      %853 = vmatmul.bf16.gmra.mxu0 %v808
      %v854 = vpop.f32.mrf.mxu0
      %v855 = vadd.f32 0.0, %v854
      %v856 = vpop.f32.mrf.mxu0
      %v857 = vadd.f32 0.0, %v856
      %858 = vdwg.mxu0
      %v859 = vld [vmem:[%s2] sm:$0x1]
      %v861 = vperm.slane %v859, 0
      %v863 = vmul.f32 %v820, %v861
      %v864 = vmul.f32 %v822, %v861
      %v865 = vmul.f32 %v825, %v861
      %v866 = vmul.f32 %v827, %v861
      %v867 = vmul.f32 %v830, %v861
      %v868 = vmul.f32 %v832, %v861
      %v869 = vmul.f32 %v835, %v861
      %v870 = vmul.f32 %v837, %v861
      %v871 = vmul.f32 %v840, %v861
      %v872 = vmul.f32 %v842, %v861
      %v873 = vmul.f32 %v845, %v861
      %v874 = vmul.f32 %v847, %v861
      %v875 = vmul.f32 %v850, %v861
      %v876 = vmul.f32 %v852, %v861
      %v877 = vmul.f32 %v855, %v861
      %v878 = vmul.f32 %v857, %v861
      %v879 = vld [vmem:[%s3] sm:$0x1]
      %v881 = vperm.slane %v879, 0
      %v883 = vadd.f32 %v863, %v881
      %v884 = vadd.f32 %v864, %v881
      %v885 = vadd.f32 %v865, %v881
      %v886 = vadd.f32 %v866, %v881
      %v887 = vadd.f32 %v867, %v881
      %v888 = vadd.f32 %v868, %v881
      %v889 = vadd.f32 %v869, %v881
      %v890 = vadd.f32 %v870, %v881
      %v891 = vadd.f32 %v871, %v881
      %v892 = vadd.f32 %v872, %v881
      %v893 = vadd.f32 %v873, %v881
      %v894 = vadd.f32 %v874, %v881
      %v895 = vadd.f32 %v875, %v881
      %v896 = vadd.f32 %v876, %v881
      %v897 = vadd.f32 %v877, %v881
      %v898 = vadd.f32 %v878, %v881
      %v899 = vmax.f32 %v883, 0.0
      %v900 = vmax.f32 %v884, 0.0
      %v901 = vmax.f32 %v885, 0.0
      %v902 = vmax.f32 %v886, 0.0
      %v903 = vmax.f32 %v887, 0.0
      %v904 = vmax.f32 %v888, 0.0
      %v905 = vmax.f32 %v889, 0.0
      %v906 = vmax.f32 %v890, 0.0
      %v907 = vmax.f32 %v891, 0.0
      %v908 = vmax.f32 %v892, 0.0
      %v909 = vmax.f32 %v893, 0.0
      %v910 = vmax.f32 %v894, 0.0
      %v911 = vmax.f32 %v895, 0.0
      %v912 = vmax.f32 %v896, 0.0
      %v913 = vmax.f32 %v897, 0.0
      %v914 = vmax.f32 %v898, 0.0
      %v915 = vmax.f32 %v899, %v900
      %v916 = vmax.f32 %v915, %v901
      %v917 = vmax.f32 %v916, %v902
      %v918 = vmax.f32 %v917, %v903
      %v919 = vmax.f32 %v918, %v904
      %v920 = vmax.f32 %v919, %v905
      %v921 = vmax.f32 %v920, %v906
      %v922 = vmax.f32 %v921, %v907
      %v923 = vmax.f32 %v922, %v908
      %v924 = vmax.f32 %v923, %v909
      %v925 = vmax.f32 %v924, %v910
      %v926 = vmax.f32 %v925, %v911
      %v927 = vmax.f32 %v926, %v912
      %v928 = vmax.f32 %v927, %v913
      %v929 = vmax.f32 %v928, %v914
      %s930 = scalar_lea.vmem %s197, 64
      %931 = vst [vmem:[%s930 + $0x1] sm:$0xff] %v929
      %v932 = vld [vmem:[%s192 + $0x200] sm:$0xff]
      %v933 = vld [vmem:[%s192 + $0x208] sm:$0xff]
      %v934 = vld [vmem:[%s192 + $0x210] sm:$0xff]
      %v935 = vld [vmem:[%s192 + $0x218] sm:$0xff]
      %v936 = vld [vmem:[%s192 + $0x220] sm:$0xff]
      %v937 = vld [vmem:[%s192 + $0x228] sm:$0xff]
      %v938 = vld [vmem:[%s192 + $0x230] sm:$0xff]
      %v939 = vld [vmem:[%s192 + $0x238] sm:$0xff]
      %v940 = vld [vmem:[%s192 + $0x240] sm:$0xff]
      %v941 = vld [vmem:[%s192 + $0x248] sm:$0xff]
      %v942 = vld [vmem:[%s192 + $0x250] sm:$0xff]
      %v943 = vld [vmem:[%s192 + $0x258] sm:$0xff]
      %v944 = vld [vmem:[%s192 + $0x260] sm:$0xff]
      %v945 = vld [vmem:[%s192 + $0x268] sm:$0xff]
      %v946 = vld [vmem:[%s192 + $0x270] sm:$0xff]
      %v947 = vld [vmem:[%s192 + $0x278] sm:$0xff]
      %v948 = vpack.c.bf16 %v933, %v932
      %v949 = vpack.c.bf16 %v935, %v934
      %v950 = vpack.c.bf16 %v937, %v936
      %v951 = vpack.c.bf16 %v939, %v938
      %v952 = vpack.c.bf16 %v941, %v940
      %v953 = vpack.c.bf16 %v943, %v942
      %v954 = vpack.c.bf16 %v945, %v944
      %v955 = vpack.c.bf16 %v947, %v946
      %v956 = vld [vmem:[%s1] sm:$0xf]
      %v957 = vld [vmem:[%s1 + $0x4] sm:$0xf]
      %v960 = vunpack.c.l.b16 %v956
      %v961 = vunpack.c.l.b16 %v957
      %v962 = vpack.c.b16 %v961, %v960
      %v965 = vsel %vm251, %v948, 0
      %v968 = vsel %vm251, %v949, 0
      %v971 = vsel %vm251, %v950, 0
      %v974 = vsel %vm251, %v951, 0
      %v977 = vsel %vm251, %v952, 0
      %v980 = vsel %vm251, %v953, 0
      %v983 = vsel %vm251, %v954, 0
      %v986 = vsel %vm251, %v955, 0
      %988 = vmatpush.bf16.msra.mxu0 0
      %989 = vmatpush.bf16.msra.mxu0 0
      %990 = vmatpush.bf16.msra.mxu0 0
      %991 = vmatpush.bf16.msra.mxu0 0
      %992 = vmatpush.bf16.msra.mxu0 0
      %993 = vmatpush.bf16.msra.mxu0 0
      %994 = vmatpush.bf16.msra.mxu0 0
      %995 = vmatpush.bf16.msra.mxu0 %v962
      %996 = vmatmul.bf16.gmra.mxu0 %v965
      %v997 = vpop.f32.mrf.mxu0
      %v998 = vadd.f32 0.0, %v997
      %v999 = vpop.f32.mrf.mxu0
      %v1000 = vadd.f32 0.0, %v999
      %1001 = vmatmul.bf16.gmra.mxu0 %v968
      %v1002 = vpop.f32.mrf.mxu0
      %v1003 = vadd.f32 0.0, %v1002
      %v1004 = vpop.f32.mrf.mxu0
      %v1005 = vadd.f32 0.0, %v1004
      %1006 = vmatmul.bf16.gmra.mxu0 %v971
      %v1007 = vpop.f32.mrf.mxu0
      %v1008 = vadd.f32 0.0, %v1007
      %v1009 = vpop.f32.mrf.mxu0
      %v1010 = vadd.f32 0.0, %v1009
      %1011 = vmatmul.bf16.gmra.mxu0 %v974
      %v1012 = vpop.f32.mrf.mxu0
      %v1013 = vadd.f32 0.0, %v1012
      %v1014 = vpop.f32.mrf.mxu0
      %v1015 = vadd.f32 0.0, %v1014
      %1016 = vmatmul.bf16.gmra.mxu0 %v977
      %v1017 = vpop.f32.mrf.mxu0
      %v1018 = vadd.f32 0.0, %v1017
      %v1019 = vpop.f32.mrf.mxu0
      %v1020 = vadd.f32 0.0, %v1019
      %1021 = vmatmul.bf16.gmra.mxu0 %v980
      %v1022 = vpop.f32.mrf.mxu0
      %v1023 = vadd.f32 0.0, %v1022
      %v1024 = vpop.f32.mrf.mxu0
      %v1025 = vadd.f32 0.0, %v1024
      %1026 = vmatmul.bf16.gmra.mxu0 %v983
      %v1027 = vpop.f32.mrf.mxu0
      %v1028 = vadd.f32 0.0, %v1027
      %v1029 = vpop.f32.mrf.mxu0
      %v1030 = vadd.f32 0.0, %v1029
      %1031 = vmatmul.bf16.gmra.mxu0 %v986
      %v1032 = vpop.f32.mrf.mxu0
      %v1033 = vadd.f32 0.0, %v1032
      %v1034 = vpop.f32.mrf.mxu0
      %v1035 = vadd.f32 0.0, %v1034
      %1036 = vdwg.mxu0
      %v1037 = vld [vmem:[%s2] sm:$0x1]
      %v1039 = vperm.slane %v1037, 0
      %v1041 = vmul.f32 %v998, %v1039
      %v1042 = vmul.f32 %v1000, %v1039
      %v1043 = vmul.f32 %v1003, %v1039
      %v1044 = vmul.f32 %v1005, %v1039
      %v1045 = vmul.f32 %v1008, %v1039
      %v1046 = vmul.f32 %v1010, %v1039
      %v1047 = vmul.f32 %v1013, %v1039
      %v1048 = vmul.f32 %v1015, %v1039
      %v1049 = vmul.f32 %v1018, %v1039
      %v1050 = vmul.f32 %v1020, %v1039
      %v1051 = vmul.f32 %v1023, %v1039
      %v1052 = vmul.f32 %v1025, %v1039
      %v1053 = vmul.f32 %v1028, %v1039
      %v1054 = vmul.f32 %v1030, %v1039
      %v1055 = vmul.f32 %v1033, %v1039
      %v1056 = vmul.f32 %v1035, %v1039
      %v1057 = vld [vmem:[%s3] sm:$0x1]
      %v1059 = vperm.slane %v1057, 0
      %v1061 = vadd.f32 %v1041, %v1059
      %v1062 = vadd.f32 %v1042, %v1059
      %v1063 = vadd.f32 %v1043, %v1059
      %v1064 = vadd.f32 %v1044, %v1059
      %v1065 = vadd.f32 %v1045, %v1059
      %v1066 = vadd.f32 %v1046, %v1059
      %v1067 = vadd.f32 %v1047, %v1059
      %v1068 = vadd.f32 %v1048, %v1059
      %v1069 = vadd.f32 %v1049, %v1059
      %v1070 = vadd.f32 %v1050, %v1059
      %v1071 = vadd.f32 %v1051, %v1059
      %v1072 = vadd.f32 %v1052, %v1059
      %v1073 = vadd.f32 %v1053, %v1059
      %v1074 = vadd.f32 %v1054, %v1059
      %v1075 = vadd.f32 %v1055, %v1059
      %v1076 = vadd.f32 %v1056, %v1059
      %v1077 = vmax.f32 %v1061, 0.0
      %v1078 = vmax.f32 %v1062, 0.0
      %v1079 = vmax.f32 %v1063, 0.0
      %v1080 = vmax.f32 %v1064, 0.0
      %v1081 = vmax.f32 %v1065, 0.0
      %v1082 = vmax.f32 %v1066, 0.0
      %v1083 = vmax.f32 %v1067, 0.0
      %v1084 = vmax.f32 %v1068, 0.0
      %v1085 = vmax.f32 %v1069, 0.0
      %v1086 = vmax.f32 %v1070, 0.0
      %v1087 = vmax.f32 %v1071, 0.0
      %v1088 = vmax.f32 %v1072, 0.0
      %v1089 = vmax.f32 %v1073, 0.0
      %v1090 = vmax.f32 %v1074, 0.0
      %v1091 = vmax.f32 %v1075, 0.0
      %v1092 = vmax.f32 %v1076, 0.0
      %v1093 = vmax.f32 %v1077, %v1078
      %v1094 = vmax.f32 %v1093, %v1079
      %v1095 = vmax.f32 %v1094, %v1080
      %v1096 = vmax.f32 %v1095, %v1081
      %v1097 = vmax.f32 %v1096, %v1082
      %v1098 = vmax.f32 %v1097, %v1083
      %v1099 = vmax.f32 %v1098, %v1084
      %v1100 = vmax.f32 %v1099, %v1085
      %v1101 = vmax.f32 %v1100, %v1086
      %v1102 = vmax.f32 %v1101, %v1087
      %v1103 = vmax.f32 %v1102, %v1088
      %v1104 = vmax.f32 %v1103, %v1089
      %v1105 = vmax.f32 %v1104, %v1090
      %v1106 = vmax.f32 %v1105, %v1091
      %v1107 = vmax.f32 %v1106, %v1092
      %s1108 = scalar_lea.vmem %s197, 80
      %1109 = vst [vmem:[%s1108 + $0x1] sm:$0xff] %v1107
      %v1110 = vld [vmem:[%s192 + $0x280] sm:$0xff]
      %v1111 = vld [vmem:[%s192 + $0x288] sm:$0xff]
      %v1112 = vld [vmem:[%s192 + $0x290] sm:$0xff]
      %v1113 = vld [vmem:[%s192 + $0x298] sm:$0xff]
      %v1114 = vld [vmem:[%s192 + $0x2a0] sm:$0xff]
      %v1115 = vld [vmem:[%s192 + $0x2a8] sm:$0xff]
      %v1116 = vld [vmem:[%s192 + $0x2b0] sm:$0xff]
      %v1117 = vld [vmem:[%s192 + $0x2b8] sm:$0xff]
      %v1118 = vld [vmem:[%s192 + $0x2c0] sm:$0xff]
      %v1119 = vld [vmem:[%s192 + $0x2c8] sm:$0xff]
      %v1120 = vld [vmem:[%s192 + $0x2d0] sm:$0xff]
      %v1121 = vld [vmem:[%s192 + $0x2d8] sm:$0xff]
      %v1122 = vld [vmem:[%s192 + $0x2e0] sm:$0xff]
      %v1123 = vld [vmem:[%s192 + $0x2e8] sm:$0xff]
      %v1124 = vld [vmem:[%s192 + $0x2f0] sm:$0xff]
      %v1125 = vld [vmem:[%s192 + $0x2f8] sm:$0xff]
      %v1126 = vpack.c.bf16 %v1111, %v1110
      %v1127 = vpack.c.bf16 %v1113, %v1112
      %v1128 = vpack.c.bf16 %v1115, %v1114
      %v1129 = vpack.c.bf16 %v1117, %v1116
      %v1130 = vpack.c.bf16 %v1119, %v1118
      %v1131 = vpack.c.bf16 %v1121, %v1120
      %v1132 = vpack.c.bf16 %v1123, %v1122
      %v1133 = vpack.c.bf16 %v1125, %v1124
      %v1134 = vld [vmem:[%s1] sm:$0xf]
      %v1135 = vld [vmem:[%s1 + $0x4] sm:$0xf]
      %v1138 = vunpack.c.l.b16 %v1134
      %v1139 = vunpack.c.l.b16 %v1135
      %v1140 = vpack.c.b16 %v1139, %v1138
      %v1143 = vsel %vm251, %v1126, 0
      %v1146 = vsel %vm251, %v1127, 0
      %v1149 = vsel %vm251, %v1128, 0
      %v1152 = vsel %vm251, %v1129, 0
      %v1155 = vsel %vm251, %v1130, 0
      %v1158 = vsel %vm251, %v1131, 0
      %v1161 = vsel %vm251, %v1132, 0
      %v1164 = vsel %vm251, %v1133, 0
      %1166 = vmatpush.bf16.msra.mxu0 0
      %1167 = vmatpush.bf16.msra.mxu0 0
      %1168 = vmatpush.bf16.msra.mxu0 0
      %1169 = vmatpush.bf16.msra.mxu0 0
      %1170 = vmatpush.bf16.msra.mxu0 0
      %1171 = vmatpush.bf16.msra.mxu0 0
      %1172 = vmatpush.bf16.msra.mxu0 0
      %1173 = vmatpush.bf16.msra.mxu0 %v1140
      %1174 = vmatmul.bf16.gmra.mxu0 %v1143
      %v1175 = vpop.f32.mrf.mxu0
      %v1176 = vadd.f32 0.0, %v1175
      %v1177 = vpop.f32.mrf.mxu0
      %v1178 = vadd.f32 0.0, %v1177
      %1179 = vmatmul.bf16.gmra.mxu0 %v1146
      %v1180 = vpop.f32.mrf.mxu0
      %v1181 = vadd.f32 0.0, %v1180
      %v1182 = vpop.f32.mrf.mxu0
      %v1183 = vadd.f32 0.0, %v1182
      %1184 = vmatmul.bf16.gmra.mxu0 %v1149
      %v1185 = vpop.f32.mrf.mxu0
      %v1186 = vadd.f32 0.0, %v1185
      %v1187 = vpop.f32.mrf.mxu0
      %v1188 = vadd.f32 0.0, %v1187
      %1189 = vmatmul.bf16.gmra.mxu0 %v1152
      %v1190 = vpop.f32.mrf.mxu0
      %v1191 = vadd.f32 0.0, %v1190
      %v1192 = vpop.f32.mrf.mxu0
      %v1193 = vadd.f32 0.0, %v1192
      %1194 = vmatmul.bf16.gmra.mxu0 %v1155
      %v1195 = vpop.f32.mrf.mxu0
      %v1196 = vadd.f32 0.0, %v1195
      %v1197 = vpop.f32.mrf.mxu0
      %v1198 = vadd.f32 0.0, %v1197
      %1199 = vmatmul.bf16.gmra.mxu0 %v1158
      %v1200 = vpop.f32.mrf.mxu0
      %v1201 = vadd.f32 0.0, %v1200
      %v1202 = vpop.f32.mrf.mxu0
      %v1203 = vadd.f32 0.0, %v1202
      %1204 = vmatmul.bf16.gmra.mxu0 %v1161
      %v1205 = vpop.f32.mrf.mxu0
      %v1206 = vadd.f32 0.0, %v1205
      %v1207 = vpop.f32.mrf.mxu0
      %v1208 = vadd.f32 0.0, %v1207
      %1209 = vmatmul.bf16.gmra.mxu0 %v1164
      %v1210 = vpop.f32.mrf.mxu0
      %v1211 = vadd.f32 0.0, %v1210
      %v1212 = vpop.f32.mrf.mxu0
      %v1213 = vadd.f32 0.0, %v1212
      %1214 = vdwg.mxu0
      %v1215 = vld [vmem:[%s2] sm:$0x1]
      %v1217 = vperm.slane %v1215, 0
      %v1219 = vmul.f32 %v1176, %v1217
      %v1220 = vmul.f32 %v1178, %v1217
      %v1221 = vmul.f32 %v1181, %v1217
      %v1222 = vmul.f32 %v1183, %v1217
      %v1223 = vmul.f32 %v1186, %v1217
      %v1224 = vmul.f32 %v1188, %v1217
      %v1225 = vmul.f32 %v1191, %v1217
      %v1226 = vmul.f32 %v1193, %v1217
      %v1227 = vmul.f32 %v1196, %v1217
      %v1228 = vmul.f32 %v1198, %v1217
      %v1229 = vmul.f32 %v1201, %v1217
      %v1230 = vmul.f32 %v1203, %v1217
      %v1231 = vmul.f32 %v1206, %v1217
      %v1232 = vmul.f32 %v1208, %v1217
      %v1233 = vmul.f32 %v1211, %v1217
      %v1234 = vmul.f32 %v1213, %v1217
      %v1235 = vld [vmem:[%s3] sm:$0x1]
      %v1237 = vperm.slane %v1235, 0
      %v1239 = vadd.f32 %v1219, %v1237
      %v1240 = vadd.f32 %v1220, %v1237
      %v1241 = vadd.f32 %v1221, %v1237
      %v1242 = vadd.f32 %v1222, %v1237
      %v1243 = vadd.f32 %v1223, %v1237
      %v1244 = vadd.f32 %v1224, %v1237
      %v1245 = vadd.f32 %v1225, %v1237
      %v1246 = vadd.f32 %v1226, %v1237
      %v1247 = vadd.f32 %v1227, %v1237
      %v1248 = vadd.f32 %v1228, %v1237
      %v1249 = vadd.f32 %v1229, %v1237
      %v1250 = vadd.f32 %v1230, %v1237
      %v1251 = vadd.f32 %v1231, %v1237
      %v1252 = vadd.f32 %v1232, %v1237
      %v1253 = vadd.f32 %v1233, %v1237
      %v1254 = vadd.f32 %v1234, %v1237
      %v1255 = vmax.f32 %v1239, 0.0
      %v1256 = vmax.f32 %v1240, 0.0
      %v1257 = vmax.f32 %v1241, 0.0
      %v1258 = vmax.f32 %v1242, 0.0
      %v1259 = vmax.f32 %v1243, 0.0
      %v1260 = vmax.f32 %v1244, 0.0
      %v1261 = vmax.f32 %v1245, 0.0
      %v1262 = vmax.f32 %v1246, 0.0
      %v1263 = vmax.f32 %v1247, 0.0
      %v1264 = vmax.f32 %v1248, 0.0
      %v1265 = vmax.f32 %v1249, 0.0
      %v1266 = vmax.f32 %v1250, 0.0
      %v1267 = vmax.f32 %v1251, 0.0
      %v1268 = vmax.f32 %v1252, 0.0
      %v1269 = vmax.f32 %v1253, 0.0
      %v1270 = vmax.f32 %v1254, 0.0
      %v1271 = vmax.f32 %v1255, %v1256
      %v1272 = vmax.f32 %v1271, %v1257
      %v1273 = vmax.f32 %v1272, %v1258
      %v1274 = vmax.f32 %v1273, %v1259
      %v1275 = vmax.f32 %v1274, %v1260
      %v1276 = vmax.f32 %v1275, %v1261
      %v1277 = vmax.f32 %v1276, %v1262
      %v1278 = vmax.f32 %v1277, %v1263
      %v1279 = vmax.f32 %v1278, %v1264
      %v1280 = vmax.f32 %v1279, %v1265
      %v1281 = vmax.f32 %v1280, %v1266
      %v1282 = vmax.f32 %v1281, %v1267
      %v1283 = vmax.f32 %v1282, %v1268
      %v1284 = vmax.f32 %v1283, %v1269
      %v1285 = vmax.f32 %v1284, %v1270
      %s1286 = scalar_lea.vmem %s197, 96
      %1287 = vst [vmem:[%s1286 + $0x1] sm:$0xff] %v1285
      %v1288 = vld [vmem:[%s192 + $0x300] sm:$0xff]
      %v1289 = vld [vmem:[%s192 + $0x308] sm:$0xff]
      %v1290 = vld [vmem:[%s192 + $0x310] sm:$0xff]
      %v1291 = vld [vmem:[%s192 + $0x318] sm:$0xff]
      %v1292 = vld [vmem:[%s192 + $0x320] sm:$0xff]
      %v1293 = vld [vmem:[%s192 + $0x328] sm:$0xff]
      %v1294 = vld [vmem:[%s192 + $0x330] sm:$0xff]
      %v1295 = vld [vmem:[%s192 + $0x338] sm:$0xff]
      %v1296 = vld [vmem:[%s192 + $0x340] sm:$0xff]
      %v1297 = vld [vmem:[%s192 + $0x348] sm:$0xff]
      %v1298 = vld [vmem:[%s192 + $0x350] sm:$0xff]
      %v1299 = vld [vmem:[%s192 + $0x358] sm:$0xff]
      %v1300 = vld [vmem:[%s192 + $0x360] sm:$0xff]
      %v1301 = vld [vmem:[%s192 + $0x368] sm:$0xff]
      %v1302 = vld [vmem:[%s192 + $0x370] sm:$0xff]
      %v1303 = vld [vmem:[%s192 + $0x378] sm:$0xff]
      %v1304 = vpack.c.bf16 %v1289, %v1288
      %v1305 = vpack.c.bf16 %v1291, %v1290
      %v1306 = vpack.c.bf16 %v1293, %v1292
      %v1307 = vpack.c.bf16 %v1295, %v1294
      %v1308 = vpack.c.bf16 %v1297, %v1296
      %v1309 = vpack.c.bf16 %v1299, %v1298
      %v1310 = vpack.c.bf16 %v1301, %v1300
      %v1311 = vpack.c.bf16 %v1303, %v1302
      %v1312 = vld [vmem:[%s1] sm:$0xf]
      %v1313 = vld [vmem:[%s1 + $0x4] sm:$0xf]
      %v1316 = vunpack.c.l.b16 %v1312
      %v1317 = vunpack.c.l.b16 %v1313
      %v1318 = vpack.c.b16 %v1317, %v1316
      %v1321 = vsel %vm251, %v1304, 0
      %v1324 = vsel %vm251, %v1305, 0
      %v1327 = vsel %vm251, %v1306, 0
      %v1330 = vsel %vm251, %v1307, 0
      %v1333 = vsel %vm251, %v1308, 0
      %v1336 = vsel %vm251, %v1309, 0
      %v1339 = vsel %vm251, %v1310, 0
      %v1342 = vsel %vm251, %v1311, 0
      %1344 = vmatpush.bf16.msra.mxu0 0
      %1345 = vmatpush.bf16.msra.mxu0 0
      %1346 = vmatpush.bf16.msra.mxu0 0
      %1347 = vmatpush.bf16.msra.mxu0 0
      %1348 = vmatpush.bf16.msra.mxu0 0
      %1349 = vmatpush.bf16.msra.mxu0 0
      %1350 = vmatpush.bf16.msra.mxu0 0
      %1351 = vmatpush.bf16.msra.mxu0 %v1318
      %1352 = vmatmul.bf16.gmra.mxu0 %v1321
      %v1353 = vpop.f32.mrf.mxu0
      %v1354 = vadd.f32 0.0, %v1353
      %v1355 = vpop.f32.mrf.mxu0
      %v1356 = vadd.f32 0.0, %v1355
      %1357 = vmatmul.bf16.gmra.mxu0 %v1324
      %v1358 = vpop.f32.mrf.mxu0
      %v1359 = vadd.f32 0.0, %v1358
      %v1360 = vpop.f32.mrf.mxu0
      %v1361 = vadd.f32 0.0, %v1360
      %1362 = vmatmul.bf16.gmra.mxu0 %v1327
      %v1363 = vpop.f32.mrf.mxu0
      %v1364 = vadd.f32 0.0, %v1363
      %v1365 = vpop.f32.mrf.mxu0
      %v1366 = vadd.f32 0.0, %v1365
      %1367 = vmatmul.bf16.gmra.mxu0 %v1330
      %v1368 = vpop.f32.mrf.mxu0
      %v1369 = vadd.f32 0.0, %v1368
      %v1370 = vpop.f32.mrf.mxu0
      %v1371 = vadd.f32 0.0, %v1370
      %1372 = vmatmul.bf16.gmra.mxu0 %v1333
      %v1373 = vpop.f32.mrf.mxu0
      %v1374 = vadd.f32 0.0, %v1373
      %v1375 = vpop.f32.mrf.mxu0
      %v1376 = vadd.f32 0.0, %v1375
      %1377 = vmatmul.bf16.gmra.mxu0 %v1336
      %v1378 = vpop.f32.mrf.mxu0
      %v1379 = vadd.f32 0.0, %v1378
      %v1380 = vpop.f32.mrf.mxu0
      %v1381 = vadd.f32 0.0, %v1380
      %1382 = vmatmul.bf16.gmra.mxu0 %v1339
      %v1383 = vpop.f32.mrf.mxu0
      %v1384 = vadd.f32 0.0, %v1383
      %v1385 = vpop.f32.mrf.mxu0
      %v1386 = vadd.f32 0.0, %v1385
      %1387 = vmatmul.bf16.gmra.mxu0 %v1342
      %v1388 = vpop.f32.mrf.mxu0
      %v1389 = vadd.f32 0.0, %v1388
      %v1390 = vpop.f32.mrf.mxu0
      %v1391 = vadd.f32 0.0, %v1390
      %1392 = vdwg.mxu0
      %v1393 = vld [vmem:[%s2] sm:$0x1]
      %v1395 = vperm.slane %v1393, 0
      %v1397 = vmul.f32 %v1354, %v1395
      %v1398 = vmul.f32 %v1356, %v1395
      %v1399 = vmul.f32 %v1359, %v1395
      %v1400 = vmul.f32 %v1361, %v1395
      %v1401 = vmul.f32 %v1364, %v1395
      %v1402 = vmul.f32 %v1366, %v1395
      %v1403 = vmul.f32 %v1369, %v1395
      %v1404 = vmul.f32 %v1371, %v1395
      %v1405 = vmul.f32 %v1374, %v1395
      %v1406 = vmul.f32 %v1376, %v1395
      %v1407 = vmul.f32 %v1379, %v1395
      %v1408 = vmul.f32 %v1381, %v1395
      %v1409 = vmul.f32 %v1384, %v1395
      %v1410 = vmul.f32 %v1386, %v1395
      %v1411 = vmul.f32 %v1389, %v1395
      %v1412 = vmul.f32 %v1391, %v1395
      %v1413 = vld [vmem:[%s3] sm:$0x1]
      %v1415 = vperm.slane %v1413, 0
      %v1417 = vadd.f32 %v1397, %v1415
      %v1418 = vadd.f32 %v1398, %v1415
      %v1419 = vadd.f32 %v1399, %v1415
      %v1420 = vadd.f32 %v1400, %v1415
      %v1421 = vadd.f32 %v1401, %v1415
      %v1422 = vadd.f32 %v1402, %v1415
      %v1423 = vadd.f32 %v1403, %v1415
      %v1424 = vadd.f32 %v1404, %v1415
      %v1425 = vadd.f32 %v1405, %v1415
      %v1426 = vadd.f32 %v1406, %v1415
      %v1427 = vadd.f32 %v1407, %v1415
      %v1428 = vadd.f32 %v1408, %v1415
      %v1429 = vadd.f32 %v1409, %v1415
      %v1430 = vadd.f32 %v1410, %v1415
      %v1431 = vadd.f32 %v1411, %v1415
      %v1432 = vadd.f32 %v1412, %v1415
      %v1433 = vmax.f32 %v1417, 0.0
      %v1434 = vmax.f32 %v1418, 0.0
      %v1435 = vmax.f32 %v1419, 0.0
      %v1436 = vmax.f32 %v1420, 0.0
      %v1437 = vmax.f32 %v1421, 0.0
      %v1438 = vmax.f32 %v1422, 0.0
      %v1439 = vmax.f32 %v1423, 0.0
      %v1440 = vmax.f32 %v1424, 0.0
      %v1441 = vmax.f32 %v1425, 0.0
      %v1442 = vmax.f32 %v1426, 0.0
      %v1443 = vmax.f32 %v1427, 0.0
      %v1444 = vmax.f32 %v1428, 0.0
      %v1445 = vmax.f32 %v1429, 0.0
      %v1446 = vmax.f32 %v1430, 0.0
      %v1447 = vmax.f32 %v1431, 0.0
      %v1448 = vmax.f32 %v1432, 0.0
      %v1449 = vmax.f32 %v1433, %v1434
      %v1450 = vmax.f32 %v1449, %v1435
      %v1451 = vmax.f32 %v1450, %v1436
      %v1452 = vmax.f32 %v1451, %v1437
      %v1453 = vmax.f32 %v1452, %v1438
      %v1454 = vmax.f32 %v1453, %v1439
      %v1455 = vmax.f32 %v1454, %v1440
      %v1456 = vmax.f32 %v1455, %v1441
      %v1457 = vmax.f32 %v1456, %v1442
      %v1458 = vmax.f32 %v1457, %v1443
      %v1459 = vmax.f32 %v1458, %v1444
      %v1460 = vmax.f32 %v1459, %v1445
      %v1461 = vmax.f32 %v1460, %v1446
      %v1462 = vmax.f32 %v1461, %v1447
      %v1463 = vmax.f32 %v1462, %v1448
      %s1464 = scalar_lea.vmem %s197, 112
      %1465 = vst [vmem:[%s1464 + $0x1] sm:$0xff] %v1463
      %v1466 = vld [vmem:[%s192 + $0x380] sm:$0xff]
      %v1467 = vld [vmem:[%s192 + $0x388] sm:$0xff]
      %v1468 = vld [vmem:[%s192 + $0x390] sm:$0xff]
      %v1469 = vld [vmem:[%s192 + $0x398] sm:$0xff]
      %v1470 = vld [vmem:[%s192 + $0x3a0] sm:$0xff]
      %v1471 = vld [vmem:[%s192 + $0x3a8] sm:$0xff]
      %v1472 = vld [vmem:[%s192 + $0x3b0] sm:$0xff]
      %v1473 = vld [vmem:[%s192 + $0x3b8] sm:$0xff]
      %v1474 = vld [vmem:[%s192 + $0x3c0] sm:$0xff]
      %v1475 = vld [vmem:[%s192 + $0x3c8] sm:$0xff]
      %v1476 = vld [vmem:[%s192 + $0x3d0] sm:$0xff]
      %v1477 = vld [vmem:[%s192 + $0x3d8] sm:$0xff]
      %v1478 = vld [vmem:[%s192 + $0x3e0] sm:$0xff]
      %v1479 = vld [vmem:[%s192 + $0x3e8] sm:$0xff]
      %v1480 = vld [vmem:[%s192 + $0x3f0] sm:$0xff]
      %v1481 = vld [vmem:[%s192 + $0x3f8] sm:$0xff]
      %v1482 = vpack.c.bf16 %v1467, %v1466
      %v1483 = vpack.c.bf16 %v1469, %v1468
      %v1484 = vpack.c.bf16 %v1471, %v1470
      %v1485 = vpack.c.bf16 %v1473, %v1472
      %v1486 = vpack.c.bf16 %v1475, %v1474
      %v1487 = vpack.c.bf16 %v1477, %v1476
      %v1488 = vpack.c.bf16 %v1479, %v1478
      %v1489 = vpack.c.bf16 %v1481, %v1480
      %v1490 = vld [vmem:[%s1] sm:$0xf]
      %v1491 = vld [vmem:[%s1 + $0x4] sm:$0xf]
      %v1494 = vunpack.c.l.b16 %v1490
      %v1495 = vunpack.c.l.b16 %v1491
      %v1496 = vpack.c.b16 %v1495, %v1494
      %v1499 = vsel %vm251, %v1482, 0
      %v1502 = vsel %vm251, %v1483, 0
      %v1505 = vsel %vm251, %v1484, 0
      %v1508 = vsel %vm251, %v1485, 0
      %v1511 = vsel %vm251, %v1486, 0
      %v1514 = vsel %vm251, %v1487, 0
      %v1517 = vsel %vm251, %v1488, 0
      %v1520 = vsel %vm251, %v1489, 0
      %1522 = vmatpush.bf16.msra.mxu0 0
      %1523 = vmatpush.bf16.msra.mxu0 0
      %1524 = vmatpush.bf16.msra.mxu0 0
      %1525 = vmatpush.bf16.msra.mxu0 0
      %1526 = vmatpush.bf16.msra.mxu0 0
      %1527 = vmatpush.bf16.msra.mxu0 0
      %1528 = vmatpush.bf16.msra.mxu0 0
      %1529 = vmatpush.bf16.msra.mxu0 %v1496
      %1530 = vmatmul.bf16.gmra.mxu0 %v1499
      %v1531 = vpop.f32.mrf.mxu0
      %v1532 = vadd.f32 0.0, %v1531
      %v1533 = vpop.f32.mrf.mxu0
      %v1534 = vadd.f32 0.0, %v1533
      %1535 = vmatmul.bf16.gmra.mxu0 %v1502
      %v1536 = vpop.f32.mrf.mxu0
      %v1537 = vadd.f32 0.0, %v1536
      %v1538 = vpop.f32.mrf.mxu0
      %v1539 = vadd.f32 0.0, %v1538
      %1540 = vmatmul.bf16.gmra.mxu0 %v1505
      %v1541 = vpop.f32.mrf.mxu0
      %v1542 = vadd.f32 0.0, %v1541
      %v1543 = vpop.f32.mrf.mxu0
      %v1544 = vadd.f32 0.0, %v1543
      %1545 = vmatmul.bf16.gmra.mxu0 %v1508
      %v1546 = vpop.f32.mrf.mxu0
      %v1547 = vadd.f32 0.0, %v1546
      %v1548 = vpop.f32.mrf.mxu0
      %v1549 = vadd.f32 0.0, %v1548
      %1550 = vmatmul.bf16.gmra.mxu0 %v1511
      %v1551 = vpop.f32.mrf.mxu0
      %v1552 = vadd.f32 0.0, %v1551
      %v1553 = vpop.f32.mrf.mxu0
      %v1554 = vadd.f32 0.0, %v1553
      %1555 = vmatmul.bf16.gmra.mxu0 %v1514
      %v1556 = vpop.f32.mrf.mxu0
      %v1557 = vadd.f32 0.0, %v1556
      %v1558 = vpop.f32.mrf.mxu0
      %v1559 = vadd.f32 0.0, %v1558
      %1560 = vmatmul.bf16.gmra.mxu0 %v1517
      %v1561 = vpop.f32.mrf.mxu0
      %v1562 = vadd.f32 0.0, %v1561
      %v1563 = vpop.f32.mrf.mxu0
      %v1564 = vadd.f32 0.0, %v1563
      %1565 = vmatmul.bf16.gmra.mxu0 %v1520
      %v1566 = vpop.f32.mrf.mxu0
      %v1567 = vadd.f32 0.0, %v1566
      %v1568 = vpop.f32.mrf.mxu0
      %v1569 = vadd.f32 0.0, %v1568
      %1570 = vdwg.mxu0
      %v1571 = vld [vmem:[%s2] sm:$0x1]
      %v1573 = vperm.slane %v1571, 0
      %v1575 = vmul.f32 %v1532, %v1573
      %v1576 = vmul.f32 %v1534, %v1573
      %v1577 = vmul.f32 %v1537, %v1573
      %v1578 = vmul.f32 %v1539, %v1573
      %v1579 = vmul.f32 %v1542, %v1573
      %v1580 = vmul.f32 %v1544, %v1573
      %v1581 = vmul.f32 %v1547, %v1573
      %v1582 = vmul.f32 %v1549, %v1573
      %v1583 = vmul.f32 %v1552, %v1573
      %v1584 = vmul.f32 %v1554, %v1573
      %v1585 = vmul.f32 %v1557, %v1573
      %v1586 = vmul.f32 %v1559, %v1573
      %v1587 = vmul.f32 %v1562, %v1573
      %v1588 = vmul.f32 %v1564, %v1573
      %v1589 = vmul.f32 %v1567, %v1573
      %v1590 = vmul.f32 %v1569, %v1573
      %v1591 = vld [vmem:[%s3] sm:$0x1]
      %v1593 = vperm.slane %v1591, 0
      %v1595 = vadd.f32 %v1575, %v1593
      %v1596 = vadd.f32 %v1576, %v1593
      %v1597 = vadd.f32 %v1577, %v1593
      %v1598 = vadd.f32 %v1578, %v1593
      %v1599 = vadd.f32 %v1579, %v1593
      %v1600 = vadd.f32 %v1580, %v1593
      %v1601 = vadd.f32 %v1581, %v1593
      %v1602 = vadd.f32 %v1582, %v1593
      %v1603 = vadd.f32 %v1583, %v1593
      %v1604 = vadd.f32 %v1584, %v1593
      %v1605 = vadd.f32 %v1585, %v1593
      %v1606 = vadd.f32 %v1586, %v1593
      %v1607 = vadd.f32 %v1587, %v1593
      %v1608 = vadd.f32 %v1588, %v1593
      %v1609 = vadd.f32 %v1589, %v1593
      %v1610 = vadd.f32 %v1590, %v1593
      %v1611 = vmax.f32 %v1595, 0.0
      %v1612 = vmax.f32 %v1596, 0.0
      %v1613 = vmax.f32 %v1597, 0.0
      %v1614 = vmax.f32 %v1598, 0.0
      %v1615 = vmax.f32 %v1599, 0.0
      %v1616 = vmax.f32 %v1600, 0.0
      %v1617 = vmax.f32 %v1601, 0.0
      %v1618 = vmax.f32 %v1602, 0.0
      %v1619 = vmax.f32 %v1603, 0.0
      %v1620 = vmax.f32 %v1604, 0.0
      %v1621 = vmax.f32 %v1605, 0.0
      %v1622 = vmax.f32 %v1606, 0.0
      %v1623 = vmax.f32 %v1607, 0.0
      %v1624 = vmax.f32 %v1608, 0.0
      %v1625 = vmax.f32 %v1609, 0.0
      %v1626 = vmax.f32 %v1610, 0.0
      %v1627 = vmax.f32 %v1611, %v1612
      %v1628 = vmax.f32 %v1627, %v1613
      %v1629 = vmax.f32 %v1628, %v1614
      %v1630 = vmax.f32 %v1629, %v1615
      %v1631 = vmax.f32 %v1630, %v1616
      %v1632 = vmax.f32 %v1631, %v1617
      %v1633 = vmax.f32 %v1632, %v1618
      %v1634 = vmax.f32 %v1633, %v1619
      %v1635 = vmax.f32 %v1634, %v1620
      %v1636 = vmax.f32 %v1635, %v1621
      %v1637 = vmax.f32 %v1636, %v1622
      %v1638 = vmax.f32 %v1637, %v1623
      %v1639 = vmax.f32 %v1638, %v1624
      %v1640 = vmax.f32 %v1639, %v1625
      %v1641 = vmax.f32 %v1640, %v1626
      %s1642 = scalar_lea.vmem %s197, 128
      %1643 = vst [vmem:[%s1642 + $0x1] sm:$0xff] %v1641
      %p1644 = scmp.lt.s32.totalorder %s15, 1
      %s1645 = scalar_select %p1644, %s15, 1
      %s1646 = smul.addr %s1645, 20
      %s1647 = smul.addr %s1646, 8
      %s1648 = scalar_lea.vmem %s4, %s1647
      // Predicated region
      $region37: #{resnet_forward_pallas.4} parent=35 // pred_check
        %p1649 = pneg %p122
      $region38: #{resnet_forward_pallas.4} parent=35 // pred_check_branch
        %1651 = sbr.rel (%p1649) target = $region40
      $region39: #{resnet_forward_pallas.4} parent=35 // pred_region
        _
      $region40: #{resnet_forward_pallas.4} parent=35 // pred_fallthru
        _
    $region36: #{resnet_forward_pallas.4} parent=5 // pred_fallthru
      _
    %p1652 = scmp.le.s32.totalorder 2, %s10
    // Predicated region
    $region41: #{resnet_forward_pallas.4} parent=5 // pred_check
      %p1653 = pneg %p1652
    $region42: #{resnet_forward_pallas.4} parent=5 // pred_check_branch
      %1655 = sbr.rel (%p1653) target = $region44
    $region43: #{resnet_forward_pallas.4} parent=5 // pred_region
      %s1656 = ssub.s32 %s10, 2
      // Predicated region
      $region45: #{resnet_forward_pallas.4} parent=43 // pred_check
        %p1657 = pneg %p128
      $region46: #{resnet_forward_pallas.4} parent=43 // pred_check_branch
        %1659 = sbr.rel (%p1657) target = $region48
      $region47: #{resnet_forward_pallas.4} parent=43 // pred_region
        %p1660 = scmp.lt.s32.totalorder %s16, 1
        %s1661 = scalar_select %p1660, %s16, 1
        %s1662 = smul.addr %s1661, 20
        %s1663 = smul.addr %s1662, 8
        %s1664 = scalar_lea.vmem %s4, %s1663
      $region48: #{resnet_forward_pallas.4} parent=43 // pred_fallthru
        _
    $region44: #{resnet_forward_pallas.4} parent=5 // pred_fallthru
      _
  $region6: #{resnet_forward_pallas.4} parent=0 // loop_footer
    %s14 = sadd.s32 1, %s10
  $region7: #{resnet_forward_pallas.4} parent=0 // loop_footer_branch
    %9 = sbr.rel target = $region3
  $region8: #{resnet_forward_pallas.4} parent=0 // loop_exit
    _

// kernel: resnet_forward_pallas.5
$region0: #{resnet_forward_pallas.5}
  #allocation0 [shape = 'u32[]', space=smem, size = 0x4, offset = 0x4, fixed_abs, tag = 'smem constant byte address 0x4 - core index']
  #allocation1 [shape = 'u32[72,128]{1,0:T(1,128)}', space=vmem, size = 0x9000, scoped, tag = 'internal scratch']
  #allocation2 [shape = 'f32[10,10,128]{2,1,0:T(8,128)}', space=vmem, size = 0x14000, scoped, tag = 'scratch operand']
  %s0 = inlined_call_operand.vmem [shape: f32[2,10,10,128], index: 0, kind: input, shape index: {}]
  %s1 = inlined_call_operand.vmem [shape: bf16[9,128,128], index: 1, kind: input, shape index: {}]
  %s2 = inlined_call_operand.vmem [shape: f32[1,128], index: 2, kind: input, shape index: {}]
  %s3 = inlined_call_operand.vmem [shape: f32[1,128], index: 3, kind: input, shape index: {}]
  %s4 = inlined_call_operand.vmem [shape: bf16[9,128,128], index: 4, kind: input, shape index: {}]
  %s5 = inlined_call_operand.vmem [shape: f32[1,128], index: 5, kind: input, shape index: {}]
  %s6 = inlined_call_operand.vmem [shape: f32[1,128], index: 6, kind: input, shape index: {}]
  %s7 = inlined_call_operand.vmem [shape: f32[2,10,10,128], index: 7, kind: output, shape index: {}]
  %s8 = sld [smem:[#allocation0]]
  $region61: #{resnet_forward_pallas.5} parent=0
    _
  %s10 = ssub.s32 1, %s8
  %s11 = scalar_select 0, %s10, %s8
  loop: start=0, step=1, limit=4
  $region2: #{resnet_forward_pallas.5} parent=0 // loop_pre_header
    _
  $region3: #{resnet_forward_pallas.5} parent=0 // loop_header
    %s13 = sphi 0, %s17
    %p14 = scmp.ge.s32.totalorder %s13, 4
    %s23 = sphi 0, %s25
    %s26 = sphi 0, %s23
    %s27 = sphi 0, %s26
    %s43 = sphi 0, %s27
    %s47 = sphi 0, %s47
    %s49 = sphi 0, %s47
    %s50 = sphi 0, %s49
    %s64 = sphi 0, %s50
    %s68 = sphi 0, %s68
    %s70 = sphi 0, %s68
    %s71 = sphi 0, %s70
    %s85 = sphi 0, %s71
    %s89 = sphi 0, %s89
    %s91 = sphi 0, %s89
    %s92 = sphi 0, %s91
    %s106 = sphi 0, %s92
    %s110 = sphi 0, %s110
    %s112 = sphi 0, %s110
    %s113 = sphi 0, %s112
    %s127 = sphi 0, %s113
    %s131 = sphi 0, %s131
    %s133 = sphi 0, %s131
    %s134 = sphi 0, %s133
    %s148 = sphi 0, %s134
    %s152 = sphi 0, %s152
    %s154 = sphi 0, %s152
    %s155 = sphi 0, %s154
    %s169 = sphi 0, %s155
    %s175 = sphi 0, %s177
    %s178 = sphi 0, %s175
    %s179 = sphi 0, %s178
    %s195 = sphi 0, %s179
  $region4: #{resnet_forward_pallas.5} parent=0 // loop_header_branch
    %16 = sbr.rel (%p14) target = $region8
  $region5: #{resnet_forward_pallas.5} parent=0 // loop_body
    %s18 = ssub.s32 %s13, 1
    %s19 = ssub.s32 %s13, 2
    %s20 = sadd.s32 %s13, 1
    %s21 = ssub.s32 %s13, %s20
    %p22 = scmp.eq.s32.totalorder %s21, 0
    %s24 = sadd.s32 %s23, 1
    %s25 = scalar_select %p22, %s23, %s24
    %p28 = pneg %p22
    %p29 = scmp.eq.s32.totalorder %s13, 1
    %p30 = por %p28, %p29
    %p31 = scmp.ne.s32.totalorder %s23, %s26
    %p32 = scmp.eq.s32.totalorder %s13, 0
    %p33 = por %p31, %p32
    %p34 = scmp.ne.s32.totalorder %s23, %s26
    %p35 = scmp.eq.s32.totalorder %s18, 1
    %p36 = por %p34, %p35
    %p37 = scmp.ne.s32.totalorder %s26, %s27
    %p38 = scmp.eq.s32.totalorder %s18, 0
    %p39 = por %p37, %p38
    %p40 = scmp.ne.s32.totalorder %s26, %s27
    %p41 = scmp.eq.s32.totalorder %s19, 1
    %p42 = por %p40, %p41
    %p44 = scmp.ne.s32.totalorder %s27, %s43
    %p45 = scmp.eq.s32.totalorder %s19, 0
    %p46 = por %p44, %p45
    %s48 = sadd.s32 %s47, 1
    %p51 = scmp.eq.s32.totalorder %s13, 1
    %p52 = scmp.ne.s32.totalorder %s47, %s49
    %p53 = scmp.eq.s32.totalorder %s13, 0
    %p54 = por %p52, %p53
    %p55 = scmp.ne.s32.totalorder %s47, %s49
    %p56 = scmp.eq.s32.totalorder %s18, 1
    %p57 = por %p55, %p56
    %p58 = scmp.ne.s32.totalorder %s49, %s50
    %p59 = scmp.eq.s32.totalorder %s18, 0
    %p60 = por %p58, %p59
    %p61 = scmp.ne.s32.totalorder %s49, %s50
    %p62 = scmp.eq.s32.totalorder %s19, 1
    %p63 = por %p61, %p62
    %p65 = scmp.ne.s32.totalorder %s50, %s64
    %p66 = scmp.eq.s32.totalorder %s19, 0
    %p67 = por %p65, %p66
    %s69 = sadd.s32 %s68, 1
    %p72 = scmp.eq.s32.totalorder %s13, 1
    %p73 = scmp.ne.s32.totalorder %s68, %s70
    %p74 = scmp.eq.s32.totalorder %s13, 0
    %p75 = por %p73, %p74
    %p76 = scmp.ne.s32.totalorder %s68, %s70
    %p77 = scmp.eq.s32.totalorder %s18, 1
    %p78 = por %p76, %p77
    %p79 = scmp.ne.s32.totalorder %s70, %s71
    %p80 = scmp.eq.s32.totalorder %s18, 0
    %p81 = por %p79, %p80
    %p82 = scmp.ne.s32.totalorder %s70, %s71
    %p83 = scmp.eq.s32.totalorder %s19, 1
    %p84 = por %p82, %p83
    %p86 = scmp.ne.s32.totalorder %s71, %s85
    %p87 = scmp.eq.s32.totalorder %s19, 0
    %p88 = por %p86, %p87
    %s90 = sadd.s32 %s89, 1
    %p93 = scmp.eq.s32.totalorder %s13, 1
    %p94 = scmp.ne.s32.totalorder %s89, %s91
    %p95 = scmp.eq.s32.totalorder %s13, 0
    %p96 = por %p94, %p95
    %p97 = scmp.ne.s32.totalorder %s89, %s91
    %p98 = scmp.eq.s32.totalorder %s18, 1
    %p99 = por %p97, %p98
    %p100 = scmp.ne.s32.totalorder %s91, %s92
    %p101 = scmp.eq.s32.totalorder %s18, 0
    %p102 = por %p100, %p101
    %p103 = scmp.ne.s32.totalorder %s91, %s92
    %p104 = scmp.eq.s32.totalorder %s19, 1
    %p105 = por %p103, %p104
    %p107 = scmp.ne.s32.totalorder %s92, %s106
    %p108 = scmp.eq.s32.totalorder %s19, 0
    %p109 = por %p107, %p108
    %s111 = sadd.s32 %s110, 1
    %p114 = scmp.eq.s32.totalorder %s13, 1
    %p115 = scmp.ne.s32.totalorder %s110, %s112
    %p116 = scmp.eq.s32.totalorder %s13, 0
    %p117 = por %p115, %p116
    %p118 = scmp.ne.s32.totalorder %s110, %s112
    %p119 = scmp.eq.s32.totalorder %s18, 1
    %p120 = por %p118, %p119
    %p121 = scmp.ne.s32.totalorder %s112, %s113
    %p122 = scmp.eq.s32.totalorder %s18, 0
    %p123 = por %p121, %p122
    %p124 = scmp.ne.s32.totalorder %s112, %s113
    %p125 = scmp.eq.s32.totalorder %s19, 1
    %p126 = por %p124, %p125
    %p128 = scmp.ne.s32.totalorder %s113, %s127
    %p129 = scmp.eq.s32.totalorder %s19, 0
    %p130 = por %p128, %p129
    %s132 = sadd.s32 %s131, 1
    %p135 = scmp.eq.s32.totalorder %s13, 1
    %p136 = scmp.ne.s32.totalorder %s131, %s133
    %p137 = scmp.eq.s32.totalorder %s13, 0
    %p138 = por %p136, %p137
    %p139 = scmp.ne.s32.totalorder %s131, %s133
    %p140 = scmp.eq.s32.totalorder %s18, 1
    %p141 = por %p139, %p140
    %p142 = scmp.ne.s32.totalorder %s133, %s134
    %p143 = scmp.eq.s32.totalorder %s18, 0
    %p144 = por %p142, %p143
    %p145 = scmp.ne.s32.totalorder %s133, %s134
    %p146 = scmp.eq.s32.totalorder %s19, 1
    %p147 = por %p145, %p146
    %p149 = scmp.ne.s32.totalorder %s134, %s148
    %p150 = scmp.eq.s32.totalorder %s19, 0
    %p151 = por %p149, %p150
    %s153 = sadd.s32 %s152, 1
    %p156 = scmp.eq.s32.totalorder %s13, 1
    %p157 = scmp.ne.s32.totalorder %s152, %s154
    %p158 = scmp.eq.s32.totalorder %s13, 0
    %p159 = por %p157, %p158
    %p160 = scmp.ne.s32.totalorder %s152, %s154
    %p161 = scmp.eq.s32.totalorder %s18, 1
    %p162 = por %p160, %p161
    %p163 = scmp.ne.s32.totalorder %s154, %s155
    %p164 = scmp.eq.s32.totalorder %s18, 0
    %p165 = por %p163, %p164
    %p166 = scmp.ne.s32.totalorder %s154, %s155
    %p167 = scmp.eq.s32.totalorder %s19, 1
    %p168 = por %p166, %p167
    %p170 = scmp.ne.s32.totalorder %s155, %s169
    %p171 = scmp.eq.s32.totalorder %s19, 0
    %p172 = por %p170, %p171
    %s173 = ssub.s32 %s13, %s20
    %p174 = scmp.eq.s32.totalorder %s173, 0
    %s176 = sadd.s32 %s175, 1
    %s177 = scalar_select %p174, %s175, %s176
    %p180 = pneg %p174
    %p181 = scmp.eq.s32.totalorder %s13, 1
    %p182 = por %p180, %p181
    %p183 = scmp.ne.s32.totalorder %s175, %s178
    %p184 = scmp.eq.s32.totalorder %s13, 0
    %p185 = por %p183, %p184
    %p186 = scmp.ne.s32.totalorder %s175, %s178
    %p187 = scmp.eq.s32.totalorder %s18, 1
    %p188 = por %p186, %p187
    %p189 = scmp.ne.s32.totalorder %s178, %s179
    %p190 = scmp.eq.s32.totalorder %s18, 0
    %p191 = por %p189, %p190
    %p192 = scmp.ne.s32.totalorder %s178, %s179
    %p193 = scmp.eq.s32.totalorder %s19, 1
    %p194 = por %p192, %p193
    %p196 = scmp.ne.s32.totalorder %s179, %s195
    %p197 = scmp.eq.s32.totalorder %s19, 0
    %p198 = por %p196, %p197
    %p199 = scmp.le.s32.totalorder 1, %s13
    %p200 = scmp.lt.s32.totalorder %s13, 3
    %p201 = pnand %p199, %p200
    %p202 = pneg %p201
    // Predicated region
    $region9: #{resnet_forward_pallas.5} parent=5 // pred_check
      _
    $region10: #{resnet_forward_pallas.5} parent=5 // pred_check_branch
      %204 = sbr.rel (%p201) target = $region12
    $region11: #{resnet_forward_pallas.5} parent=5 // pred_region
      %s205 = ssub.s32 %s13, 1
      // Predicated region
      $region13: #{resnet_forward_pallas.5} parent=11 // pred_check
        %p206 = pneg %p60
      $region14: #{resnet_forward_pallas.5} parent=11 // pred_check_branch
        %208 = sbr.rel (%p206) target = $region16
      $region15: #{resnet_forward_pallas.5} parent=11 // pred_region
        _
      $region16: #{resnet_forward_pallas.5} parent=11 // pred_fallthru
        _
      // Predicated region
      $region17: #{resnet_forward_pallas.5} parent=11 // pred_check
        %p209 = pneg %p81
      $region18: #{resnet_forward_pallas.5} parent=11 // pred_check_branch
        %211 = sbr.rel (%p209) target = $region20
      $region19: #{resnet_forward_pallas.5} parent=11 // pred_region
        _
      $region20: #{resnet_forward_pallas.5} parent=11 // pred_fallthru
        _
      // Predicated region
      $region21: #{resnet_forward_pallas.5} parent=11 // pred_check
        %p212 = pneg %p102
      $region22: #{resnet_forward_pallas.5} parent=11 // pred_check_branch
        %214 = sbr.rel (%p212) target = $region24
      $region23: #{resnet_forward_pallas.5} parent=11 // pred_region
        _
      $region24: #{resnet_forward_pallas.5} parent=11 // pred_fallthru
        _
      // Predicated region
      $region25: #{resnet_forward_pallas.5} parent=11 // pred_check
        %p215 = pneg %p123
      $region26: #{resnet_forward_pallas.5} parent=11 // pred_check_branch
        %217 = sbr.rel (%p215) target = $region28
      $region27: #{resnet_forward_pallas.5} parent=11 // pred_region
        _
      $region28: #{resnet_forward_pallas.5} parent=11 // pred_fallthru
        _
      // Predicated region
      $region29: #{resnet_forward_pallas.5} parent=11 // pred_check
        %p218 = pneg %p144
      $region30: #{resnet_forward_pallas.5} parent=11 // pred_check_branch
        %220 = sbr.rel (%p218) target = $region32
      $region31: #{resnet_forward_pallas.5} parent=11 // pred_region
        _
      $region32: #{resnet_forward_pallas.5} parent=11 // pred_fallthru
        _
      // Predicated region
      $region33: #{resnet_forward_pallas.5} parent=11 // pred_check
        %p221 = pneg %p165
      $region34: #{resnet_forward_pallas.5} parent=11 // pred_check_branch
        %223 = sbr.rel (%p221) target = $region36
      $region35: #{resnet_forward_pallas.5} parent=11 // pred_region
        _
      $region36: #{resnet_forward_pallas.5} parent=11 // pred_fallthru
        _
    $region12: #{resnet_forward_pallas.5} parent=5 // pred_fallthru
      _
    %p224 = scmp.lt.s32.totalorder %s13, 2
    // Predicated region
    $region37: #{resnet_forward_pallas.5} parent=5 // pred_check
      %p225 = pneg %p224
    $region38: #{resnet_forward_pallas.5} parent=5 // pred_check_branch
      %227 = sbr.rel (%p225) target = $region40
    $region39: #{resnet_forward_pallas.5} parent=5 // pred_region
      // Predicated region
      $region41: #{resnet_forward_pallas.5} parent=39 // pred_check
        %p228 = pneg %p33
      $region42: #{resnet_forward_pallas.5} parent=39 // pred_check_branch
        %230 = sbr.rel (%p228) target = $region44
      $region43: #{resnet_forward_pallas.5} parent=39 // pred_region
        %p231 = scmp.lt.s32.totalorder %s13, 1
        %s232 = scalar_select %p231, %s13, 1
        %s233 = smul.addr %s232, 20
        %s234 = smul.addr %s233, 8
        %s235 = scalar_lea.vmem %s0, %s234
      $region44: #{resnet_forward_pallas.5} parent=39 // pred_fallthru
        _
    $region40: #{resnet_forward_pallas.5} parent=5 // pred_fallthru
      _
    %p236 = scmp.le.s32.totalorder 1, %s13
    %p237 = scmp.lt.s32.totalorder %s13, 3
    %p238 = pnand %p236, %p237
    %p239 = pneg %p238
    // Predicated region
    $region45: #{resnet_forward_pallas.5} parent=5 // pred_check
      _
    $region46: #{resnet_forward_pallas.5} parent=5 // pred_check_branch
      %241 = sbr.rel (%p238) target = $region48
    $region47: #{resnet_forward_pallas.5} parent=5 // pred_region
      %s242 = ssub.s32 %s13, 1
      %p243 = scmp.lt.s32.totalorder %s18, 1
      %s244 = scalar_select %p243, %s18, 1
      %s245 = smul.addr %s244, 20
      %s246 = smul.addr %s245, 8
      %s247 = scalar_lea.vmem %s0, %s246
      %p248 = pneg %p39
      %p249 = pneg %p36
      %p250 = pneg %p60
      %p251 = pneg %p57
      %p252 = pneg %p81
      %p253 = pneg %p78
      %p254 = pneg %p102
      %p255 = pneg %p99
      %p256 = pneg %p123
      %p257 = pneg %p120
      %p258 = pneg %p144
      %p259 = pneg %p141
      %p260 = pneg %p165
      %p261 = pneg %p162
      %p262 = pneg %p191
      %p263 = pneg %p188
      %p264 = scmp.lt.s32.totalorder %s18, 1
      %s265 = scalar_select %p264, %s18, 1
      %s266 = smul.addr %s265, 20
      %s267 = smul.addr %s266, 8
      %s268 = scalar_lea.vmem %s7, %s267
      %p269 = scmp.lt.s32.totalorder %s18, 1
      %s270 = scalar_select %p269, %s18, 1
      %s271 = smul.addr %s270, 20
      %s272 = smul.addr %s271, 8
      %s273 = scalar_lea.vmem %s0, %s272
      %p274 = scmp.lt.s32.totalorder %s18, 1
      %s275 = scalar_select %p274, %s18, 1
      %s276 = smul.addr %s275, 20
      %s277 = smul.addr %s276, 8
      %s278 = scalar_lea.vmem %s7, %s277
      %v279 = vld [vmem:[%s273] sm:$0xff]
      %v280 = vld [vmem:[%s273 + $0x10] sm:$0xff]
      %v281 = vld [vmem:[%s273 + $0x20] sm:$0xff]
      %v282 = vld [vmem:[%s273 + $0x30] sm:$0xff]
      %v283 = vld [vmem:[%s273 + $0x40] sm:$0xff]
      %v284 = vld [vmem:[%s273 + $0x50] sm:$0xff]
      %v285 = vld [vmem:[%s273 + $0x60] sm:$0xff]
      %v286 = vld [vmem:[%s273 + $0x70] sm:$0xff]
      %v287 = vpack.c.bf16 %v280, %v279
      %v288 = vpack.c.bf16 %v282, %v281
      %v289 = vpack.c.bf16 %v284, %v283
      %v290 = vpack.c.bf16 %v286, %v285
      %v291 = vld [vmem:[%s1] sm:$0xf]
      %v292 = vld [vmem:[%s1 + $0x4] sm:$0xf]
      %v293 = vld [vmem:[%s1 + $0x8] sm:$0xf]
      %v294 = vld [vmem:[%s1 + $0xc] sm:$0xf]
      %v295 = vld [vmem:[%s1 + $0x10] sm:$0xf]
      %v296 = vld [vmem:[%s1 + $0x14] sm:$0xf]
      %v297 = vld [vmem:[%s1 + $0x18] sm:$0xf]
      %v298 = vld [vmem:[%s1 + $0x1c] sm:$0xf]
      %v299 = vld [vmem:[%s1 + $0x20] sm:$0xf]
      %v300 = vld [vmem:[%s1 + $0x24] sm:$0xf]
      %v301 = vld [vmem:[%s1 + $0x28] sm:$0xf]
      %v302 = vld [vmem:[%s1 + $0x2c] sm:$0xf]
      %v303 = vld [vmem:[%s1 + $0x30] sm:$0xf]
      %v304 = vld [vmem:[%s1 + $0x34] sm:$0xf]
      %v305 = vld [vmem:[%s1 + $0x38] sm:$0xf]
      %v306 = vld [vmem:[%s1 + $0x3c] sm:$0xf]
      %v307 = vld [vmem:[%s273 + $0x1] sm:$0xff]
      %v308 = vld [vmem:[%s273 + $0x11] sm:$0xff]
      %v309 = vld [vmem:[%s273 + $0x21] sm:$0xff]
      %v310 = vld [vmem:[%s273 + $0x31] sm:$0xff]
      %v311 = vld [vmem:[%s273 + $0x41] sm:$0xff]
      %v312 = vld [vmem:[%s273 + $0x51] sm:$0xff]
      %v313 = vld [vmem:[%s273 + $0x61] sm:$0xff]
      %v314 = vld [vmem:[%s273 + $0x71] sm:$0xff]
      %v315 = vpack.c.bf16 %v308, %v307
      %v316 = vpack.c.bf16 %v310, %v309
      %v317 = vpack.c.bf16 %v312, %v311
      %v318 = vpack.c.bf16 %v314, %v313
      %s319 = scalar_lea.vmem %s1, 64
      %v320 = vld [vmem:[%s319] sm:$0xf]
      %v321 = vld [vmem:[%s319 + $0x4] sm:$0xf]
      %v322 = vld [vmem:[%s319 + $0x8] sm:$0xf]
      %v323 = vld [vmem:[%s319 + $0xc] sm:$0xf]
      %v324 = vld [vmem:[%s319 + $0x10] sm:$0xf]
      %v325 = vld [vmem:[%s319 + $0x14] sm:$0xf]
      %v326 = vld [vmem:[%s319 + $0x18] sm:$0xf]
      %v327 = vld [vmem:[%s319 + $0x1c] sm:$0xf]
      %v328 = vld [vmem:[%s319 + $0x20] sm:$0xf]
      %v329 = vld [vmem:[%s319 + $0x24] sm:$0xf]
      %v330 = vld [vmem:[%s319 + $0x28] sm:$0xf]
      %v331 = vld [vmem:[%s319 + $0x2c] sm:$0xf]
      %v332 = vld [vmem:[%s319 + $0x30] sm:$0xf]
      %v333 = vld [vmem:[%s319 + $0x34] sm:$0xf]
      %v334 = vld [vmem:[%s319 + $0x38] sm:$0xf]
      %v335 = vld [vmem:[%s319 + $0x3c] sm:$0xf]
      %v352 = vunpack.c.l.b16 %v320
      %v353 = vunpack.c.l.b16 %v321
      %v354 = vunpack.c.l.b16 %v322
      %v355 = vunpack.c.l.b16 %v323
      %v356 = vunpack.c.l.b16 %v324
      %v357 = vunpack.c.l.b16 %v325
      %v358 = vunpack.c.l.b16 %v326
      %v359 = vunpack.c.l.b16 %v327
      %v360 = vunpack.c.l.b16 %v328
      %v361 = vunpack.c.l.b16 %v329
      %v362 = vunpack.c.l.b16 %v330
      %v363 = vunpack.c.l.b16 %v331
      %v364 = vunpack.c.l.b16 %v332
      %v365 = vunpack.c.l.b16 %v333
      %v366 = vunpack.c.l.b16 %v334
      %v367 = vunpack.c.l.b16 %v335
      %v368 = vpack.c.b16 %v353, %v352
      %v369 = vpack.c.b16 %v355, %v354
      %v370 = vpack.c.b16 %v357, %v356
      %v371 = vpack.c.b16 %v359, %v358
      %v372 = vpack.c.b16 %v361, %v360
      %v373 = vpack.c.b16 %v363, %v362
      %v374 = vpack.c.b16 %v365, %v364
      %v375 = vpack.c.b16 %v367, %v366
      %384 = vmatpush.bf16.msra.mxu0 %v375
      %385 = vmatpush.bf16.msra.mxu0 %v374
      %386 = vmatpush.bf16.msra.mxu0 %v373
      %387 = vmatpush.bf16.msra.mxu0 %v372
      %388 = vmatpush.bf16.msra.mxu0 %v371
      %389 = vmatpush.bf16.msra.mxu0 %v370
      %390 = vmatpush.bf16.msra.mxu0 %v369
      %391 = vmatpush.bf16.msra.mxu0 %v368
      %392 = vmatmul.bf16.gmra.mxu0 %v315
      %v393 = vpop.f32.mrf.mxu0
      %v394 = vadd.f32 0.0, %v393
      %v395 = vpop.f32.mrf.mxu0
      %v396 = vadd.f32 0.0, %v395
      %397 = vmatmul.bf16.gmra.mxu0 %v316
      %v398 = vpop.f32.mrf.mxu0
      %v399 = vadd.f32 0.0, %v398
      %v400 = vpop.f32.mrf.mxu0
      %v401 = vadd.f32 0.0, %v400
      %402 = vmatmul.bf16.gmra.mxu0 %v317
      %v403 = vpop.f32.mrf.mxu0
      %v404 = vadd.f32 0.0, %v403
      %v405 = vpop.f32.mrf.mxu0
      %v406 = vadd.f32 0.0, %v405
      %407 = vmatmul.bf16.gmra.mxu0 %v318
      %v408 = vpop.f32.mrf.mxu0
      %v409 = vadd.f32 0.0, %v408
      %v410 = vpop.f32.mrf.mxu0
      %v411 = vadd.f32 0.0, %v410
      %412 = vdwg.mxu0
      %v429 = vunpack.c.l.b16 %v291
      %v430 = vunpack.c.l.b16 %v292
      %v431 = vunpack.c.l.b16 %v293
      %v432 = vunpack.c.l.b16 %v294
      %v433 = vunpack.c.l.b16 %v295
      %v434 = vunpack.c.l.b16 %v296
      %v435 = vunpack.c.l.b16 %v297
      %v436 = vunpack.c.l.b16 %v298
      %v437 = vunpack.c.l.b16 %v299
      %v438 = vunpack.c.l.b16 %v300
      %v439 = vunpack.c.l.b16 %v301
      %v440 = vunpack.c.l.b16 %v302
      %v441 = vunpack.c.l.b16 %v303
      %v442 = vunpack.c.l.b16 %v304
      %v443 = vunpack.c.l.b16 %v305
      %v444 = vunpack.c.l.b16 %v306
      %v445 = vpack.c.b16 %v430, %v429
      %v446 = vpack.c.b16 %v432, %v431
      %v447 = vpack.c.b16 %v434, %v433
      %v448 = vpack.c.b16 %v436, %v435
      %v449 = vpack.c.b16 %v438, %v437
      %v450 = vpack.c.b16 %v440, %v439
      %v451 = vpack.c.b16 %v442, %v441
      %v452 = vpack.c.b16 %v444, %v443
      %461 = vmatpush.bf16.msra.mxu0 %v452
      %462 = vmatpush.bf16.msra.mxu0 %v451
      %463 = vmatpush.bf16.msra.mxu0 %v450
      %464 = vmatpush.bf16.msra.mxu0 %v449
      %465 = vmatpush.bf16.msra.mxu0 %v448
      %466 = vmatpush.bf16.msra.mxu0 %v447
      %467 = vmatpush.bf16.msra.mxu0 %v446
      %468 = vmatpush.bf16.msra.mxu0 %v445
      %469 = vmatmul.bf16.gmra.mxu0 %v287
      %v470 = vpop.f32.mrf.mxu0
      %v471 = vadd.f32 %v394, %v470
      %v472 = vpop.f32.mrf.mxu0
      %v473 = vadd.f32 %v396, %v472
      %474 = vmatmul.bf16.gmra.mxu0 %v288
      %v475 = vpop.f32.mrf.mxu0
      %v476 = vadd.f32 %v399, %v475
      %v477 = vpop.f32.mrf.mxu0
      %v478 = vadd.f32 %v401, %v477
      %479 = vmatmul.bf16.gmra.mxu0 %v289
      %v480 = vpop.f32.mrf.mxu0
      %v481 = vadd.f32 %v404, %v480
      %v482 = vpop.f32.mrf.mxu0
      %v483 = vadd.f32 %v406, %v482
      %484 = vmatmul.bf16.gmra.mxu0 %v290
      %v485 = vpop.f32.mrf.mxu0
      %v486 = vadd.f32 %v409, %v485
      %v487 = vpop.f32.mrf.mxu0
      %v488 = vadd.f32 %v411, %v487
      %489 = vdwg.mxu0
      %v490 = vld [vmem:[%s273 + $0x2] sm:$0xff]
      %v491 = vld [vmem:[%s273 + $0x12] sm:$0xff]
      %v492 = vld [vmem:[%s273 + $0x22] sm:$0xff]
      %v493 = vld [vmem:[%s273 + $0x32] sm:$0xff]
      %v494 = vld [vmem:[%s273 + $0x42] sm:$0xff]
      %v495 = vld [vmem:[%s273 + $0x52] sm:$0xff]
      %v496 = vld [vmem:[%s273 + $0x62] sm:$0xff]
      %v497 = vld [vmem:[%s273 + $0x72] sm:$0xff]
      %v498 = vpack.c.bf16 %v491, %v490
      %v499 = vpack.c.bf16 %v493, %v492
      %v500 = vpack.c.bf16 %v495, %v494
      %v501 = vpack.c.bf16 %v497, %v496
      %s502 = scalar_lea.vmem %s1, 128
      %v503 = vld [vmem:[%s502] sm:$0xf]
      %v504 = vld [vmem:[%s502 + $0x4] sm:$0xf]
      %v505 = vld [vmem:[%s502 + $0x8] sm:$0xf]
      %v506 = vld [vmem:[%s502 + $0xc] sm:$0xf]
      %v507 = vld [vmem:[%s502 + $0x10] sm:$0xf]
      %v508 = vld [vmem:[%s502 + $0x14] sm:$0xf]
      %v509 = vld [vmem:[%s502 + $0x18] sm:$0xf]
      %v510 = vld [vmem:[%s502 + $0x1c] sm:$0xf]
      %v511 = vld [vmem:[%s502 + $0x20] sm:$0xf]
      %v512 = vld [vmem:[%s502 + $0x24] sm:$0xf]
      %v513 = vld [vmem:[%s502 + $0x28] sm:$0xf]
      %v514 = vld [vmem:[%s502 + $0x2c] sm:$0xf]
      %v515 = vld [vmem:[%s502 + $0x30] sm:$0xf]
      %v516 = vld [vmem:[%s502 + $0x34] sm:$0xf]
      %v517 = vld [vmem:[%s502 + $0x38] sm:$0xf]
      %v518 = vld [vmem:[%s502 + $0x3c] sm:$0xf]
      %v535 = vunpack.c.l.b16 %v503
      %v536 = vunpack.c.l.b16 %v504
      %v537 = vunpack.c.l.b16 %v505
      %v538 = vunpack.c.l.b16 %v506
      %v539 = vunpack.c.l.b16 %v507
      %v540 = vunpack.c.l.b16 %v508
      %v541 = vunpack.c.l.b16 %v509
      %v542 = vunpack.c.l.b16 %v510
      %v543 = vunpack.c.l.b16 %v511
      %v544 = vunpack.c.l.b16 %v512
      %v545 = vunpack.c.l.b16 %v513
      %v546 = vunpack.c.l.b16 %v514
      %v547 = vunpack.c.l.b16 %v515
      %v548 = vunpack.c.l.b16 %v516
      %v549 = vunpack.c.l.b16 %v517
      %v550 = vunpack.c.l.b16 %v518
      %v551 = vpack.c.b16 %v536, %v535
      %v552 = vpack.c.b16 %v538, %v537
      %v553 = vpack.c.b16 %v540, %v539
      %v554 = vpack.c.b16 %v542, %v541
      %v555 = vpack.c.b16 %v544, %v543
      %v556 = vpack.c.b16 %v546, %v545
      %v557 = vpack.c.b16 %v548, %v547
      %v558 = vpack.c.b16 %v550, %v549
      %567 = vmatpush.bf16.msra.mxu0 %v558
      %568 = vmatpush.bf16.msra.mxu0 %v557
      %569 = vmatpush.bf16.msra.mxu0 %v556
      %570 = vmatpush.bf16.msra.mxu0 %v555
      %571 = vmatpush.bf16.msra.mxu0 %v554
      %572 = vmatpush.bf16.msra.mxu0 %v553
      %573 = vmatpush.bf16.msra.mxu0 %v552
      %574 = vmatpush.bf16.msra.mxu0 %v551
      %575 = vmatmul.bf16.gmra.mxu0 %v498
      %v576 = vpop.f32.mrf.mxu0
      %v577 = vadd.f32 0.0, %v576
      %v578 = vpop.f32.mrf.mxu0
      %v579 = vadd.f32 0.0, %v578
      %580 = vmatmul.bf16.gmra.mxu0 %v499
      %v581 = vpop.f32.mrf.mxu0
      %v582 = vadd.f32 0.0, %v581
      %v583 = vpop.f32.mrf.mxu0
      %v584 = vadd.f32 0.0, %v583
      %585 = vmatmul.bf16.gmra.mxu0 %v500
      %v586 = vpop.f32.mrf.mxu0
      %v587 = vadd.f32 0.0, %v586
      %v588 = vpop.f32.mrf.mxu0
      %v589 = vadd.f32 0.0, %v588
      %590 = vmatmul.bf16.gmra.mxu0 %v501
      %v591 = vpop.f32.mrf.mxu0
      %v592 = vadd.f32 0.0, %v591
      %v593 = vpop.f32.mrf.mxu0
      %v594 = vadd.f32 0.0, %v593
      %595 = vdwg.mxu0
      %v596 = vadd.f32 %v471, %v577
      %v597 = vadd.f32 %v473, %v579
      %v598 = vadd.f32 %v476, %v582
      %v599 = vadd.f32 %v478, %v584
      %v600 = vadd.f32 %v481, %v587
      %v601 = vadd.f32 %v483, %v589
      %v602 = vadd.f32 %v486, %v592
      %v603 = vadd.f32 %v488, %v594
      %s604 = scalar_lea.vmem %s273, 16
      %v605 = vld [vmem:[%s604] sm:$0xff]
      %v606 = vld [vmem:[%s604 + $0x10] sm:$0xff]
      %v607 = vld [vmem:[%s604 + $0x20] sm:$0xff]
      %v608 = vld [vmem:[%s604 + $0x30] sm:$0xff]
      %v609 = vld [vmem:[%s604 + $0x40] sm:$0xff]
      %v610 = vld [vmem:[%s604 + $0x50] sm:$0xff]
      %v611 = vld [vmem:[%s604 + $0x60] sm:$0xff]
      %v612 = vld [vmem:[%s604 + $0x70] sm:$0xff]
      %v613 = vpack.c.bf16 %v606, %v605
      %v614 = vpack.c.bf16 %v608, %v607
      %v615 = vpack.c.bf16 %v610, %v609
      %v616 = vpack.c.bf16 %v612, %v611
      %s617 = scalar_lea.vmem %s1, 192
      %v618 = vld [vmem:[%s617] sm:$0xf]
      %v619 = vld [vmem:[%s617 + $0x4] sm:$0xf]
      %v620 = vld [vmem:[%s617 + $0x8] sm:$0xf]
      %v621 = vld [vmem:[%s617 + $0xc] sm:$0xf]
      %v622 = vld [vmem:[%s617 + $0x10] sm:$0xf]
      %v623 = vld [vmem:[%s617 + $0x14] sm:$0xf]
      %v624 = vld [vmem:[%s617 + $0x18] sm:$0xf]
      %v625 = vld [vmem:[%s617 + $0x1c] sm:$0xf]
      %v626 = vld [vmem:[%s617 + $0x20] sm:$0xf]
      %v627 = vld [vmem:[%s617 + $0x24] sm:$0xf]
      %v628 = vld [vmem:[%s617 + $0x28] sm:$0xf]
      %v629 = vld [vmem:[%s617 + $0x2c] sm:$0xf]
      %v630 = vld [vmem:[%s617 + $0x30] sm:$0xf]
      %v631 = vld [vmem:[%s617 + $0x34] sm:$0xf]
      %v632 = vld [vmem:[%s617 + $0x38] sm:$0xf]
      %v633 = vld [vmem:[%s617 + $0x3c] sm:$0xf]
      %v650 = vunpack.c.l.b16 %v618
      %v651 = vunpack.c.l.b16 %v619
      %v652 = vunpack.c.l.b16 %v620
      %v653 = vunpack.c.l.b16 %v621
      %v654 = vunpack.c.l.b16 %v622
      %v655 = vunpack.c.l.b16 %v623
      %v656 = vunpack.c.l.b16 %v624
      %v657 = vunpack.c.l.b16 %v625
      %v658 = vunpack.c.l.b16 %v626
      %v659 = vunpack.c.l.b16 %v627
      %v660 = vunpack.c.l.b16 %v628
      %v661 = vunpack.c.l.b16 %v629
      %v662 = vunpack.c.l.b16 %v630
      %v663 = vunpack.c.l.b16 %v631
      %v664 = vunpack.c.l.b16 %v632
      %v665 = vunpack.c.l.b16 %v633
      %v666 = vpack.c.b16 %v651, %v650
      %v667 = vpack.c.b16 %v653, %v652
      %v668 = vpack.c.b16 %v655, %v654
      %v669 = vpack.c.b16 %v657, %v656
      %v670 = vpack.c.b16 %v659, %v658
      %v671 = vpack.c.b16 %v661, %v660
      %v672 = vpack.c.b16 %v663, %v662
      %v673 = vpack.c.b16 %v665, %v664
      %682 = vmatpush.bf16.msra.mxu0 %v673
      %683 = vmatpush.bf16.msra.mxu0 %v672
      %684 = vmatpush.bf16.msra.mxu0 %v671
      %685 = vmatpush.bf16.msra.mxu0 %v670
      %686 = vmatpush.bf16.msra.mxu0 %v669
      %687 = vmatpush.bf16.msra.mxu0 %v668
      %688 = vmatpush.bf16.msra.mxu0 %v667
      %689 = vmatpush.bf16.msra.mxu0 %v666
      %690 = vmatmul.bf16.gmra.mxu0 %v613
      %v691 = vpop.f32.mrf.mxu0
      %v692 = vadd.f32 0.0, %v691
      %v693 = vpop.f32.mrf.mxu0
      %v694 = vadd.f32 0.0, %v693
      %695 = vmatmul.bf16.gmra.mxu0 %v614
      %v696 = vpop.f32.mrf.mxu0
      %v697 = vadd.f32 0.0, %v696
      %v698 = vpop.f32.mrf.mxu0
      %v699 = vadd.f32 0.0, %v698
      %700 = vmatmul.bf16.gmra.mxu0 %v615
      %v701 = vpop.f32.mrf.mxu0
      %v702 = vadd.f32 0.0, %v701
      %v703 = vpop.f32.mrf.mxu0
      %v704 = vadd.f32 0.0, %v703
      %705 = vmatmul.bf16.gmra.mxu0 %v616
      %v706 = vpop.f32.mrf.mxu0
      %v707 = vadd.f32 0.0, %v706
      %v708 = vpop.f32.mrf.mxu0
      %v709 = vadd.f32 0.0, %v708
      %710 = vdwg.mxu0
      %v711 = vadd.f32 %v596, %v692
      %v712 = vadd.f32 %v597, %v694
      %v713 = vadd.f32 %v598, %v697
      %v714 = vadd.f32 %v599, %v699
      %v715 = vadd.f32 %v600, %v702
      %v716 = vadd.f32 %v601, %v704
      %v717 = vadd.f32 %v602, %v707
      %v718 = vadd.f32 %v603, %v709
      %v719 = vld [vmem:[%s604 + $0x1] sm:$0xff]
      %v720 = vld [vmem:[%s604 + $0x11] sm:$0xff]
      %v721 = vld [vmem:[%s604 + $0x21] sm:$0xff]
      %v722 = vld [vmem:[%s604 + $0x31] sm:$0xff]
      %v723 = vld [vmem:[%s604 + $0x41] sm:$0xff]
      %v724 = vld [vmem:[%s604 + $0x51] sm:$0xff]
      %v725 = vld [vmem:[%s604 + $0x61] sm:$0xff]
      %v726 = vld [vmem:[%s604 + $0x71] sm:$0xff]
      %v727 = vpack.c.bf16 %v720, %v719
      %v728 = vpack.c.bf16 %v722, %v721
      %v729 = vpack.c.bf16 %v724, %v723
      %v730 = vpack.c.bf16 %v726, %v725
      %s731 = scalar_lea.vmem %s1, 256
      %v732 = vld [vmem:[%s731] sm:$0xf]
      %v733 = vld [vmem:[%s731 + $0x4] sm:$0xf]
      %v734 = vld [vmem:[%s731 + $0x8] sm:$0xf]
      %v735 = vld [vmem:[%s731 + $0xc] sm:$0xf]
      %v736 = vld [vmem:[%s731 + $0x10] sm:$0xf]
      %v737 = vld [vmem:[%s731 + $0x14] sm:$0xf]
      %v738 = vld [vmem:[%s731 + $0x18] sm:$0xf]
      %v739 = vld [vmem:[%s731 + $0x1c] sm:$0xf]
      %v740 = vld [vmem:[%s731 + $0x20] sm:$0xf]
      %v741 = vld [vmem:[%s731 + $0x24] sm:$0xf]
      %v742 = vld [vmem:[%s731 + $0x28] sm:$0xf]
      %v743 = vld [vmem:[%s731 + $0x2c] sm:$0xf]
      %v744 = vld [vmem:[%s731 + $0x30] sm:$0xf]
      %v745 = vld [vmem:[%s731 + $0x34] sm:$0xf]
      %v746 = vld [vmem:[%s731 + $0x38] sm:$0xf]
      %v747 = vld [vmem:[%s731 + $0x3c] sm:$0xf]
      %v764 = vunpack.c.l.b16 %v732
      %v765 = vunpack.c.l.b16 %v733
      %v766 = vunpack.c.l.b16 %v734
      %v767 = vunpack.c.l.b16 %v735
      %v768 = vunpack.c.l.b16 %v736
      %v769 = vunpack.c.l.b16 %v737
      %v770 = vunpack.c.l.b16 %v738
      %v771 = vunpack.c.l.b16 %v739
      %v772 = vunpack.c.l.b16 %v740
      %v773 = vunpack.c.l.b16 %v741
      %v774 = vunpack.c.l.b16 %v742
      %v775 = vunpack.c.l.b16 %v743
      %v776 = vunpack.c.l.b16 %v744
      %v777 = vunpack.c.l.b16 %v745
      %v778 = vunpack.c.l.b16 %v746
      %v779 = vunpack.c.l.b16 %v747
      %v780 = vpack.c.b16 %v765, %v764
      %v781 = vpack.c.b16 %v767, %v766
      %v782 = vpack.c.b16 %v769, %v768
      %v783 = vpack.c.b16 %v771, %v770
      %v784 = vpack.c.b16 %v773, %v772
      %v785 = vpack.c.b16 %v775, %v774
      %v786 = vpack.c.b16 %v777, %v776
      %v787 = vpack.c.b16 %v779, %v778
      %796 = vmatpush.bf16.msra.mxu0 %v787
      %797 = vmatpush.bf16.msra.mxu0 %v786
      %798 = vmatpush.bf16.msra.mxu0 %v785
      %799 = vmatpush.bf16.msra.mxu0 %v784
      %800 = vmatpush.bf16.msra.mxu0 %v783
      %801 = vmatpush.bf16.msra.mxu0 %v782
      %802 = vmatpush.bf16.msra.mxu0 %v781
      %803 = vmatpush.bf16.msra.mxu0 %v780
      %804 = vmatmul.bf16.gmra.mxu0 %v727
      %v805 = vpop.f32.mrf.mxu0
      %v806 = vadd.f32 0.0, %v805
      %v807 = vpop.f32.mrf.mxu0
      %v808 = vadd.f32 0.0, %v807
      %809 = vmatmul.bf16.gmra.mxu0 %v728
      %v810 = vpop.f32.mrf.mxu0
      %v811 = vadd.f32 0.0, %v810
      %v812 = vpop.f32.mrf.mxu0
      %v813 = vadd.f32 0.0, %v812
      %814 = vmatmul.bf16.gmra.mxu0 %v729
      %v815 = vpop.f32.mrf.mxu0
      %v816 = vadd.f32 0.0, %v815
      %v817 = vpop.f32.mrf.mxu0
      %v818 = vadd.f32 0.0, %v817
      %819 = vmatmul.bf16.gmra.mxu0 %v730
      %v820 = vpop.f32.mrf.mxu0
      %v821 = vadd.f32 0.0, %v820
      %v822 = vpop.f32.mrf.mxu0
      %v823 = vadd.f32 0.0, %v822
      %824 = vdwg.mxu0
      %v825 = vadd.f32 %v711, %v806
      %v826 = vadd.f32 %v712, %v808
      %v827 = vadd.f32 %v713, %v811
      %v828 = vadd.f32 %v714, %v813
      %v829 = vadd.f32 %v715, %v816
      %v830 = vadd.f32 %v716, %v818
      %v831 = vadd.f32 %v717, %v821
      %v832 = vadd.f32 %v718, %v823
      %v833 = vld [vmem:[%s604 + $0x2] sm:$0xff]
      %v834 = vld [vmem:[%s604 + $0x12] sm:$0xff]
      %v835 = vld [vmem:[%s604 + $0x22] sm:$0xff]
      %v836 = vld [vmem:[%s604 + $0x32] sm:$0xff]
      %v837 = vld [vmem:[%s604 + $0x42] sm:$0xff]
      %v838 = vld [vmem:[%s604 + $0x52] sm:$0xff]
      %v839 = vld [vmem:[%s604 + $0x62] sm:$0xff]
      %v840 = vld [vmem:[%s604 + $0x72] sm:$0xff]
      %v841 = vpack.c.bf16 %v834, %v833
      %v842 = vpack.c.bf16 %v836, %v835
      %v843 = vpack.c.bf16 %v838, %v837
      %v844 = vpack.c.bf16 %v840, %v839
      %s845 = scalar_lea.vmem %s1, 320
      %v846 = vld [vmem:[%s845] sm:$0xf]
      %v847 = vld [vmem:[%s845 + $0x4] sm:$0xf]
      %v848 = vld [vmem:[%s845 + $0x8] sm:$0xf]
      %v849 = vld [vmem:[%s845 + $0xc] sm:$0xf]
      %v850 = vld [vmem:[%s845 + $0x10] sm:$0xf]
      %v851 = vld [vmem:[%s845 + $0x14] sm:$0xf]
      %v852 = vld [vmem:[%s845 + $0x18] sm:$0xf]
      %v853 = vld [vmem:[%s845 + $0x1c] sm:$0xf]
      %v854 = vld [vmem:[%s845 + $0x20] sm:$0xf]
      %v855 = vld [vmem:[%s845 + $0x24] sm:$0xf]
      %v856 = vld [vmem:[%s845 + $0x28] sm:$0xf]
      %v857 = vld [vmem:[%s845 + $0x2c] sm:$0xf]
      %v858 = vld [vmem:[%s845 + $0x30] sm:$0xf]
      %v859 = vld [vmem:[%s845 + $0x34] sm:$0xf]
      %v860 = vld [vmem:[%s845 + $0x38] sm:$0xf]
      %v861 = vld [vmem:[%s845 + $0x3c] sm:$0xf]
      %v878 = vunpack.c.l.b16 %v846
      %v879 = vunpack.c.l.b16 %v847
      %v880 = vunpack.c.l.b16 %v848
      %v881 = vunpack.c.l.b16 %v849
      %v882 = vunpack.c.l.b16 %v850
      %v883 = vunpack.c.l.b16 %v851
      %v884 = vunpack.c.l.b16 %v852
      %v885 = vunpack.c.l.b16 %v853
      %v886 = vunpack.c.l.b16 %v854
      %v887 = vunpack.c.l.b16 %v855
      %v888 = vunpack.c.l.b16 %v856
      %v889 = vunpack.c.l.b16 %v857
      %v890 = vunpack.c.l.b16 %v858
      %v891 = vunpack.c.l.b16 %v859
      %v892 = vunpack.c.l.b16 %v860
      %v893 = vunpack.c.l.b16 %v861
      %v894 = vpack.c.b16 %v879, %v878
      %v895 = vpack.c.b16 %v881, %v880
      %v896 = vpack.c.b16 %v883, %v882
      %v897 = vpack.c.b16 %v885, %v884
      %v898 = vpack.c.b16 %v887, %v886
      %v899 = vpack.c.b16 %v889, %v888
      %v900 = vpack.c.b16 %v891, %v890
      %v901 = vpack.c.b16 %v893, %v892
      %910 = vmatpush.bf16.msra.mxu0 %v901
      %911 = vmatpush.bf16.msra.mxu0 %v900
      %912 = vmatpush.bf16.msra.mxu0 %v899
      %913 = vmatpush.bf16.msra.mxu0 %v898
      %914 = vmatpush.bf16.msra.mxu0 %v897
      %915 = vmatpush.bf16.msra.mxu0 %v896
      %916 = vmatpush.bf16.msra.mxu0 %v895
      %917 = vmatpush.bf16.msra.mxu0 %v894
      %918 = vmatmul.bf16.gmra.mxu0 %v841
      %v919 = vpop.f32.mrf.mxu0
      %v920 = vadd.f32 0.0, %v919
      %v921 = vpop.f32.mrf.mxu0
      %v922 = vadd.f32 0.0, %v921
      %923 = vmatmul.bf16.gmra.mxu0 %v842
      %v924 = vpop.f32.mrf.mxu0
      %v925 = vadd.f32 0.0, %v924
      %v926 = vpop.f32.mrf.mxu0
      %v927 = vadd.f32 0.0, %v926
      %928 = vmatmul.bf16.gmra.mxu0 %v843
      %v929 = vpop.f32.mrf.mxu0
      %v930 = vadd.f32 0.0, %v929
      %v931 = vpop.f32.mrf.mxu0
      %v932 = vadd.f32 0.0, %v931
      %933 = vmatmul.bf16.gmra.mxu0 %v844
      %v934 = vpop.f32.mrf.mxu0
      %v935 = vadd.f32 0.0, %v934
      %v936 = vpop.f32.mrf.mxu0
      %v937 = vadd.f32 0.0, %v936
      %938 = vdwg.mxu0
      %v939 = vadd.f32 %v825, %v920
      %v940 = vadd.f32 %v826, %v922
      %v941 = vadd.f32 %v827, %v925
      %v942 = vadd.f32 %v828, %v927
      %v943 = vadd.f32 %v829, %v930
      %v944 = vadd.f32 %v830, %v932
      %v945 = vadd.f32 %v831, %v935
      %v946 = vadd.f32 %v832, %v937
      %s947 = scalar_lea.vmem %s273, 32
      %v948 = vld [vmem:[%s947] sm:$0xff]
      %v949 = vld [vmem:[%s947 + $0x10] sm:$0xff]
      %v950 = vld [vmem:[%s947 + $0x20] sm:$0xff]
      %v951 = vld [vmem:[%s947 + $0x30] sm:$0xff]
      %v952 = vld [vmem:[%s947 + $0x40] sm:$0xff]
      %v953 = vld [vmem:[%s947 + $0x50] sm:$0xff]
      %v954 = vld [vmem:[%s947 + $0x60] sm:$0xff]
      %v955 = vld [vmem:[%s947 + $0x70] sm:$0xff]
      %v956 = vpack.c.bf16 %v949, %v948
      %v957 = vpack.c.bf16 %v951, %v950
      %v958 = vpack.c.bf16 %v953, %v952
      %v959 = vpack.c.bf16 %v955, %v954
      %s960 = scalar_lea.vmem %s1, 384
      %v961 = vld [vmem:[%s960] sm:$0xf]
      %v962 = vld [vmem:[%s960 + $0x4] sm:$0xf]
      %v963 = vld [vmem:[%s960 + $0x8] sm:$0xf]
      %v964 = vld [vmem:[%s960 + $0xc] sm:$0xf]
      %v965 = vld [vmem:[%s960 + $0x10] sm:$0xf]
      %v966 = vld [vmem:[%s960 + $0x14] sm:$0xf]
      %v967 = vld [vmem:[%s960 + $0x18] sm:$0xf]
      %v968 = vld [vmem:[%s960 + $0x1c] sm:$0xf]
      %v969 = vld [vmem:[%s960 + $0x20] sm:$0xf]
      %v970 = vld [vmem:[%s960 + $0x24] sm:$0xf]
      %v971 = vld [vmem:[%s960 + $0x28] sm:$0xf]
      %v972 = vld [vmem:[%s960 + $0x2c] sm:$0xf]
      %v973 = vld [vmem:[%s960 + $0x30] sm:$0xf]
      %v974 = vld [vmem:[%s960 + $0x34] sm:$0xf]
      %v975 = vld [vmem:[%s960 + $0x38] sm:$0xf]
      %v976 = vld [vmem:[%s960 + $0x3c] sm:$0xf]
      %v993 = vunpack.c.l.b16 %v961
      %v994 = vunpack.c.l.b16 %v962
      %v995 = vunpack.c.l.b16 %v963
      %v996 = vunpack.c.l.b16 %v964
      %v997 = vunpack.c.l.b16 %v965
      %v998 = vunpack.c.l.b16 %v966
      %v999 = vunpack.c.l.b16 %v967
      %v1000 = vunpack.c.l.b16 %v968
      %v1001 = vunpack.c.l.b16 %v969
      %v1002 = vunpack.c.l.b16 %v970
      %v1003 = vunpack.c.l.b16 %v971
      %v1004 = vunpack.c.l.b16 %v972
      %v1005 = vunpack.c.l.b16 %v973
      %v1006 = vunpack.c.l.b16 %v974
      %v1007 = vunpack.c.l.b16 %v975
      %v1008 = vunpack.c.l.b16 %v976
      %v1009 = vpack.c.b16 %v994, %v993
      %v1010 = vpack.c.b16 %v996, %v995
      %v1011 = vpack.c.b16 %v998, %v997
      %v1012 = vpack.c.b16 %v1000, %v999
      %v1013 = vpack.c.b16 %v1002, %v1001
      %v1014 = vpack.c.b16 %v1004, %v1003
      %v1015 = vpack.c.b16 %v1006, %v1005
      %v1016 = vpack.c.b16 %v1008, %v1007
      %1025 = vmatpush.bf16.msra.mxu0 %v1016
      %1026 = vmatpush.bf16.msra.mxu0 %v1015
      %1027 = vmatpush.bf16.msra.mxu0 %v1014
      %1028 = vmatpush.bf16.msra.mxu0 %v1013
      %1029 = vmatpush.bf16.msra.mxu0 %v1012
      %1030 = vmatpush.bf16.msra.mxu0 %v1011
      %1031 = vmatpush.bf16.msra.mxu0 %v1010
      %1032 = vmatpush.bf16.msra.mxu0 %v1009
      %1033 = vmatmul.bf16.gmra.mxu0 %v956
      %v1034 = vpop.f32.mrf.mxu0
      %v1035 = vadd.f32 0.0, %v1034
      %v1036 = vpop.f32.mrf.mxu0
      %v1037 = vadd.f32 0.0, %v1036
      %1038 = vmatmul.bf16.gmra.mxu0 %v957
      %v1039 = vpop.f32.mrf.mxu0
      %v1040 = vadd.f32 0.0, %v1039
      %v1041 = vpop.f32.mrf.mxu0
      %v1042 = vadd.f32 0.0, %v1041
      %1043 = vmatmul.bf16.gmra.mxu0 %v958
      %v1044 = vpop.f32.mrf.mxu0
      %v1045 = vadd.f32 0.0, %v1044
      %v1046 = vpop.f32.mrf.mxu0
      %v1047 = vadd.f32 0.0, %v1046
      %1048 = vmatmul.bf16.gmra.mxu0 %v959
      %v1049 = vpop.f32.mrf.mxu0
      %v1050 = vadd.f32 0.0, %v1049
      %v1051 = vpop.f32.mrf.mxu0
      %v1052 = vadd.f32 0.0, %v1051
      %1053 = vdwg.mxu0
      %v1054 = vadd.f32 %v939, %v1035
      %v1055 = vadd.f32 %v940, %v1037
      %v1056 = vadd.f32 %v941, %v1040
      %v1057 = vadd.f32 %v942, %v1042
      %v1058 = vadd.f32 %v943, %v1045
      %v1059 = vadd.f32 %v944, %v1047
      %v1060 = vadd.f32 %v945, %v1050
      %v1061 = vadd.f32 %v946, %v1052
      %v1062 = vld [vmem:[%s947 + $0x1] sm:$0xff]
      %v1063 = vld [vmem:[%s947 + $0x11] sm:$0xff]
      %v1064 = vld [vmem:[%s947 + $0x21] sm:$0xff]
      %v1065 = vld [vmem:[%s947 + $0x31] sm:$0xff]
      %v1066 = vld [vmem:[%s947 + $0x41] sm:$0xff]
      %v1067 = vld [vmem:[%s947 + $0x51] sm:$0xff]
      %v1068 = vld [vmem:[%s947 + $0x61] sm:$0xff]
      %v1069 = vld [vmem:[%s947 + $0x71] sm:$0xff]
      %v1070 = vpack.c.bf16 %v1063, %v1062
      %v1071 = vpack.c.bf16 %v1065, %v1064
      %v1072 = vpack.c.bf16 %v1067, %v1066
      %v1073 = vpack.c.bf16 %v1069, %v1068
      %s1074 = scalar_lea.vmem %s1, 448
      %v1075 = vld [vmem:[%s1074] sm:$0xf]
      %v1076 = vld [vmem:[%s1074 + $0x4] sm:$0xf]
      %v1077 = vld [vmem:[%s1074 + $0x8] sm:$0xf]
      %v1078 = vld [vmem:[%s1074 + $0xc] sm:$0xf]
      %v1079 = vld [vmem:[%s1074 + $0x10] sm:$0xf]
      %v1080 = vld [vmem:[%s1074 + $0x14] sm:$0xf]
      %v1081 = vld [vmem:[%s1074 + $0x18] sm:$0xf]
      %v1082 = vld [vmem:[%s1074 + $0x1c] sm:$0xf]
      %v1083 = vld [vmem:[%s1074 + $0x20] sm:$0xf]
      %v1084 = vld [vmem:[%s1074 + $0x24] sm:$0xf]
      %v1085 = vld [vmem:[%s1074 + $0x28] sm:$0xf]
      %v1086 = vld [vmem:[%s1074 + $0x2c] sm:$0xf]
      %v1087 = vld [vmem:[%s1074 + $0x30] sm:$0xf]
      %v1088 = vld [vmem:[%s1074 + $0x34] sm:$0xf]
      %v1089 = vld [vmem:[%s1074 + $0x38] sm:$0xf]
      %v1090 = vld [vmem:[%s1074 + $0x3c] sm:$0xf]
      %v1107 = vunpack.c.l.b16 %v1075
      %v1108 = vunpack.c.l.b16 %v1076
      %v1109 = vunpack.c.l.b16 %v1077
      %v1110 = vunpack.c.l.b16 %v1078
      %v1111 = vunpack.c.l.b16 %v1079
      %v1112 = vunpack.c.l.b16 %v1080
      %v1113 = vunpack.c.l.b16 %v1081
      %v1114 = vunpack.c.l.b16 %v1082
      %v1115 = vunpack.c.l.b16 %v1083
      %v1116 = vunpack.c.l.b16 %v1084
      %v1117 = vunpack.c.l.b16 %v1085
      %v1118 = vunpack.c.l.b16 %v1086
      %v1119 = vunpack.c.l.b16 %v1087
      %v1120 = vunpack.c.l.b16 %v1088
      %v1121 = vunpack.c.l.b16 %v1089
      %v1122 = vunpack.c.l.b16 %v1090
      %v1123 = vpack.c.b16 %v1108, %v1107
      %v1124 = vpack.c.b16 %v1110, %v1109
      %v1125 = vpack.c.b16 %v1112, %v1111
      %v1126 = vpack.c.b16 %v1114, %v1113
      %v1127 = vpack.c.b16 %v1116, %v1115
      %v1128 = vpack.c.b16 %v1118, %v1117
      %v1129 = vpack.c.b16 %v1120, %v1119
      %v1130 = vpack.c.b16 %v1122, %v1121
      %1139 = vmatpush.bf16.msra.mxu0 %v1130
      %1140 = vmatpush.bf16.msra.mxu0 %v1129
      %1141 = vmatpush.bf16.msra.mxu0 %v1128
      %1142 = vmatpush.bf16.msra.mxu0 %v1127
      %1143 = vmatpush.bf16.msra.mxu0 %v1126
      %1144 = vmatpush.bf16.msra.mxu0 %v1125
      %1145 = vmatpush.bf16.msra.mxu0 %v1124
      %1146 = vmatpush.bf16.msra.mxu0 %v1123
      %1147 = vmatmul.bf16.gmra.mxu0 %v1070
      %v1148 = vpop.f32.mrf.mxu0
      %v1149 = vadd.f32 0.0, %v1148
      %v1150 = vpop.f32.mrf.mxu0
      %v1151 = vadd.f32 0.0, %v1150
      %1152 = vmatmul.bf16.gmra.mxu0 %v1071
      %v1153 = vpop.f32.mrf.mxu0
      %v1154 = vadd.f32 0.0, %v1153
      %v1155 = vpop.f32.mrf.mxu0
      %v1156 = vadd.f32 0.0, %v1155
      %1157 = vmatmul.bf16.gmra.mxu0 %v1072
      %v1158 = vpop.f32.mrf.mxu0
      %v1159 = vadd.f32 0.0, %v1158
      %v1160 = vpop.f32.mrf.mxu0
      %v1161 = vadd.f32 0.0, %v1160
      %1162 = vmatmul.bf16.gmra.mxu0 %v1073
      %v1163 = vpop.f32.mrf.mxu0
      %v1164 = vadd.f32 0.0, %v1163
      %v1165 = vpop.f32.mrf.mxu0
      %v1166 = vadd.f32 0.0, %v1165
      %1167 = vdwg.mxu0
      %v1168 = vadd.f32 %v1054, %v1149
      %v1169 = vadd.f32 %v1055, %v1151
      %v1170 = vadd.f32 %v1056, %v1154
      %v1171 = vadd.f32 %v1057, %v1156
      %v1172 = vadd.f32 %v1058, %v1159
      %v1173 = vadd.f32 %v1059, %v1161
      %v1174 = vadd.f32 %v1060, %v1164
      %v1175 = vadd.f32 %v1061, %v1166
      %v1176 = vld [vmem:[%s947 + $0x2] sm:$0xff]
      %v1177 = vld [vmem:[%s947 + $0x12] sm:$0xff]
      %v1178 = vld [vmem:[%s947 + $0x22] sm:$0xff]
      %v1179 = vld [vmem:[%s947 + $0x32] sm:$0xff]
      %v1180 = vld [vmem:[%s947 + $0x42] sm:$0xff]
      %v1181 = vld [vmem:[%s947 + $0x52] sm:$0xff]
      %v1182 = vld [vmem:[%s947 + $0x62] sm:$0xff]
      %v1183 = vld [vmem:[%s947 + $0x72] sm:$0xff]
      %v1184 = vpack.c.bf16 %v1177, %v1176
      %v1185 = vpack.c.bf16 %v1179, %v1178
      %v1186 = vpack.c.bf16 %v1181, %v1180
      %v1187 = vpack.c.bf16 %v1183, %v1182
      %s1188 = scalar_lea.vmem %s1, 512
      %v1189 = vld [vmem:[%s1188] sm:$0xf]
      %v1190 = vld [vmem:[%s1188 + $0x4] sm:$0xf]
      %v1191 = vld [vmem:[%s1188 + $0x8] sm:$0xf]
      %v1192 = vld [vmem:[%s1188 + $0xc] sm:$0xf]
      %v1193 = vld [vmem:[%s1188 + $0x10] sm:$0xf]
      %v1194 = vld [vmem:[%s1188 + $0x14] sm:$0xf]
      %v1195 = vld [vmem:[%s1188 + $0x18] sm:$0xf]
      %v1196 = vld [vmem:[%s1188 + $0x1c] sm:$0xf]
      %v1197 = vld [vmem:[%s1188 + $0x20] sm:$0xf]
      %v1198 = vld [vmem:[%s1188 + $0x24] sm:$0xf]
      %v1199 = vld [vmem:[%s1188 + $0x28] sm:$0xf]
      %v1200 = vld [vmem:[%s1188 + $0x2c] sm:$0xf]
      %v1201 = vld [vmem:[%s1188 + $0x30] sm:$0xf]
      %v1202 = vld [vmem:[%s1188 + $0x34] sm:$0xf]
      %v1203 = vld [vmem:[%s1188 + $0x38] sm:$0xf]
      %v1204 = vld [vmem:[%s1188 + $0x3c] sm:$0xf]
      %v1221 = vunpack.c.l.b16 %v1189
      %v1222 = vunpack.c.l.b16 %v1190
      %v1223 = vunpack.c.l.b16 %v1191
      %v1224 = vunpack.c.l.b16 %v1192
      %v1225 = vunpack.c.l.b16 %v1193
      %v1226 = vunpack.c.l.b16 %v1194
      %v1227 = vunpack.c.l.b16 %v1195
      %v1228 = vunpack.c.l.b16 %v1196
      %v1229 = vunpack.c.l.b16 %v1197
      %v1230 = vunpack.c.l.b16 %v1198
      %v1231 = vunpack.c.l.b16 %v1199
      %v1232 = vunpack.c.l.b16 %v1200
      %v1233 = vunpack.c.l.b16 %v1201
      %v1234 = vunpack.c.l.b16 %v1202
      %v1235 = vunpack.c.l.b16 %v1203
      %v1236 = vunpack.c.l.b16 %v1204
      %v1237 = vpack.c.b16 %v1222, %v1221
      %v1238 = vpack.c.b16 %v1224, %v1223
      %v1239 = vpack.c.b16 %v1226, %v1225
      %v1240 = vpack.c.b16 %v1228, %v1227
      %v1241 = vpack.c.b16 %v1230, %v1229
      %v1242 = vpack.c.b16 %v1232, %v1231
      %v1243 = vpack.c.b16 %v1234, %v1233
      %v1244 = vpack.c.b16 %v1236, %v1235
      %1253 = vmatpush.bf16.msra.mxu0 %v1244
      %1254 = vmatpush.bf16.msra.mxu0 %v1243
      %1255 = vmatpush.bf16.msra.mxu0 %v1242
      %1256 = vmatpush.bf16.msra.mxu0 %v1241
      %1257 = vmatpush.bf16.msra.mxu0 %v1240
      %1258 = vmatpush.bf16.msra.mxu0 %v1239
      %1259 = vmatpush.bf16.msra.mxu0 %v1238
      %1260 = vmatpush.bf16.msra.mxu0 %v1237
      %1261 = vmatmul.bf16.gmra.mxu0 %v1184
      %v1262 = vpop.f32.mrf.mxu0
      %v1263 = vadd.f32 0.0, %v1262
      %v1264 = vpop.f32.mrf.mxu0
      %v1265 = vadd.f32 0.0, %v1264
      %1266 = vmatmul.bf16.gmra.mxu0 %v1185
      %v1267 = vpop.f32.mrf.mxu0
      %v1268 = vadd.f32 0.0, %v1267
      %v1269 = vpop.f32.mrf.mxu0
      %v1270 = vadd.f32 0.0, %v1269
      %1271 = vmatmul.bf16.gmra.mxu0 %v1186
      %v1272 = vpop.f32.mrf.mxu0
      %v1273 = vadd.f32 0.0, %v1272
      %v1274 = vpop.f32.mrf.mxu0
      %v1275 = vadd.f32 0.0, %v1274
      %1276 = vmatmul.bf16.gmra.mxu0 %v1187
      %v1277 = vpop.f32.mrf.mxu0
      %v1278 = vadd.f32 0.0, %v1277
      %v1279 = vpop.f32.mrf.mxu0
      %v1280 = vadd.f32 0.0, %v1279
      %1281 = vdwg.mxu0
      %v1282 = vadd.f32 %v1168, %v1263
      %v1283 = vadd.f32 %v1169, %v1265
      %v1284 = vadd.f32 %v1170, %v1268
      %v1285 = vadd.f32 %v1171, %v1270
      %v1286 = vadd.f32 %v1172, %v1273
      %v1287 = vadd.f32 %v1173, %v1275
      %v1288 = vadd.f32 %v1174, %v1278
      %v1289 = vadd.f32 %v1175, %v1280
      %v1290 = vld [vmem:[%s2] sm:$0x1]
      %v1292 = vperm.slane %v1290, 0
      %v1294 = vmul.f32 %v1282, %v1292
      %v1295 = vmul.f32 %v1283, %v1292
      %v1296 = vmul.f32 %v1284, %v1292
      %v1297 = vmul.f32 %v1285, %v1292
      %v1298 = vmul.f32 %v1286, %v1292
      %v1299 = vmul.f32 %v1287, %v1292
      %v1300 = vmul.f32 %v1288, %v1292
      %v1301 = vmul.f32 %v1289, %v1292
      %v1302 = vld [vmem:[%s3] sm:$0x1]
      %v1304 = vperm.slane %v1302, 0
      %v1306 = vadd.f32 %v1294, %v1304
      %v1307 = vadd.f32 %v1295, %v1304
      %v1308 = vadd.f32 %v1296, %v1304
      %v1309 = vadd.f32 %v1297, %v1304
      %v1310 = vadd.f32 %v1298, %v1304
      %v1311 = vadd.f32 %v1299, %v1304
      %v1312 = vadd.f32 %v1300, %v1304
      %v1313 = vadd.f32 %v1301, %v1304
      %v1314 = vmax.f32 %v1306, 0.0
      %v1315 = vmax.f32 %v1307, 0.0
      %v1316 = vmax.f32 %v1308, 0.0
      %v1317 = vmax.f32 %v1309, 0.0
      %v1318 = vmax.f32 %v1310, 0.0
      %v1319 = vmax.f32 %v1311, 0.0
      %v1320 = vmax.f32 %v1312, 0.0
      %v1321 = vmax.f32 %v1313, 0.0
      %1322 = vst [vmem:[#allocation2] sm:$0xff] 0.0
      %1323 = vst [vmem:[#allocation2 + $0x8] sm:$0x3] 0.0
      %1324 = vst [vmem:[#allocation2 + $0x10] sm:$0xff] 0.0
      %1325 = vst [vmem:[#allocation2 + $0x18] sm:$0x3] 0.0
      %1326 = vst [vmem:[#allocation2 + $0x20] sm:$0xff] 0.0
      %1327 = vst [vmem:[#allocation2 + $0x28] sm:$0x3] 0.0
      %1328 = vst [vmem:[#allocation2 + $0x30] sm:$0xff] 0.0
      %1329 = vst [vmem:[#allocation2 + $0x38] sm:$0x3] 0.0
      %1330 = vst [vmem:[#allocation2 + $0x40] sm:$0xff] 0.0
      %1331 = vst [vmem:[#allocation2 + $0x48] sm:$0x3] 0.0
      %1332 = vst [vmem:[#allocation2 + $0x50] sm:$0xff] 0.0
      %1333 = vst [vmem:[#allocation2 + $0x58] sm:$0x3] 0.0
      %1334 = vst [vmem:[#allocation2 + $0x60] sm:$0xff] 0.0
      %1335 = vst [vmem:[#allocation2 + $0x68] sm:$0x3] 0.0
      %1336 = vst [vmem:[#allocation2 + $0x70] sm:$0xff] 0.0
      %1337 = vst [vmem:[#allocation2 + $0x78] sm:$0x3] 0.0
      %1338 = vst [vmem:[#allocation2 + $0x80] sm:$0xff] 0.0
      %1339 = vst [vmem:[#allocation2 + $0x88] sm:$0x3] 0.0
      %1340 = vst [vmem:[#allocation2 + $0x90] sm:$0xff] 0.0
      %1341 = vst [vmem:[#allocation2 + $0x98] sm:$0x3] 0.0
      %s1342 = scalar_lea.vmem [#allocation2], 16
      %1343 = vst [vmem:[%s1342 + $0x1] sm:$0xff] %v1314
      %1344 = vst [vmem:[%s1342 + $0x11] sm:$0xff] %v1315
      %1345 = vst [vmem:[%s1342 + $0x21] sm:$0xff] %v1316
      %1346 = vst [vmem:[%s1342 + $0x31] sm:$0xff] %v1317
      %1347 = vst [vmem:[%s1342 + $0x41] sm:$0xff] %v1318
      %1348 = vst [vmem:[%s1342 + $0x51] sm:$0xff] %v1319
      %1349 = vst [vmem:[%s1342 + $0x61] sm:$0xff] %v1320
      %1350 = vst [vmem:[%s1342 + $0x71] sm:$0xff] %v1321
      %v1351 = vld [vmem:[#allocation2] sm:$0xff]
      %v1352 = vld [vmem:[#allocation2 + $0x10] sm:$0xff]
      %v1353 = vld [vmem:[#allocation2 + $0x20] sm:$0xff]
      %v1354 = vld [vmem:[#allocation2 + $0x30] sm:$0xff]
      %v1355 = vld [vmem:[#allocation2 + $0x40] sm:$0xff]
      %v1356 = vld [vmem:[#allocation2 + $0x50] sm:$0xff]
      %v1357 = vld [vmem:[#allocation2 + $0x60] sm:$0xff]
      %v1358 = vld [vmem:[#allocation2 + $0x70] sm:$0xff]
      %v1359 = vpack.c.bf16 %v1352, %v1351
      %v1360 = vpack.c.bf16 %v1354, %v1353
      %v1361 = vpack.c.bf16 %v1356, %v1355
      %v1362 = vpack.c.bf16 %v1358, %v1357
      %v1363 = vld [vmem:[%s4] sm:$0xf]
      %v1364 = vld [vmem:[%s4 + $0x4] sm:$0xf]
      %v1365 = vld [vmem:[%s4 + $0x8] sm:$0xf]
      %v1366 = vld [vmem:[%s4 + $0xc] sm:$0xf]
      %v1367 = vld [vmem:[%s4 + $0x10] sm:$0xf]
      %v1368 = vld [vmem:[%s4 + $0x14] sm:$0xf]
      %v1369 = vld [vmem:[%s4 + $0x18] sm:$0xf]
      %v1370 = vld [vmem:[%s4 + $0x1c] sm:$0xf]
      %v1371 = vld [vmem:[%s4 + $0x20] sm:$0xf]
      %v1372 = vld [vmem:[%s4 + $0x24] sm:$0xf]
      %v1373 = vld [vmem:[%s4 + $0x28] sm:$0xf]
      %v1374 = vld [vmem:[%s4 + $0x2c] sm:$0xf]
      %v1375 = vld [vmem:[%s4 + $0x30] sm:$0xf]
      %v1376 = vld [vmem:[%s4 + $0x34] sm:$0xf]
      %v1377 = vld [vmem:[%s4 + $0x38] sm:$0xf]
      %v1378 = vld [vmem:[%s4 + $0x3c] sm:$0xf]
      %v1379 = vld [vmem:[#allocation2 + $0x1] sm:$0xff]
      %v1380 = vld [vmem:[#allocation2 + $0x11] sm:$0xff]
      %v1381 = vld [vmem:[#allocation2 + $0x21] sm:$0xff]
      %v1382 = vld [vmem:[#allocation2 + $0x31] sm:$0xff]
      %v1383 = vld [vmem:[#allocation2 + $0x41] sm:$0xff]
      %v1384 = vld [vmem:[#allocation2 + $0x51] sm:$0xff]
      %v1385 = vld [vmem:[#allocation2 + $0x61] sm:$0xff]
      %v1386 = vld [vmem:[#allocation2 + $0x71] sm:$0xff]
      %v1387 = vpack.c.bf16 %v1380, %v1379
      %v1388 = vpack.c.bf16 %v1382, %v1381
      %v1389 = vpack.c.bf16 %v1384, %v1383
      %v1390 = vpack.c.bf16 %v1386, %v1385
      %s1391 = scalar_lea.vmem %s4, 64
      %v1392 = vld [vmem:[%s1391] sm:$0xf]
      %v1393 = vld [vmem:[%s1391 + $0x4] sm:$0xf]
      %v1394 = vld [vmem:[%s1391 + $0x8] sm:$0xf]
      %v1395 = vld [vmem:[%s1391 + $0xc] sm:$0xf]
      %v1396 = vld [vmem:[%s1391 + $0x10] sm:$0xf]
      %v1397 = vld [vmem:[%s1391 + $0x14] sm:$0xf]
      %v1398 = vld [vmem:[%s1391 + $0x18] sm:$0xf]
      %v1399 = vld [vmem:[%s1391 + $0x1c] sm:$0xf]
      %v1400 = vld [vmem:[%s1391 + $0x20] sm:$0xf]
      %v1401 = vld [vmem:[%s1391 + $0x24] sm:$0xf]
      %v1402 = vld [vmem:[%s1391 + $0x28] sm:$0xf]
      %v1403 = vld [vmem:[%s1391 + $0x2c] sm:$0xf]
      %v1404 = vld [vmem:[%s1391 + $0x30] sm:$0xf]
      %v1405 = vld [vmem:[%s1391 + $0x34] sm:$0xf]
      %v1406 = vld [vmem:[%s1391 + $0x38] sm:$0xf]
      %v1407 = vld [vmem:[%s1391 + $0x3c] sm:$0xf]
      %v1424 = vunpack.c.l.b16 %v1392
      %v1425 = vunpack.c.l.b16 %v1393
      %v1426 = vunpack.c.l.b16 %v1394
      %v1427 = vunpack.c.l.b16 %v1395
      %v1428 = vunpack.c.l.b16 %v1396
      %v1429 = vunpack.c.l.b16 %v1397
      %v1430 = vunpack.c.l.b16 %v1398
      %v1431 = vunpack.c.l.b16 %v1399
      %v1432 = vunpack.c.l.b16 %v1400
      %v1433 = vunpack.c.l.b16 %v1401
      %v1434 = vunpack.c.l.b16 %v1402
      %v1435 = vunpack.c.l.b16 %v1403
      %v1436 = vunpack.c.l.b16 %v1404
      %v1437 = vunpack.c.l.b16 %v1405
      %v1438 = vunpack.c.l.b16 %v1406
      %v1439 = vunpack.c.l.b16 %v1407
      %v1440 = vpack.c.b16 %v1425, %v1424
      %v1441 = vpack.c.b16 %v1427, %v1426
      %v1442 = vpack.c.b16 %v1429, %v1428
      %v1443 = vpack.c.b16 %v1431, %v1430
      %v1444 = vpack.c.b16 %v1433, %v1432
      %v1445 = vpack.c.b16 %v1435, %v1434
      %v1446 = vpack.c.b16 %v1437, %v1436
      %v1447 = vpack.c.b16 %v1439, %v1438
      %1456 = vmatpush.bf16.msra.mxu0 %v1447
      %1457 = vmatpush.bf16.msra.mxu0 %v1446
      %1458 = vmatpush.bf16.msra.mxu0 %v1445
      %1459 = vmatpush.bf16.msra.mxu0 %v1444
      %1460 = vmatpush.bf16.msra.mxu0 %v1443
      %1461 = vmatpush.bf16.msra.mxu0 %v1442
      %1462 = vmatpush.bf16.msra.mxu0 %v1441
      %1463 = vmatpush.bf16.msra.mxu0 %v1440
      %1464 = vmatmul.bf16.gmra.mxu0 %v1387
      %v1465 = vpop.f32.mrf.mxu0
      %v1466 = vadd.f32 0.0, %v1465
      %v1467 = vpop.f32.mrf.mxu0
      %v1468 = vadd.f32 0.0, %v1467
      %1469 = vmatmul.bf16.gmra.mxu0 %v1388
      %v1470 = vpop.f32.mrf.mxu0
      %v1471 = vadd.f32 0.0, %v1470
      %v1472 = vpop.f32.mrf.mxu0
      %v1473 = vadd.f32 0.0, %v1472
      %1474 = vmatmul.bf16.gmra.mxu0 %v1389
      %v1475 = vpop.f32.mrf.mxu0
      %v1476 = vadd.f32 0.0, %v1475
      %v1477 = vpop.f32.mrf.mxu0
      %v1478 = vadd.f32 0.0, %v1477
      %1479 = vmatmul.bf16.gmra.mxu0 %v1390
      %v1480 = vpop.f32.mrf.mxu0
      %v1481 = vadd.f32 0.0, %v1480
      %v1482 = vpop.f32.mrf.mxu0
      %v1483 = vadd.f32 0.0, %v1482
      %1484 = vdwg.mxu0
      %v1501 = vunpack.c.l.b16 %v1363
      %v1502 = vunpack.c.l.b16 %v1364
      %v1503 = vunpack.c.l.b16 %v1365
      %v1504 = vunpack.c.l.b16 %v1366
      %v1505 = vunpack.c.l.b16 %v1367
      %v1506 = vunpack.c.l.b16 %v1368
      %v1507 = vunpack.c.l.b16 %v1369
      %v1508 = vunpack.c.l.b16 %v1370
      %v1509 = vunpack.c.l.b16 %v1371
      %v1510 = vunpack.c.l.b16 %v1372
      %v1511 = vunpack.c.l.b16 %v1373
      %v1512 = vunpack.c.l.b16 %v1374
      %v1513 = vunpack.c.l.b16 %v1375
      %v1514 = vunpack.c.l.b16 %v1376
      %v1515 = vunpack.c.l.b16 %v1377
      %v1516 = vunpack.c.l.b16 %v1378
      %v1517 = vpack.c.b16 %v1502, %v1501
      %v1518 = vpack.c.b16 %v1504, %v1503
      %v1519 = vpack.c.b16 %v1506, %v1505
      %v1520 = vpack.c.b16 %v1508, %v1507
      %v1521 = vpack.c.b16 %v1510, %v1509
      %v1522 = vpack.c.b16 %v1512, %v1511
      %v1523 = vpack.c.b16 %v1514, %v1513
      %v1524 = vpack.c.b16 %v1516, %v1515
      %1533 = vmatpush.bf16.msra.mxu0 %v1524
      %1534 = vmatpush.bf16.msra.mxu0 %v1523
      %1535 = vmatpush.bf16.msra.mxu0 %v1522
      %1536 = vmatpush.bf16.msra.mxu0 %v1521
      %1537 = vmatpush.bf16.msra.mxu0 %v1520
      %1538 = vmatpush.bf16.msra.mxu0 %v1519
      %1539 = vmatpush.bf16.msra.mxu0 %v1518
      %1540 = vmatpush.bf16.msra.mxu0 %v1517
      %1541 = vmatmul.bf16.gmra.mxu0 %v1359
      %v1542 = vpop.f32.mrf.mxu0
      %v1543 = vadd.f32 %v1466, %v1542
      %v1544 = vpop.f32.mrf.mxu0
      %v1545 = vadd.f32 %v1468, %v1544
      %1546 = vmatmul.bf16.gmra.mxu0 %v1360
      %v1547 = vpop.f32.mrf.mxu0
      %v1548 = vadd.f32 %v1471, %v1547
      %v1549 = vpop.f32.mrf.mxu0
      %v1550 = vadd.f32 %v1473, %v1549
      %1551 = vmatmul.bf16.gmra.mxu0 %v1361
      %v1552 = vpop.f32.mrf.mxu0
      %v1553 = vadd.f32 %v1476, %v1552
      %v1554 = vpop.f32.mrf.mxu0
      %v1555 = vadd.f32 %v1478, %v1554
      %1556 = vmatmul.bf16.gmra.mxu0 %v1362
      %v1557 = vpop.f32.mrf.mxu0
      %v1558 = vadd.f32 %v1481, %v1557
      %v1559 = vpop.f32.mrf.mxu0
      %v1560 = vadd.f32 %v1483, %v1559
      %1561 = vdwg.mxu0
      %v1562 = vld [vmem:[#allocation2 + $0x2] sm:$0xff]
      %v1563 = vld [vmem:[#allocation2 + $0x12] sm:$0xff]
      %v1564 = vld [vmem:[#allocation2 + $0x22] sm:$0xff]
      %v1565 = vld [vmem:[#allocation2 + $0x32] sm:$0xff]
      %v1566 = vld [vmem:[#allocation2 + $0x42] sm:$0xff]
      %v1567 = vld [vmem:[#allocation2 + $0x52] sm:$0xff]
      %v1568 = vld [vmem:[#allocation2 + $0x62] sm:$0xff]
      %v1569 = vld [vmem:[#allocation2 + $0x72] sm:$0xff]
      %v1570 = vpack.c.bf16 %v1563, %v1562
      %v1571 = vpack.c.bf16 %v1565, %v1564
      %v1572 = vpack.c.bf16 %v1567, %v1566
      %v1573 = vpack.c.bf16 %v1569, %v1568
      %s1574 = scalar_lea.vmem %s4, 128
      %v1575 = vld [vmem:[%s1574] sm:$0xf]
      %v1576 = vld [vmem:[%s1574 + $0x4] sm:$0xf]
      %v1577 = vld [vmem:[%s1574 + $0x8] sm:$0xf]
      %v1578 = vld [vmem:[%s1574 + $0xc] sm:$0xf]
      %v1579 = vld [vmem:[%s1574 + $0x10] sm:$0xf]
      %v1580 = vld [vmem:[%s1574 + $0x14] sm:$0xf]
      %v1581 = vld [vmem:[%s1574 + $0x18] sm:$0xf]
      %v1582 = vld [vmem:[%s1574 + $0x1c] sm:$0xf]
      %v1583 = vld [vmem:[%s1574 + $0x20] sm:$0xf]
      %v1584 = vld [vmem:[%s1574 + $0x24] sm:$0xf]
      %v1585 = vld [vmem:[%s1574 + $0x28] sm:$0xf]
      %v1586 = vld [vmem:[%s1574 + $0x2c] sm:$0xf]
      %v1587 = vld [vmem:[%s1574 + $0x30] sm:$0xf]
      %v1588 = vld [vmem:[%s1574 + $0x34] sm:$0xf]
      %v1589 = vld [vmem:[%s1574 + $0x38] sm:$0xf]
      %v1590 = vld [vmem:[%s1574 + $0x3c] sm:$0xf]
      %v1607 = vunpack.c.l.b16 %v1575
      %v1608 = vunpack.c.l.b16 %v1576
      %v1609 = vunpack.c.l.b16 %v1577
      %v1610 = vunpack.c.l.b16 %v1578
      %v1611 = vunpack.c.l.b16 %v1579
      %v1612 = vunpack.c.l.b16 %v1580
      %v1613 = vunpack.c.l.b16 %v1581
      %v1614 = vunpack.c.l.b16 %v1582
      %v1615 = vunpack.c.l.b16 %v1583
      %v1616 = vunpack.c.l.b16 %v1584
      %v1617 = vunpack.c.l.b16 %v1585
      %v1618 = vunpack.c.l.b16 %v1586
      %v1619 = vunpack.c.l.b16 %v1587
      %v1620 = vunpack.c.l.b16 %v1588
      %v1621 = vunpack.c.l.b16 %v1589
      %v1622 = vunpack.c.l.b16 %v1590
      %v1623 = vpack.c.b16 %v1608, %v1607
      %v1624 = vpack.c.b16 %v1610, %v1609
      %v1625 = vpack.c.b16 %v1612, %v1611
      %v1626 = vpack.c.b16 %v1614, %v1613
      %v1627 = vpack.c.b16 %v1616, %v1615
      %v1628 = vpack.c.b16 %v1618, %v1617
      %v1629 = vpack.c.b16 %v1620, %v1619
      %v1630 = vpack.c.b16 %v1622, %v1621
      %1639 = vmatpush.bf16.msra.mxu0 %v1630
      %1640 = vmatpush.bf16.msra.mxu0 %v1629
      %1641 = vmatpush.bf16.msra.mxu0 %v1628
      %1642 = vmatpush.bf16.msra.mxu0 %v1627
      %1643 = vmatpush.bf16.msra.mxu0 %v1626
      %1644 = vmatpush.bf16.msra.mxu0 %v1625
      %1645 = vmatpush.bf16.msra.mxu0 %v1624
      %1646 = vmatpush.bf16.msra.mxu0 %v1623
      %1647 = vmatmul.bf16.gmra.mxu0 %v1570
      %v1648 = vpop.f32.mrf.mxu0
      %v1649 = vadd.f32 0.0, %v1648
      %v1650 = vpop.f32.mrf.mxu0
      %v1651 = vadd.f32 0.0, %v1650
      %1652 = vmatmul.bf16.gmra.mxu0 %v1571
      %v1653 = vpop.f32.mrf.mxu0
      %v1654 = vadd.f32 0.0, %v1653
      %v1655 = vpop.f32.mrf.mxu0
      %v1656 = vadd.f32 0.0, %v1655
      %1657 = vmatmul.bf16.gmra.mxu0 %v1572
      %v1658 = vpop.f32.mrf.mxu0
      %v1659 = vadd.f32 0.0, %v1658
      %v1660 = vpop.f32.mrf.mxu0
      %v1661 = vadd.f32 0.0, %v1660
      %1662 = vmatmul.bf16.gmra.mxu0 %v1573
      %v1663 = vpop.f32.mrf.mxu0
      %v1664 = vadd.f32 0.0, %v1663
      %v1665 = vpop.f32.mrf.mxu0
      %v1666 = vadd.f32 0.0, %v1665
      %1667 = vdwg.mxu0
      %v1668 = vadd.f32 %v1543, %v1649
      %v1669 = vadd.f32 %v1545, %v1651
      %v1670 = vadd.f32 %v1548, %v1654
      %v1671 = vadd.f32 %v1550, %v1656
      %v1672 = vadd.f32 %v1553, %v1659
      %v1673 = vadd.f32 %v1555, %v1661
      %v1674 = vadd.f32 %v1558, %v1664
      %v1675 = vadd.f32 %v1560, %v1666
      %v1676 = vld [vmem:[%s1342] sm:$0xff]
      %v1677 = vld [vmem:[%s1342 + $0x10] sm:$0xff]
      %v1678 = vld [vmem:[%s1342 + $0x20] sm:$0xff]
      %v1679 = vld [vmem:[%s1342 + $0x30] sm:$0xff]
      %v1680 = vld [vmem:[%s1342 + $0x40] sm:$0xff]
      %v1681 = vld [vmem:[%s1342 + $0x50] sm:$0xff]
      %v1682 = vld [vmem:[%s1342 + $0x60] sm:$0xff]
      %v1683 = vld [vmem:[%s1342 + $0x70] sm:$0xff]
      %v1684 = vpack.c.bf16 %v1677, %v1676
      %v1685 = vpack.c.bf16 %v1679, %v1678
      %v1686 = vpack.c.bf16 %v1681, %v1680
      %v1687 = vpack.c.bf16 %v1683, %v1682
      %s1688 = scalar_lea.vmem %s4, 192
      %v1689 = vld [vmem:[%s1688] sm:$0xf]
      %v1690 = vld [vmem:[%s1688 + $0x4] sm:$0xf]
      %v1691 = vld [vmem:[%s1688 + $0x8] sm:$0xf]
      %v1692 = vld [vmem:[%s1688 + $0xc] sm:$0xf]
      %v1693 = vld [vmem:[%s1688 + $0x10] sm:$0xf]
      %v1694 = vld [vmem:[%s1688 + $0x14] sm:$0xf]
      %v1695 = vld [vmem:[%s1688 + $0x18] sm:$0xf]
      %v1696 = vld [vmem:[%s1688 + $0x1c] sm:$0xf]
      %v1697 = vld [vmem:[%s1688 + $0x20] sm:$0xf]
      %v1698 = vld [vmem:[%s1688 + $0x24] sm:$0xf]
      %v1699 = vld [vmem:[%s1688 + $0x28] sm:$0xf]
      %v1700 = vld [vmem:[%s1688 + $0x2c] sm:$0xf]
      %v1701 = vld [vmem:[%s1688 + $0x30] sm:$0xf]
      %v1702 = vld [vmem:[%s1688 + $0x34] sm:$0xf]
      %v1703 = vld [vmem:[%s1688 + $0x38] sm:$0xf]
      %v1704 = vld [vmem:[%s1688 + $0x3c] sm:$0xf]
      %v1721 = vunpack.c.l.b16 %v1689
      %v1722 = vunpack.c.l.b16 %v1690
      %v1723 = vunpack.c.l.b16 %v1691
      %v1724 = vunpack.c.l.b16 %v1692
      %v1725 = vunpack.c.l.b16 %v1693
      %v1726 = vunpack.c.l.b16 %v1694
      %v1727 = vunpack.c.l.b16 %v1695
      %v1728 = vunpack.c.l.b16 %v1696
      %v1729 = vunpack.c.l.b16 %v1697
      %v1730 = vunpack.c.l.b16 %v1698
      %v1731 = vunpack.c.l.b16 %v1699
      %v1732 = vunpack.c.l.b16 %v1700
      %v1733 = vunpack.c.l.b16 %v1701
      %v1734 = vunpack.c.l.b16 %v1702
      %v1735 = vunpack.c.l.b16 %v1703
      %v1736 = vunpack.c.l.b16 %v1704
      %v1737 = vpack.c.b16 %v1722, %v1721
      %v1738 = vpack.c.b16 %v1724, %v1723
      %v1739 = vpack.c.b16 %v1726, %v1725
      %v1740 = vpack.c.b16 %v1728, %v1727
      %v1741 = vpack.c.b16 %v1730, %v1729
      %v1742 = vpack.c.b16 %v1732, %v1731
      %v1743 = vpack.c.b16 %v1734, %v1733
      %v1744 = vpack.c.b16 %v1736, %v1735
      %1753 = vmatpush.bf16.msra.mxu0 %v1744
      %1754 = vmatpush.bf16.msra.mxu0 %v1743
      %1755 = vmatpush.bf16.msra.mxu0 %v1742
      %1756 = vmatpush.bf16.msra.mxu0 %v1741
      %1757 = vmatpush.bf16.msra.mxu0 %v1740
      %1758 = vmatpush.bf16.msra.mxu0 %v1739
      %1759 = vmatpush.bf16.msra.mxu0 %v1738
      %1760 = vmatpush.bf16.msra.mxu0 %v1737
      %1761 = vmatmul.bf16.gmra.mxu0 %v1684
      %v1762 = vpop.f32.mrf.mxu0
      %v1763 = vadd.f32 0.0, %v1762
      %v1764 = vpop.f32.mrf.mxu0
      %v1765 = vadd.f32 0.0, %v1764
      %1766 = vmatmul.bf16.gmra.mxu0 %v1685
      %v1767 = vpop.f32.mrf.mxu0
      %v1768 = vadd.f32 0.0, %v1767
      %v1769 = vpop.f32.mrf.mxu0
      %v1770 = vadd.f32 0.0, %v1769
      %1771 = vmatmul.bf16.gmra.mxu0 %v1686
      %v1772 = vpop.f32.mrf.mxu0
      %v1773 = vadd.f32 0.0, %v1772
      %v1774 = vpop.f32.mrf.mxu0
      %v1775 = vadd.f32 0.0, %v1774
      %1776 = vmatmul.bf16.gmra.mxu0 %v1687
      %v1777 = vpop.f32.mrf.mxu0
      %v1778 = vadd.f32 0.0, %v1777
      %v1779 = vpop.f32.mrf.mxu0
      %v1780 = vadd.f32 0.0, %v1779
      %1781 = vdwg.mxu0
      %v1782 = vadd.f32 %v1668, %v1763
      %v1783 = vadd.f32 %v1669, %v1765
      %v1784 = vadd.f32 %v1670, %v1768
      %v1785 = vadd.f32 %v1671, %v1770
      %v1786 = vadd.f32 %v1672, %v1773
      %v1787 = vadd.f32 %v1673, %v1775
      %v1788 = vadd.f32 %v1674, %v1778
      %v1789 = vadd.f32 %v1675, %v1780
      %v1790 = vld [vmem:[%s1342 + $0x1] sm:$0xff]
      %v1791 = vld [vmem:[%s1342 + $0x11] sm:$0xff]
      %v1792 = vld [vmem:[%s1342 + $0x21] sm:$0xff]
      %v1793 = vld [vmem:[%s1342 + $0x31] sm:$0xff]
      %v1794 = vld [vmem:[%s1342 + $0x41] sm:$0xff]
      %v1795 = vld [vmem:[%s1342 + $0x51] sm:$0xff]
      %v1796 = vld [vmem:[%s1342 + $0x61] sm:$0xff]
      %v1797 = vld [vmem:[%s1342 + $0x71] sm:$0xff]
      %v1798 = vpack.c.bf16 %v1791, %v1790
      %v1799 = vpack.c.bf16 %v1793, %v1792
      %v1800 = vpack.c.bf16 %v1795, %v1794
      %v1801 = vpack.c.bf16 %v1797, %v1796
      %s1802 = scalar_lea.vmem %s4, 256
      %v1803 = vld [vmem:[%s1802] sm:$0xf]
      %v1804 = vld [vmem:[%s1802 + $0x4] sm:$0xf]
      %v1805 = vld [vmem:[%s1802 + $0x8] sm:$0xf]
      %v1806 = vld [vmem:[%s1802 + $0xc] sm:$0xf]
      %v1807 = vld [vmem:[%s1802 + $0x10] sm:$0xf]
      %v1808 = vld [vmem:[%s1802 + $0x14] sm:$0xf]
      %v1809 = vld [vmem:[%s1802 + $0x18] sm:$0xf]
      %v1810 = vld [vmem:[%s1802 + $0x1c] sm:$0xf]
      %v1811 = vld [vmem:[%s1802 + $0x20] sm:$0xf]
      %v1812 = vld [vmem:[%s1802 + $0x24] sm:$0xf]
      %v1813 = vld [vmem:[%s1802 + $0x28] sm:$0xf]
      %v1814 = vld [vmem:[%s1802 + $0x2c] sm:$0xf]
      %v1815 = vld [vmem:[%s1802 + $0x30] sm:$0xf]
      %v1816 = vld [vmem:[%s1802 + $0x34] sm:$0xf]
      %v1817 = vld [vmem:[%s1802 + $0x38] sm:$0xf]
      %v1818 = vld [vmem:[%s1802 + $0x3c] sm:$0xf]
      %v1835 = vunpack.c.l.b16 %v1803
      %v1836 = vunpack.c.l.b16 %v1804
      %v1837 = vunpack.c.l.b16 %v1805
      %v1838 = vunpack.c.l.b16 %v1806
      %v1839 = vunpack.c.l.b16 %v1807
      %v1840 = vunpack.c.l.b16 %v1808
      %v1841 = vunpack.c.l.b16 %v1809
      %v1842 = vunpack.c.l.b16 %v1810
      %v1843 = vunpack.c.l.b16 %v1811
      %v1844 = vunpack.c.l.b16 %v1812
      %v1845 = vunpack.c.l.b16 %v1813
      %v1846 = vunpack.c.l.b16 %v1814
      %v1847 = vunpack.c.l.b16 %v1815
      %v1848 = vunpack.c.l.b16 %v1816
      %v1849 = vunpack.c.l.b16 %v1817
      %v1850 = vunpack.c.l.b16 %v1818
      %v1851 = vpack.c.b16 %v1836, %v1835
      %v1852 = vpack.c.b16 %v1838, %v1837
      %v1853 = vpack.c.b16 %v1840, %v1839
      %v1854 = vpack.c.b16 %v1842, %v1841
      %v1855 = vpack.c.b16 %v1844, %v1843
      %v1856 = vpack.c.b16 %v1846, %v1845
      %v1857 = vpack.c.b16 %v1848, %v1847
      %v1858 = vpack.c.b16 %v1850, %v1849
      %1867 = vmatpush.bf16.msra.mxu0 %v1858
      %1868 = vmatpush.bf16.msra.mxu0 %v1857
      %1869 = vmatpush.bf16.msra.mxu0 %v1856
      %1870 = vmatpush.bf16.msra.mxu0 %v1855
      %1871 = vmatpush.bf16.msra.mxu0 %v1854
      %1872 = vmatpush.bf16.msra.mxu0 %v1853
      %1873 = vmatpush.bf16.msra.mxu0 %v1852
      %1874 = vmatpush.bf16.msra.mxu0 %v1851
      %1875 = vmatmul.bf16.gmra.mxu0 %v1798
      %v1876 = vpop.f32.mrf.mxu0
      %v1877 = vadd.f32 0.0, %v1876
      %v1878 = vpop.f32.mrf.mxu0
      %v1879 = vadd.f32 0.0, %v1878
      %1880 = vmatmul.bf16.gmra.mxu0 %v1799
      %v1881 = vpop.f32.mrf.mxu0
      %v1882 = vadd.f32 0.0, %v1881
      %v1883 = vpop.f32.mrf.mxu0
      %v1884 = vadd.f32 0.0, %v1883
      %1885 = vmatmul.bf16.gmra.mxu0 %v1800
      %v1886 = vpop.f32.mrf.mxu0
      %v1887 = vadd.f32 0.0, %v1886
      %v1888 = vpop.f32.mrf.mxu0
      %v1889 = vadd.f32 0.0, %v1888
      %1890 = vmatmul.bf16.gmra.mxu0 %v1801
      %v1891 = vpop.f32.mrf.mxu0
      %v1892 = vadd.f32 0.0, %v1891
      %v1893 = vpop.f32.mrf.mxu0
      %v1894 = vadd.f32 0.0, %v1893
      %1895 = vdwg.mxu0
      %v1896 = vadd.f32 %v1782, %v1877
      %v1897 = vadd.f32 %v1783, %v1879
      %v1898 = vadd.f32 %v1784, %v1882
      %v1899 = vadd.f32 %v1785, %v1884
      %v1900 = vadd.f32 %v1786, %v1887
      %v1901 = vadd.f32 %v1787, %v1889
      %v1902 = vadd.f32 %v1788, %v1892
      %v1903 = vadd.f32 %v1789, %v1894
      %v1904 = vld [vmem:[%s1342 + $0x2] sm:$0xff]
      %v1905 = vld [vmem:[%s1342 + $0x12] sm:$0xff]
      %v1906 = vld [vmem:[%s1342 + $0x22] sm:$0xff]
      %v1907 = vld [vmem:[%s1342 + $0x32] sm:$0xff]
      %v1908 = vld [vmem:[%s1342 + $0x42] sm:$0xff]
      %v1909 = vld [vmem:[%s1342 + $0x52] sm:$0xff]
      %v1910 = vld [vmem:[%s1342 + $0x62] sm:$0xff]
      %v1911 = vld [vmem:[%s1342 + $0x72] sm:$0xff]
      %v1912 = vpack.c.bf16 %v1905, %v1904
      %v1913 = vpack.c.bf16 %v1907, %v1906
      %v1914 = vpack.c.bf16 %v1909, %v1908
      %v1915 = vpack.c.bf16 %v1911, %v1910
      %s1916 = scalar_lea.vmem %s4, 320
      %v1917 = vld [vmem:[%s1916] sm:$0xf]
      %v1918 = vld [vmem:[%s1916 + $0x4] sm:$0xf]
      %v1919 = vld [vmem:[%s1916 + $0x8] sm:$0xf]
      %v1920 = vld [vmem:[%s1916 + $0xc] sm:$0xf]
      %v1921 = vld [vmem:[%s1916 + $0x10] sm:$0xf]
      %v1922 = vld [vmem:[%s1916 + $0x14] sm:$0xf]
      %v1923 = vld [vmem:[%s1916 + $0x18] sm:$0xf]
      %v1924 = vld [vmem:[%s1916 + $0x1c] sm:$0xf]
      %v1925 = vld [vmem:[%s1916 + $0x20] sm:$0xf]
      %v1926 = vld [vmem:[%s1916 + $0x24] sm:$0xf]
      %v1927 = vld [vmem:[%s1916 + $0x28] sm:$0xf]
      %v1928 = vld [vmem:[%s1916 + $0x2c] sm:$0xf]
      %v1929 = vld [vmem:[%s1916 + $0x30] sm:$0xf]
      %v1930 = vld [vmem:[%s1916 + $0x34] sm:$0xf]
      %v1931 = vld [vmem:[%s1916 + $0x38] sm:$0xf]
      %v1932 = vld [vmem:[%s1916 + $0x3c] sm:$0xf]
      %v1949 = vunpack.c.l.b16 %v1917
      %v1950 = vunpack.c.l.b16 %v1918
      %v1951 = vunpack.c.l.b16 %v1919
      %v1952 = vunpack.c.l.b16 %v1920
      %v1953 = vunpack.c.l.b16 %v1921
      %v1954 = vunpack.c.l.b16 %v1922
      %v1955 = vunpack.c.l.b16 %v1923
      %v1956 = vunpack.c.l.b16 %v1924
      %v1957 = vunpack.c.l.b16 %v1925
      %v1958 = vunpack.c.l.b16 %v1926
      %v1959 = vunpack.c.l.b16 %v1927
      %v1960 = vunpack.c.l.b16 %v1928
      %v1961 = vunpack.c.l.b16 %v1929
      %v1962 = vunpack.c.l.b16 %v1930
      %v1963 = vunpack.c.l.b16 %v1931
      %v1964 = vunpack.c.l.b16 %v1932
      %v1965 = vpack.c.b16 %v1950, %v1949
      %v1966 = vpack.c.b16 %v1952, %v1951
      %v1967 = vpack.c.b16 %v1954, %v1953
      %v1968 = vpack.c.b16 %v1956, %v1955
      %v1969 = vpack.c.b16 %v1958, %v1957
      %v1970 = vpack.c.b16 %v1960, %v1959
      %v1971 = vpack.c.b16 %v1962, %v1961
      %v1972 = vpack.c.b16 %v1964, %v1963
      %1981 = vmatpush.bf16.msra.mxu0 %v1972
      %1982 = vmatpush.bf16.msra.mxu0 %v1971
      %1983 = vmatpush.bf16.msra.mxu0 %v1970
      %1984 = vmatpush.bf16.msra.mxu0 %v1969
      %1985 = vmatpush.bf16.msra.mxu0 %v1968
      %1986 = vmatpush.bf16.msra.mxu0 %v1967
      %1987 = vmatpush.bf16.msra.mxu0 %v1966
      %1988 = vmatpush.bf16.msra.mxu0 %v1965
      %1989 = vmatmul.bf16.gmra.mxu0 %v1912
      %v1990 = vpop.f32.mrf.mxu0
      %v1991 = vadd.f32 0.0, %v1990
      %v1992 = vpop.f32.mrf.mxu0
      %v1993 = vadd.f32 0.0, %v1992
      %1994 = vmatmul.bf16.gmra.mxu0 %v1913
      %v1995 = vpop.f32.mrf.mxu0
      %v1996 = vadd.f32 0.0, %v1995
      %v1997 = vpop.f32.mrf.mxu0
      %v1998 = vadd.f32 0.0, %v1997
      %1999 = vmatmul.bf16.gmra.mxu0 %v1914
      %v2000 = vpop.f32.mrf.mxu0
      %v2001 = vadd.f32 0.0, %v2000
      %v2002 = vpop.f32.mrf.mxu0
      %v2003 = vadd.f32 0.0, %v2002
      %2004 = vmatmul.bf16.gmra.mxu0 %v1915
      %v2005 = vpop.f32.mrf.mxu0
      %v2006 = vadd.f32 0.0, %v2005
      %v2007 = vpop.f32.mrf.mxu0
      %v2008 = vadd.f32 0.0, %v2007
      %2009 = vdwg.mxu0
      %v2010 = vadd.f32 %v1896, %v1991
      %v2011 = vadd.f32 %v1897, %v1993
      %v2012 = vadd.f32 %v1898, %v1996
      %v2013 = vadd.f32 %v1899, %v1998
      %v2014 = vadd.f32 %v1900, %v2001
      %v2015 = vadd.f32 %v1901, %v2003
      %v2016 = vadd.f32 %v1902, %v2006
      %v2017 = vadd.f32 %v1903, %v2008
      %s2018 = scalar_lea.vmem [#allocation2], 32
      %v2019 = vld [vmem:[%s2018] sm:$0xff]
      %v2020 = vld [vmem:[%s2018 + $0x10] sm:$0xff]
      %v2021 = vld [vmem:[%s2018 + $0x20] sm:$0xff]
      %v2022 = vld [vmem:[%s2018 + $0x30] sm:$0xff]
      %v2023 = vld [vmem:[%s2018 + $0x40] sm:$0xff]
      %v2024 = vld [vmem:[%s2018 + $0x50] sm:$0xff]
      %v2025 = vld [vmem:[%s2018 + $0x60] sm:$0xff]
      %v2026 = vld [vmem:[%s2018 + $0x70] sm:$0xff]
      %v2027 = vpack.c.bf16 %v2020, %v2019
      %v2028 = vpack.c.bf16 %v2022, %v2021
      %v2029 = vpack.c.bf16 %v2024, %v2023
      %v2030 = vpack.c.bf16 %v2026, %v2025
      %s2031 = scalar_lea.vmem %s4, 384
      %v2032 = vld [vmem:[%s2031] sm:$0xf]
      %v2033 = vld [vmem:[%s2031 + $0x4] sm:$0xf]
      %v2034 = vld [vmem:[%s2031 + $0x8] sm:$0xf]
      %v2035 = vld [vmem:[%s2031 + $0xc] sm:$0xf]
      %v2036 = vld [vmem:[%s2031 + $0x10] sm:$0xf]
      %v2037 = vld [vmem:[%s2031 + $0x14] sm:$0xf]
      %v2038 = vld [vmem:[%s2031 + $0x18] sm:$0xf]
      %v2039 = vld [vmem:[%s2031 + $0x1c] sm:$0xf]
      %v2040 = vld [vmem:[%s2031 + $0x20] sm:$0xf]
      %v2041 = vld [vmem:[%s2031 + $0x24] sm:$0xf]
      %v2042 = vld [vmem:[%s2031 + $0x28] sm:$0xf]
      %v2043 = vld [vmem:[%s2031 + $0x2c] sm:$0xf]
      %v2044 = vld [vmem:[%s2031 + $0x30] sm:$0xf]
      %v2045 = vld [vmem:[%s2031 + $0x34] sm:$0xf]
      %v2046 = vld [vmem:[%s2031 + $0x38] sm:$0xf]
      %v2047 = vld [vmem:[%s2031 + $0x3c] sm:$0xf]
      %v2064 = vunpack.c.l.b16 %v2032
      %v2065 = vunpack.c.l.b16 %v2033
      %v2066 = vunpack.c.l.b16 %v2034
      %v2067 = vunpack.c.l.b16 %v2035
      %v2068 = vunpack.c.l.b16 %v2036
      %v2069 = vunpack.c.l.b16 %v2037
      %v2070 = vunpack.c.l.b16 %v2038
      %v2071 = vunpack.c.l.b16 %v2039
      %v2072 = vunpack.c.l.b16 %v2040
      %v2073 = vunpack.c.l.b16 %v2041
      %v2074 = vunpack.c.l.b16 %v2042
      %v2075 = vunpack.c.l.b16 %v2043
      %v2076 = vunpack.c.l.b16 %v2044
      %v2077 = vunpack.c.l.b16 %v2045
      %v2078 = vunpack.c.l.b16 %v2046
      %v2079 = vunpack.c.l.b16 %v2047
      %v2080 = vpack.c.b16 %v2065, %v2064
      %v2081 = vpack.c.b16 %v2067, %v2066
      %v2082 = vpack.c.b16 %v2069, %v2068
      %v2083 = vpack.c.b16 %v2071, %v2070
      %v2084 = vpack.c.b16 %v2073, %v2072
      %v2085 = vpack.c.b16 %v2075, %v2074
      %v2086 = vpack.c.b16 %v2077, %v2076
      %v2087 = vpack.c.b16 %v2079, %v2078
      %2096 = vmatpush.bf16.msra.mxu0 %v2087
      %2097 = vmatpush.bf16.msra.mxu0 %v2086
      %2098 = vmatpush.bf16.msra.mxu0 %v2085
      %2099 = vmatpush.bf16.msra.mxu0 %v2084
      %2100 = vmatpush.bf16.msra.mxu0 %v2083
      %2101 = vmatpush.bf16.msra.mxu0 %v2082
      %2102 = vmatpush.bf16.msra.mxu0 %v2081
      %2103 = vmatpush.bf16.msra.mxu0 %v2080
      %2104 = vmatmul.bf16.gmra.mxu0 %v2027
      %v2105 = vpop.f32.mrf.mxu0
      %v2106 = vadd.f32 0.0, %v2105
      %v2107 = vpop.f32.mrf.mxu0
      %v2108 = vadd.f32 0.0, %v2107
      %2109 = vmatmul.bf16.gmra.mxu0 %v2028
      %v2110 = vpop.f32.mrf.mxu0
      %v2111 = vadd.f32 0.0, %v2110
      %v2112 = vpop.f32.mrf.mxu0
      %v2113 = vadd.f32 0.0, %v2112
      %2114 = vmatmul.bf16.gmra.mxu0 %v2029
      %v2115 = vpop.f32.mrf.mxu0
      %v2116 = vadd.f32 0.0, %v2115
      %v2117 = vpop.f32.mrf.mxu0
      %v2118 = vadd.f32 0.0, %v2117
      %2119 = vmatmul.bf16.gmra.mxu0 %v2030
      %v2120 = vpop.f32.mrf.mxu0
      %v2121 = vadd.f32 0.0, %v2120
      %v2122 = vpop.f32.mrf.mxu0
      %v2123 = vadd.f32 0.0, %v2122
      %2124 = vdwg.mxu0
      %v2125 = vadd.f32 %v2010, %v2106
      %v2126 = vadd.f32 %v2011, %v2108
      %v2127 = vadd.f32 %v2012, %v2111
      %v2128 = vadd.f32 %v2013, %v2113
      %v2129 = vadd.f32 %v2014, %v2116
      %v2130 = vadd.f32 %v2015, %v2118
      %v2131 = vadd.f32 %v2016, %v2121
      %v2132 = vadd.f32 %v2017, %v2123
      %v2133 = vld [vmem:[%s2018 + $0x1] sm:$0xff]
      %v2134 = vld [vmem:[%s2018 + $0x11] sm:$0xff]
      %v2135 = vld [vmem:[%s2018 + $0x21] sm:$0xff]
      %v2136 = vld [vmem:[%s2018 + $0x31] sm:$0xff]
      %v2137 = vld [vmem:[%s2018 + $0x41] sm:$0xff]
      %v2138 = vld [vmem:[%s2018 + $0x51] sm:$0xff]
      %v2139 = vld [vmem:[%s2018 + $0x61] sm:$0xff]
      %v2140 = vld [vmem:[%s2018 + $0x71] sm:$0xff]
      %v2141 = vpack.c.bf16 %v2134, %v2133
      %v2142 = vpack.c.bf16 %v2136, %v2135
      %v2143 = vpack.c.bf16 %v2138, %v2137
      %v2144 = vpack.c.bf16 %v2140, %v2139
      %s2145 = scalar_lea.vmem %s4, 448
      %v2146 = vld [vmem:[%s2145] sm:$0xf]
      %v2147 = vld [vmem:[%s2145 + $0x4] sm:$0xf]
      %v2148 = vld [vmem:[%s2145 + $0x8] sm:$0xf]
      %v2149 = vld [vmem:[%s2145 + $0xc] sm:$0xf]
      %v2150 = vld [vmem:[%s2145 + $0x10] sm:$0xf]
      %v2151 = vld [vmem:[%s2145 + $0x14] sm:$0xf]
      %v2152 = vld [vmem:[%s2145 + $0x18] sm:$0xf]
      %v2153 = vld [vmem:[%s2145 + $0x1c] sm:$0xf]
      %v2154 = vld [vmem:[%s2145 + $0x20] sm:$0xf]
      %v2155 = vld [vmem:[%s2145 + $0x24] sm:$0xf]
      %v2156 = vld [vmem:[%s2145 + $0x28] sm:$0xf]
      %v2157 = vld [vmem:[%s2145 + $0x2c] sm:$0xf]
      %v2158 = vld [vmem:[%s2145 + $0x30] sm:$0xf]
      %v2159 = vld [vmem:[%s2145 + $0x34] sm:$0xf]
      %v2160 = vld [vmem:[%s2145 + $0x38] sm:$0xf]
      %v2161 = vld [vmem:[%s2145 + $0x3c] sm:$0xf]
      %v2178 = vunpack.c.l.b16 %v2146
      %v2179 = vunpack.c.l.b16 %v2147
      %v2180 = vunpack.c.l.b16 %v2148
      %v2181 = vunpack.c.l.b16 %v2149
      %v2182 = vunpack.c.l.b16 %v2150
      %v2183 = vunpack.c.l.b16 %v2151
      %v2184 = vunpack.c.l.b16 %v2152
      %v2185 = vunpack.c.l.b16 %v2153
      %v2186 = vunpack.c.l.b16 %v2154
      %v2187 = vunpack.c.l.b16 %v2155
      %v2188 = vunpack.c.l.b16 %v2156
      %v2189 = vunpack.c.l.b16 %v2157
      %v2190 = vunpack.c.l.b16 %v2158
      %v2191 = vunpack.c.l.b16 %v2159
      %v2192 = vunpack.c.l.b16 %v2160
      %v2193 = vunpack.c.l.b16 %v2161
      %v2194 = vpack.c.b16 %v2179, %v2178
      %v2195 = vpack.c.b16 %v2181, %v2180
      %v2196 = vpack.c.b16 %v2183, %v2182
      %v2197 = vpack.c.b16 %v2185, %v2184
      %v2198 = vpack.c.b16 %v2187, %v2186
      %v2199 = vpack.c.b16 %v2189, %v2188
      %v2200 = vpack.c.b16 %v2191, %v2190
      %v2201 = vpack.c.b16 %v2193, %v2192
      %2210 = vmatpush.bf16.msra.mxu0 %v2201
      %2211 = vmatpush.bf16.msra.mxu0 %v2200
      %2212 = vmatpush.bf16.msra.mxu0 %v2199
      %2213 = vmatpush.bf16.msra.mxu0 %v2198
      %2214 = vmatpush.bf16.msra.mxu0 %v2197
      %2215 = vmatpush.bf16.msra.mxu0 %v2196
      %2216 = vmatpush.bf16.msra.mxu0 %v2195
      %2217 = vmatpush.bf16.msra.mxu0 %v2194
      %2218 = vmatmul.bf16.gmra.mxu0 %v2141
      %v2219 = vpop.f32.mrf.mxu0
      %v2220 = vadd.f32 0.0, %v2219
      %v2221 = vpop.f32.mrf.mxu0
      %v2222 = vadd.f32 0.0, %v2221
      %2223 = vmatmul.bf16.gmra.mxu0 %v2142
      %v2224 = vpop.f32.mrf.mxu0
      %v2225 = vadd.f32 0.0, %v2224
      %v2226 = vpop.f32.mrf.mxu0
      %v2227 = vadd.f32 0.0, %v2226
      %2228 = vmatmul.bf16.gmra.mxu0 %v2143
      %v2229 = vpop.f32.mrf.mxu0
      %v2230 = vadd.f32 0.0, %v2229
      %v2231 = vpop.f32.mrf.mxu0
      %v2232 = vadd.f32 0.0, %v2231
      %2233 = vmatmul.bf16.gmra.mxu0 %v2144
      %v2234 = vpop.f32.mrf.mxu0
      %v2235 = vadd.f32 0.0, %v2234
      %v2236 = vpop.f32.mrf.mxu0
      %v2237 = vadd.f32 0.0, %v2236
      %2238 = vdwg.mxu0
      %v2239 = vadd.f32 %v2125, %v2220
      %v2240 = vadd.f32 %v2126, %v2222
      %v2241 = vadd.f32 %v2127, %v2225
      %v2242 = vadd.f32 %v2128, %v2227
      %v2243 = vadd.f32 %v2129, %v2230
      %v2244 = vadd.f32 %v2130, %v2232
      %v2245 = vadd.f32 %v2131, %v2235
      %v2246 = vadd.f32 %v2132, %v2237
      %v2247 = vld [vmem:[%s2018 + $0x2] sm:$0xff]
      %v2248 = vld [vmem:[%s2018 + $0x12] sm:$0xff]
      %v2249 = vld [vmem:[%s2018 + $0x22] sm:$0xff]
      %v2250 = vld [vmem:[%s2018 + $0x32] sm:$0xff]
      %v2251 = vld [vmem:[%s2018 + $0x42] sm:$0xff]
      %v2252 = vld [vmem:[%s2018 + $0x52] sm:$0xff]
      %v2253 = vld [vmem:[%s2018 + $0x62] sm:$0xff]
      %v2254 = vld [vmem:[%s2018 + $0x72] sm:$0xff]
      %v2255 = vpack.c.bf16 %v2248, %v2247
      %v2256 = vpack.c.bf16 %v2250, %v2249
      %v2257 = vpack.c.bf16 %v2252, %v2251
      %v2258 = vpack.c.bf16 %v2254, %v2253
      %s2259 = scalar_lea.vmem %s4, 512
      %v2260 = vld [vmem:[%s2259] sm:$0xf]
      %v2261 = vld [vmem:[%s2259 + $0x4] sm:$0xf]
      %v2262 = vld [vmem:[%s2259 + $0x8] sm:$0xf]
      %v2263 = vld [vmem:[%s2259 + $0xc] sm:$0xf]
      %v2264 = vld [vmem:[%s2259 + $0x10] sm:$0xf]
      %v2265 = vld [vmem:[%s2259 + $0x14] sm:$0xf]
      %v2266 = vld [vmem:[%s2259 + $0x18] sm:$0xf]
      %v2267 = vld [vmem:[%s2259 + $0x1c] sm:$0xf]
      %v2268 = vld [vmem:[%s2259 + $0x20] sm:$0xf]
      %v2269 = vld [vmem:[%s2259 + $0x24] sm:$0xf]
      %v2270 = vld [vmem:[%s2259 + $0x28] sm:$0xf]
      %v2271 = vld [vmem:[%s2259 + $0x2c] sm:$0xf]
      %v2272 = vld [vmem:[%s2259 + $0x30] sm:$0xf]
      %v2273 = vld [vmem:[%s2259 + $0x34] sm:$0xf]
      %v2274 = vld [vmem:[%s2259 + $0x38] sm:$0xf]
      %v2275 = vld [vmem:[%s2259 + $0x3c] sm:$0xf]
      %v2292 = vunpack.c.l.b16 %v2260
      %v2293 = vunpack.c.l.b16 %v2261
      %v2294 = vunpack.c.l.b16 %v2262
      %v2295 = vunpack.c.l.b16 %v2263
      %v2296 = vunpack.c.l.b16 %v2264
      %v2297 = vunpack.c.l.b16 %v2265
      %v2298 = vunpack.c.l.b16 %v2266
      %v2299 = vunpack.c.l.b16 %v2267
      %v2300 = vunpack.c.l.b16 %v2268
      %v2301 = vunpack.c.l.b16 %v2269
      %v2302 = vunpack.c.l.b16 %v2270
      %v2303 = vunpack.c.l.b16 %v2271
      %v2304 = vunpack.c.l.b16 %v2272
      %v2305 = vunpack.c.l.b16 %v2273
      %v2306 = vunpack.c.l.b16 %v2274
      %v2307 = vunpack.c.l.b16 %v2275
      %v2308 = vpack.c.b16 %v2293, %v2292
      %v2309 = vpack.c.b16 %v2295, %v2294
      %v2310 = vpack.c.b16 %v2297, %v2296
      %v2311 = vpack.c.b16 %v2299, %v2298
      %v2312 = vpack.c.b16 %v2301, %v2300
      %v2313 = vpack.c.b16 %v2303, %v2302
      %v2314 = vpack.c.b16 %v2305, %v2304
      %v2315 = vpack.c.b16 %v2307, %v2306
      %2324 = vmatpush.bf16.msra.mxu0 %v2315
      %2325 = vmatpush.bf16.msra.mxu0 %v2314
      %2326 = vmatpush.bf16.msra.mxu0 %v2313
      %2327 = vmatpush.bf16.msra.mxu0 %v2312
      %2328 = vmatpush.bf16.msra.mxu0 %v2311
      %2329 = vmatpush.bf16.msra.mxu0 %v2310
      %2330 = vmatpush.bf16.msra.mxu0 %v2309
      %2331 = vmatpush.bf16.msra.mxu0 %v2308
      %2332 = vmatmul.bf16.gmra.mxu0 %v2255
      %v2333 = vpop.f32.mrf.mxu0
      %v2334 = vadd.f32 0.0, %v2333
      %v2335 = vpop.f32.mrf.mxu0
      %v2336 = vadd.f32 0.0, %v2335
      %2337 = vmatmul.bf16.gmra.mxu0 %v2256
      %v2338 = vpop.f32.mrf.mxu0
      %v2339 = vadd.f32 0.0, %v2338
      %v2340 = vpop.f32.mrf.mxu0
      %v2341 = vadd.f32 0.0, %v2340
      %2342 = vmatmul.bf16.gmra.mxu0 %v2257
      %v2343 = vpop.f32.mrf.mxu0
      %v2344 = vadd.f32 0.0, %v2343
      %v2345 = vpop.f32.mrf.mxu0
      %v2346 = vadd.f32 0.0, %v2345
      %2347 = vmatmul.bf16.gmra.mxu0 %v2258
      %v2348 = vpop.f32.mrf.mxu0
      %v2349 = vadd.f32 0.0, %v2348
      %v2350 = vpop.f32.mrf.mxu0
      %v2351 = vadd.f32 0.0, %v2350
      %2352 = vdwg.mxu0
      %v2353 = vadd.f32 %v2239, %v2334
      %v2354 = vadd.f32 %v2240, %v2336
      %v2355 = vadd.f32 %v2241, %v2339
      %v2356 = vadd.f32 %v2242, %v2341
      %v2357 = vadd.f32 %v2243, %v2344
      %v2358 = vadd.f32 %v2244, %v2346
      %v2359 = vadd.f32 %v2245, %v2349
      %v2360 = vadd.f32 %v2246, %v2351
      %v2361 = vld [vmem:[%s5] sm:$0x1]
      %v2363 = vperm.slane %v2361, 0
      %v2365 = vmul.f32 %v2353, %v2363
      %v2366 = vmul.f32 %v2354, %v2363
      %v2367 = vmul.f32 %v2355, %v2363
      %v2368 = vmul.f32 %v2356, %v2363
      %v2369 = vmul.f32 %v2357, %v2363
      %v2370 = vmul.f32 %v2358, %v2363
      %v2371 = vmul.f32 %v2359, %v2363
      %v2372 = vmul.f32 %v2360, %v2363
      %v2373 = vld [vmem:[%s6] sm:$0x1]
      %v2375 = vperm.slane %v2373, 0
      %v2377 = vadd.f32 %v2365, %v2375
      %v2378 = vadd.f32 %v2366, %v2375
      %v2379 = vadd.f32 %v2367, %v2375
      %v2380 = vadd.f32 %v2368, %v2375
      %v2381 = vadd.f32 %v2369, %v2375
      %v2382 = vadd.f32 %v2370, %v2375
      %v2383 = vadd.f32 %v2371, %v2375
      %v2384 = vadd.f32 %v2372, %v2375
      %v2385 = vld [vmem:[%s604 + $0x1] sm:$0xff]
      %v2386 = vld [vmem:[%s604 + $0x11] sm:$0xff]
      %v2387 = vld [vmem:[%s604 + $0x21] sm:$0xff]
      %v2388 = vld [vmem:[%s604 + $0x31] sm:$0xff]
      %v2389 = vld [vmem:[%s604 + $0x41] sm:$0xff]
      %v2390 = vld [vmem:[%s604 + $0x51] sm:$0xff]
      %v2391 = vld [vmem:[%s604 + $0x61] sm:$0xff]
      %v2392 = vld [vmem:[%s604 + $0x71] sm:$0xff]
      %v2393 = vadd.f32 %v2377, %v2385
      %v2394 = vadd.f32 %v2378, %v2386
      %v2395 = vadd.f32 %v2379, %v2387
      %v2396 = vadd.f32 %v2380, %v2388
      %v2397 = vadd.f32 %v2381, %v2389
      %v2398 = vadd.f32 %v2382, %v2390
      %v2399 = vadd.f32 %v2383, %v2391
      %v2400 = vadd.f32 %v2384, %v2392
      %v2401 = vmax.f32 %v2393, 0.0
      %v2402 = vmax.f32 %v2394, 0.0
      %v2403 = vmax.f32 %v2395, 0.0
      %v2404 = vmax.f32 %v2396, 0.0
      %v2405 = vmax.f32 %v2397, 0.0
      %v2406 = vmax.f32 %v2398, 0.0
      %v2407 = vmax.f32 %v2399, 0.0
      %v2408 = vmax.f32 %v2400, 0.0
      %2409 = vst [vmem:[%s278] sm:$0xff] 0.0
      %2410 = vst [vmem:[%s278 + $0x8] sm:$0x3] 0.0
      %2411 = vst [vmem:[%s278 + $0x10] sm:$0xff] 0.0
      %2412 = vst [vmem:[%s278 + $0x18] sm:$0x3] 0.0
      %2413 = vst [vmem:[%s278 + $0x20] sm:$0xff] 0.0
      %2414 = vst [vmem:[%s278 + $0x28] sm:$0x3] 0.0
      %2415 = vst [vmem:[%s278 + $0x30] sm:$0xff] 0.0
      %2416 = vst [vmem:[%s278 + $0x38] sm:$0x3] 0.0
      %2417 = vst [vmem:[%s278 + $0x40] sm:$0xff] 0.0
      %2418 = vst [vmem:[%s278 + $0x48] sm:$0x3] 0.0
      %2419 = vst [vmem:[%s278 + $0x50] sm:$0xff] 0.0
      %2420 = vst [vmem:[%s278 + $0x58] sm:$0x3] 0.0
      %2421 = vst [vmem:[%s278 + $0x60] sm:$0xff] 0.0
      %2422 = vst [vmem:[%s278 + $0x68] sm:$0x3] 0.0
      %2423 = vst [vmem:[%s278 + $0x70] sm:$0xff] 0.0
      %2424 = vst [vmem:[%s278 + $0x78] sm:$0x3] 0.0
      %2425 = vst [vmem:[%s278 + $0x80] sm:$0xff] 0.0
      %2426 = vst [vmem:[%s278 + $0x88] sm:$0x3] 0.0
      %2427 = vst [vmem:[%s278 + $0x90] sm:$0xff] 0.0
      %2428 = vst [vmem:[%s278 + $0x98] sm:$0x3] 0.0
      %s2429 = scalar_lea.vmem %s278, 16
      %2430 = vst [vmem:[%s2429 + $0x1] sm:$0xff] %v2401
      %2431 = vst [vmem:[%s2429 + $0x11] sm:$0xff] %v2402
      %2432 = vst [vmem:[%s2429 + $0x21] sm:$0xff] %v2403
      %2433 = vst [vmem:[%s2429 + $0x31] sm:$0xff] %v2404
      %2434 = vst [vmem:[%s2429 + $0x41] sm:$0xff] %v2405
      %2435 = vst [vmem:[%s2429 + $0x51] sm:$0xff] %v2406
      %2436 = vst [vmem:[%s2429 + $0x61] sm:$0xff] %v2407
      %2437 = vst [vmem:[%s2429 + $0x71] sm:$0xff] %v2408
      %p2438 = scmp.lt.s32.totalorder %s18, 1
      %s2439 = scalar_select %p2438, %s18, 1
      %s2440 = smul.addr %s2439, 20
      %s2441 = smul.addr %s2440, 8
      %s2442 = scalar_lea.vmem %s7, %s2441
      // Predicated region
      $region49: #{resnet_forward_pallas.5} parent=47 // pred_check
        %p2443 = pneg %p188
      $region50: #{resnet_forward_pallas.5} parent=47 // pred_check_branch
        %2445 = sbr.rel (%p2443) target = $region52
      $region51: #{resnet_forward_pallas.5} parent=47 // pred_region
        _
      $region52: #{resnet_forward_pallas.5} parent=47 // pred_fallthru
        _
    $region48: #{resnet_forward_pallas.5} parent=5 // pred_fallthru
      _
    %p2446 = scmp.le.s32.totalorder 2, %s13
    // Predicated region
    $region53: #{resnet_forward_pallas.5} parent=5 // pred_check
      %p2447 = pneg %p2446
    $region54: #{resnet_forward_pallas.5} parent=5 // pred_check_branch
      %2449 = sbr.rel (%p2447) target = $region56
    $region55: #{resnet_forward_pallas.5} parent=5 // pred_region
      %s2450 = ssub.s32 %s13, 2
      // Predicated region
      $region57: #{resnet_forward_pallas.5} parent=55 // pred_check
        %p2451 = pneg %p194
      $region58: #{resnet_forward_pallas.5} parent=55 // pred_check_branch
        %2453 = sbr.rel (%p2451) target = $region60
      $region59: #{resnet_forward_pallas.5} parent=55 // pred_region
        %p2454 = scmp.lt.s32.totalorder %s19, 1
        %s2455 = scalar_select %p2454, %s19, 1
        %s2456 = smul.addr %s2455, 20
        %s2457 = smul.addr %s2456, 8
        %s2458 = scalar_lea.vmem %s7, %s2457
      $region60: #{resnet_forward_pallas.5} parent=55 // pred_fallthru
        _
    $region56: #{resnet_forward_pallas.5} parent=5 // pred_fallthru
      _
  $region6: #{resnet_forward_pallas.5} parent=0 // loop_footer
    %s17 = sadd.s32 1, %s13
  $region7: #{resnet_forward_pallas.5} parent=0 // loop_footer_branch
    %12 = sbr.rel target = $region3
  $region8: #{resnet_forward_pallas.5} parent=0 // loop_exit
    _

// kernel: resnet_forward_pallas.6
$region0: #{resnet_forward_pallas.6}
  #allocation0 [shape = 'u32[]', space=smem, size = 0x4, offset = 0x4, fixed_abs, tag = 'smem constant byte address 0x4 - core index']
  #allocation1 [shape = 'u32[72,128]{1,0:T(1,128)}', space=vmem, size = 0x9000, scoped, tag = 'internal scratch']
  #allocation2 [shape = 'f32[10,10,128]{2,1,0:T(8,128)}', space=vmem, size = 0x14000, scoped, tag = 'scratch operand']
  %s0 = inlined_call_operand.vmem [shape: f32[2,10,10,128], index: 0, kind: input, shape index: {}]
  %s1 = inlined_call_operand.vmem [shape: bf16[9,128,128], index: 1, kind: input, shape index: {}]
  %s2 = inlined_call_operand.vmem [shape: f32[1,128], index: 2, kind: input, shape index: {}]
  %s3 = inlined_call_operand.vmem [shape: f32[1,128], index: 3, kind: input, shape index: {}]
  %s4 = inlined_call_operand.vmem [shape: bf16[9,128,128], index: 4, kind: input, shape index: {}]
  %s5 = inlined_call_operand.vmem [shape: f32[1,128], index: 5, kind: input, shape index: {}]
  %s6 = inlined_call_operand.vmem [shape: f32[1,128], index: 6, kind: input, shape index: {}]
  %s7 = inlined_call_operand.vmem [shape: bf16[128,128], index: 7, kind: input, shape index: {}]
  %s8 = inlined_call_operand.vmem [shape: f32[1,128], index: 8, kind: input, shape index: {}]
  %s9 = inlined_call_operand.vmem [shape: f32[1,128], index: 9, kind: input, shape index: {}]
  %s10 = inlined_call_operand.vmem [shape: f32[2,10,10,128], index: 10, kind: output, shape index: {}]
  %s11 = sld [smem:[#allocation0]]
  $region73: #{resnet_forward_pallas.6} parent=0
    _
  %s13 = ssub.s32 1, %s11
  %s14 = scalar_select 0, %s13, %s11
  loop: start=0, step=1, limit=4
  $region2: #{resnet_forward_pallas.6} parent=0 // loop_pre_header
    _
  $region3: #{resnet_forward_pallas.6} parent=0 // loop_header
    %s16 = sphi 0, %s20
    %p17 = scmp.ge.s32.totalorder %s16, 4
    %s26 = sphi 0, %s28
    %s29 = sphi 0, %s26
    %s30 = sphi 0, %s29
    %s46 = sphi 0, %s30
    %s50 = sphi 0, %s50
    %s52 = sphi 0, %s50
    %s53 = sphi 0, %s52
    %s67 = sphi 0, %s53
    %s71 = sphi 0, %s71
    %s73 = sphi 0, %s71
    %s74 = sphi 0, %s73
    %s88 = sphi 0, %s74
    %s92 = sphi 0, %s92
    %s94 = sphi 0, %s92
    %s95 = sphi 0, %s94
    %s109 = sphi 0, %s95
    %s113 = sphi 0, %s113
    %s115 = sphi 0, %s113
    %s116 = sphi 0, %s115
    %s130 = sphi 0, %s116
    %s134 = sphi 0, %s134
    %s136 = sphi 0, %s134
    %s137 = sphi 0, %s136
    %s151 = sphi 0, %s137
    %s155 = sphi 0, %s155
    %s157 = sphi 0, %s155
    %s158 = sphi 0, %s157
    %s172 = sphi 0, %s158
    %s176 = sphi 0, %s176
    %s178 = sphi 0, %s176
    %s179 = sphi 0, %s178
    %s193 = sphi 0, %s179
    %s197 = sphi 0, %s197
    %s199 = sphi 0, %s197
    %s200 = sphi 0, %s199
    %s214 = sphi 0, %s200
    %s218 = sphi 0, %s218
    %s220 = sphi 0, %s218
    %s221 = sphi 0, %s220
    %s235 = sphi 0, %s221
    %s241 = sphi 0, %s243
    %s244 = sphi 0, %s241
    %s245 = sphi 0, %s244
    %s261 = sphi 0, %s245
  $region4: #{resnet_forward_pallas.6} parent=0 // loop_header_branch
    %19 = sbr.rel (%p17) target = $region8
  $region5: #{resnet_forward_pallas.6} parent=0 // loop_body
    %s21 = ssub.s32 %s16, 1
    %s22 = ssub.s32 %s16, 2
    %s23 = sadd.s32 %s16, 1
    %s24 = ssub.s32 %s16, %s23
    %p25 = scmp.eq.s32.totalorder %s24, 0
    %s27 = sadd.s32 %s26, 1
    %s28 = scalar_select %p25, %s26, %s27
    %p31 = pneg %p25
    %p32 = scmp.eq.s32.totalorder %s16, 1
    %p33 = por %p31, %p32
    %p34 = scmp.ne.s32.totalorder %s26, %s29
    %p35 = scmp.eq.s32.totalorder %s16, 0
    %p36 = por %p34, %p35
    %p37 = scmp.ne.s32.totalorder %s26, %s29
    %p38 = scmp.eq.s32.totalorder %s21, 1
    %p39 = por %p37, %p38
    %p40 = scmp.ne.s32.totalorder %s29, %s30
    %p41 = scmp.eq.s32.totalorder %s21, 0
    %p42 = por %p40, %p41
    %p43 = scmp.ne.s32.totalorder %s29, %s30
    %p44 = scmp.eq.s32.totalorder %s22, 1
    %p45 = por %p43, %p44
    %p47 = scmp.ne.s32.totalorder %s30, %s46
    %p48 = scmp.eq.s32.totalorder %s22, 0
    %p49 = por %p47, %p48
    %s51 = sadd.s32 %s50, 1
    %p54 = scmp.eq.s32.totalorder %s16, 1
    %p55 = scmp.ne.s32.totalorder %s50, %s52
    %p56 = scmp.eq.s32.totalorder %s16, 0
    %p57 = por %p55, %p56
    %p58 = scmp.ne.s32.totalorder %s50, %s52
    %p59 = scmp.eq.s32.totalorder %s21, 1
    %p60 = por %p58, %p59
    %p61 = scmp.ne.s32.totalorder %s52, %s53
    %p62 = scmp.eq.s32.totalorder %s21, 0
    %p63 = por %p61, %p62
    %p64 = scmp.ne.s32.totalorder %s52, %s53
    %p65 = scmp.eq.s32.totalorder %s22, 1
    %p66 = por %p64, %p65
    %p68 = scmp.ne.s32.totalorder %s53, %s67
    %p69 = scmp.eq.s32.totalorder %s22, 0
    %p70 = por %p68, %p69
    %s72 = sadd.s32 %s71, 1
    %p75 = scmp.eq.s32.totalorder %s16, 1
    %p76 = scmp.ne.s32.totalorder %s71, %s73
    %p77 = scmp.eq.s32.totalorder %s16, 0
    %p78 = por %p76, %p77
    %p79 = scmp.ne.s32.totalorder %s71, %s73
    %p80 = scmp.eq.s32.totalorder %s21, 1
    %p81 = por %p79, %p80
    %p82 = scmp.ne.s32.totalorder %s73, %s74
    %p83 = scmp.eq.s32.totalorder %s21, 0
    %p84 = por %p82, %p83
    %p85 = scmp.ne.s32.totalorder %s73, %s74
    %p86 = scmp.eq.s32.totalorder %s22, 1
    %p87 = por %p85, %p86
    %p89 = scmp.ne.s32.totalorder %s74, %s88
    %p90 = scmp.eq.s32.totalorder %s22, 0
    %p91 = por %p89, %p90
    %s93 = sadd.s32 %s92, 1
    %p96 = scmp.eq.s32.totalorder %s16, 1
    %p97 = scmp.ne.s32.totalorder %s92, %s94
    %p98 = scmp.eq.s32.totalorder %s16, 0
    %p99 = por %p97, %p98
    %p100 = scmp.ne.s32.totalorder %s92, %s94
    %p101 = scmp.eq.s32.totalorder %s21, 1
    %p102 = por %p100, %p101
    %p103 = scmp.ne.s32.totalorder %s94, %s95
    %p104 = scmp.eq.s32.totalorder %s21, 0
    %p105 = por %p103, %p104
    %p106 = scmp.ne.s32.totalorder %s94, %s95
    %p107 = scmp.eq.s32.totalorder %s22, 1
    %p108 = por %p106, %p107
    %p110 = scmp.ne.s32.totalorder %s95, %s109
    %p111 = scmp.eq.s32.totalorder %s22, 0
    %p112 = por %p110, %p111
    %s114 = sadd.s32 %s113, 1
    %p117 = scmp.eq.s32.totalorder %s16, 1
    %p118 = scmp.ne.s32.totalorder %s113, %s115
    %p119 = scmp.eq.s32.totalorder %s16, 0
    %p120 = por %p118, %p119
    %p121 = scmp.ne.s32.totalorder %s113, %s115
    %p122 = scmp.eq.s32.totalorder %s21, 1
    %p123 = por %p121, %p122
    %p124 = scmp.ne.s32.totalorder %s115, %s116
    %p125 = scmp.eq.s32.totalorder %s21, 0
    %p126 = por %p124, %p125
    %p127 = scmp.ne.s32.totalorder %s115, %s116
    %p128 = scmp.eq.s32.totalorder %s22, 1
    %p129 = por %p127, %p128
    %p131 = scmp.ne.s32.totalorder %s116, %s130
    %p132 = scmp.eq.s32.totalorder %s22, 0
    %p133 = por %p131, %p132
    %s135 = sadd.s32 %s134, 1
    %p138 = scmp.eq.s32.totalorder %s16, 1
    %p139 = scmp.ne.s32.totalorder %s134, %s136
    %p140 = scmp.eq.s32.totalorder %s16, 0
    %p141 = por %p139, %p140
    %p142 = scmp.ne.s32.totalorder %s134, %s136
    %p143 = scmp.eq.s32.totalorder %s21, 1
    %p144 = por %p142, %p143
    %p145 = scmp.ne.s32.totalorder %s136, %s137
    %p146 = scmp.eq.s32.totalorder %s21, 0
    %p147 = por %p145, %p146
    %p148 = scmp.ne.s32.totalorder %s136, %s137
    %p149 = scmp.eq.s32.totalorder %s22, 1
    %p150 = por %p148, %p149
    %p152 = scmp.ne.s32.totalorder %s137, %s151
    %p153 = scmp.eq.s32.totalorder %s22, 0
    %p154 = por %p152, %p153
    %s156 = sadd.s32 %s155, 1
    %p159 = scmp.eq.s32.totalorder %s16, 1
    %p160 = scmp.ne.s32.totalorder %s155, %s157
    %p161 = scmp.eq.s32.totalorder %s16, 0
    %p162 = por %p160, %p161
    %p163 = scmp.ne.s32.totalorder %s155, %s157
    %p164 = scmp.eq.s32.totalorder %s21, 1
    %p165 = por %p163, %p164
    %p166 = scmp.ne.s32.totalorder %s157, %s158
    %p167 = scmp.eq.s32.totalorder %s21, 0
    %p168 = por %p166, %p167
    %p169 = scmp.ne.s32.totalorder %s157, %s158
    %p170 = scmp.eq.s32.totalorder %s22, 1
    %p171 = por %p169, %p170
    %p173 = scmp.ne.s32.totalorder %s158, %s172
    %p174 = scmp.eq.s32.totalorder %s22, 0
    %p175 = por %p173, %p174
    %s177 = sadd.s32 %s176, 1
    %p180 = scmp.eq.s32.totalorder %s16, 1
    %p181 = scmp.ne.s32.totalorder %s176, %s178
    %p182 = scmp.eq.s32.totalorder %s16, 0
    %p183 = por %p181, %p182
    %p184 = scmp.ne.s32.totalorder %s176, %s178
    %p185 = scmp.eq.s32.totalorder %s21, 1
    %p186 = por %p184, %p185
    %p187 = scmp.ne.s32.totalorder %s178, %s179
    %p188 = scmp.eq.s32.totalorder %s21, 0
    %p189 = por %p187, %p188
    %p190 = scmp.ne.s32.totalorder %s178, %s179
    %p191 = scmp.eq.s32.totalorder %s22, 1
    %p192 = por %p190, %p191
    %p194 = scmp.ne.s32.totalorder %s179, %s193
    %p195 = scmp.eq.s32.totalorder %s22, 0
    %p196 = por %p194, %p195
    %s198 = sadd.s32 %s197, 1
    %p201 = scmp.eq.s32.totalorder %s16, 1
    %p202 = scmp.ne.s32.totalorder %s197, %s199
    %p203 = scmp.eq.s32.totalorder %s16, 0
    %p204 = por %p202, %p203
    %p205 = scmp.ne.s32.totalorder %s197, %s199
    %p206 = scmp.eq.s32.totalorder %s21, 1
    %p207 = por %p205, %p206
    %p208 = scmp.ne.s32.totalorder %s199, %s200
    %p209 = scmp.eq.s32.totalorder %s21, 0
    %p210 = por %p208, %p209
    %p211 = scmp.ne.s32.totalorder %s199, %s200
    %p212 = scmp.eq.s32.totalorder %s22, 1
    %p213 = por %p211, %p212
    %p215 = scmp.ne.s32.totalorder %s200, %s214
    %p216 = scmp.eq.s32.totalorder %s22, 0
    %p217 = por %p215, %p216
    %s219 = sadd.s32 %s218, 1
    %p222 = scmp.eq.s32.totalorder %s16, 1
    %p223 = scmp.ne.s32.totalorder %s218, %s220
    %p224 = scmp.eq.s32.totalorder %s16, 0
    %p225 = por %p223, %p224
    %p226 = scmp.ne.s32.totalorder %s218, %s220
    %p227 = scmp.eq.s32.totalorder %s21, 1
    %p228 = por %p226, %p227
    %p229 = scmp.ne.s32.totalorder %s220, %s221
    %p230 = scmp.eq.s32.totalorder %s21, 0
    %p231 = por %p229, %p230
    %p232 = scmp.ne.s32.totalorder %s220, %s221
    %p233 = scmp.eq.s32.totalorder %s22, 1
    %p234 = por %p232, %p233
    %p236 = scmp.ne.s32.totalorder %s221, %s235
    %p237 = scmp.eq.s32.totalorder %s22, 0
    %p238 = por %p236, %p237
    %s239 = ssub.s32 %s16, %s23
    %p240 = scmp.eq.s32.totalorder %s239, 0
    %s242 = sadd.s32 %s241, 1
    %s243 = scalar_select %p240, %s241, %s242
    %p246 = pneg %p240
    %p247 = scmp.eq.s32.totalorder %s16, 1
    %p248 = por %p246, %p247
    %p249 = scmp.ne.s32.totalorder %s241, %s244
    %p250 = scmp.eq.s32.totalorder %s16, 0
    %p251 = por %p249, %p250
    %p252 = scmp.ne.s32.totalorder %s241, %s244
    %p253 = scmp.eq.s32.totalorder %s21, 1
    %p254 = por %p252, %p253
    %p255 = scmp.ne.s32.totalorder %s244, %s245
    %p256 = scmp.eq.s32.totalorder %s21, 0
    %p257 = por %p255, %p256
    %p258 = scmp.ne.s32.totalorder %s244, %s245
    %p259 = scmp.eq.s32.totalorder %s22, 1
    %p260 = por %p258, %p259
    %p262 = scmp.ne.s32.totalorder %s245, %s261
    %p263 = scmp.eq.s32.totalorder %s22, 0
    %p264 = por %p262, %p263
    %p265 = scmp.le.s32.totalorder 1, %s16
    %p266 = scmp.lt.s32.totalorder %s16, 3
    %p267 = pnand %p265, %p266
    %p268 = pneg %p267
    // Predicated region
    $region9: #{resnet_forward_pallas.6} parent=5 // pred_check
      _
    $region10: #{resnet_forward_pallas.6} parent=5 // pred_check_branch
      %270 = sbr.rel (%p267) target = $region12
    $region11: #{resnet_forward_pallas.6} parent=5 // pred_region
      %s271 = ssub.s32 %s16, 1
      // Predicated region
      $region13: #{resnet_forward_pallas.6} parent=11 // pred_check
        %p272 = pneg %p63
      $region14: #{resnet_forward_pallas.6} parent=11 // pred_check_branch
        %274 = sbr.rel (%p272) target = $region16
      $region15: #{resnet_forward_pallas.6} parent=11 // pred_region
        _
      $region16: #{resnet_forward_pallas.6} parent=11 // pred_fallthru
        _
      // Predicated region
      $region17: #{resnet_forward_pallas.6} parent=11 // pred_check
        %p275 = pneg %p84
      $region18: #{resnet_forward_pallas.6} parent=11 // pred_check_branch
        %277 = sbr.rel (%p275) target = $region20
      $region19: #{resnet_forward_pallas.6} parent=11 // pred_region
        _
      $region20: #{resnet_forward_pallas.6} parent=11 // pred_fallthru
        _
      // Predicated region
      $region21: #{resnet_forward_pallas.6} parent=11 // pred_check
        %p278 = pneg %p105
      $region22: #{resnet_forward_pallas.6} parent=11 // pred_check_branch
        %280 = sbr.rel (%p278) target = $region24
      $region23: #{resnet_forward_pallas.6} parent=11 // pred_region
        _
      $region24: #{resnet_forward_pallas.6} parent=11 // pred_fallthru
        _
      // Predicated region
      $region25: #{resnet_forward_pallas.6} parent=11 // pred_check
        %p281 = pneg %p126
      $region26: #{resnet_forward_pallas.6} parent=11 // pred_check_branch
        %283 = sbr.rel (%p281) target = $region28
      $region27: #{resnet_forward_pallas.6} parent=11 // pred_region
        _
      $region28: #{resnet_forward_pallas.6} parent=11 // pred_fallthru
        _
      // Predicated region
      $region29: #{resnet_forward_pallas.6} parent=11 // pred_check
        %p284 = pneg %p147
      $region30: #{resnet_forward_pallas.6} parent=11 // pred_check_branch
        %286 = sbr.rel (%p284) target = $region32
      $region31: #{resnet_forward_pallas.6} parent=11 // pred_region
        _
      $region32: #{resnet_forward_pallas.6} parent=11 // pred_fallthru
        _
      // Predicated region
      $region33: #{resnet_forward_pallas.6} parent=11 // pred_check
        %p287 = pneg %p168
      $region34: #{resnet_forward_pallas.6} parent=11 // pred_check_branch
        %289 = sbr.rel (%p287) target = $region36
      $region35: #{resnet_forward_pallas.6} parent=11 // pred_region
        _
      $region36: #{resnet_forward_pallas.6} parent=11 // pred_fallthru
        _
      // Predicated region
      $region37: #{resnet_forward_pallas.6} parent=11 // pred_check
        %p290 = pneg %p189
      $region38: #{resnet_forward_pallas.6} parent=11 // pred_check_branch
        %292 = sbr.rel (%p290) target = $region40
      $region39: #{resnet_forward_pallas.6} parent=11 // pred_region
        _
      $region40: #{resnet_forward_pallas.6} parent=11 // pred_fallthru
        _
      // Predicated region
      $region41: #{resnet_forward_pallas.6} parent=11 // pred_check
        %p293 = pneg %p210
      $region42: #{resnet_forward_pallas.6} parent=11 // pred_check_branch
        %295 = sbr.rel (%p293) target = $region44
      $region43: #{resnet_forward_pallas.6} parent=11 // pred_region
        _
      $region44: #{resnet_forward_pallas.6} parent=11 // pred_fallthru
        _
      // Predicated region
      $region45: #{resnet_forward_pallas.6} parent=11 // pred_check
        %p296 = pneg %p231
      $region46: #{resnet_forward_pallas.6} parent=11 // pred_check_branch
        %298 = sbr.rel (%p296) target = $region48
      $region47: #{resnet_forward_pallas.6} parent=11 // pred_region
        _
      $region48: #{resnet_forward_pallas.6} parent=11 // pred_fallthru
        _
    $region12: #{resnet_forward_pallas.6} parent=5 // pred_fallthru
      _
    %p299 = scmp.lt.s32.totalorder %s16, 2
    // Predicated region
    $region49: #{resnet_forward_pallas.6} parent=5 // pred_check
      %p300 = pneg %p299
    $region50: #{resnet_forward_pallas.6} parent=5 // pred_check_branch
      %302 = sbr.rel (%p300) target = $region52
    $region51: #{resnet_forward_pallas.6} parent=5 // pred_region
      // Predicated region
      $region53: #{resnet_forward_pallas.6} parent=51 // pred_check
        %p303 = pneg %p36
      $region54: #{resnet_forward_pallas.6} parent=51 // pred_check_branch
        %305 = sbr.rel (%p303) target = $region56
      $region55: #{resnet_forward_pallas.6} parent=51 // pred_region
        %p306 = scmp.lt.s32.totalorder %s16, 1
        %s307 = scalar_select %p306, %s16, 1
        %s308 = smul.addr %s307, 20
        %s309 = smul.addr %s308, 8
        %s310 = scalar_lea.vmem %s0, %s309
      $region56: #{resnet_forward_pallas.6} parent=51 // pred_fallthru
        _
    $region52: #{resnet_forward_pallas.6} parent=5 // pred_fallthru
      _
    %p311 = scmp.le.s32.totalorder 1, %s16
    %p312 = scmp.lt.s32.totalorder %s16, 3
    %p313 = pnand %p311, %p312
    %p314 = pneg %p313
    // Predicated region
    $region57: #{resnet_forward_pallas.6} parent=5 // pred_check
      _
    $region58: #{resnet_forward_pallas.6} parent=5 // pred_check_branch
      %316 = sbr.rel (%p313) target = $region60
    $region59: #{resnet_forward_pallas.6} parent=5 // pred_region
      %s317 = ssub.s32 %s16, 1
      %p318 = scmp.lt.s32.totalorder %s21, 1
      %s319 = scalar_select %p318, %s21, 1
      %s320 = smul.addr %s319, 20
      %s321 = smul.addr %s320, 8
      %s322 = scalar_lea.vmem %s0, %s321
      %p323 = pneg %p42
      %p324 = pneg %p39
      %p325 = pneg %p63
      %p326 = pneg %p60
      %p327 = pneg %p84
      %p328 = pneg %p81
      %p329 = pneg %p105
      %p330 = pneg %p102
      %p331 = pneg %p126
      %p332 = pneg %p123
      %p333 = pneg %p147
      %p334 = pneg %p144
      %p335 = pneg %p168
      %p336 = pneg %p165
      %p337 = pneg %p189
      %p338 = pneg %p186
      %p339 = pneg %p210
      %p340 = pneg %p207
      %p341 = pneg %p231
      %p342 = pneg %p228
      %p343 = pneg %p257
      %p344 = pneg %p254
      %p345 = scmp.lt.s32.totalorder %s21, 1
      %s346 = scalar_select %p345, %s21, 1
      %s347 = smul.addr %s346, 20
      %s348 = smul.addr %s347, 8
      %s349 = scalar_lea.vmem %s10, %s348
      %p350 = scmp.lt.s32.totalorder %s21, 1
      %s351 = scalar_select %p350, %s21, 1
      %s352 = smul.addr %s351, 20
      %s353 = smul.addr %s352, 8
      %s354 = scalar_lea.vmem %s0, %s353
      %p355 = scmp.lt.s32.totalorder %s21, 1
      %s356 = scalar_select %p355, %s21, 1
      %s357 = smul.addr %s356, 20
      %s358 = smul.addr %s357, 8
      %s359 = scalar_lea.vmem %s10, %s358
      %v360 = vld [vmem:[%s354] sm:$0xff]
      %v361 = vld [vmem:[%s354 + $0x10] sm:$0xff]
      %v362 = vld [vmem:[%s354 + $0x20] sm:$0xff]
      %v363 = vld [vmem:[%s354 + $0x30] sm:$0xff]
      %v364 = vld [vmem:[%s354 + $0x40] sm:$0xff]
      %v365 = vld [vmem:[%s354 + $0x50] sm:$0xff]
      %v366 = vld [vmem:[%s354 + $0x60] sm:$0xff]
      %v367 = vld [vmem:[%s354 + $0x70] sm:$0xff]
      %v368 = vpack.c.bf16 %v361, %v360
      %v369 = vpack.c.bf16 %v363, %v362
      %v370 = vpack.c.bf16 %v365, %v364
      %v371 = vpack.c.bf16 %v367, %v366
      %v372 = vld [vmem:[%s1] sm:$0xf]
      %v373 = vld [vmem:[%s1 + $0x4] sm:$0xf]
      %v374 = vld [vmem:[%s1 + $0x8] sm:$0xf]
      %v375 = vld [vmem:[%s1 + $0xc] sm:$0xf]
      %v376 = vld [vmem:[%s1 + $0x10] sm:$0xf]
      %v377 = vld [vmem:[%s1 + $0x14] sm:$0xf]
      %v378 = vld [vmem:[%s1 + $0x18] sm:$0xf]
      %v379 = vld [vmem:[%s1 + $0x1c] sm:$0xf]
      %v380 = vld [vmem:[%s1 + $0x20] sm:$0xf]
      %v381 = vld [vmem:[%s1 + $0x24] sm:$0xf]
      %v382 = vld [vmem:[%s1 + $0x28] sm:$0xf]
      %v383 = vld [vmem:[%s1 + $0x2c] sm:$0xf]
      %v384 = vld [vmem:[%s1 + $0x30] sm:$0xf]
      %v385 = vld [vmem:[%s1 + $0x34] sm:$0xf]
      %v386 = vld [vmem:[%s1 + $0x38] sm:$0xf]
      %v387 = vld [vmem:[%s1 + $0x3c] sm:$0xf]
      %v388 = vld [vmem:[%s354 + $0x1] sm:$0xff]
      %v389 = vld [vmem:[%s354 + $0x11] sm:$0xff]
      %v390 = vld [vmem:[%s354 + $0x21] sm:$0xff]
      %v391 = vld [vmem:[%s354 + $0x31] sm:$0xff]
      %v392 = vld [vmem:[%s354 + $0x41] sm:$0xff]
      %v393 = vld [vmem:[%s354 + $0x51] sm:$0xff]
      %v394 = vld [vmem:[%s354 + $0x61] sm:$0xff]
      %v395 = vld [vmem:[%s354 + $0x71] sm:$0xff]
      %v396 = vpack.c.bf16 %v389, %v388
      %v397 = vpack.c.bf16 %v391, %v390
      %v398 = vpack.c.bf16 %v393, %v392
      %v399 = vpack.c.bf16 %v395, %v394
      %s400 = scalar_lea.vmem %s1, 64
      %v401 = vld [vmem:[%s400] sm:$0xf]
      %v402 = vld [vmem:[%s400 + $0x4] sm:$0xf]
      %v403 = vld [vmem:[%s400 + $0x8] sm:$0xf]
      %v404 = vld [vmem:[%s400 + $0xc] sm:$0xf]
      %v405 = vld [vmem:[%s400 + $0x10] sm:$0xf]
      %v406 = vld [vmem:[%s400 + $0x14] sm:$0xf]
      %v407 = vld [vmem:[%s400 + $0x18] sm:$0xf]
      %v408 = vld [vmem:[%s400 + $0x1c] sm:$0xf]
      %v409 = vld [vmem:[%s400 + $0x20] sm:$0xf]
      %v410 = vld [vmem:[%s400 + $0x24] sm:$0xf]
      %v411 = vld [vmem:[%s400 + $0x28] sm:$0xf]
      %v412 = vld [vmem:[%s400 + $0x2c] sm:$0xf]
      %v413 = vld [vmem:[%s400 + $0x30] sm:$0xf]
      %v414 = vld [vmem:[%s400 + $0x34] sm:$0xf]
      %v415 = vld [vmem:[%s400 + $0x38] sm:$0xf]
      %v416 = vld [vmem:[%s400 + $0x3c] sm:$0xf]
      %v433 = vunpack.c.l.b16 %v401
      %v434 = vunpack.c.l.b16 %v402
      %v435 = vunpack.c.l.b16 %v403
      %v436 = vunpack.c.l.b16 %v404
      %v437 = vunpack.c.l.b16 %v405
      %v438 = vunpack.c.l.b16 %v406
      %v439 = vunpack.c.l.b16 %v407
      %v440 = vunpack.c.l.b16 %v408
      %v441 = vunpack.c.l.b16 %v409
      %v442 = vunpack.c.l.b16 %v410
      %v443 = vunpack.c.l.b16 %v411
      %v444 = vunpack.c.l.b16 %v412
      %v445 = vunpack.c.l.b16 %v413
      %v446 = vunpack.c.l.b16 %v414
      %v447 = vunpack.c.l.b16 %v415
      %v448 = vunpack.c.l.b16 %v416
      %v449 = vpack.c.b16 %v434, %v433
      %v450 = vpack.c.b16 %v436, %v435
      %v451 = vpack.c.b16 %v438, %v437
      %v452 = vpack.c.b16 %v440, %v439
      %v453 = vpack.c.b16 %v442, %v441
      %v454 = vpack.c.b16 %v444, %v443
      %v455 = vpack.c.b16 %v446, %v445
      %v456 = vpack.c.b16 %v448, %v447
      %465 = vmatpush.bf16.msra.mxu0 %v456
      %466 = vmatpush.bf16.msra.mxu0 %v455
      %467 = vmatpush.bf16.msra.mxu0 %v454
      %468 = vmatpush.bf16.msra.mxu0 %v453
      %469 = vmatpush.bf16.msra.mxu0 %v452
      %470 = vmatpush.bf16.msra.mxu0 %v451
      %471 = vmatpush.bf16.msra.mxu0 %v450
      %472 = vmatpush.bf16.msra.mxu0 %v449
      %473 = vmatmul.bf16.gmra.mxu0 %v396
      %v474 = vpop.f32.mrf.mxu0
      %v475 = vadd.f32 0.0, %v474
      %v476 = vpop.f32.mrf.mxu0
      %v477 = vadd.f32 0.0, %v476
      %478 = vmatmul.bf16.gmra.mxu0 %v397
      %v479 = vpop.f32.mrf.mxu0
      %v480 = vadd.f32 0.0, %v479
      %v481 = vpop.f32.mrf.mxu0
      %v482 = vadd.f32 0.0, %v481
      %483 = vmatmul.bf16.gmra.mxu0 %v398
      %v484 = vpop.f32.mrf.mxu0
      %v485 = vadd.f32 0.0, %v484
      %v486 = vpop.f32.mrf.mxu0
      %v487 = vadd.f32 0.0, %v486
      %488 = vmatmul.bf16.gmra.mxu0 %v399
      %v489 = vpop.f32.mrf.mxu0
      %v490 = vadd.f32 0.0, %v489
      %v491 = vpop.f32.mrf.mxu0
      %v492 = vadd.f32 0.0, %v491
      %493 = vdwg.mxu0
      %v510 = vunpack.c.l.b16 %v372
      %v511 = vunpack.c.l.b16 %v373
      %v512 = vunpack.c.l.b16 %v374
      %v513 = vunpack.c.l.b16 %v375
      %v514 = vunpack.c.l.b16 %v376
      %v515 = vunpack.c.l.b16 %v377
      %v516 = vunpack.c.l.b16 %v378
      %v517 = vunpack.c.l.b16 %v379
      %v518 = vunpack.c.l.b16 %v380
      %v519 = vunpack.c.l.b16 %v381
      %v520 = vunpack.c.l.b16 %v382
      %v521 = vunpack.c.l.b16 %v383
      %v522 = vunpack.c.l.b16 %v384
      %v523 = vunpack.c.l.b16 %v385
      %v524 = vunpack.c.l.b16 %v386
      %v525 = vunpack.c.l.b16 %v387
      %v526 = vpack.c.b16 %v511, %v510
      %v527 = vpack.c.b16 %v513, %v512
      %v528 = vpack.c.b16 %v515, %v514
      %v529 = vpack.c.b16 %v517, %v516
      %v530 = vpack.c.b16 %v519, %v518
      %v531 = vpack.c.b16 %v521, %v520
      %v532 = vpack.c.b16 %v523, %v522
      %v533 = vpack.c.b16 %v525, %v524
      %542 = vmatpush.bf16.msra.mxu0 %v533
      %543 = vmatpush.bf16.msra.mxu0 %v532
      %544 = vmatpush.bf16.msra.mxu0 %v531
      %545 = vmatpush.bf16.msra.mxu0 %v530
      %546 = vmatpush.bf16.msra.mxu0 %v529
      %547 = vmatpush.bf16.msra.mxu0 %v528
      %548 = vmatpush.bf16.msra.mxu0 %v527
      %549 = vmatpush.bf16.msra.mxu0 %v526
      %550 = vmatmul.bf16.gmra.mxu0 %v368
      %v551 = vpop.f32.mrf.mxu0
      %v552 = vadd.f32 %v475, %v551
      %v553 = vpop.f32.mrf.mxu0
      %v554 = vadd.f32 %v477, %v553
      %555 = vmatmul.bf16.gmra.mxu0 %v369
      %v556 = vpop.f32.mrf.mxu0
      %v557 = vadd.f32 %v480, %v556
      %v558 = vpop.f32.mrf.mxu0
      %v559 = vadd.f32 %v482, %v558
      %560 = vmatmul.bf16.gmra.mxu0 %v370
      %v561 = vpop.f32.mrf.mxu0
      %v562 = vadd.f32 %v485, %v561
      %v563 = vpop.f32.mrf.mxu0
      %v564 = vadd.f32 %v487, %v563
      %565 = vmatmul.bf16.gmra.mxu0 %v371
      %v566 = vpop.f32.mrf.mxu0
      %v567 = vadd.f32 %v490, %v566
      %v568 = vpop.f32.mrf.mxu0
      %v569 = vadd.f32 %v492, %v568
      %570 = vdwg.mxu0
      %v571 = vld [vmem:[%s354 + $0x2] sm:$0xff]
      %v572 = vld [vmem:[%s354 + $0x12] sm:$0xff]
      %v573 = vld [vmem:[%s354 + $0x22] sm:$0xff]
      %v574 = vld [vmem:[%s354 + $0x32] sm:$0xff]
      %v575 = vld [vmem:[%s354 + $0x42] sm:$0xff]
      %v576 = vld [vmem:[%s354 + $0x52] sm:$0xff]
      %v577 = vld [vmem:[%s354 + $0x62] sm:$0xff]
      %v578 = vld [vmem:[%s354 + $0x72] sm:$0xff]
      %v579 = vpack.c.bf16 %v572, %v571
      %v580 = vpack.c.bf16 %v574, %v573
      %v581 = vpack.c.bf16 %v576, %v575
      %v582 = vpack.c.bf16 %v578, %v577
      %s583 = scalar_lea.vmem %s1, 128
      %v584 = vld [vmem:[%s583] sm:$0xf]
      %v585 = vld [vmem:[%s583 + $0x4] sm:$0xf]
      %v586 = vld [vmem:[%s583 + $0x8] sm:$0xf]
      %v587 = vld [vmem:[%s583 + $0xc] sm:$0xf]
      %v588 = vld [vmem:[%s583 + $0x10] sm:$0xf]
      %v589 = vld [vmem:[%s583 + $0x14] sm:$0xf]
      %v590 = vld [vmem:[%s583 + $0x18] sm:$0xf]
      %v591 = vld [vmem:[%s583 + $0x1c] sm:$0xf]
      %v592 = vld [vmem:[%s583 + $0x20] sm:$0xf]
      %v593 = vld [vmem:[%s583 + $0x24] sm:$0xf]
      %v594 = vld [vmem:[%s583 + $0x28] sm:$0xf]
      %v595 = vld [vmem:[%s583 + $0x2c] sm:$0xf]
      %v596 = vld [vmem:[%s583 + $0x30] sm:$0xf]
      %v597 = vld [vmem:[%s583 + $0x34] sm:$0xf]
      %v598 = vld [vmem:[%s583 + $0x38] sm:$0xf]
      %v599 = vld [vmem:[%s583 + $0x3c] sm:$0xf]
      %v616 = vunpack.c.l.b16 %v584
      %v617 = vunpack.c.l.b16 %v585
      %v618 = vunpack.c.l.b16 %v586
      %v619 = vunpack.c.l.b16 %v587
      %v620 = vunpack.c.l.b16 %v588
      %v621 = vunpack.c.l.b16 %v589
      %v622 = vunpack.c.l.b16 %v590
      %v623 = vunpack.c.l.b16 %v591
      %v624 = vunpack.c.l.b16 %v592
      %v625 = vunpack.c.l.b16 %v593
      %v626 = vunpack.c.l.b16 %v594
      %v627 = vunpack.c.l.b16 %v595
      %v628 = vunpack.c.l.b16 %v596
      %v629 = vunpack.c.l.b16 %v597
      %v630 = vunpack.c.l.b16 %v598
      %v631 = vunpack.c.l.b16 %v599
      %v632 = vpack.c.b16 %v617, %v616
      %v633 = vpack.c.b16 %v619, %v618
      %v634 = vpack.c.b16 %v621, %v620
      %v635 = vpack.c.b16 %v623, %v622
      %v636 = vpack.c.b16 %v625, %v624
      %v637 = vpack.c.b16 %v627, %v626
      %v638 = vpack.c.b16 %v629, %v628
      %v639 = vpack.c.b16 %v631, %v630
      %648 = vmatpush.bf16.msra.mxu0 %v639
      %649 = vmatpush.bf16.msra.mxu0 %v638
      %650 = vmatpush.bf16.msra.mxu0 %v637
      %651 = vmatpush.bf16.msra.mxu0 %v636
      %652 = vmatpush.bf16.msra.mxu0 %v635
      %653 = vmatpush.bf16.msra.mxu0 %v634
      %654 = vmatpush.bf16.msra.mxu0 %v633
      %655 = vmatpush.bf16.msra.mxu0 %v632
      %656 = vmatmul.bf16.gmra.mxu0 %v579
      %v657 = vpop.f32.mrf.mxu0
      %v658 = vadd.f32 0.0, %v657
      %v659 = vpop.f32.mrf.mxu0
      %v660 = vadd.f32 0.0, %v659
      %661 = vmatmul.bf16.gmra.mxu0 %v580
      %v662 = vpop.f32.mrf.mxu0
      %v663 = vadd.f32 0.0, %v662
      %v664 = vpop.f32.mrf.mxu0
      %v665 = vadd.f32 0.0, %v664
      %666 = vmatmul.bf16.gmra.mxu0 %v581
      %v667 = vpop.f32.mrf.mxu0
      %v668 = vadd.f32 0.0, %v667
      %v669 = vpop.f32.mrf.mxu0
      %v670 = vadd.f32 0.0, %v669
      %671 = vmatmul.bf16.gmra.mxu0 %v582
      %v672 = vpop.f32.mrf.mxu0
      %v673 = vadd.f32 0.0, %v672
      %v674 = vpop.f32.mrf.mxu0
      %v675 = vadd.f32 0.0, %v674
      %676 = vdwg.mxu0
      %v677 = vadd.f32 %v552, %v658
      %v678 = vadd.f32 %v554, %v660
      %v679 = vadd.f32 %v557, %v663
      %v680 = vadd.f32 %v559, %v665
      %v681 = vadd.f32 %v562, %v668
      %v682 = vadd.f32 %v564, %v670
      %v683 = vadd.f32 %v567, %v673
      %v684 = vadd.f32 %v569, %v675
      %s685 = scalar_lea.vmem %s354, 16
      %v686 = vld [vmem:[%s685] sm:$0xff]
      %v687 = vld [vmem:[%s685 + $0x10] sm:$0xff]
      %v688 = vld [vmem:[%s685 + $0x20] sm:$0xff]
      %v689 = vld [vmem:[%s685 + $0x30] sm:$0xff]
      %v690 = vld [vmem:[%s685 + $0x40] sm:$0xff]
      %v691 = vld [vmem:[%s685 + $0x50] sm:$0xff]
      %v692 = vld [vmem:[%s685 + $0x60] sm:$0xff]
      %v693 = vld [vmem:[%s685 + $0x70] sm:$0xff]
      %v694 = vpack.c.bf16 %v687, %v686
      %v695 = vpack.c.bf16 %v689, %v688
      %v696 = vpack.c.bf16 %v691, %v690
      %v697 = vpack.c.bf16 %v693, %v692
      %s698 = scalar_lea.vmem %s1, 192
      %v699 = vld [vmem:[%s698] sm:$0xf]
      %v700 = vld [vmem:[%s698 + $0x4] sm:$0xf]
      %v701 = vld [vmem:[%s698 + $0x8] sm:$0xf]
      %v702 = vld [vmem:[%s698 + $0xc] sm:$0xf]
      %v703 = vld [vmem:[%s698 + $0x10] sm:$0xf]
      %v704 = vld [vmem:[%s698 + $0x14] sm:$0xf]
      %v705 = vld [vmem:[%s698 + $0x18] sm:$0xf]
      %v706 = vld [vmem:[%s698 + $0x1c] sm:$0xf]
      %v707 = vld [vmem:[%s698 + $0x20] sm:$0xf]
      %v708 = vld [vmem:[%s698 + $0x24] sm:$0xf]
      %v709 = vld [vmem:[%s698 + $0x28] sm:$0xf]
      %v710 = vld [vmem:[%s698 + $0x2c] sm:$0xf]
      %v711 = vld [vmem:[%s698 + $0x30] sm:$0xf]
      %v712 = vld [vmem:[%s698 + $0x34] sm:$0xf]
      %v713 = vld [vmem:[%s698 + $0x38] sm:$0xf]
      %v714 = vld [vmem:[%s698 + $0x3c] sm:$0xf]
      %v731 = vunpack.c.l.b16 %v699
      %v732 = vunpack.c.l.b16 %v700
      %v733 = vunpack.c.l.b16 %v701
      %v734 = vunpack.c.l.b16 %v702
      %v735 = vunpack.c.l.b16 %v703
      %v736 = vunpack.c.l.b16 %v704
      %v737 = vunpack.c.l.b16 %v705
      %v738 = vunpack.c.l.b16 %v706
      %v739 = vunpack.c.l.b16 %v707
      %v740 = vunpack.c.l.b16 %v708
      %v741 = vunpack.c.l.b16 %v709
      %v742 = vunpack.c.l.b16 %v710
      %v743 = vunpack.c.l.b16 %v711
      %v744 = vunpack.c.l.b16 %v712
      %v745 = vunpack.c.l.b16 %v713
      %v746 = vunpack.c.l.b16 %v714
      %v747 = vpack.c.b16 %v732, %v731
      %v748 = vpack.c.b16 %v734, %v733
      %v749 = vpack.c.b16 %v736, %v735
      %v750 = vpack.c.b16 %v738, %v737
      %v751 = vpack.c.b16 %v740, %v739
      %v752 = vpack.c.b16 %v742, %v741
      %v753 = vpack.c.b16 %v744, %v743
      %v754 = vpack.c.b16 %v746, %v745
      %763 = vmatpush.bf16.msra.mxu0 %v754
      %764 = vmatpush.bf16.msra.mxu0 %v753
      %765 = vmatpush.bf16.msra.mxu0 %v752
      %766 = vmatpush.bf16.msra.mxu0 %v751
      %767 = vmatpush.bf16.msra.mxu0 %v750
      %768 = vmatpush.bf16.msra.mxu0 %v749
      %769 = vmatpush.bf16.msra.mxu0 %v748
      %770 = vmatpush.bf16.msra.mxu0 %v747
      %771 = vmatmul.bf16.gmra.mxu0 %v694
      %v772 = vpop.f32.mrf.mxu0
      %v773 = vadd.f32 0.0, %v772
      %v774 = vpop.f32.mrf.mxu0
      %v775 = vadd.f32 0.0, %v774
      %776 = vmatmul.bf16.gmra.mxu0 %v695
      %v777 = vpop.f32.mrf.mxu0
      %v778 = vadd.f32 0.0, %v777
      %v779 = vpop.f32.mrf.mxu0
      %v780 = vadd.f32 0.0, %v779
      %781 = vmatmul.bf16.gmra.mxu0 %v696
      %v782 = vpop.f32.mrf.mxu0
      %v783 = vadd.f32 0.0, %v782
      %v784 = vpop.f32.mrf.mxu0
      %v785 = vadd.f32 0.0, %v784
      %786 = vmatmul.bf16.gmra.mxu0 %v697
      %v787 = vpop.f32.mrf.mxu0
      %v788 = vadd.f32 0.0, %v787
      %v789 = vpop.f32.mrf.mxu0
      %v790 = vadd.f32 0.0, %v789
      %791 = vdwg.mxu0
      %v792 = vadd.f32 %v677, %v773
      %v793 = vadd.f32 %v678, %v775
      %v794 = vadd.f32 %v679, %v778
      %v795 = vadd.f32 %v680, %v780
      %v796 = vadd.f32 %v681, %v783
      %v797 = vadd.f32 %v682, %v785
      %v798 = vadd.f32 %v683, %v788
      %v799 = vadd.f32 %v684, %v790
      %v800 = vld [vmem:[%s685 + $0x1] sm:$0xff]
      %v801 = vld [vmem:[%s685 + $0x11] sm:$0xff]
      %v802 = vld [vmem:[%s685 + $0x21] sm:$0xff]
      %v803 = vld [vmem:[%s685 + $0x31] sm:$0xff]
      %v804 = vld [vmem:[%s685 + $0x41] sm:$0xff]
      %v805 = vld [vmem:[%s685 + $0x51] sm:$0xff]
      %v806 = vld [vmem:[%s685 + $0x61] sm:$0xff]
      %v807 = vld [vmem:[%s685 + $0x71] sm:$0xff]
      %v808 = vpack.c.bf16 %v801, %v800
      %v809 = vpack.c.bf16 %v803, %v802
      %v810 = vpack.c.bf16 %v805, %v804
      %v811 = vpack.c.bf16 %v807, %v806
      %s812 = scalar_lea.vmem %s1, 256
      %v813 = vld [vmem:[%s812] sm:$0xf]
      %v814 = vld [vmem:[%s812 + $0x4] sm:$0xf]
      %v815 = vld [vmem:[%s812 + $0x8] sm:$0xf]
      %v816 = vld [vmem:[%s812 + $0xc] sm:$0xf]
      %v817 = vld [vmem:[%s812 + $0x10] sm:$0xf]
      %v818 = vld [vmem:[%s812 + $0x14] sm:$0xf]
      %v819 = vld [vmem:[%s812 + $0x18] sm:$0xf]
      %v820 = vld [vmem:[%s812 + $0x1c] sm:$0xf]
      %v821 = vld [vmem:[%s812 + $0x20] sm:$0xf]
      %v822 = vld [vmem:[%s812 + $0x24] sm:$0xf]
      %v823 = vld [vmem:[%s812 + $0x28] sm:$0xf]
      %v824 = vld [vmem:[%s812 + $0x2c] sm:$0xf]
      %v825 = vld [vmem:[%s812 + $0x30] sm:$0xf]
      %v826 = vld [vmem:[%s812 + $0x34] sm:$0xf]
      %v827 = vld [vmem:[%s812 + $0x38] sm:$0xf]
      %v828 = vld [vmem:[%s812 + $0x3c] sm:$0xf]
      %v845 = vunpack.c.l.b16 %v813
      %v846 = vunpack.c.l.b16 %v814
      %v847 = vunpack.c.l.b16 %v815
      %v848 = vunpack.c.l.b16 %v816
      %v849 = vunpack.c.l.b16 %v817
      %v850 = vunpack.c.l.b16 %v818
      %v851 = vunpack.c.l.b16 %v819
      %v852 = vunpack.c.l.b16 %v820
      %v853 = vunpack.c.l.b16 %v821
      %v854 = vunpack.c.l.b16 %v822
      %v855 = vunpack.c.l.b16 %v823
      %v856 = vunpack.c.l.b16 %v824
      %v857 = vunpack.c.l.b16 %v825
      %v858 = vunpack.c.l.b16 %v826
      %v859 = vunpack.c.l.b16 %v827
      %v860 = vunpack.c.l.b16 %v828
      %v861 = vpack.c.b16 %v846, %v845
      %v862 = vpack.c.b16 %v848, %v847
      %v863 = vpack.c.b16 %v850, %v849
      %v864 = vpack.c.b16 %v852, %v851
      %v865 = vpack.c.b16 %v854, %v853
      %v866 = vpack.c.b16 %v856, %v855
      %v867 = vpack.c.b16 %v858, %v857
      %v868 = vpack.c.b16 %v860, %v859
      %877 = vmatpush.bf16.msra.mxu0 %v868
      %878 = vmatpush.bf16.msra.mxu0 %v867
      %879 = vmatpush.bf16.msra.mxu0 %v866
      %880 = vmatpush.bf16.msra.mxu0 %v865
      %881 = vmatpush.bf16.msra.mxu0 %v864
      %882 = vmatpush.bf16.msra.mxu0 %v863
      %883 = vmatpush.bf16.msra.mxu0 %v862
      %884 = vmatpush.bf16.msra.mxu0 %v861
      %885 = vmatmul.bf16.gmra.mxu0 %v808
      %v886 = vpop.f32.mrf.mxu0
      %v887 = vadd.f32 0.0, %v886
      %v888 = vpop.f32.mrf.mxu0
      %v889 = vadd.f32 0.0, %v888
      %890 = vmatmul.bf16.gmra.mxu0 %v809
      %v891 = vpop.f32.mrf.mxu0
      %v892 = vadd.f32 0.0, %v891
      %v893 = vpop.f32.mrf.mxu0
      %v894 = vadd.f32 0.0, %v893
      %895 = vmatmul.bf16.gmra.mxu0 %v810
      %v896 = vpop.f32.mrf.mxu0
      %v897 = vadd.f32 0.0, %v896
      %v898 = vpop.f32.mrf.mxu0
      %v899 = vadd.f32 0.0, %v898
      %900 = vmatmul.bf16.gmra.mxu0 %v811
      %v901 = vpop.f32.mrf.mxu0
      %v902 = vadd.f32 0.0, %v901
      %v903 = vpop.f32.mrf.mxu0
      %v904 = vadd.f32 0.0, %v903
      %905 = vdwg.mxu0
      %v906 = vadd.f32 %v792, %v887
      %v907 = vadd.f32 %v793, %v889
      %v908 = vadd.f32 %v794, %v892
      %v909 = vadd.f32 %v795, %v894
      %v910 = vadd.f32 %v796, %v897
      %v911 = vadd.f32 %v797, %v899
      %v912 = vadd.f32 %v798, %v902
      %v913 = vadd.f32 %v799, %v904
      %v914 = vld [vmem:[%s685 + $0x2] sm:$0xff]
      %v915 = vld [vmem:[%s685 + $0x12] sm:$0xff]
      %v916 = vld [vmem:[%s685 + $0x22] sm:$0xff]
      %v917 = vld [vmem:[%s685 + $0x32] sm:$0xff]
      %v918 = vld [vmem:[%s685 + $0x42] sm:$0xff]
      %v919 = vld [vmem:[%s685 + $0x52] sm:$0xff]
      %v920 = vld [vmem:[%s685 + $0x62] sm:$0xff]
      %v921 = vld [vmem:[%s685 + $0x72] sm:$0xff]
      %v922 = vpack.c.bf16 %v915, %v914
      %v923 = vpack.c.bf16 %v917, %v916
      %v924 = vpack.c.bf16 %v919, %v918
      %v925 = vpack.c.bf16 %v921, %v920
      %s926 = scalar_lea.vmem %s1, 320
      %v927 = vld [vmem:[%s926] sm:$0xf]
      %v928 = vld [vmem:[%s926 + $0x4] sm:$0xf]
      %v929 = vld [vmem:[%s926 + $0x8] sm:$0xf]
      %v930 = vld [vmem:[%s926 + $0xc] sm:$0xf]
      %v931 = vld [vmem:[%s926 + $0x10] sm:$0xf]
      %v932 = vld [vmem:[%s926 + $0x14] sm:$0xf]
      %v933 = vld [vmem:[%s926 + $0x18] sm:$0xf]
      %v934 = vld [vmem:[%s926 + $0x1c] sm:$0xf]
      %v935 = vld [vmem:[%s926 + $0x20] sm:$0xf]
      %v936 = vld [vmem:[%s926 + $0x24] sm:$0xf]
      %v937 = vld [vmem:[%s926 + $0x28] sm:$0xf]
      %v938 = vld [vmem:[%s926 + $0x2c] sm:$0xf]
      %v939 = vld [vmem:[%s926 + $0x30] sm:$0xf]
      %v940 = vld [vmem:[%s926 + $0x34] sm:$0xf]
      %v941 = vld [vmem:[%s926 + $0x38] sm:$0xf]
      %v942 = vld [vmem:[%s926 + $0x3c] sm:$0xf]
      %v959 = vunpack.c.l.b16 %v927
      %v960 = vunpack.c.l.b16 %v928
      %v961 = vunpack.c.l.b16 %v929
      %v962 = vunpack.c.l.b16 %v930
      %v963 = vunpack.c.l.b16 %v931
      %v964 = vunpack.c.l.b16 %v932
      %v965 = vunpack.c.l.b16 %v933
      %v966 = vunpack.c.l.b16 %v934
      %v967 = vunpack.c.l.b16 %v935
      %v968 = vunpack.c.l.b16 %v936
      %v969 = vunpack.c.l.b16 %v937
      %v970 = vunpack.c.l.b16 %v938
      %v971 = vunpack.c.l.b16 %v939
      %v972 = vunpack.c.l.b16 %v940
      %v973 = vunpack.c.l.b16 %v941
      %v974 = vunpack.c.l.b16 %v942
      %v975 = vpack.c.b16 %v960, %v959
      %v976 = vpack.c.b16 %v962, %v961
      %v977 = vpack.c.b16 %v964, %v963
      %v978 = vpack.c.b16 %v966, %v965
      %v979 = vpack.c.b16 %v968, %v967
      %v980 = vpack.c.b16 %v970, %v969
      %v981 = vpack.c.b16 %v972, %v971
      %v982 = vpack.c.b16 %v974, %v973
      %991 = vmatpush.bf16.msra.mxu0 %v982
      %992 = vmatpush.bf16.msra.mxu0 %v981
      %993 = vmatpush.bf16.msra.mxu0 %v980
      %994 = vmatpush.bf16.msra.mxu0 %v979
      %995 = vmatpush.bf16.msra.mxu0 %v978
      %996 = vmatpush.bf16.msra.mxu0 %v977
      %997 = vmatpush.bf16.msra.mxu0 %v976
      %998 = vmatpush.bf16.msra.mxu0 %v975
      %999 = vmatmul.bf16.gmra.mxu0 %v922
      %v1000 = vpop.f32.mrf.mxu0
      %v1001 = vadd.f32 0.0, %v1000
      %v1002 = vpop.f32.mrf.mxu0
      %v1003 = vadd.f32 0.0, %v1002
      %1004 = vmatmul.bf16.gmra.mxu0 %v923
      %v1005 = vpop.f32.mrf.mxu0
      %v1006 = vadd.f32 0.0, %v1005
      %v1007 = vpop.f32.mrf.mxu0
      %v1008 = vadd.f32 0.0, %v1007
      %1009 = vmatmul.bf16.gmra.mxu0 %v924
      %v1010 = vpop.f32.mrf.mxu0
      %v1011 = vadd.f32 0.0, %v1010
      %v1012 = vpop.f32.mrf.mxu0
      %v1013 = vadd.f32 0.0, %v1012
      %1014 = vmatmul.bf16.gmra.mxu0 %v925
      %v1015 = vpop.f32.mrf.mxu0
      %v1016 = vadd.f32 0.0, %v1015
      %v1017 = vpop.f32.mrf.mxu0
      %v1018 = vadd.f32 0.0, %v1017
      %1019 = vdwg.mxu0
      %v1020 = vadd.f32 %v906, %v1001
      %v1021 = vadd.f32 %v907, %v1003
      %v1022 = vadd.f32 %v908, %v1006
      %v1023 = vadd.f32 %v909, %v1008
      %v1024 = vadd.f32 %v910, %v1011
      %v1025 = vadd.f32 %v911, %v1013
      %v1026 = vadd.f32 %v912, %v1016
      %v1027 = vadd.f32 %v913, %v1018
      %s1028 = scalar_lea.vmem %s354, 32
      %v1029 = vld [vmem:[%s1028] sm:$0xff]
      %v1030 = vld [vmem:[%s1028 + $0x10] sm:$0xff]
      %v1031 = vld [vmem:[%s1028 + $0x20] sm:$0xff]
      %v1032 = vld [vmem:[%s1028 + $0x30] sm:$0xff]
      %v1033 = vld [vmem:[%s1028 + $0x40] sm:$0xff]
      %v1034 = vld [vmem:[%s1028 + $0x50] sm:$0xff]
      %v1035 = vld [vmem:[%s1028 + $0x60] sm:$0xff]
      %v1036 = vld [vmem:[%s1028 + $0x70] sm:$0xff]
      %v1037 = vpack.c.bf16 %v1030, %v1029
      %v1038 = vpack.c.bf16 %v1032, %v1031
      %v1039 = vpack.c.bf16 %v1034, %v1033
      %v1040 = vpack.c.bf16 %v1036, %v1035
      %s1041 = scalar_lea.vmem %s1, 384
      %v1042 = vld [vmem:[%s1041] sm:$0xf]
      %v1043 = vld [vmem:[%s1041 + $0x4] sm:$0xf]
      %v1044 = vld [vmem:[%s1041 + $0x8] sm:$0xf]
      %v1045 = vld [vmem:[%s1041 + $0xc] sm:$0xf]
      %v1046 = vld [vmem:[%s1041 + $0x10] sm:$0xf]
      %v1047 = vld [vmem:[%s1041 + $0x14] sm:$0xf]
      %v1048 = vld [vmem:[%s1041 + $0x18] sm:$0xf]
      %v1049 = vld [vmem:[%s1041 + $0x1c] sm:$0xf]
      %v1050 = vld [vmem:[%s1041 + $0x20] sm:$0xf]
      %v1051 = vld [vmem:[%s1041 + $0x24] sm:$0xf]
      %v1052 = vld [vmem:[%s1041 + $0x28] sm:$0xf]
      %v1053 = vld [vmem:[%s1041 + $0x2c] sm:$0xf]
      %v1054 = vld [vmem:[%s1041 + $0x30] sm:$0xf]
      %v1055 = vld [vmem:[%s1041 + $0x34] sm:$0xf]
      %v1056 = vld [vmem:[%s1041 + $0x38] sm:$0xf]
      %v1057 = vld [vmem:[%s1041 + $0x3c] sm:$0xf]
      %v1074 = vunpack.c.l.b16 %v1042
      %v1075 = vunpack.c.l.b16 %v1043
      %v1076 = vunpack.c.l.b16 %v1044
      %v1077 = vunpack.c.l.b16 %v1045
      %v1078 = vunpack.c.l.b16 %v1046
      %v1079 = vunpack.c.l.b16 %v1047
      %v1080 = vunpack.c.l.b16 %v1048
      %v1081 = vunpack.c.l.b16 %v1049
      %v1082 = vunpack.c.l.b16 %v1050
      %v1083 = vunpack.c.l.b16 %v1051
      %v1084 = vunpack.c.l.b16 %v1052
      %v1085 = vunpack.c.l.b16 %v1053
      %v1086 = vunpack.c.l.b16 %v1054
      %v1087 = vunpack.c.l.b16 %v1055
      %v1088 = vunpack.c.l.b16 %v1056
      %v1089 = vunpack.c.l.b16 %v1057
      %v1090 = vpack.c.b16 %v1075, %v1074
      %v1091 = vpack.c.b16 %v1077, %v1076
      %v1092 = vpack.c.b16 %v1079, %v1078
      %v1093 = vpack.c.b16 %v1081, %v1080
      %v1094 = vpack.c.b16 %v1083, %v1082
      %v1095 = vpack.c.b16 %v1085, %v1084
      %v1096 = vpack.c.b16 %v1087, %v1086
      %v1097 = vpack.c.b16 %v1089, %v1088
      %1106 = vmatpush.bf16.msra.mxu0 %v1097
      %1107 = vmatpush.bf16.msra.mxu0 %v1096
      %1108 = vmatpush.bf16.msra.mxu0 %v1095
      %1109 = vmatpush.bf16.msra.mxu0 %v1094
      %1110 = vmatpush.bf16.msra.mxu0 %v1093
      %1111 = vmatpush.bf16.msra.mxu0 %v1092
      %1112 = vmatpush.bf16.msra.mxu0 %v1091
      %1113 = vmatpush.bf16.msra.mxu0 %v1090
      %1114 = vmatmul.bf16.gmra.mxu0 %v1037
      %v1115 = vpop.f32.mrf.mxu0
      %v1116 = vadd.f32 0.0, %v1115
      %v1117 = vpop.f32.mrf.mxu0
      %v1118 = vadd.f32 0.0, %v1117
      %1119 = vmatmul.bf16.gmra.mxu0 %v1038
      %v1120 = vpop.f32.mrf.mxu0
      %v1121 = vadd.f32 0.0, %v1120
      %v1122 = vpop.f32.mrf.mxu0
      %v1123 = vadd.f32 0.0, %v1122
      %1124 = vmatmul.bf16.gmra.mxu0 %v1039
      %v1125 = vpop.f32.mrf.mxu0
      %v1126 = vadd.f32 0.0, %v1125
      %v1127 = vpop.f32.mrf.mxu0
      %v1128 = vadd.f32 0.0, %v1127
      %1129 = vmatmul.bf16.gmra.mxu0 %v1040
      %v1130 = vpop.f32.mrf.mxu0
      %v1131 = vadd.f32 0.0, %v1130
      %v1132 = vpop.f32.mrf.mxu0
      %v1133 = vadd.f32 0.0, %v1132
      %1134 = vdwg.mxu0
      %v1135 = vadd.f32 %v1020, %v1116
      %v1136 = vadd.f32 %v1021, %v1118
      %v1137 = vadd.f32 %v1022, %v1121
      %v1138 = vadd.f32 %v1023, %v1123
      %v1139 = vadd.f32 %v1024, %v1126
      %v1140 = vadd.f32 %v1025, %v1128
      %v1141 = vadd.f32 %v1026, %v1131
      %v1142 = vadd.f32 %v1027, %v1133
      %v1143 = vld [vmem:[%s1028 + $0x1] sm:$0xff]
      %v1144 = vld [vmem:[%s1028 + $0x11] sm:$0xff]
      %v1145 = vld [vmem:[%s1028 + $0x21] sm:$0xff]
      %v1146 = vld [vmem:[%s1028 + $0x31] sm:$0xff]
      %v1147 = vld [vmem:[%s1028 + $0x41] sm:$0xff]
      %v1148 = vld [vmem:[%s1028 + $0x51] sm:$0xff]
      %v1149 = vld [vmem:[%s1028 + $0x61] sm:$0xff]
      %v1150 = vld [vmem:[%s1028 + $0x71] sm:$0xff]
      %v1151 = vpack.c.bf16 %v1144, %v1143
      %v1152 = vpack.c.bf16 %v1146, %v1145
      %v1153 = vpack.c.bf16 %v1148, %v1147
      %v1154 = vpack.c.bf16 %v1150, %v1149
      %s1155 = scalar_lea.vmem %s1, 448
      %v1156 = vld [vmem:[%s1155] sm:$0xf]
      %v1157 = vld [vmem:[%s1155 + $0x4] sm:$0xf]
      %v1158 = vld [vmem:[%s1155 + $0x8] sm:$0xf]
      %v1159 = vld [vmem:[%s1155 + $0xc] sm:$0xf]
      %v1160 = vld [vmem:[%s1155 + $0x10] sm:$0xf]
      %v1161 = vld [vmem:[%s1155 + $0x14] sm:$0xf]
      %v1162 = vld [vmem:[%s1155 + $0x18] sm:$0xf]
      %v1163 = vld [vmem:[%s1155 + $0x1c] sm:$0xf]
      %v1164 = vld [vmem:[%s1155 + $0x20] sm:$0xf]
      %v1165 = vld [vmem:[%s1155 + $0x24] sm:$0xf]
      %v1166 = vld [vmem:[%s1155 + $0x28] sm:$0xf]
      %v1167 = vld [vmem:[%s1155 + $0x2c] sm:$0xf]
      %v1168 = vld [vmem:[%s1155 + $0x30] sm:$0xf]
      %v1169 = vld [vmem:[%s1155 + $0x34] sm:$0xf]
      %v1170 = vld [vmem:[%s1155 + $0x38] sm:$0xf]
      %v1171 = vld [vmem:[%s1155 + $0x3c] sm:$0xf]
      %v1188 = vunpack.c.l.b16 %v1156
      %v1189 = vunpack.c.l.b16 %v1157
      %v1190 = vunpack.c.l.b16 %v1158
      %v1191 = vunpack.c.l.b16 %v1159
      %v1192 = vunpack.c.l.b16 %v1160
      %v1193 = vunpack.c.l.b16 %v1161
      %v1194 = vunpack.c.l.b16 %v1162
      %v1195 = vunpack.c.l.b16 %v1163
      %v1196 = vunpack.c.l.b16 %v1164
      %v1197 = vunpack.c.l.b16 %v1165
      %v1198 = vunpack.c.l.b16 %v1166
      %v1199 = vunpack.c.l.b16 %v1167
      %v1200 = vunpack.c.l.b16 %v1168
      %v1201 = vunpack.c.l.b16 %v1169
      %v1202 = vunpack.c.l.b16 %v1170
      %v1203 = vunpack.c.l.b16 %v1171
      %v1204 = vpack.c.b16 %v1189, %v1188
      %v1205 = vpack.c.b16 %v1191, %v1190
      %v1206 = vpack.c.b16 %v1193, %v1192
      %v1207 = vpack.c.b16 %v1195, %v1194
      %v1208 = vpack.c.b16 %v1197, %v1196
      %v1209 = vpack.c.b16 %v1199, %v1198
      %v1210 = vpack.c.b16 %v1201, %v1200
      %v1211 = vpack.c.b16 %v1203, %v1202
      %1220 = vmatpush.bf16.msra.mxu0 %v1211
      %1221 = vmatpush.bf16.msra.mxu0 %v1210
      %1222 = vmatpush.bf16.msra.mxu0 %v1209
      %1223 = vmatpush.bf16.msra.mxu0 %v1208
      %1224 = vmatpush.bf16.msra.mxu0 %v1207
      %1225 = vmatpush.bf16.msra.mxu0 %v1206
      %1226 = vmatpush.bf16.msra.mxu0 %v1205
      %1227 = vmatpush.bf16.msra.mxu0 %v1204
      %1228 = vmatmul.bf16.gmra.mxu0 %v1151
      %v1229 = vpop.f32.mrf.mxu0
      %v1230 = vadd.f32 0.0, %v1229
      %v1231 = vpop.f32.mrf.mxu0
      %v1232 = vadd.f32 0.0, %v1231
      %1233 = vmatmul.bf16.gmra.mxu0 %v1152
      %v1234 = vpop.f32.mrf.mxu0
      %v1235 = vadd.f32 0.0, %v1234
      %v1236 = vpop.f32.mrf.mxu0
      %v1237 = vadd.f32 0.0, %v1236
      %1238 = vmatmul.bf16.gmra.mxu0 %v1153
      %v1239 = vpop.f32.mrf.mxu0
      %v1240 = vadd.f32 0.0, %v1239
      %v1241 = vpop.f32.mrf.mxu0
      %v1242 = vadd.f32 0.0, %v1241
      %1243 = vmatmul.bf16.gmra.mxu0 %v1154
      %v1244 = vpop.f32.mrf.mxu0
      %v1245 = vadd.f32 0.0, %v1244
      %v1246 = vpop.f32.mrf.mxu0
      %v1247 = vadd.f32 0.0, %v1246
      %1248 = vdwg.mxu0
      %v1249 = vadd.f32 %v1135, %v1230
      %v1250 = vadd.f32 %v1136, %v1232
      %v1251 = vadd.f32 %v1137, %v1235
      %v1252 = vadd.f32 %v1138, %v1237
      %v1253 = vadd.f32 %v1139, %v1240
      %v1254 = vadd.f32 %v1140, %v1242
      %v1255 = vadd.f32 %v1141, %v1245
      %v1256 = vadd.f32 %v1142, %v1247
      %v1257 = vld [vmem:[%s1028 + $0x2] sm:$0xff]
      %v1258 = vld [vmem:[%s1028 + $0x12] sm:$0xff]
      %v1259 = vld [vmem:[%s1028 + $0x22] sm:$0xff]
      %v1260 = vld [vmem:[%s1028 + $0x32] sm:$0xff]
      %v1261 = vld [vmem:[%s1028 + $0x42] sm:$0xff]
      %v1262 = vld [vmem:[%s1028 + $0x52] sm:$0xff]
      %v1263 = vld [vmem:[%s1028 + $0x62] sm:$0xff]
      %v1264 = vld [vmem:[%s1028 + $0x72] sm:$0xff]
      %v1265 = vpack.c.bf16 %v1258, %v1257
      %v1266 = vpack.c.bf16 %v1260, %v1259
      %v1267 = vpack.c.bf16 %v1262, %v1261
      %v1268 = vpack.c.bf16 %v1264, %v1263
      %s1269 = scalar_lea.vmem %s1, 512
      %v1270 = vld [vmem:[%s1269] sm:$0xf]
      %v1271 = vld [vmem:[%s1269 + $0x4] sm:$0xf]
      %v1272 = vld [vmem:[%s1269 + $0x8] sm:$0xf]
      %v1273 = vld [vmem:[%s1269 + $0xc] sm:$0xf]
      %v1274 = vld [vmem:[%s1269 + $0x10] sm:$0xf]
      %v1275 = vld [vmem:[%s1269 + $0x14] sm:$0xf]
      %v1276 = vld [vmem:[%s1269 + $0x18] sm:$0xf]
      %v1277 = vld [vmem:[%s1269 + $0x1c] sm:$0xf]
      %v1278 = vld [vmem:[%s1269 + $0x20] sm:$0xf]
      %v1279 = vld [vmem:[%s1269 + $0x24] sm:$0xf]
      %v1280 = vld [vmem:[%s1269 + $0x28] sm:$0xf]
      %v1281 = vld [vmem:[%s1269 + $0x2c] sm:$0xf]
      %v1282 = vld [vmem:[%s1269 + $0x30] sm:$0xf]
      %v1283 = vld [vmem:[%s1269 + $0x34] sm:$0xf]
      %v1284 = vld [vmem:[%s1269 + $0x38] sm:$0xf]
      %v1285 = vld [vmem:[%s1269 + $0x3c] sm:$0xf]
      %v1302 = vunpack.c.l.b16 %v1270
      %v1303 = vunpack.c.l.b16 %v1271
      %v1304 = vunpack.c.l.b16 %v1272
      %v1305 = vunpack.c.l.b16 %v1273
      %v1306 = vunpack.c.l.b16 %v1274
      %v1307 = vunpack.c.l.b16 %v1275
      %v1308 = vunpack.c.l.b16 %v1276
      %v1309 = vunpack.c.l.b16 %v1277
      %v1310 = vunpack.c.l.b16 %v1278
      %v1311 = vunpack.c.l.b16 %v1279
      %v1312 = vunpack.c.l.b16 %v1280
      %v1313 = vunpack.c.l.b16 %v1281
      %v1314 = vunpack.c.l.b16 %v1282
      %v1315 = vunpack.c.l.b16 %v1283
      %v1316 = vunpack.c.l.b16 %v1284
      %v1317 = vunpack.c.l.b16 %v1285
      %v1318 = vpack.c.b16 %v1303, %v1302
      %v1319 = vpack.c.b16 %v1305, %v1304
      %v1320 = vpack.c.b16 %v1307, %v1306
      %v1321 = vpack.c.b16 %v1309, %v1308
      %v1322 = vpack.c.b16 %v1311, %v1310
      %v1323 = vpack.c.b16 %v1313, %v1312
      %v1324 = vpack.c.b16 %v1315, %v1314
      %v1325 = vpack.c.b16 %v1317, %v1316
      %1334 = vmatpush.bf16.msra.mxu0 %v1325
      %1335 = vmatpush.bf16.msra.mxu0 %v1324
      %1336 = vmatpush.bf16.msra.mxu0 %v1323
      %1337 = vmatpush.bf16.msra.mxu0 %v1322
      %1338 = vmatpush.bf16.msra.mxu0 %v1321
      %1339 = vmatpush.bf16.msra.mxu0 %v1320
      %1340 = vmatpush.bf16.msra.mxu0 %v1319
      %1341 = vmatpush.bf16.msra.mxu0 %v1318
      %1342 = vmatmul.bf16.gmra.mxu0 %v1265
      %v1343 = vpop.f32.mrf.mxu0
      %v1344 = vadd.f32 0.0, %v1343
      %v1345 = vpop.f32.mrf.mxu0
      %v1346 = vadd.f32 0.0, %v1345
      %1347 = vmatmul.bf16.gmra.mxu0 %v1266
      %v1348 = vpop.f32.mrf.mxu0
      %v1349 = vadd.f32 0.0, %v1348
      %v1350 = vpop.f32.mrf.mxu0
      %v1351 = vadd.f32 0.0, %v1350
      %1352 = vmatmul.bf16.gmra.mxu0 %v1267
      %v1353 = vpop.f32.mrf.mxu0
      %v1354 = vadd.f32 0.0, %v1353
      %v1355 = vpop.f32.mrf.mxu0
      %v1356 = vadd.f32 0.0, %v1355
      %1357 = vmatmul.bf16.gmra.mxu0 %v1268
      %v1358 = vpop.f32.mrf.mxu0
      %v1359 = vadd.f32 0.0, %v1358
      %v1360 = vpop.f32.mrf.mxu0
      %v1361 = vadd.f32 0.0, %v1360
      %1362 = vdwg.mxu0
      %v1363 = vadd.f32 %v1249, %v1344
      %v1364 = vadd.f32 %v1250, %v1346
      %v1365 = vadd.f32 %v1251, %v1349
      %v1366 = vadd.f32 %v1252, %v1351
      %v1367 = vadd.f32 %v1253, %v1354
      %v1368 = vadd.f32 %v1254, %v1356
      %v1369 = vadd.f32 %v1255, %v1359
      %v1370 = vadd.f32 %v1256, %v1361
      %v1371 = vld [vmem:[%s2] sm:$0x1]
      %v1373 = vperm.slane %v1371, 0
      %v1375 = vmul.f32 %v1363, %v1373
      %v1376 = vmul.f32 %v1364, %v1373
      %v1377 = vmul.f32 %v1365, %v1373
      %v1378 = vmul.f32 %v1366, %v1373
      %v1379 = vmul.f32 %v1367, %v1373
      %v1380 = vmul.f32 %v1368, %v1373
      %v1381 = vmul.f32 %v1369, %v1373
      %v1382 = vmul.f32 %v1370, %v1373
      %v1383 = vld [vmem:[%s3] sm:$0x1]
      %v1385 = vperm.slane %v1383, 0
      %v1387 = vadd.f32 %v1375, %v1385
      %v1388 = vadd.f32 %v1376, %v1385
      %v1389 = vadd.f32 %v1377, %v1385
      %v1390 = vadd.f32 %v1378, %v1385
      %v1391 = vadd.f32 %v1379, %v1385
      %v1392 = vadd.f32 %v1380, %v1385
      %v1393 = vadd.f32 %v1381, %v1385
      %v1394 = vadd.f32 %v1382, %v1385
      %v1395 = vmax.f32 %v1387, 0.0
      %v1396 = vmax.f32 %v1388, 0.0
      %v1397 = vmax.f32 %v1389, 0.0
      %v1398 = vmax.f32 %v1390, 0.0
      %v1399 = vmax.f32 %v1391, 0.0
      %v1400 = vmax.f32 %v1392, 0.0
      %v1401 = vmax.f32 %v1393, 0.0
      %v1402 = vmax.f32 %v1394, 0.0
      %1403 = vst [vmem:[#allocation2] sm:$0xff] 0.0
      %1404 = vst [vmem:[#allocation2 + $0x8] sm:$0x3] 0.0
      %1405 = vst [vmem:[#allocation2 + $0x10] sm:$0xff] 0.0
      %1406 = vst [vmem:[#allocation2 + $0x18] sm:$0x3] 0.0
      %1407 = vst [vmem:[#allocation2 + $0x20] sm:$0xff] 0.0
      %1408 = vst [vmem:[#allocation2 + $0x28] sm:$0x3] 0.0
      %1409 = vst [vmem:[#allocation2 + $0x30] sm:$0xff] 0.0
      %1410 = vst [vmem:[#allocation2 + $0x38] sm:$0x3] 0.0
      %1411 = vst [vmem:[#allocation2 + $0x40] sm:$0xff] 0.0
      %1412 = vst [vmem:[#allocation2 + $0x48] sm:$0x3] 0.0
      %1413 = vst [vmem:[#allocation2 + $0x50] sm:$0xff] 0.0
      %1414 = vst [vmem:[#allocation2 + $0x58] sm:$0x3] 0.0
      %1415 = vst [vmem:[#allocation2 + $0x60] sm:$0xff] 0.0
      %1416 = vst [vmem:[#allocation2 + $0x68] sm:$0x3] 0.0
      %1417 = vst [vmem:[#allocation2 + $0x70] sm:$0xff] 0.0
      %1418 = vst [vmem:[#allocation2 + $0x78] sm:$0x3] 0.0
      %1419 = vst [vmem:[#allocation2 + $0x80] sm:$0xff] 0.0
      %1420 = vst [vmem:[#allocation2 + $0x88] sm:$0x3] 0.0
      %1421 = vst [vmem:[#allocation2 + $0x90] sm:$0xff] 0.0
      %1422 = vst [vmem:[#allocation2 + $0x98] sm:$0x3] 0.0
      %s1423 = scalar_lea.vmem [#allocation2], 16
      %1424 = vst [vmem:[%s1423 + $0x1] sm:$0xff] %v1395
      %1425 = vst [vmem:[%s1423 + $0x11] sm:$0xff] %v1396
      %1426 = vst [vmem:[%s1423 + $0x21] sm:$0xff] %v1397
      %1427 = vst [vmem:[%s1423 + $0x31] sm:$0xff] %v1398
      %1428 = vst [vmem:[%s1423 + $0x41] sm:$0xff] %v1399
      %1429 = vst [vmem:[%s1423 + $0x51] sm:$0xff] %v1400
      %1430 = vst [vmem:[%s1423 + $0x61] sm:$0xff] %v1401
      %1431 = vst [vmem:[%s1423 + $0x71] sm:$0xff] %v1402
      %v1432 = vld [vmem:[#allocation2] sm:$0xff]
      %v1433 = vld [vmem:[#allocation2 + $0x10] sm:$0xff]
      %v1434 = vld [vmem:[#allocation2 + $0x20] sm:$0xff]
      %v1435 = vld [vmem:[#allocation2 + $0x30] sm:$0xff]
      %v1436 = vld [vmem:[#allocation2 + $0x40] sm:$0xff]
      %v1437 = vld [vmem:[#allocation2 + $0x50] sm:$0xff]
      %v1438 = vld [vmem:[#allocation2 + $0x60] sm:$0xff]
      %v1439 = vld [vmem:[#allocation2 + $0x70] sm:$0xff]
      %v1440 = vpack.c.bf16 %v1433, %v1432
      %v1441 = vpack.c.bf16 %v1435, %v1434
      %v1442 = vpack.c.bf16 %v1437, %v1436
      %v1443 = vpack.c.bf16 %v1439, %v1438
      %v1444 = vld [vmem:[%s4] sm:$0xf]
      %v1445 = vld [vmem:[%s4 + $0x4] sm:$0xf]
      %v1446 = vld [vmem:[%s4 + $0x8] sm:$0xf]
      %v1447 = vld [vmem:[%s4 + $0xc] sm:$0xf]
      %v1448 = vld [vmem:[%s4 + $0x10] sm:$0xf]
      %v1449 = vld [vmem:[%s4 + $0x14] sm:$0xf]
      %v1450 = vld [vmem:[%s4 + $0x18] sm:$0xf]
      %v1451 = vld [vmem:[%s4 + $0x1c] sm:$0xf]
      %v1452 = vld [vmem:[%s4 + $0x20] sm:$0xf]
      %v1453 = vld [vmem:[%s4 + $0x24] sm:$0xf]
      %v1454 = vld [vmem:[%s4 + $0x28] sm:$0xf]
      %v1455 = vld [vmem:[%s4 + $0x2c] sm:$0xf]
      %v1456 = vld [vmem:[%s4 + $0x30] sm:$0xf]
      %v1457 = vld [vmem:[%s4 + $0x34] sm:$0xf]
      %v1458 = vld [vmem:[%s4 + $0x38] sm:$0xf]
      %v1459 = vld [vmem:[%s4 + $0x3c] sm:$0xf]
      %v1460 = vld [vmem:[#allocation2 + $0x1] sm:$0xff]
      %v1461 = vld [vmem:[#allocation2 + $0x11] sm:$0xff]
      %v1462 = vld [vmem:[#allocation2 + $0x21] sm:$0xff]
      %v1463 = vld [vmem:[#allocation2 + $0x31] sm:$0xff]
      %v1464 = vld [vmem:[#allocation2 + $0x41] sm:$0xff]
      %v1465 = vld [vmem:[#allocation2 + $0x51] sm:$0xff]
      %v1466 = vld [vmem:[#allocation2 + $0x61] sm:$0xff]
      %v1467 = vld [vmem:[#allocation2 + $0x71] sm:$0xff]
      %v1468 = vpack.c.bf16 %v1461, %v1460
      %v1469 = vpack.c.bf16 %v1463, %v1462
      %v1470 = vpack.c.bf16 %v1465, %v1464
      %v1471 = vpack.c.bf16 %v1467, %v1466
      %s1472 = scalar_lea.vmem %s4, 64
      %v1473 = vld [vmem:[%s1472] sm:$0xf]
      %v1474 = vld [vmem:[%s1472 + $0x4] sm:$0xf]
      %v1475 = vld [vmem:[%s1472 + $0x8] sm:$0xf]
      %v1476 = vld [vmem:[%s1472 + $0xc] sm:$0xf]
      %v1477 = vld [vmem:[%s1472 + $0x10] sm:$0xf]
      %v1478 = vld [vmem:[%s1472 + $0x14] sm:$0xf]
      %v1479 = vld [vmem:[%s1472 + $0x18] sm:$0xf]
      %v1480 = vld [vmem:[%s1472 + $0x1c] sm:$0xf]
      %v1481 = vld [vmem:[%s1472 + $0x20] sm:$0xf]
      %v1482 = vld [vmem:[%s1472 + $0x24] sm:$0xf]
      %v1483 = vld [vmem:[%s1472 + $0x28] sm:$0xf]
      %v1484 = vld [vmem:[%s1472 + $0x2c] sm:$0xf]
      %v1485 = vld [vmem:[%s1472 + $0x30] sm:$0xf]
      %v1486 = vld [vmem:[%s1472 + $0x34] sm:$0xf]
      %v1487 = vld [vmem:[%s1472 + $0x38] sm:$0xf]
      %v1488 = vld [vmem:[%s1472 + $0x3c] sm:$0xf]
      %v1505 = vunpack.c.l.b16 %v1473
      %v1506 = vunpack.c.l.b16 %v1474
      %v1507 = vunpack.c.l.b16 %v1475
      %v1508 = vunpack.c.l.b16 %v1476
      %v1509 = vunpack.c.l.b16 %v1477
      %v1510 = vunpack.c.l.b16 %v1478
      %v1511 = vunpack.c.l.b16 %v1479
      %v1512 = vunpack.c.l.b16 %v1480
      %v1513 = vunpack.c.l.b16 %v1481
      %v1514 = vunpack.c.l.b16 %v1482
      %v1515 = vunpack.c.l.b16 %v1483
      %v1516 = vunpack.c.l.b16 %v1484
      %v1517 = vunpack.c.l.b16 %v1485
      %v1518 = vunpack.c.l.b16 %v1486
      %v1519 = vunpack.c.l.b16 %v1487
      %v1520 = vunpack.c.l.b16 %v1488
      %v1521 = vpack.c.b16 %v1506, %v1505
      %v1522 = vpack.c.b16 %v1508, %v1507
      %v1523 = vpack.c.b16 %v1510, %v1509
      %v1524 = vpack.c.b16 %v1512, %v1511
      %v1525 = vpack.c.b16 %v1514, %v1513
      %v1526 = vpack.c.b16 %v1516, %v1515
      %v1527 = vpack.c.b16 %v1518, %v1517
      %v1528 = vpack.c.b16 %v1520, %v1519
      %1537 = vmatpush.bf16.msra.mxu0 %v1528
      %1538 = vmatpush.bf16.msra.mxu0 %v1527
      %1539 = vmatpush.bf16.msra.mxu0 %v1526
      %1540 = vmatpush.bf16.msra.mxu0 %v1525
      %1541 = vmatpush.bf16.msra.mxu0 %v1524
      %1542 = vmatpush.bf16.msra.mxu0 %v1523
      %1543 = vmatpush.bf16.msra.mxu0 %v1522
      %1544 = vmatpush.bf16.msra.mxu0 %v1521
      %1545 = vmatmul.bf16.gmra.mxu0 %v1468
      %v1546 = vpop.f32.mrf.mxu0
      %v1547 = vadd.f32 0.0, %v1546
      %v1548 = vpop.f32.mrf.mxu0
      %v1549 = vadd.f32 0.0, %v1548
      %1550 = vmatmul.bf16.gmra.mxu0 %v1469
      %v1551 = vpop.f32.mrf.mxu0
      %v1552 = vadd.f32 0.0, %v1551
      %v1553 = vpop.f32.mrf.mxu0
      %v1554 = vadd.f32 0.0, %v1553
      %1555 = vmatmul.bf16.gmra.mxu0 %v1470
      %v1556 = vpop.f32.mrf.mxu0
      %v1557 = vadd.f32 0.0, %v1556
      %v1558 = vpop.f32.mrf.mxu0
      %v1559 = vadd.f32 0.0, %v1558
      %1560 = vmatmul.bf16.gmra.mxu0 %v1471
      %v1561 = vpop.f32.mrf.mxu0
      %v1562 = vadd.f32 0.0, %v1561
      %v1563 = vpop.f32.mrf.mxu0
      %v1564 = vadd.f32 0.0, %v1563
      %1565 = vdwg.mxu0
      %v1582 = vunpack.c.l.b16 %v1444
      %v1583 = vunpack.c.l.b16 %v1445
      %v1584 = vunpack.c.l.b16 %v1446
      %v1585 = vunpack.c.l.b16 %v1447
      %v1586 = vunpack.c.l.b16 %v1448
      %v1587 = vunpack.c.l.b16 %v1449
      %v1588 = vunpack.c.l.b16 %v1450
      %v1589 = vunpack.c.l.b16 %v1451
      %v1590 = vunpack.c.l.b16 %v1452
      %v1591 = vunpack.c.l.b16 %v1453
      %v1592 = vunpack.c.l.b16 %v1454
      %v1593 = vunpack.c.l.b16 %v1455
      %v1594 = vunpack.c.l.b16 %v1456
      %v1595 = vunpack.c.l.b16 %v1457
      %v1596 = vunpack.c.l.b16 %v1458
      %v1597 = vunpack.c.l.b16 %v1459
      %v1598 = vpack.c.b16 %v1583, %v1582
      %v1599 = vpack.c.b16 %v1585, %v1584
      %v1600 = vpack.c.b16 %v1587, %v1586
      %v1601 = vpack.c.b16 %v1589, %v1588
      %v1602 = vpack.c.b16 %v1591, %v1590
      %v1603 = vpack.c.b16 %v1593, %v1592
      %v1604 = vpack.c.b16 %v1595, %v1594
      %v1605 = vpack.c.b16 %v1597, %v1596
      %1614 = vmatpush.bf16.msra.mxu0 %v1605
      %1615 = vmatpush.bf16.msra.mxu0 %v1604
      %1616 = vmatpush.bf16.msra.mxu0 %v1603
      %1617 = vmatpush.bf16.msra.mxu0 %v1602
      %1618 = vmatpush.bf16.msra.mxu0 %v1601
      %1619 = vmatpush.bf16.msra.mxu0 %v1600
      %1620 = vmatpush.bf16.msra.mxu0 %v1599
      %1621 = vmatpush.bf16.msra.mxu0 %v1598
      %1622 = vmatmul.bf16.gmra.mxu0 %v1440
      %v1623 = vpop.f32.mrf.mxu0
      %v1624 = vadd.f32 %v1547, %v1623
      %v1625 = vpop.f32.mrf.mxu0
      %v1626 = vadd.f32 %v1549, %v1625
      %1627 = vmatmul.bf16.gmra.mxu0 %v1441
      %v1628 = vpop.f32.mrf.mxu0
      %v1629 = vadd.f32 %v1552, %v1628
      %v1630 = vpop.f32.mrf.mxu0
      %v1631 = vadd.f32 %v1554, %v1630
      %1632 = vmatmul.bf16.gmra.mxu0 %v1442
      %v1633 = vpop.f32.mrf.mxu0
      %v1634 = vadd.f32 %v1557, %v1633
      %v1635 = vpop.f32.mrf.mxu0
      %v1636 = vadd.f32 %v1559, %v1635
      %1637 = vmatmul.bf16.gmra.mxu0 %v1443
      %v1638 = vpop.f32.mrf.mxu0
      %v1639 = vadd.f32 %v1562, %v1638
      %v1640 = vpop.f32.mrf.mxu0
      %v1641 = vadd.f32 %v1564, %v1640
      %1642 = vdwg.mxu0
      %v1643 = vld [vmem:[#allocation2 + $0x2] sm:$0xff]
      %v1644 = vld [vmem:[#allocation2 + $0x12] sm:$0xff]
      %v1645 = vld [vmem:[#allocation2 + $0x22] sm:$0xff]
      %v1646 = vld [vmem:[#allocation2 + $0x32] sm:$0xff]
      %v1647 = vld [vmem:[#allocation2 + $0x42] sm:$0xff]
      %v1648 = vld [vmem:[#allocation2 + $0x52] sm:$0xff]
      %v1649 = vld [vmem:[#allocation2 + $0x62] sm:$0xff]
      %v1650 = vld [vmem:[#allocation2 + $0x72] sm:$0xff]
      %v1651 = vpack.c.bf16 %v1644, %v1643
      %v1652 = vpack.c.bf16 %v1646, %v1645
      %v1653 = vpack.c.bf16 %v1648, %v1647
      %v1654 = vpack.c.bf16 %v1650, %v1649
      %s1655 = scalar_lea.vmem %s4, 128
      %v1656 = vld [vmem:[%s1655] sm:$0xf]
      %v1657 = vld [vmem:[%s1655 + $0x4] sm:$0xf]
      %v1658 = vld [vmem:[%s1655 + $0x8] sm:$0xf]
      %v1659 = vld [vmem:[%s1655 + $0xc] sm:$0xf]
      %v1660 = vld [vmem:[%s1655 + $0x10] sm:$0xf]
      %v1661 = vld [vmem:[%s1655 + $0x14] sm:$0xf]
      %v1662 = vld [vmem:[%s1655 + $0x18] sm:$0xf]
      %v1663 = vld [vmem:[%s1655 + $0x1c] sm:$0xf]
      %v1664 = vld [vmem:[%s1655 + $0x20] sm:$0xf]
      %v1665 = vld [vmem:[%s1655 + $0x24] sm:$0xf]
      %v1666 = vld [vmem:[%s1655 + $0x28] sm:$0xf]
      %v1667 = vld [vmem:[%s1655 + $0x2c] sm:$0xf]
      %v1668 = vld [vmem:[%s1655 + $0x30] sm:$0xf]
      %v1669 = vld [vmem:[%s1655 + $0x34] sm:$0xf]
      %v1670 = vld [vmem:[%s1655 + $0x38] sm:$0xf]
      %v1671 = vld [vmem:[%s1655 + $0x3c] sm:$0xf]
      %v1688 = vunpack.c.l.b16 %v1656
      %v1689 = vunpack.c.l.b16 %v1657
      %v1690 = vunpack.c.l.b16 %v1658
      %v1691 = vunpack.c.l.b16 %v1659
      %v1692 = vunpack.c.l.b16 %v1660
      %v1693 = vunpack.c.l.b16 %v1661
      %v1694 = vunpack.c.l.b16 %v1662
      %v1695 = vunpack.c.l.b16 %v1663
      %v1696 = vunpack.c.l.b16 %v1664
      %v1697 = vunpack.c.l.b16 %v1665
      %v1698 = vunpack.c.l.b16 %v1666
      %v1699 = vunpack.c.l.b16 %v1667
      %v1700 = vunpack.c.l.b16 %v1668
      %v1701 = vunpack.c.l.b16 %v1669
      %v1702 = vunpack.c.l.b16 %v1670
      %v1703 = vunpack.c.l.b16 %v1671
      %v1704 = vpack.c.b16 %v1689, %v1688
      %v1705 = vpack.c.b16 %v1691, %v1690
      %v1706 = vpack.c.b16 %v1693, %v1692
      %v1707 = vpack.c.b16 %v1695, %v1694
      %v1708 = vpack.c.b16 %v1697, %v1696
      %v1709 = vpack.c.b16 %v1699, %v1698
      %v1710 = vpack.c.b16 %v1701, %v1700
      %v1711 = vpack.c.b16 %v1703, %v1702
      %1720 = vmatpush.bf16.msra.mxu0 %v1711
      %1721 = vmatpush.bf16.msra.mxu0 %v1710
      %1722 = vmatpush.bf16.msra.mxu0 %v1709
      %1723 = vmatpush.bf16.msra.mxu0 %v1708
      %1724 = vmatpush.bf16.msra.mxu0 %v1707
      %1725 = vmatpush.bf16.msra.mxu0 %v1706
      %1726 = vmatpush.bf16.msra.mxu0 %v1705
      %1727 = vmatpush.bf16.msra.mxu0 %v1704
      %1728 = vmatmul.bf16.gmra.mxu0 %v1651
      %v1729 = vpop.f32.mrf.mxu0
      %v1730 = vadd.f32 0.0, %v1729
      %v1731 = vpop.f32.mrf.mxu0
      %v1732 = vadd.f32 0.0, %v1731
      %1733 = vmatmul.bf16.gmra.mxu0 %v1652
      %v1734 = vpop.f32.mrf.mxu0
      %v1735 = vadd.f32 0.0, %v1734
      %v1736 = vpop.f32.mrf.mxu0
      %v1737 = vadd.f32 0.0, %v1736
      %1738 = vmatmul.bf16.gmra.mxu0 %v1653
      %v1739 = vpop.f32.mrf.mxu0
      %v1740 = vadd.f32 0.0, %v1739
      %v1741 = vpop.f32.mrf.mxu0
      %v1742 = vadd.f32 0.0, %v1741
      %1743 = vmatmul.bf16.gmra.mxu0 %v1654
      %v1744 = vpop.f32.mrf.mxu0
      %v1745 = vadd.f32 0.0, %v1744
      %v1746 = vpop.f32.mrf.mxu0
      %v1747 = vadd.f32 0.0, %v1746
      %1748 = vdwg.mxu0
      %v1749 = vadd.f32 %v1624, %v1730
      %v1750 = vadd.f32 %v1626, %v1732
      %v1751 = vadd.f32 %v1629, %v1735
      %v1752 = vadd.f32 %v1631, %v1737
      %v1753 = vadd.f32 %v1634, %v1740
      %v1754 = vadd.f32 %v1636, %v1742
      %v1755 = vadd.f32 %v1639, %v1745
      %v1756 = vadd.f32 %v1641, %v1747
      %v1757 = vld [vmem:[%s1423] sm:$0xff]
      %v1758 = vld [vmem:[%s1423 + $0x10] sm:$0xff]
      %v1759 = vld [vmem:[%s1423 + $0x20] sm:$0xff]
      %v1760 = vld [vmem:[%s1423 + $0x30] sm:$0xff]
      %v1761 = vld [vmem:[%s1423 + $0x40] sm:$0xff]
      %v1762 = vld [vmem:[%s1423 + $0x50] sm:$0xff]
      %v1763 = vld [vmem:[%s1423 + $0x60] sm:$0xff]
      %v1764 = vld [vmem:[%s1423 + $0x70] sm:$0xff]
      %v1765 = vpack.c.bf16 %v1758, %v1757
      %v1766 = vpack.c.bf16 %v1760, %v1759
      %v1767 = vpack.c.bf16 %v1762, %v1761
      %v1768 = vpack.c.bf16 %v1764, %v1763
      %s1769 = scalar_lea.vmem %s4, 192
      %v1770 = vld [vmem:[%s1769] sm:$0xf]
      %v1771 = vld [vmem:[%s1769 + $0x4] sm:$0xf]
      %v1772 = vld [vmem:[%s1769 + $0x8] sm:$0xf]
      %v1773 = vld [vmem:[%s1769 + $0xc] sm:$0xf]
      %v1774 = vld [vmem:[%s1769 + $0x10] sm:$0xf]
      %v1775 = vld [vmem:[%s1769 + $0x14] sm:$0xf]
      %v1776 = vld [vmem:[%s1769 + $0x18] sm:$0xf]
      %v1777 = vld [vmem:[%s1769 + $0x1c] sm:$0xf]
      %v1778 = vld [vmem:[%s1769 + $0x20] sm:$0xf]
      %v1779 = vld [vmem:[%s1769 + $0x24] sm:$0xf]
      %v1780 = vld [vmem:[%s1769 + $0x28] sm:$0xf]
      %v1781 = vld [vmem:[%s1769 + $0x2c] sm:$0xf]
      %v1782 = vld [vmem:[%s1769 + $0x30] sm:$0xf]
      %v1783 = vld [vmem:[%s1769 + $0x34] sm:$0xf]
      %v1784 = vld [vmem:[%s1769 + $0x38] sm:$0xf]
      %v1785 = vld [vmem:[%s1769 + $0x3c] sm:$0xf]
      %v1802 = vunpack.c.l.b16 %v1770
      %v1803 = vunpack.c.l.b16 %v1771
      %v1804 = vunpack.c.l.b16 %v1772
      %v1805 = vunpack.c.l.b16 %v1773
      %v1806 = vunpack.c.l.b16 %v1774
      %v1807 = vunpack.c.l.b16 %v1775
      %v1808 = vunpack.c.l.b16 %v1776
      %v1809 = vunpack.c.l.b16 %v1777
      %v1810 = vunpack.c.l.b16 %v1778
      %v1811 = vunpack.c.l.b16 %v1779
      %v1812 = vunpack.c.l.b16 %v1780
      %v1813 = vunpack.c.l.b16 %v1781
      %v1814 = vunpack.c.l.b16 %v1782
      %v1815 = vunpack.c.l.b16 %v1783
      %v1816 = vunpack.c.l.b16 %v1784
      %v1817 = vunpack.c.l.b16 %v1785
      %v1818 = vpack.c.b16 %v1803, %v1802
      %v1819 = vpack.c.b16 %v1805, %v1804
      %v1820 = vpack.c.b16 %v1807, %v1806
      %v1821 = vpack.c.b16 %v1809, %v1808
      %v1822 = vpack.c.b16 %v1811, %v1810
      %v1823 = vpack.c.b16 %v1813, %v1812
      %v1824 = vpack.c.b16 %v1815, %v1814
      %v1825 = vpack.c.b16 %v1817, %v1816
      %1834 = vmatpush.bf16.msra.mxu0 %v1825
      %1835 = vmatpush.bf16.msra.mxu0 %v1824
      %1836 = vmatpush.bf16.msra.mxu0 %v1823
      %1837 = vmatpush.bf16.msra.mxu0 %v1822
      %1838 = vmatpush.bf16.msra.mxu0 %v1821
      %1839 = vmatpush.bf16.msra.mxu0 %v1820
      %1840 = vmatpush.bf16.msra.mxu0 %v1819
      %1841 = vmatpush.bf16.msra.mxu0 %v1818
      %1842 = vmatmul.bf16.gmra.mxu0 %v1765
      %v1843 = vpop.f32.mrf.mxu0
      %v1844 = vadd.f32 0.0, %v1843
      %v1845 = vpop.f32.mrf.mxu0
      %v1846 = vadd.f32 0.0, %v1845
      %1847 = vmatmul.bf16.gmra.mxu0 %v1766
      %v1848 = vpop.f32.mrf.mxu0
      %v1849 = vadd.f32 0.0, %v1848
      %v1850 = vpop.f32.mrf.mxu0
      %v1851 = vadd.f32 0.0, %v1850
      %1852 = vmatmul.bf16.gmra.mxu0 %v1767
      %v1853 = vpop.f32.mrf.mxu0
      %v1854 = vadd.f32 0.0, %v1853
      %v1855 = vpop.f32.mrf.mxu0
      %v1856 = vadd.f32 0.0, %v1855
      %1857 = vmatmul.bf16.gmra.mxu0 %v1768
      %v1858 = vpop.f32.mrf.mxu0
      %v1859 = vadd.f32 0.0, %v1858
      %v1860 = vpop.f32.mrf.mxu0
      %v1861 = vadd.f32 0.0, %v1860
      %1862 = vdwg.mxu0
      %v1863 = vadd.f32 %v1749, %v1844
      %v1864 = vadd.f32 %v1750, %v1846
      %v1865 = vadd.f32 %v1751, %v1849
      %v1866 = vadd.f32 %v1752, %v1851
      %v1867 = vadd.f32 %v1753, %v1854
      %v1868 = vadd.f32 %v1754, %v1856
      %v1869 = vadd.f32 %v1755, %v1859
      %v1870 = vadd.f32 %v1756, %v1861
      %v1871 = vld [vmem:[%s1423 + $0x1] sm:$0xff]
      %v1872 = vld [vmem:[%s1423 + $0x11] sm:$0xff]
      %v1873 = vld [vmem:[%s1423 + $0x21] sm:$0xff]
      %v1874 = vld [vmem:[%s1423 + $0x31] sm:$0xff]
      %v1875 = vld [vmem:[%s1423 + $0x41] sm:$0xff]
      %v1876 = vld [vmem:[%s1423 + $0x51] sm:$0xff]
      %v1877 = vld [vmem:[%s1423 + $0x61] sm:$0xff]
      %v1878 = vld [vmem:[%s1423 + $0x71] sm:$0xff]
      %v1879 = vpack.c.bf16 %v1872, %v1871
      %v1880 = vpack.c.bf16 %v1874, %v1873
      %v1881 = vpack.c.bf16 %v1876, %v1875
      %v1882 = vpack.c.bf16 %v1878, %v1877
      %s1883 = scalar_lea.vmem %s4, 256
      %v1884 = vld [vmem:[%s1883] sm:$0xf]
      %v1885 = vld [vmem:[%s1883 + $0x4] sm:$0xf]
      %v1886 = vld [vmem:[%s1883 + $0x8] sm:$0xf]
      %v1887 = vld [vmem:[%s1883 + $0xc] sm:$0xf]
      %v1888 = vld [vmem:[%s1883 + $0x10] sm:$0xf]
      %v1889 = vld [vmem:[%s1883 + $0x14] sm:$0xf]
      %v1890 = vld [vmem:[%s1883 + $0x18] sm:$0xf]
      %v1891 = vld [vmem:[%s1883 + $0x1c] sm:$0xf]
      %v1892 = vld [vmem:[%s1883 + $0x20] sm:$0xf]
      %v1893 = vld [vmem:[%s1883 + $0x24] sm:$0xf]
      %v1894 = vld [vmem:[%s1883 + $0x28] sm:$0xf]
      %v1895 = vld [vmem:[%s1883 + $0x2c] sm:$0xf]
      %v1896 = vld [vmem:[%s1883 + $0x30] sm:$0xf]
      %v1897 = vld [vmem:[%s1883 + $0x34] sm:$0xf]
      %v1898 = vld [vmem:[%s1883 + $0x38] sm:$0xf]
      %v1899 = vld [vmem:[%s1883 + $0x3c] sm:$0xf]
      %v1916 = vunpack.c.l.b16 %v1884
      %v1917 = vunpack.c.l.b16 %v1885
      %v1918 = vunpack.c.l.b16 %v1886
      %v1919 = vunpack.c.l.b16 %v1887
      %v1920 = vunpack.c.l.b16 %v1888
      %v1921 = vunpack.c.l.b16 %v1889
      %v1922 = vunpack.c.l.b16 %v1890
      %v1923 = vunpack.c.l.b16 %v1891
      %v1924 = vunpack.c.l.b16 %v1892
      %v1925 = vunpack.c.l.b16 %v1893
      %v1926 = vunpack.c.l.b16 %v1894
      %v1927 = vunpack.c.l.b16 %v1895
      %v1928 = vunpack.c.l.b16 %v1896
      %v1929 = vunpack.c.l.b16 %v1897
      %v1930 = vunpack.c.l.b16 %v1898
      %v1931 = vunpack.c.l.b16 %v1899
      %v1932 = vpack.c.b16 %v1917, %v1916
      %v1933 = vpack.c.b16 %v1919, %v1918
      %v1934 = vpack.c.b16 %v1921, %v1920
      %v1935 = vpack.c.b16 %v1923, %v1922
      %v1936 = vpack.c.b16 %v1925, %v1924
      %v1937 = vpack.c.b16 %v1927, %v1926
      %v1938 = vpack.c.b16 %v1929, %v1928
      %v1939 = vpack.c.b16 %v1931, %v1930
      %1948 = vmatpush.bf16.msra.mxu0 %v1939
      %1949 = vmatpush.bf16.msra.mxu0 %v1938
      %1950 = vmatpush.bf16.msra.mxu0 %v1937
      %1951 = vmatpush.bf16.msra.mxu0 %v1936
      %1952 = vmatpush.bf16.msra.mxu0 %v1935
      %1953 = vmatpush.bf16.msra.mxu0 %v1934
      %1954 = vmatpush.bf16.msra.mxu0 %v1933
      %1955 = vmatpush.bf16.msra.mxu0 %v1932
      %1956 = vmatmul.bf16.gmra.mxu0 %v1879
      %v1957 = vpop.f32.mrf.mxu0
      %v1958 = vadd.f32 0.0, %v1957
      %v1959 = vpop.f32.mrf.mxu0
      %v1960 = vadd.f32 0.0, %v1959
      %1961 = vmatmul.bf16.gmra.mxu0 %v1880
      %v1962 = vpop.f32.mrf.mxu0
      %v1963 = vadd.f32 0.0, %v1962
      %v1964 = vpop.f32.mrf.mxu0
      %v1965 = vadd.f32 0.0, %v1964
      %1966 = vmatmul.bf16.gmra.mxu0 %v1881
      %v1967 = vpop.f32.mrf.mxu0
      %v1968 = vadd.f32 0.0, %v1967
      %v1969 = vpop.f32.mrf.mxu0
      %v1970 = vadd.f32 0.0, %v1969
      %1971 = vmatmul.bf16.gmra.mxu0 %v1882
      %v1972 = vpop.f32.mrf.mxu0
      %v1973 = vadd.f32 0.0, %v1972
      %v1974 = vpop.f32.mrf.mxu0
      %v1975 = vadd.f32 0.0, %v1974
      %1976 = vdwg.mxu0
      %v1977 = vadd.f32 %v1863, %v1958
      %v1978 = vadd.f32 %v1864, %v1960
      %v1979 = vadd.f32 %v1865, %v1963
      %v1980 = vadd.f32 %v1866, %v1965
      %v1981 = vadd.f32 %v1867, %v1968
      %v1982 = vadd.f32 %v1868, %v1970
      %v1983 = vadd.f32 %v1869, %v1973
      %v1984 = vadd.f32 %v1870, %v1975
      %v1985 = vld [vmem:[%s1423 + $0x2] sm:$0xff]
      %v1986 = vld [vmem:[%s1423 + $0x12] sm:$0xff]
      %v1987 = vld [vmem:[%s1423 + $0x22] sm:$0xff]
      %v1988 = vld [vmem:[%s1423 + $0x32] sm:$0xff]
      %v1989 = vld [vmem:[%s1423 + $0x42] sm:$0xff]
      %v1990 = vld [vmem:[%s1423 + $0x52] sm:$0xff]
      %v1991 = vld [vmem:[%s1423 + $0x62] sm:$0xff]
      %v1992 = vld [vmem:[%s1423 + $0x72] sm:$0xff]
      %v1993 = vpack.c.bf16 %v1986, %v1985
      %v1994 = vpack.c.bf16 %v1988, %v1987
      %v1995 = vpack.c.bf16 %v1990, %v1989
      %v1996 = vpack.c.bf16 %v1992, %v1991
      %s1997 = scalar_lea.vmem %s4, 320
      %v1998 = vld [vmem:[%s1997] sm:$0xf]
      %v1999 = vld [vmem:[%s1997 + $0x4] sm:$0xf]
      %v2000 = vld [vmem:[%s1997 + $0x8] sm:$0xf]
      %v2001 = vld [vmem:[%s1997 + $0xc] sm:$0xf]
      %v2002 = vld [vmem:[%s1997 + $0x10] sm:$0xf]
      %v2003 = vld [vmem:[%s1997 + $0x14] sm:$0xf]
      %v2004 = vld [vmem:[%s1997 + $0x18] sm:$0xf]
      %v2005 = vld [vmem:[%s1997 + $0x1c] sm:$0xf]
      %v2006 = vld [vmem:[%s1997 + $0x20] sm:$0xf]
      %v2007 = vld [vmem:[%s1997 + $0x24] sm:$0xf]
      %v2008 = vld [vmem:[%s1997 + $0x28] sm:$0xf]
      %v2009 = vld [vmem:[%s1997 + $0x2c] sm:$0xf]
      %v2010 = vld [vmem:[%s1997 + $0x30] sm:$0xf]
      %v2011 = vld [vmem:[%s1997 + $0x34] sm:$0xf]
      %v2012 = vld [vmem:[%s1997 + $0x38] sm:$0xf]
      %v2013 = vld [vmem:[%s1997 + $0x3c] sm:$0xf]
      %v2030 = vunpack.c.l.b16 %v1998
      %v2031 = vunpack.c.l.b16 %v1999
      %v2032 = vunpack.c.l.b16 %v2000
      %v2033 = vunpack.c.l.b16 %v2001
      %v2034 = vunpack.c.l.b16 %v2002
      %v2035 = vunpack.c.l.b16 %v2003
      %v2036 = vunpack.c.l.b16 %v2004
      %v2037 = vunpack.c.l.b16 %v2005
      %v2038 = vunpack.c.l.b16 %v2006
      %v2039 = vunpack.c.l.b16 %v2007
      %v2040 = vunpack.c.l.b16 %v2008
      %v2041 = vunpack.c.l.b16 %v2009
      %v2042 = vunpack.c.l.b16 %v2010
      %v2043 = vunpack.c.l.b16 %v2011
      %v2044 = vunpack.c.l.b16 %v2012
      %v2045 = vunpack.c.l.b16 %v2013
      %v2046 = vpack.c.b16 %v2031, %v2030
      %v2047 = vpack.c.b16 %v2033, %v2032
      %v2048 = vpack.c.b16 %v2035, %v2034
      %v2049 = vpack.c.b16 %v2037, %v2036
      %v2050 = vpack.c.b16 %v2039, %v2038
      %v2051 = vpack.c.b16 %v2041, %v2040
      %v2052 = vpack.c.b16 %v2043, %v2042
      %v2053 = vpack.c.b16 %v2045, %v2044
      %2062 = vmatpush.bf16.msra.mxu0 %v2053
      %2063 = vmatpush.bf16.msra.mxu0 %v2052
      %2064 = vmatpush.bf16.msra.mxu0 %v2051
      %2065 = vmatpush.bf16.msra.mxu0 %v2050
      %2066 = vmatpush.bf16.msra.mxu0 %v2049
      %2067 = vmatpush.bf16.msra.mxu0 %v2048
      %2068 = vmatpush.bf16.msra.mxu0 %v2047
      %2069 = vmatpush.bf16.msra.mxu0 %v2046
      %2070 = vmatmul.bf16.gmra.mxu0 %v1993
      %v2071 = vpop.f32.mrf.mxu0
      %v2072 = vadd.f32 0.0, %v2071
      %v2073 = vpop.f32.mrf.mxu0
      %v2074 = vadd.f32 0.0, %v2073
      %2075 = vmatmul.bf16.gmra.mxu0 %v1994
      %v2076 = vpop.f32.mrf.mxu0
      %v2077 = vadd.f32 0.0, %v2076
      %v2078 = vpop.f32.mrf.mxu0
      %v2079 = vadd.f32 0.0, %v2078
      %2080 = vmatmul.bf16.gmra.mxu0 %v1995
      %v2081 = vpop.f32.mrf.mxu0
      %v2082 = vadd.f32 0.0, %v2081
      %v2083 = vpop.f32.mrf.mxu0
      %v2084 = vadd.f32 0.0, %v2083
      %2085 = vmatmul.bf16.gmra.mxu0 %v1996
      %v2086 = vpop.f32.mrf.mxu0
      %v2087 = vadd.f32 0.0, %v2086
      %v2088 = vpop.f32.mrf.mxu0
      %v2089 = vadd.f32 0.0, %v2088
      %2090 = vdwg.mxu0
      %v2091 = vadd.f32 %v1977, %v2072
      %v2092 = vadd.f32 %v1978, %v2074
      %v2093 = vadd.f32 %v1979, %v2077
      %v2094 = vadd.f32 %v1980, %v2079
      %v2095 = vadd.f32 %v1981, %v2082
      %v2096 = vadd.f32 %v1982, %v2084
      %v2097 = vadd.f32 %v1983, %v2087
      %v2098 = vadd.f32 %v1984, %v2089
      %s2099 = scalar_lea.vmem [#allocation2], 32
      %v2100 = vld [vmem:[%s2099] sm:$0xff]
      %v2101 = vld [vmem:[%s2099 + $0x10] sm:$0xff]
      %v2102 = vld [vmem:[%s2099 + $0x20] sm:$0xff]
      %v2103 = vld [vmem:[%s2099 + $0x30] sm:$0xff]
      %v2104 = vld [vmem:[%s2099 + $0x40] sm:$0xff]
      %v2105 = vld [vmem:[%s2099 + $0x50] sm:$0xff]
      %v2106 = vld [vmem:[%s2099 + $0x60] sm:$0xff]
      %v2107 = vld [vmem:[%s2099 + $0x70] sm:$0xff]
      %v2108 = vpack.c.bf16 %v2101, %v2100
      %v2109 = vpack.c.bf16 %v2103, %v2102
      %v2110 = vpack.c.bf16 %v2105, %v2104
      %v2111 = vpack.c.bf16 %v2107, %v2106
      %s2112 = scalar_lea.vmem %s4, 384
      %v2113 = vld [vmem:[%s2112] sm:$0xf]
      %v2114 = vld [vmem:[%s2112 + $0x4] sm:$0xf]
      %v2115 = vld [vmem:[%s2112 + $0x8] sm:$0xf]
      %v2116 = vld [vmem:[%s2112 + $0xc] sm:$0xf]
      %v2117 = vld [vmem:[%s2112 + $0x10] sm:$0xf]
      %v2118 = vld [vmem:[%s2112 + $0x14] sm:$0xf]
      %v2119 = vld [vmem:[%s2112 + $0x18] sm:$0xf]
      %v2120 = vld [vmem:[%s2112 + $0x1c] sm:$0xf]
      %v2121 = vld [vmem:[%s2112 + $0x20] sm:$0xf]
      %v2122 = vld [vmem:[%s2112 + $0x24] sm:$0xf]
      %v2123 = vld [vmem:[%s2112 + $0x28] sm:$0xf]
      %v2124 = vld [vmem:[%s2112 + $0x2c] sm:$0xf]
      %v2125 = vld [vmem:[%s2112 + $0x30] sm:$0xf]
      %v2126 = vld [vmem:[%s2112 + $0x34] sm:$0xf]
      %v2127 = vld [vmem:[%s2112 + $0x38] sm:$0xf]
      %v2128 = vld [vmem:[%s2112 + $0x3c] sm:$0xf]
      %v2145 = vunpack.c.l.b16 %v2113
      %v2146 = vunpack.c.l.b16 %v2114
      %v2147 = vunpack.c.l.b16 %v2115
      %v2148 = vunpack.c.l.b16 %v2116
      %v2149 = vunpack.c.l.b16 %v2117
      %v2150 = vunpack.c.l.b16 %v2118
      %v2151 = vunpack.c.l.b16 %v2119
      %v2152 = vunpack.c.l.b16 %v2120
      %v2153 = vunpack.c.l.b16 %v2121
      %v2154 = vunpack.c.l.b16 %v2122
      %v2155 = vunpack.c.l.b16 %v2123
      %v2156 = vunpack.c.l.b16 %v2124
      %v2157 = vunpack.c.l.b16 %v2125
      %v2158 = vunpack.c.l.b16 %v2126
      %v2159 = vunpack.c.l.b16 %v2127
      %v2160 = vunpack.c.l.b16 %v2128
      %v2161 = vpack.c.b16 %v2146, %v2145
      %v2162 = vpack.c.b16 %v2148, %v2147
      %v2163 = vpack.c.b16 %v2150, %v2149
      %v2164 = vpack.c.b16 %v2152, %v2151
      %v2165 = vpack.c.b16 %v2154, %v2153
      %v2166 = vpack.c.b16 %v2156, %v2155
      %v2167 = vpack.c.b16 %v2158, %v2157
      %v2168 = vpack.c.b16 %v2160, %v2159
      %2177 = vmatpush.bf16.msra.mxu0 %v2168
      %2178 = vmatpush.bf16.msra.mxu0 %v2167
      %2179 = vmatpush.bf16.msra.mxu0 %v2166
      %2180 = vmatpush.bf16.msra.mxu0 %v2165
      %2181 = vmatpush.bf16.msra.mxu0 %v2164
      %2182 = vmatpush.bf16.msra.mxu0 %v2163
      %2183 = vmatpush.bf16.msra.mxu0 %v2162
      %2184 = vmatpush.bf16.msra.mxu0 %v2161
      %2185 = vmatmul.bf16.gmra.mxu0 %v2108
      %v2186 = vpop.f32.mrf.mxu0
      %v2187 = vadd.f32 0.0, %v2186
      %v2188 = vpop.f32.mrf.mxu0
      %v2189 = vadd.f32 0.0, %v2188
      %2190 = vmatmul.bf16.gmra.mxu0 %v2109
      %v2191 = vpop.f32.mrf.mxu0
      %v2192 = vadd.f32 0.0, %v2191
      %v2193 = vpop.f32.mrf.mxu0
      %v2194 = vadd.f32 0.0, %v2193
      %2195 = vmatmul.bf16.gmra.mxu0 %v2110
      %v2196 = vpop.f32.mrf.mxu0
      %v2197 = vadd.f32 0.0, %v2196
      %v2198 = vpop.f32.mrf.mxu0
      %v2199 = vadd.f32 0.0, %v2198
      %2200 = vmatmul.bf16.gmra.mxu0 %v2111
      %v2201 = vpop.f32.mrf.mxu0
      %v2202 = vadd.f32 0.0, %v2201
      %v2203 = vpop.f32.mrf.mxu0
      %v2204 = vadd.f32 0.0, %v2203
      %2205 = vdwg.mxu0
      %v2206 = vadd.f32 %v2091, %v2187
      %v2207 = vadd.f32 %v2092, %v2189
      %v2208 = vadd.f32 %v2093, %v2192
      %v2209 = vadd.f32 %v2094, %v2194
      %v2210 = vadd.f32 %v2095, %v2197
      %v2211 = vadd.f32 %v2096, %v2199
      %v2212 = vadd.f32 %v2097, %v2202
      %v2213 = vadd.f32 %v2098, %v2204
      %v2214 = vld [vmem:[%s2099 + $0x1] sm:$0xff]
      %v2215 = vld [vmem:[%s2099 + $0x11] sm:$0xff]
      %v2216 = vld [vmem:[%s2099 + $0x21] sm:$0xff]
      %v2217 = vld [vmem:[%s2099 + $0x31] sm:$0xff]
      %v2218 = vld [vmem:[%s2099 + $0x41] sm:$0xff]
      %v2219 = vld [vmem:[%s2099 + $0x51] sm:$0xff]
      %v2220 = vld [vmem:[%s2099 + $0x61] sm:$0xff]
      %v2221 = vld [vmem:[%s2099 + $0x71] sm:$0xff]
      %v2222 = vpack.c.bf16 %v2215, %v2214
      %v2223 = vpack.c.bf16 %v2217, %v2216
      %v2224 = vpack.c.bf16 %v2219, %v2218
      %v2225 = vpack.c.bf16 %v2221, %v2220
      %s2226 = scalar_lea.vmem %s4, 448
      %v2227 = vld [vmem:[%s2226] sm:$0xf]
      %v2228 = vld [vmem:[%s2226 + $0x4] sm:$0xf]
      %v2229 = vld [vmem:[%s2226 + $0x8] sm:$0xf]
      %v2230 = vld [vmem:[%s2226 + $0xc] sm:$0xf]
      %v2231 = vld [vmem:[%s2226 + $0x10] sm:$0xf]
      %v2232 = vld [vmem:[%s2226 + $0x14] sm:$0xf]
      %v2233 = vld [vmem:[%s2226 + $0x18] sm:$0xf]
      %v2234 = vld [vmem:[%s2226 + $0x1c] sm:$0xf]
      %v2235 = vld [vmem:[%s2226 + $0x20] sm:$0xf]
      %v2236 = vld [vmem:[%s2226 + $0x24] sm:$0xf]
      %v2237 = vld [vmem:[%s2226 + $0x28] sm:$0xf]
      %v2238 = vld [vmem:[%s2226 + $0x2c] sm:$0xf]
      %v2239 = vld [vmem:[%s2226 + $0x30] sm:$0xf]
      %v2240 = vld [vmem:[%s2226 + $0x34] sm:$0xf]
      %v2241 = vld [vmem:[%s2226 + $0x38] sm:$0xf]
      %v2242 = vld [vmem:[%s2226 + $0x3c] sm:$0xf]
      %v2259 = vunpack.c.l.b16 %v2227
      %v2260 = vunpack.c.l.b16 %v2228
      %v2261 = vunpack.c.l.b16 %v2229
      %v2262 = vunpack.c.l.b16 %v2230
      %v2263 = vunpack.c.l.b16 %v2231
      %v2264 = vunpack.c.l.b16 %v2232
      %v2265 = vunpack.c.l.b16 %v2233
      %v2266 = vunpack.c.l.b16 %v2234
      %v2267 = vunpack.c.l.b16 %v2235
      %v2268 = vunpack.c.l.b16 %v2236
      %v2269 = vunpack.c.l.b16 %v2237
      %v2270 = vunpack.c.l.b16 %v2238
      %v2271 = vunpack.c.l.b16 %v2239
      %v2272 = vunpack.c.l.b16 %v2240
      %v2273 = vunpack.c.l.b16 %v2241
      %v2274 = vunpack.c.l.b16 %v2242
      %v2275 = vpack.c.b16 %v2260, %v2259
      %v2276 = vpack.c.b16 %v2262, %v2261
      %v2277 = vpack.c.b16 %v2264, %v2263
      %v2278 = vpack.c.b16 %v2266, %v2265
      %v2279 = vpack.c.b16 %v2268, %v2267
      %v2280 = vpack.c.b16 %v2270, %v2269
      %v2281 = vpack.c.b16 %v2272, %v2271
      %v2282 = vpack.c.b16 %v2274, %v2273
      %2291 = vmatpush.bf16.msra.mxu0 %v2282
      %2292 = vmatpush.bf16.msra.mxu0 %v2281
      %2293 = vmatpush.bf16.msra.mxu0 %v2280
      %2294 = vmatpush.bf16.msra.mxu0 %v2279
      %2295 = vmatpush.bf16.msra.mxu0 %v2278
      %2296 = vmatpush.bf16.msra.mxu0 %v2277
      %2297 = vmatpush.bf16.msra.mxu0 %v2276
      %2298 = vmatpush.bf16.msra.mxu0 %v2275
      %2299 = vmatmul.bf16.gmra.mxu0 %v2222
      %v2300 = vpop.f32.mrf.mxu0
      %v2301 = vadd.f32 0.0, %v2300
      %v2302 = vpop.f32.mrf.mxu0
      %v2303 = vadd.f32 0.0, %v2302
      %2304 = vmatmul.bf16.gmra.mxu0 %v2223
      %v2305 = vpop.f32.mrf.mxu0
      %v2306 = vadd.f32 0.0, %v2305
      %v2307 = vpop.f32.mrf.mxu0
      %v2308 = vadd.f32 0.0, %v2307
      %2309 = vmatmul.bf16.gmra.mxu0 %v2224
      %v2310 = vpop.f32.mrf.mxu0
      %v2311 = vadd.f32 0.0, %v2310
      %v2312 = vpop.f32.mrf.mxu0
      %v2313 = vadd.f32 0.0, %v2312
      %2314 = vmatmul.bf16.gmra.mxu0 %v2225
      %v2315 = vpop.f32.mrf.mxu0
      %v2316 = vadd.f32 0.0, %v2315
      %v2317 = vpop.f32.mrf.mxu0
      %v2318 = vadd.f32 0.0, %v2317
      %2319 = vdwg.mxu0
      %v2320 = vadd.f32 %v2206, %v2301
      %v2321 = vadd.f32 %v2207, %v2303
      %v2322 = vadd.f32 %v2208, %v2306
      %v2323 = vadd.f32 %v2209, %v2308
      %v2324 = vadd.f32 %v2210, %v2311
      %v2325 = vadd.f32 %v2211, %v2313
      %v2326 = vadd.f32 %v2212, %v2316
      %v2327 = vadd.f32 %v2213, %v2318
      %v2328 = vld [vmem:[%s2099 + $0x2] sm:$0xff]
      %v2329 = vld [vmem:[%s2099 + $0x12] sm:$0xff]
      %v2330 = vld [vmem:[%s2099 + $0x22] sm:$0xff]
      %v2331 = vld [vmem:[%s2099 + $0x32] sm:$0xff]
      %v2332 = vld [vmem:[%s2099 + $0x42] sm:$0xff]
      %v2333 = vld [vmem:[%s2099 + $0x52] sm:$0xff]
      %v2334 = vld [vmem:[%s2099 + $0x62] sm:$0xff]
      %v2335 = vld [vmem:[%s2099 + $0x72] sm:$0xff]
      %v2336 = vpack.c.bf16 %v2329, %v2328
      %v2337 = vpack.c.bf16 %v2331, %v2330
      %v2338 = vpack.c.bf16 %v2333, %v2332
      %v2339 = vpack.c.bf16 %v2335, %v2334
      %s2340 = scalar_lea.vmem %s4, 512
      %v2341 = vld [vmem:[%s2340] sm:$0xf]
      %v2342 = vld [vmem:[%s2340 + $0x4] sm:$0xf]
      %v2343 = vld [vmem:[%s2340 + $0x8] sm:$0xf]
      %v2344 = vld [vmem:[%s2340 + $0xc] sm:$0xf]
      %v2345 = vld [vmem:[%s2340 + $0x10] sm:$0xf]
      %v2346 = vld [vmem:[%s2340 + $0x14] sm:$0xf]
      %v2347 = vld [vmem:[%s2340 + $0x18] sm:$0xf]
      %v2348 = vld [vmem:[%s2340 + $0x1c] sm:$0xf]
      %v2349 = vld [vmem:[%s2340 + $0x20] sm:$0xf]
      %v2350 = vld [vmem:[%s2340 + $0x24] sm:$0xf]
      %v2351 = vld [vmem:[%s2340 + $0x28] sm:$0xf]
      %v2352 = vld [vmem:[%s2340 + $0x2c] sm:$0xf]
      %v2353 = vld [vmem:[%s2340 + $0x30] sm:$0xf]
      %v2354 = vld [vmem:[%s2340 + $0x34] sm:$0xf]
      %v2355 = vld [vmem:[%s2340 + $0x38] sm:$0xf]
      %v2356 = vld [vmem:[%s2340 + $0x3c] sm:$0xf]
      %v2373 = vunpack.c.l.b16 %v2341
      %v2374 = vunpack.c.l.b16 %v2342
      %v2375 = vunpack.c.l.b16 %v2343
      %v2376 = vunpack.c.l.b16 %v2344
      %v2377 = vunpack.c.l.b16 %v2345
      %v2378 = vunpack.c.l.b16 %v2346
      %v2379 = vunpack.c.l.b16 %v2347
      %v2380 = vunpack.c.l.b16 %v2348
      %v2381 = vunpack.c.l.b16 %v2349
      %v2382 = vunpack.c.l.b16 %v2350
      %v2383 = vunpack.c.l.b16 %v2351
      %v2384 = vunpack.c.l.b16 %v2352
      %v2385 = vunpack.c.l.b16 %v2353
      %v2386 = vunpack.c.l.b16 %v2354
      %v2387 = vunpack.c.l.b16 %v2355
      %v2388 = vunpack.c.l.b16 %v2356
      %v2389 = vpack.c.b16 %v2374, %v2373
      %v2390 = vpack.c.b16 %v2376, %v2375
      %v2391 = vpack.c.b16 %v2378, %v2377
      %v2392 = vpack.c.b16 %v2380, %v2379
      %v2393 = vpack.c.b16 %v2382, %v2381
      %v2394 = vpack.c.b16 %v2384, %v2383
      %v2395 = vpack.c.b16 %v2386, %v2385
      %v2396 = vpack.c.b16 %v2388, %v2387
      %2405 = vmatpush.bf16.msra.mxu0 %v2396
      %2406 = vmatpush.bf16.msra.mxu0 %v2395
      %2407 = vmatpush.bf16.msra.mxu0 %v2394
      %2408 = vmatpush.bf16.msra.mxu0 %v2393
      %2409 = vmatpush.bf16.msra.mxu0 %v2392
      %2410 = vmatpush.bf16.msra.mxu0 %v2391
      %2411 = vmatpush.bf16.msra.mxu0 %v2390
      %2412 = vmatpush.bf16.msra.mxu0 %v2389
      %2413 = vmatmul.bf16.gmra.mxu0 %v2336
      %v2414 = vpop.f32.mrf.mxu0
      %v2415 = vadd.f32 0.0, %v2414
      %v2416 = vpop.f32.mrf.mxu0
      %v2417 = vadd.f32 0.0, %v2416
      %2418 = vmatmul.bf16.gmra.mxu0 %v2337
      %v2419 = vpop.f32.mrf.mxu0
      %v2420 = vadd.f32 0.0, %v2419
      %v2421 = vpop.f32.mrf.mxu0
      %v2422 = vadd.f32 0.0, %v2421
      %2423 = vmatmul.bf16.gmra.mxu0 %v2338
      %v2424 = vpop.f32.mrf.mxu0
      %v2425 = vadd.f32 0.0, %v2424
      %v2426 = vpop.f32.mrf.mxu0
      %v2427 = vadd.f32 0.0, %v2426
      %2428 = vmatmul.bf16.gmra.mxu0 %v2339
      %v2429 = vpop.f32.mrf.mxu0
      %v2430 = vadd.f32 0.0, %v2429
      %v2431 = vpop.f32.mrf.mxu0
      %v2432 = vadd.f32 0.0, %v2431
      %2433 = vdwg.mxu0
      %v2434 = vadd.f32 %v2320, %v2415
      %v2435 = vadd.f32 %v2321, %v2417
      %v2436 = vadd.f32 %v2322, %v2420
      %v2437 = vadd.f32 %v2323, %v2422
      %v2438 = vadd.f32 %v2324, %v2425
      %v2439 = vadd.f32 %v2325, %v2427
      %v2440 = vadd.f32 %v2326, %v2430
      %v2441 = vadd.f32 %v2327, %v2432
      %v2442 = vld [vmem:[%s5] sm:$0x1]
      %v2444 = vperm.slane %v2442, 0
      %v2446 = vmul.f32 %v2434, %v2444
      %v2447 = vmul.f32 %v2435, %v2444
      %v2448 = vmul.f32 %v2436, %v2444
      %v2449 = vmul.f32 %v2437, %v2444
      %v2450 = vmul.f32 %v2438, %v2444
      %v2451 = vmul.f32 %v2439, %v2444
      %v2452 = vmul.f32 %v2440, %v2444
      %v2453 = vmul.f32 %v2441, %v2444
      %v2454 = vld [vmem:[%s6] sm:$0x1]
      %v2456 = vperm.slane %v2454, 0
      %v2458 = vadd.f32 %v2446, %v2456
      %v2459 = vadd.f32 %v2447, %v2456
      %v2460 = vadd.f32 %v2448, %v2456
      %v2461 = vadd.f32 %v2449, %v2456
      %v2462 = vadd.f32 %v2450, %v2456
      %v2463 = vadd.f32 %v2451, %v2456
      %v2464 = vadd.f32 %v2452, %v2456
      %v2465 = vadd.f32 %v2453, %v2456
      %v2466 = vld [vmem:[%s685 + $0x1] sm:$0xff]
      %v2467 = vld [vmem:[%s685 + $0x11] sm:$0xff]
      %v2468 = vld [vmem:[%s685 + $0x21] sm:$0xff]
      %v2469 = vld [vmem:[%s685 + $0x31] sm:$0xff]
      %v2470 = vld [vmem:[%s685 + $0x41] sm:$0xff]
      %v2471 = vld [vmem:[%s685 + $0x51] sm:$0xff]
      %v2472 = vld [vmem:[%s685 + $0x61] sm:$0xff]
      %v2473 = vld [vmem:[%s685 + $0x71] sm:$0xff]
      %v2474 = vpack.c.bf16 %v2467, %v2466
      %v2475 = vpack.c.bf16 %v2469, %v2468
      %v2476 = vpack.c.bf16 %v2471, %v2470
      %v2477 = vpack.c.bf16 %v2473, %v2472
      %v2478 = vld [vmem:[%s7] sm:$0xf]
      %v2479 = vld [vmem:[%s7 + $0x4] sm:$0xf]
      %v2480 = vld [vmem:[%s7 + $0x8] sm:$0xf]
      %v2481 = vld [vmem:[%s7 + $0xc] sm:$0xf]
      %v2482 = vld [vmem:[%s7 + $0x10] sm:$0xf]
      %v2483 = vld [vmem:[%s7 + $0x14] sm:$0xf]
      %v2484 = vld [vmem:[%s7 + $0x18] sm:$0xf]
      %v2485 = vld [vmem:[%s7 + $0x1c] sm:$0xf]
      %v2486 = vld [vmem:[%s7 + $0x20] sm:$0xf]
      %v2487 = vld [vmem:[%s7 + $0x24] sm:$0xf]
      %v2488 = vld [vmem:[%s7 + $0x28] sm:$0xf]
      %v2489 = vld [vmem:[%s7 + $0x2c] sm:$0xf]
      %v2490 = vld [vmem:[%s7 + $0x30] sm:$0xf]
      %v2491 = vld [vmem:[%s7 + $0x34] sm:$0xf]
      %v2492 = vld [vmem:[%s7 + $0x38] sm:$0xf]
      %v2493 = vld [vmem:[%s7 + $0x3c] sm:$0xf]
      %v2510 = vunpack.c.l.b16 %v2478
      %v2511 = vunpack.c.l.b16 %v2479
      %v2512 = vunpack.c.l.b16 %v2480
      %v2513 = vunpack.c.l.b16 %v2481
      %v2514 = vunpack.c.l.b16 %v2482
      %v2515 = vunpack.c.l.b16 %v2483
      %v2516 = vunpack.c.l.b16 %v2484
      %v2517 = vunpack.c.l.b16 %v2485
      %v2518 = vunpack.c.l.b16 %v2486
      %v2519 = vunpack.c.l.b16 %v2487
      %v2520 = vunpack.c.l.b16 %v2488
      %v2521 = vunpack.c.l.b16 %v2489
      %v2522 = vunpack.c.l.b16 %v2490
      %v2523 = vunpack.c.l.b16 %v2491
      %v2524 = vunpack.c.l.b16 %v2492
      %v2525 = vunpack.c.l.b16 %v2493
      %v2526 = vpack.c.b16 %v2511, %v2510
      %v2527 = vpack.c.b16 %v2513, %v2512
      %v2528 = vpack.c.b16 %v2515, %v2514
      %v2529 = vpack.c.b16 %v2517, %v2516
      %v2530 = vpack.c.b16 %v2519, %v2518
      %v2531 = vpack.c.b16 %v2521, %v2520
      %v2532 = vpack.c.b16 %v2523, %v2522
      %v2533 = vpack.c.b16 %v2525, %v2524
      %2542 = vmatpush.bf16.msra.mxu0 %v2533
      %2543 = vmatpush.bf16.msra.mxu0 %v2532
      %2544 = vmatpush.bf16.msra.mxu0 %v2531
      %2545 = vmatpush.bf16.msra.mxu0 %v2530
      %2546 = vmatpush.bf16.msra.mxu0 %v2529
      %2547 = vmatpush.bf16.msra.mxu0 %v2528
      %2548 = vmatpush.bf16.msra.mxu0 %v2527
      %2549 = vmatpush.bf16.msra.mxu0 %v2526
      %2550 = vmatmul.bf16.gmra.mxu0 %v2474
      %v2551 = vpop.f32.mrf.mxu0
      %v2552 = vadd.f32 0.0, %v2551
      %v2553 = vpop.f32.mrf.mxu0
      %v2554 = vadd.f32 0.0, %v2553
      %2555 = vmatmul.bf16.gmra.mxu0 %v2475
      %v2556 = vpop.f32.mrf.mxu0
      %v2557 = vadd.f32 0.0, %v2556
      %v2558 = vpop.f32.mrf.mxu0
      %v2559 = vadd.f32 0.0, %v2558
      %2560 = vmatmul.bf16.gmra.mxu0 %v2476
      %v2561 = vpop.f32.mrf.mxu0
      %v2562 = vadd.f32 0.0, %v2561
      %v2563 = vpop.f32.mrf.mxu0
      %v2564 = vadd.f32 0.0, %v2563
      %2565 = vmatmul.bf16.gmra.mxu0 %v2477
      %v2566 = vpop.f32.mrf.mxu0
      %v2567 = vadd.f32 0.0, %v2566
      %v2568 = vpop.f32.mrf.mxu0
      %v2569 = vadd.f32 0.0, %v2568
      %2570 = vdwg.mxu0
      %v2571 = vld [vmem:[%s8] sm:$0x1]
      %v2573 = vperm.slane %v2571, 0
      %v2575 = vmul.f32 %v2552, %v2573
      %v2576 = vmul.f32 %v2554, %v2573
      %v2577 = vmul.f32 %v2557, %v2573
      %v2578 = vmul.f32 %v2559, %v2573
      %v2579 = vmul.f32 %v2562, %v2573
      %v2580 = vmul.f32 %v2564, %v2573
      %v2581 = vmul.f32 %v2567, %v2573
      %v2582 = vmul.f32 %v2569, %v2573
      %v2583 = vld [vmem:[%s9] sm:$0x1]
      %v2585 = vperm.slane %v2583, 0
      %v2587 = vadd.f32 %v2575, %v2585
      %v2588 = vadd.f32 %v2576, %v2585
      %v2589 = vadd.f32 %v2577, %v2585
      %v2590 = vadd.f32 %v2578, %v2585
      %v2591 = vadd.f32 %v2579, %v2585
      %v2592 = vadd.f32 %v2580, %v2585
      %v2593 = vadd.f32 %v2581, %v2585
      %v2594 = vadd.f32 %v2582, %v2585
      %v2595 = vadd.f32 %v2458, %v2587
      %v2596 = vadd.f32 %v2459, %v2588
      %v2597 = vadd.f32 %v2460, %v2589
      %v2598 = vadd.f32 %v2461, %v2590
      %v2599 = vadd.f32 %v2462, %v2591
      %v2600 = vadd.f32 %v2463, %v2592
      %v2601 = vadd.f32 %v2464, %v2593
      %v2602 = vadd.f32 %v2465, %v2594
      %v2603 = vmax.f32 %v2595, 0.0
      %v2604 = vmax.f32 %v2596, 0.0
      %v2605 = vmax.f32 %v2597, 0.0
      %v2606 = vmax.f32 %v2598, 0.0
      %v2607 = vmax.f32 %v2599, 0.0
      %v2608 = vmax.f32 %v2600, 0.0
      %v2609 = vmax.f32 %v2601, 0.0
      %v2610 = vmax.f32 %v2602, 0.0
      %2611 = vst [vmem:[%s359] sm:$0xff] 0.0
      %2612 = vst [vmem:[%s359 + $0x8] sm:$0x3] 0.0
      %2613 = vst [vmem:[%s359 + $0x10] sm:$0xff] 0.0
      %2614 = vst [vmem:[%s359 + $0x18] sm:$0x3] 0.0
      %2615 = vst [vmem:[%s359 + $0x20] sm:$0xff] 0.0
      %2616 = vst [vmem:[%s359 + $0x28] sm:$0x3] 0.0
      %2617 = vst [vmem:[%s359 + $0x30] sm:$0xff] 0.0
      %2618 = vst [vmem:[%s359 + $0x38] sm:$0x3] 0.0
      %2619 = vst [vmem:[%s359 + $0x40] sm:$0xff] 0.0
      %2620 = vst [vmem:[%s359 + $0x48] sm:$0x3] 0.0
      %2621 = vst [vmem:[%s359 + $0x50] sm:$0xff] 0.0
      %2622 = vst [vmem:[%s359 + $0x58] sm:$0x3] 0.0
      %2623 = vst [vmem:[%s359 + $0x60] sm:$0xff] 0.0
      %2624 = vst [vmem:[%s359 + $0x68] sm:$0x3] 0.0
      %2625 = vst [vmem:[%s359 + $0x70] sm:$0xff] 0.0
      %2626 = vst [vmem:[%s359 + $0x78] sm:$0x3] 0.0
      %2627 = vst [vmem:[%s359 + $0x80] sm:$0xff] 0.0
      %2628 = vst [vmem:[%s359 + $0x88] sm:$0x3] 0.0
      %2629 = vst [vmem:[%s359 + $0x90] sm:$0xff] 0.0
      %2630 = vst [vmem:[%s359 + $0x98] sm:$0x3] 0.0
      %s2631 = scalar_lea.vmem %s359, 16
      %2632 = vst [vmem:[%s2631 + $0x1] sm:$0xff] %v2603
      %2633 = vst [vmem:[%s2631 + $0x11] sm:$0xff] %v2604
      %2634 = vst [vmem:[%s2631 + $0x21] sm:$0xff] %v2605
      %2635 = vst [vmem:[%s2631 + $0x31] sm:$0xff] %v2606
      %2636 = vst [vmem:[%s2631 + $0x41] sm:$0xff] %v2607
      %2637 = vst [vmem:[%s2631 + $0x51] sm:$0xff] %v2608
      %2638 = vst [vmem:[%s2631 + $0x61] sm:$0xff] %v2609
      %2639 = vst [vmem:[%s2631 + $0x71] sm:$0xff] %v2610
      %p2640 = scmp.lt.s32.totalorder %s21, 1
      %s2641 = scalar_select %p2640, %s21, 1
      %s2642 = smul.addr %s2641, 20
      %s2643 = smul.addr %s2642, 8
      %s2644 = scalar_lea.vmem %s10, %s2643
      // Predicated region
      $region61: #{resnet_forward_pallas.6} parent=59 // pred_check
        %p2645 = pneg %p254
      $region62: #{resnet_forward_pallas.6} parent=59 // pred_check_branch
        %2647 = sbr.rel (%p2645) target = $region64
      $region63: #{resnet_forward_pallas.6} parent=59 // pred_region
        _
      $region64: #{resnet_forward_pallas.6} parent=59 // pred_fallthru
        _
    $region60: #{resnet_forward_pallas.6} parent=5 // pred_fallthru
      _
    %p2648 = scmp.le.s32.totalorder 2, %s16
    // Predicated region
    $region65: #{resnet_forward_pallas.6} parent=5 // pred_check
      %p2649 = pneg %p2648
    $region66: #{resnet_forward_pallas.6} parent=5 // pred_check_branch
      %2651 = sbr.rel (%p2649) target = $region68
    $region67: #{resnet_forward_pallas.6} parent=5 // pred_region
      %s2652 = ssub.s32 %s16, 2
      // Predicated region
      $region69: #{resnet_forward_pallas.6} parent=67 // pred_check
        %p2653 = pneg %p260
      $region70: #{resnet_forward_pallas.6} parent=67 // pred_check_branch
        %2655 = sbr.rel (%p2653) target = $region72
      $region71: #{resnet_forward_pallas.6} parent=67 // pred_region
        %p2656 = scmp.lt.s32.totalorder %s22, 1
        %s2657 = scalar_select %p2656, %s22, 1
        %s2658 = smul.addr %s2657, 20
        %s2659 = smul.addr %s2658, 8
        %s2660 = scalar_lea.vmem %s10, %s2659
      $region72: #{resnet_forward_pallas.6} parent=67 // pred_fallthru
        _
    $region68: #{resnet_forward_pallas.6} parent=5 // pred_fallthru
      _
  $region6: #{resnet_forward_pallas.6} parent=0 // loop_footer
    %s20 = sadd.s32 1, %s16
  $region7: #{resnet_forward_pallas.6} parent=0 // loop_footer_branch
    %15 = sbr.rel target = $region3
  $region8: #{resnet_forward_pallas.6} parent=0 // loop_exit
    _

// kernel: resnet_forward_pallas.7
$region0: #{resnet_forward_pallas.7}
  #allocation0 [shape = 'u32[]', space=smem, size = 0x4, offset = 0x4, fixed_abs, tag = 'smem constant byte address 0x4 - core index']
  #allocation1 [shape = 'u32[72,128]{1,0:T(1,128)}', space=vmem, size = 0x9000, scoped, tag = 'internal scratch']
  #allocation2 [shape = 'f32[10,10,128]{2,1,0:T(8,128)}', space=vmem, size = 0x14000, scoped, tag = 'scratch operand']
  %s0 = inlined_call_operand.vmem [shape: f32[2,10,10,128], index: 0, kind: input, shape index: {}]
  %s1 = inlined_call_operand.vmem [shape: bf16[9,128,128], index: 1, kind: input, shape index: {}]
  %s2 = inlined_call_operand.vmem [shape: f32[1,128], index: 2, kind: input, shape index: {}]
  %s3 = inlined_call_operand.vmem [shape: f32[1,128], index: 3, kind: input, shape index: {}]
  %s4 = inlined_call_operand.vmem [shape: bf16[9,128,128], index: 4, kind: input, shape index: {}]
  %s5 = inlined_call_operand.vmem [shape: f32[1,128], index: 5, kind: input, shape index: {}]
  %s6 = inlined_call_operand.vmem [shape: f32[1,128], index: 6, kind: input, shape index: {}]
  %s7 = inlined_call_operand.vmem [shape: bf16[128,128], index: 7, kind: input, shape index: {}]
  %s8 = inlined_call_operand.vmem [shape: f32[1,128], index: 8, kind: input, shape index: {}]
  %s9 = inlined_call_operand.vmem [shape: f32[1,128], index: 9, kind: input, shape index: {}]
  %s10 = inlined_call_operand.hbm [shape: f32[2,1,128], index: 10, kind: output, shape index: {}]
  %s11 = sld [smem:[#allocation0]]
  $region73: #{resnet_forward_pallas.7} parent=0
    _
  %s13 = ssub.s32 1, %s11
  %s14 = scalar_select 0, %s13, %s11
  $region1: #{resnet_forward_pallas.7} parent=0
    #allocation3 [shape = 'u8[1024]{0}', space=vmem, size = 0x400, scoped, tag = 'output window, operand 0']
    #allocation4 [shape = 's32[2]{0}', space=sflag, size = 0x8, scoped, tag = 'scoped memory for resnet_forward_pallas.7']
    %15 = vsyncpa [#allocation4], 0
    %s16 = scalar_lea.sflag [#allocation4], 1
    %17 = vsyncpa %s16, 0
    loop: start=0, step=1, limit=4
    $region2: #{resnet_forward_pallas.7} parent=1 // loop_pre_header
      _
    $region3: #{resnet_forward_pallas.7} parent=1 // loop_header
      %s19 = sphi 0, %s23
      %p20 = scmp.ge.s32.totalorder %s19, 4
      %s29 = sphi 0, %s31
      %s32 = sphi 0, %s29
      %s33 = sphi 0, %s32
      %s49 = sphi 0, %s33
      %s53 = sphi 0, %s53
      %s55 = sphi 0, %s53
      %s56 = sphi 0, %s55
      %s70 = sphi 0, %s56
      %s74 = sphi 0, %s74
      %s76 = sphi 0, %s74
      %s77 = sphi 0, %s76
      %s91 = sphi 0, %s77
      %s95 = sphi 0, %s95
      %s97 = sphi 0, %s95
      %s98 = sphi 0, %s97
      %s112 = sphi 0, %s98
      %s116 = sphi 0, %s116
      %s118 = sphi 0, %s116
      %s119 = sphi 0, %s118
      %s133 = sphi 0, %s119
      %s137 = sphi 0, %s137
      %s139 = sphi 0, %s137
      %s140 = sphi 0, %s139
      %s154 = sphi 0, %s140
      %s158 = sphi 0, %s158
      %s160 = sphi 0, %s158
      %s161 = sphi 0, %s160
      %s175 = sphi 0, %s161
      %s179 = sphi 0, %s179
      %s181 = sphi 0, %s179
      %s182 = sphi 0, %s181
      %s196 = sphi 0, %s182
      %s200 = sphi 0, %s200
      %s202 = sphi 0, %s200
      %s203 = sphi 0, %s202
      %s217 = sphi 0, %s203
      %s221 = sphi 0, %s221
      %s223 = sphi 0, %s221
      %s224 = sphi 0, %s223
      %s238 = sphi 0, %s224
      %s244 = sphi 0, %s246
      %s247 = sphi 0, %s244
      %s248 = sphi 0, %s247
      %s264 = sphi 0, %s248
    $region4: #{resnet_forward_pallas.7} parent=1 // loop_header_branch
      %22 = sbr.rel (%p20) target = $region8
    $region5: #{resnet_forward_pallas.7} parent=1 // loop_body
      %s24 = ssub.s32 %s19, 1
      %s25 = ssub.s32 %s19, 2
      %s26 = sadd.s32 %s19, 1
      %s27 = ssub.s32 %s19, %s26
      %p28 = scmp.eq.s32.totalorder %s27, 0
      %s30 = sadd.s32 %s29, 1
      %s31 = scalar_select %p28, %s29, %s30
      %p34 = pneg %p28
      %p35 = scmp.eq.s32.totalorder %s19, 1
      %p36 = por %p34, %p35
      %p37 = scmp.ne.s32.totalorder %s29, %s32
      %p38 = scmp.eq.s32.totalorder %s19, 0
      %p39 = por %p37, %p38
      %p40 = scmp.ne.s32.totalorder %s29, %s32
      %p41 = scmp.eq.s32.totalorder %s24, 1
      %p42 = por %p40, %p41
      %p43 = scmp.ne.s32.totalorder %s32, %s33
      %p44 = scmp.eq.s32.totalorder %s24, 0
      %p45 = por %p43, %p44
      %p46 = scmp.ne.s32.totalorder %s32, %s33
      %p47 = scmp.eq.s32.totalorder %s25, 1
      %p48 = por %p46, %p47
      %p50 = scmp.ne.s32.totalorder %s33, %s49
      %p51 = scmp.eq.s32.totalorder %s25, 0
      %p52 = por %p50, %p51
      %s54 = sadd.s32 %s53, 1
      %p57 = scmp.eq.s32.totalorder %s19, 1
      %p58 = scmp.ne.s32.totalorder %s53, %s55
      %p59 = scmp.eq.s32.totalorder %s19, 0
      %p60 = por %p58, %p59
      %p61 = scmp.ne.s32.totalorder %s53, %s55
      %p62 = scmp.eq.s32.totalorder %s24, 1
      %p63 = por %p61, %p62
      %p64 = scmp.ne.s32.totalorder %s55, %s56
      %p65 = scmp.eq.s32.totalorder %s24, 0
      %p66 = por %p64, %p65
      %p67 = scmp.ne.s32.totalorder %s55, %s56
      %p68 = scmp.eq.s32.totalorder %s25, 1
      %p69 = por %p67, %p68
      %p71 = scmp.ne.s32.totalorder %s56, %s70
      %p72 = scmp.eq.s32.totalorder %s25, 0
      %p73 = por %p71, %p72
      %s75 = sadd.s32 %s74, 1
      %p78 = scmp.eq.s32.totalorder %s19, 1
      %p79 = scmp.ne.s32.totalorder %s74, %s76
      %p80 = scmp.eq.s32.totalorder %s19, 0
      %p81 = por %p79, %p80
      %p82 = scmp.ne.s32.totalorder %s74, %s76
      %p83 = scmp.eq.s32.totalorder %s24, 1
      %p84 = por %p82, %p83
      %p85 = scmp.ne.s32.totalorder %s76, %s77
      %p86 = scmp.eq.s32.totalorder %s24, 0
      %p87 = por %p85, %p86
      %p88 = scmp.ne.s32.totalorder %s76, %s77
      %p89 = scmp.eq.s32.totalorder %s25, 1
      %p90 = por %p88, %p89
      %p92 = scmp.ne.s32.totalorder %s77, %s91
      %p93 = scmp.eq.s32.totalorder %s25, 0
      %p94 = por %p92, %p93
      %s96 = sadd.s32 %s95, 1
      %p99 = scmp.eq.s32.totalorder %s19, 1
      %p100 = scmp.ne.s32.totalorder %s95, %s97
      %p101 = scmp.eq.s32.totalorder %s19, 0
      %p102 = por %p100, %p101
      %p103 = scmp.ne.s32.totalorder %s95, %s97
      %p104 = scmp.eq.s32.totalorder %s24, 1
      %p105 = por %p103, %p104
      %p106 = scmp.ne.s32.totalorder %s97, %s98
      %p107 = scmp.eq.s32.totalorder %s24, 0
      %p108 = por %p106, %p107
      %p109 = scmp.ne.s32.totalorder %s97, %s98
      %p110 = scmp.eq.s32.totalorder %s25, 1
      %p111 = por %p109, %p110
      %p113 = scmp.ne.s32.totalorder %s98, %s112
      %p114 = scmp.eq.s32.totalorder %s25, 0
      %p115 = por %p113, %p114
      %s117 = sadd.s32 %s116, 1
      %p120 = scmp.eq.s32.totalorder %s19, 1
      %p121 = scmp.ne.s32.totalorder %s116, %s118
      %p122 = scmp.eq.s32.totalorder %s19, 0
      %p123 = por %p121, %p122
      %p124 = scmp.ne.s32.totalorder %s116, %s118
      %p125 = scmp.eq.s32.totalorder %s24, 1
      %p126 = por %p124, %p125
      %p127 = scmp.ne.s32.totalorder %s118, %s119
      %p128 = scmp.eq.s32.totalorder %s24, 0
      %p129 = por %p127, %p128
      %p130 = scmp.ne.s32.totalorder %s118, %s119
      %p131 = scmp.eq.s32.totalorder %s25, 1
      %p132 = por %p130, %p131
      %p134 = scmp.ne.s32.totalorder %s119, %s133
      %p135 = scmp.eq.s32.totalorder %s25, 0
      %p136 = por %p134, %p135
      %s138 = sadd.s32 %s137, 1
      %p141 = scmp.eq.s32.totalorder %s19, 1
      %p142 = scmp.ne.s32.totalorder %s137, %s139
      %p143 = scmp.eq.s32.totalorder %s19, 0
      %p144 = por %p142, %p143
      %p145 = scmp.ne.s32.totalorder %s137, %s139
      %p146 = scmp.eq.s32.totalorder %s24, 1
      %p147 = por %p145, %p146
      %p148 = scmp.ne.s32.totalorder %s139, %s140
      %p149 = scmp.eq.s32.totalorder %s24, 0
      %p150 = por %p148, %p149
      %p151 = scmp.ne.s32.totalorder %s139, %s140
      %p152 = scmp.eq.s32.totalorder %s25, 1
      %p153 = por %p151, %p152
      %p155 = scmp.ne.s32.totalorder %s140, %s154
      %p156 = scmp.eq.s32.totalorder %s25, 0
      %p157 = por %p155, %p156
      %s159 = sadd.s32 %s158, 1
      %p162 = scmp.eq.s32.totalorder %s19, 1
      %p163 = scmp.ne.s32.totalorder %s158, %s160
      %p164 = scmp.eq.s32.totalorder %s19, 0
      %p165 = por %p163, %p164
      %p166 = scmp.ne.s32.totalorder %s158, %s160
      %p167 = scmp.eq.s32.totalorder %s24, 1
      %p168 = por %p166, %p167
      %p169 = scmp.ne.s32.totalorder %s160, %s161
      %p170 = scmp.eq.s32.totalorder %s24, 0
      %p171 = por %p169, %p170
      %p172 = scmp.ne.s32.totalorder %s160, %s161
      %p173 = scmp.eq.s32.totalorder %s25, 1
      %p174 = por %p172, %p173
      %p176 = scmp.ne.s32.totalorder %s161, %s175
      %p177 = scmp.eq.s32.totalorder %s25, 0
      %p178 = por %p176, %p177
      %s180 = sadd.s32 %s179, 1
      %p183 = scmp.eq.s32.totalorder %s19, 1
      %p184 = scmp.ne.s32.totalorder %s179, %s181
      %p185 = scmp.eq.s32.totalorder %s19, 0
      %p186 = por %p184, %p185
      %p187 = scmp.ne.s32.totalorder %s179, %s181
      %p188 = scmp.eq.s32.totalorder %s24, 1
      %p189 = por %p187, %p188
      %p190 = scmp.ne.s32.totalorder %s181, %s182
      %p191 = scmp.eq.s32.totalorder %s24, 0
      %p192 = por %p190, %p191
      %p193 = scmp.ne.s32.totalorder %s181, %s182
      %p194 = scmp.eq.s32.totalorder %s25, 1
      %p195 = por %p193, %p194
      %p197 = scmp.ne.s32.totalorder %s182, %s196
      %p198 = scmp.eq.s32.totalorder %s25, 0
      %p199 = por %p197, %p198
      %s201 = sadd.s32 %s200, 1
      %p204 = scmp.eq.s32.totalorder %s19, 1
      %p205 = scmp.ne.s32.totalorder %s200, %s202
      %p206 = scmp.eq.s32.totalorder %s19, 0
      %p207 = por %p205, %p206
      %p208 = scmp.ne.s32.totalorder %s200, %s202
      %p209 = scmp.eq.s32.totalorder %s24, 1
      %p210 = por %p208, %p209
      %p211 = scmp.ne.s32.totalorder %s202, %s203
      %p212 = scmp.eq.s32.totalorder %s24, 0
      %p213 = por %p211, %p212
      %p214 = scmp.ne.s32.totalorder %s202, %s203
      %p215 = scmp.eq.s32.totalorder %s25, 1
      %p216 = por %p214, %p215
      %p218 = scmp.ne.s32.totalorder %s203, %s217
      %p219 = scmp.eq.s32.totalorder %s25, 0
      %p220 = por %p218, %p219
      %s222 = sadd.s32 %s221, 1
      %p225 = scmp.eq.s32.totalorder %s19, 1
      %p226 = scmp.ne.s32.totalorder %s221, %s223
      %p227 = scmp.eq.s32.totalorder %s19, 0
      %p228 = por %p226, %p227
      %p229 = scmp.ne.s32.totalorder %s221, %s223
      %p230 = scmp.eq.s32.totalorder %s24, 1
      %p231 = por %p229, %p230
      %p232 = scmp.ne.s32.totalorder %s223, %s224
      %p233 = scmp.eq.s32.totalorder %s24, 0
      %p234 = por %p232, %p233
      %p235 = scmp.ne.s32.totalorder %s223, %s224
      %p236 = scmp.eq.s32.totalorder %s25, 1
      %p237 = por %p235, %p236
      %p239 = scmp.ne.s32.totalorder %s224, %s238
      %p240 = scmp.eq.s32.totalorder %s25, 0
      %p241 = por %p239, %p240
      %s242 = ssub.s32 %s19, %s26
      %p243 = scmp.eq.s32.totalorder %s242, 0
      %s245 = sadd.s32 %s244, 1
      %s246 = scalar_select %p243, %s244, %s245
      %p249 = pneg %p243
      %p250 = scmp.eq.s32.totalorder %s19, 1
      %p251 = por %p249, %p250
      %p252 = scmp.ne.s32.totalorder %s244, %s247
      %p253 = scmp.eq.s32.totalorder %s19, 0
      %p254 = por %p252, %p253
      %p255 = scmp.ne.s32.totalorder %s244, %s247
      %p256 = scmp.eq.s32.totalorder %s24, 1
      %p257 = por %p255, %p256
      %p258 = scmp.ne.s32.totalorder %s247, %s248
      %p259 = scmp.eq.s32.totalorder %s24, 0
      %p260 = por %p258, %p259
      %p261 = scmp.ne.s32.totalorder %s247, %s248
      %p262 = scmp.eq.s32.totalorder %s25, 1
      %p263 = por %p261, %p262
      %p265 = scmp.ne.s32.totalorder %s248, %s264
      %p266 = scmp.eq.s32.totalorder %s25, 0
      %p267 = por %p265, %p266
      %p268 = scmp.le.s32.totalorder 1, %s19
      %p269 = scmp.lt.s32.totalorder %s19, 3
      %p270 = pnand %p268, %p269
      %p271 = pneg %p270
      // Predicated region
      $region9: #{resnet_forward_pallas.7} parent=5 // pred_check
        _
      $region10: #{resnet_forward_pallas.7} parent=5 // pred_check_branch
        %273 = sbr.rel (%p270) target = $region12
      $region11: #{resnet_forward_pallas.7} parent=5 // pred_region
        %s274 = ssub.s32 %s19, 1
        // Predicated region
        $region13: #{resnet_forward_pallas.7} parent=11 // pred_check
          %p275 = pneg %p66
        $region14: #{resnet_forward_pallas.7} parent=11 // pred_check_branch
          %277 = sbr.rel (%p275) target = $region16
        $region15: #{resnet_forward_pallas.7} parent=11 // pred_region
          _
        $region16: #{resnet_forward_pallas.7} parent=11 // pred_fallthru
          _
        // Predicated region
        $region17: #{resnet_forward_pallas.7} parent=11 // pred_check
          %p278 = pneg %p87
        $region18: #{resnet_forward_pallas.7} parent=11 // pred_check_branch
          %280 = sbr.rel (%p278) target = $region20
        $region19: #{resnet_forward_pallas.7} parent=11 // pred_region
          _
        $region20: #{resnet_forward_pallas.7} parent=11 // pred_fallthru
          _
        // Predicated region
        $region21: #{resnet_forward_pallas.7} parent=11 // pred_check
          %p281 = pneg %p108
        $region22: #{resnet_forward_pallas.7} parent=11 // pred_check_branch
          %283 = sbr.rel (%p281) target = $region24
        $region23: #{resnet_forward_pallas.7} parent=11 // pred_region
          _
        $region24: #{resnet_forward_pallas.7} parent=11 // pred_fallthru
          _
        // Predicated region
        $region25: #{resnet_forward_pallas.7} parent=11 // pred_check
          %p284 = pneg %p129
        $region26: #{resnet_forward_pallas.7} parent=11 // pred_check_branch
          %286 = sbr.rel (%p284) target = $region28
        $region27: #{resnet_forward_pallas.7} parent=11 // pred_region
          _
        $region28: #{resnet_forward_pallas.7} parent=11 // pred_fallthru
          _
        // Predicated region
        $region29: #{resnet_forward_pallas.7} parent=11 // pred_check
          %p287 = pneg %p150
        $region30: #{resnet_forward_pallas.7} parent=11 // pred_check_branch
          %289 = sbr.rel (%p287) target = $region32
        $region31: #{resnet_forward_pallas.7} parent=11 // pred_region
          _
        $region32: #{resnet_forward_pallas.7} parent=11 // pred_fallthru
          _
        // Predicated region
        $region33: #{resnet_forward_pallas.7} parent=11 // pred_check
          %p290 = pneg %p171
        $region34: #{resnet_forward_pallas.7} parent=11 // pred_check_branch
          %292 = sbr.rel (%p290) target = $region36
        $region35: #{resnet_forward_pallas.7} parent=11 // pred_region
          _
        $region36: #{resnet_forward_pallas.7} parent=11 // pred_fallthru
          _
        // Predicated region
        $region37: #{resnet_forward_pallas.7} parent=11 // pred_check
          %p293 = pneg %p192
        $region38: #{resnet_forward_pallas.7} parent=11 // pred_check_branch
          %295 = sbr.rel (%p293) target = $region40
        $region39: #{resnet_forward_pallas.7} parent=11 // pred_region
          _
        $region40: #{resnet_forward_pallas.7} parent=11 // pred_fallthru
          _
        // Predicated region
        $region41: #{resnet_forward_pallas.7} parent=11 // pred_check
          %p296 = pneg %p213
        $region42: #{resnet_forward_pallas.7} parent=11 // pred_check_branch
          %298 = sbr.rel (%p296) target = $region44
        $region43: #{resnet_forward_pallas.7} parent=11 // pred_region
          _
        $region44: #{resnet_forward_pallas.7} parent=11 // pred_fallthru
          _
        // Predicated region
        $region45: #{resnet_forward_pallas.7} parent=11 // pred_check
          %p299 = pneg %p234
        $region46: #{resnet_forward_pallas.7} parent=11 // pred_check_branch
          %301 = sbr.rel (%p299) target = $region48
        $region47: #{resnet_forward_pallas.7} parent=11 // pred_region
          _
        $region48: #{resnet_forward_pallas.7} parent=11 // pred_fallthru
          _
      $region12: #{resnet_forward_pallas.7} parent=5 // pred_fallthru
        _
      %p302 = scmp.lt.s32.totalorder %s19, 2
      // Predicated region
      $region49: #{resnet_forward_pallas.7} parent=5 // pred_check
        %p303 = pneg %p302
      $region50: #{resnet_forward_pallas.7} parent=5 // pred_check_branch
        %305 = sbr.rel (%p303) target = $region52
      $region51: #{resnet_forward_pallas.7} parent=5 // pred_region
        // Predicated region
        $region53: #{resnet_forward_pallas.7} parent=51 // pred_check
          %p306 = pneg %p39
        $region54: #{resnet_forward_pallas.7} parent=51 // pred_check_branch
          %308 = sbr.rel (%p306) target = $region56
        $region55: #{resnet_forward_pallas.7} parent=51 // pred_region
          %p309 = scmp.lt.s32.totalorder %s19, 1
          %s310 = scalar_select %p309, %s19, 1
          %s311 = smul.addr %s310, 20
          %s312 = smul.addr %s311, 8
          %s313 = scalar_lea.vmem %s0, %s312
        $region56: #{resnet_forward_pallas.7} parent=51 // pred_fallthru
          _
      $region52: #{resnet_forward_pallas.7} parent=5 // pred_fallthru
        _
      %p314 = scmp.le.s32.totalorder 1, %s19
      %p315 = scmp.lt.s32.totalorder %s19, 3
      %p316 = pnand %p314, %p315
      %p317 = pneg %p316
      // Predicated region
      $region57: #{resnet_forward_pallas.7} parent=5 // pred_check
        _
      $region58: #{resnet_forward_pallas.7} parent=5 // pred_check_branch
        %319 = sbr.rel (%p316) target = $region60
      $region59: #{resnet_forward_pallas.7} parent=5 // pred_region
        %s320 = ssub.s32 %s19, 1
        %p321 = scmp.lt.s32.totalorder %s24, 1
        %s322 = scalar_select %p321, %s24, 1
        %s323 = smul.addr %s322, 20
        %s324 = smul.addr %s323, 8
        %s325 = scalar_lea.vmem %s0, %s324
        %p326 = pneg %p45
        %p327 = pneg %p42
        %p328 = pneg %p66
        %p329 = pneg %p63
        %p330 = pneg %p87
        %p331 = pneg %p84
        %p332 = pneg %p108
        %p333 = pneg %p105
        %p334 = pneg %p129
        %p335 = pneg %p126
        %p336 = pneg %p150
        %p337 = pneg %p147
        %p338 = pneg %p171
        %p339 = pneg %p168
        %p340 = pneg %p192
        %p341 = pneg %p189
        %p342 = pneg %p213
        %p343 = pneg %p210
        %p344 = pneg %p234
        %p345 = pneg %p231
        %p346 = pneg %p260
        %p347 = pneg %p257
        %s348 = sand.u32 %s247, 1
        %s349 = scalar_lea.sflag [#allocation4], %s348
        %s350 = sand.u32 %s247, 1
        %s351 = scalar_lea.vmem [#allocation3], %s350
        %p352 = scmp.lt.s32.totalorder %s24, 1
        %s353 = scalar_select %p352, %s24, 1
        %s354 = smul.addr %s353, 20
        %s355 = smul.addr %s354, 8
        %s356 = scalar_lea.vmem %s0, %s355
        %v357 = vld [vmem:[%s356] sm:$0xff]
        %v358 = vld [vmem:[%s356 + $0x10] sm:$0xff]
        %v359 = vld [vmem:[%s356 + $0x20] sm:$0xff]
        %v360 = vld [vmem:[%s356 + $0x30] sm:$0xff]
        %v361 = vld [vmem:[%s356 + $0x40] sm:$0xff]
        %v362 = vld [vmem:[%s356 + $0x50] sm:$0xff]
        %v363 = vld [vmem:[%s356 + $0x60] sm:$0xff]
        %v364 = vld [vmem:[%s356 + $0x70] sm:$0xff]
        %v365 = vpack.c.bf16 %v358, %v357
        %v366 = vpack.c.bf16 %v360, %v359
        %v367 = vpack.c.bf16 %v362, %v361
        %v368 = vpack.c.bf16 %v364, %v363
        %v369 = vld [vmem:[%s1] sm:$0xf]
        %v370 = vld [vmem:[%s1 + $0x4] sm:$0xf]
        %v371 = vld [vmem:[%s1 + $0x8] sm:$0xf]
        %v372 = vld [vmem:[%s1 + $0xc] sm:$0xf]
        %v373 = vld [vmem:[%s1 + $0x10] sm:$0xf]
        %v374 = vld [vmem:[%s1 + $0x14] sm:$0xf]
        %v375 = vld [vmem:[%s1 + $0x18] sm:$0xf]
        %v376 = vld [vmem:[%s1 + $0x1c] sm:$0xf]
        %v377 = vld [vmem:[%s1 + $0x20] sm:$0xf]
        %v378 = vld [vmem:[%s1 + $0x24] sm:$0xf]
        %v379 = vld [vmem:[%s1 + $0x28] sm:$0xf]
        %v380 = vld [vmem:[%s1 + $0x2c] sm:$0xf]
        %v381 = vld [vmem:[%s1 + $0x30] sm:$0xf]
        %v382 = vld [vmem:[%s1 + $0x34] sm:$0xf]
        %v383 = vld [vmem:[%s1 + $0x38] sm:$0xf]
        %v384 = vld [vmem:[%s1 + $0x3c] sm:$0xf]
        %v385 = vld [vmem:[%s356 + $0x1] sm:$0xff]
        %v386 = vld [vmem:[%s356 + $0x11] sm:$0xff]
        %v387 = vld [vmem:[%s356 + $0x21] sm:$0xff]
        %v388 = vld [vmem:[%s356 + $0x31] sm:$0xff]
        %v389 = vld [vmem:[%s356 + $0x41] sm:$0xff]
        %v390 = vld [vmem:[%s356 + $0x51] sm:$0xff]
        %v391 = vld [vmem:[%s356 + $0x61] sm:$0xff]
        %v392 = vld [vmem:[%s356 + $0x71] sm:$0xff]
        %v393 = vpack.c.bf16 %v386, %v385
        %v394 = vpack.c.bf16 %v388, %v387
        %v395 = vpack.c.bf16 %v390, %v389
        %v396 = vpack.c.bf16 %v392, %v391
        %s397 = scalar_lea.vmem %s1, 64
        %v398 = vld [vmem:[%s397] sm:$0xf]
        %v399 = vld [vmem:[%s397 + $0x4] sm:$0xf]
        %v400 = vld [vmem:[%s397 + $0x8] sm:$0xf]
        %v401 = vld [vmem:[%s397 + $0xc] sm:$0xf]
        %v402 = vld [vmem:[%s397 + $0x10] sm:$0xf]
        %v403 = vld [vmem:[%s397 + $0x14] sm:$0xf]
        %v404 = vld [vmem:[%s397 + $0x18] sm:$0xf]
        %v405 = vld [vmem:[%s397 + $0x1c] sm:$0xf]
        %v406 = vld [vmem:[%s397 + $0x20] sm:$0xf]
        %v407 = vld [vmem:[%s397 + $0x24] sm:$0xf]
        %v408 = vld [vmem:[%s397 + $0x28] sm:$0xf]
        %v409 = vld [vmem:[%s397 + $0x2c] sm:$0xf]
        %v410 = vld [vmem:[%s397 + $0x30] sm:$0xf]
        %v411 = vld [vmem:[%s397 + $0x34] sm:$0xf]
        %v412 = vld [vmem:[%s397 + $0x38] sm:$0xf]
        %v413 = vld [vmem:[%s397 + $0x3c] sm:$0xf]
        %v430 = vunpack.c.l.b16 %v398
        %v431 = vunpack.c.l.b16 %v399
        %v432 = vunpack.c.l.b16 %v400
        %v433 = vunpack.c.l.b16 %v401
        %v434 = vunpack.c.l.b16 %v402
        %v435 = vunpack.c.l.b16 %v403
        %v436 = vunpack.c.l.b16 %v404
        %v437 = vunpack.c.l.b16 %v405
        %v438 = vunpack.c.l.b16 %v406
        %v439 = vunpack.c.l.b16 %v407
        %v440 = vunpack.c.l.b16 %v408
        %v441 = vunpack.c.l.b16 %v409
        %v442 = vunpack.c.l.b16 %v410
        %v443 = vunpack.c.l.b16 %v411
        %v444 = vunpack.c.l.b16 %v412
        %v445 = vunpack.c.l.b16 %v413
        %v446 = vpack.c.b16 %v431, %v430
        %v447 = vpack.c.b16 %v433, %v432
        %v448 = vpack.c.b16 %v435, %v434
        %v449 = vpack.c.b16 %v437, %v436
        %v450 = vpack.c.b16 %v439, %v438
        %v451 = vpack.c.b16 %v441, %v440
        %v452 = vpack.c.b16 %v443, %v442
        %v453 = vpack.c.b16 %v445, %v444
        %462 = vmatpush.bf16.msra.mxu0 %v453
        %463 = vmatpush.bf16.msra.mxu0 %v452
        %464 = vmatpush.bf16.msra.mxu0 %v451
        %465 = vmatpush.bf16.msra.mxu0 %v450
        %466 = vmatpush.bf16.msra.mxu0 %v449
        %467 = vmatpush.bf16.msra.mxu0 %v448
        %468 = vmatpush.bf16.msra.mxu0 %v447
        %469 = vmatpush.bf16.msra.mxu0 %v446
        %470 = vmatmul.bf16.gmra.mxu0 %v393
        %v471 = vpop.f32.mrf.mxu0
        %v472 = vadd.f32 0.0, %v471
        %v473 = vpop.f32.mrf.mxu0
        %v474 = vadd.f32 0.0, %v473
        %475 = vmatmul.bf16.gmra.mxu0 %v394
        %v476 = vpop.f32.mrf.mxu0
        %v477 = vadd.f32 0.0, %v476
        %v478 = vpop.f32.mrf.mxu0
        %v479 = vadd.f32 0.0, %v478
        %480 = vmatmul.bf16.gmra.mxu0 %v395
        %v481 = vpop.f32.mrf.mxu0
        %v482 = vadd.f32 0.0, %v481
        %v483 = vpop.f32.mrf.mxu0
        %v484 = vadd.f32 0.0, %v483
        %485 = vmatmul.bf16.gmra.mxu0 %v396
        %v486 = vpop.f32.mrf.mxu0
        %v487 = vadd.f32 0.0, %v486
        %v488 = vpop.f32.mrf.mxu0
        %v489 = vadd.f32 0.0, %v488
        %490 = vdwg.mxu0
        %v507 = vunpack.c.l.b16 %v369
        %v508 = vunpack.c.l.b16 %v370
        %v509 = vunpack.c.l.b16 %v371
        %v510 = vunpack.c.l.b16 %v372
        %v511 = vunpack.c.l.b16 %v373
        %v512 = vunpack.c.l.b16 %v374
        %v513 = vunpack.c.l.b16 %v375
        %v514 = vunpack.c.l.b16 %v376
        %v515 = vunpack.c.l.b16 %v377
        %v516 = vunpack.c.l.b16 %v378
        %v517 = vunpack.c.l.b16 %v379
        %v518 = vunpack.c.l.b16 %v380
        %v519 = vunpack.c.l.b16 %v381
        %v520 = vunpack.c.l.b16 %v382
        %v521 = vunpack.c.l.b16 %v383
        %v522 = vunpack.c.l.b16 %v384
        %v523 = vpack.c.b16 %v508, %v507
        %v524 = vpack.c.b16 %v510, %v509
        %v525 = vpack.c.b16 %v512, %v511
        %v526 = vpack.c.b16 %v514, %v513
        %v527 = vpack.c.b16 %v516, %v515
        %v528 = vpack.c.b16 %v518, %v517
        %v529 = vpack.c.b16 %v520, %v519
        %v530 = vpack.c.b16 %v522, %v521
        %539 = vmatpush.bf16.msra.mxu0 %v530
        %540 = vmatpush.bf16.msra.mxu0 %v529
        %541 = vmatpush.bf16.msra.mxu0 %v528
        %542 = vmatpush.bf16.msra.mxu0 %v527
        %543 = vmatpush.bf16.msra.mxu0 %v526
        %544 = vmatpush.bf16.msra.mxu0 %v525
        %545 = vmatpush.bf16.msra.mxu0 %v524
        %546 = vmatpush.bf16.msra.mxu0 %v523
        %547 = vmatmul.bf16.gmra.mxu0 %v365
        %v548 = vpop.f32.mrf.mxu0
        %v549 = vadd.f32 %v472, %v548
        %v550 = vpop.f32.mrf.mxu0
        %v551 = vadd.f32 %v474, %v550
        %552 = vmatmul.bf16.gmra.mxu0 %v366
        %v553 = vpop.f32.mrf.mxu0
        %v554 = vadd.f32 %v477, %v553
        %v555 = vpop.f32.mrf.mxu0
        %v556 = vadd.f32 %v479, %v555
        %557 = vmatmul.bf16.gmra.mxu0 %v367
        %v558 = vpop.f32.mrf.mxu0
        %v559 = vadd.f32 %v482, %v558
        %v560 = vpop.f32.mrf.mxu0
        %v561 = vadd.f32 %v484, %v560
        %562 = vmatmul.bf16.gmra.mxu0 %v368
        %v563 = vpop.f32.mrf.mxu0
        %v564 = vadd.f32 %v487, %v563
        %v565 = vpop.f32.mrf.mxu0
        %v566 = vadd.f32 %v489, %v565
        %567 = vdwg.mxu0
        %v568 = vld [vmem:[%s356 + $0x2] sm:$0xff]
        %v569 = vld [vmem:[%s356 + $0x12] sm:$0xff]
        %v570 = vld [vmem:[%s356 + $0x22] sm:$0xff]
        %v571 = vld [vmem:[%s356 + $0x32] sm:$0xff]
        %v572 = vld [vmem:[%s356 + $0x42] sm:$0xff]
        %v573 = vld [vmem:[%s356 + $0x52] sm:$0xff]
        %v574 = vld [vmem:[%s356 + $0x62] sm:$0xff]
        %v575 = vld [vmem:[%s356 + $0x72] sm:$0xff]
        %v576 = vpack.c.bf16 %v569, %v568
        %v577 = vpack.c.bf16 %v571, %v570
        %v578 = vpack.c.bf16 %v573, %v572
        %v579 = vpack.c.bf16 %v575, %v574
        %s580 = scalar_lea.vmem %s1, 128
        %v581 = vld [vmem:[%s580] sm:$0xf]
        %v582 = vld [vmem:[%s580 + $0x4] sm:$0xf]
        %v583 = vld [vmem:[%s580 + $0x8] sm:$0xf]
        %v584 = vld [vmem:[%s580 + $0xc] sm:$0xf]
        %v585 = vld [vmem:[%s580 + $0x10] sm:$0xf]
        %v586 = vld [vmem:[%s580 + $0x14] sm:$0xf]
        %v587 = vld [vmem:[%s580 + $0x18] sm:$0xf]
        %v588 = vld [vmem:[%s580 + $0x1c] sm:$0xf]
        %v589 = vld [vmem:[%s580 + $0x20] sm:$0xf]
        %v590 = vld [vmem:[%s580 + $0x24] sm:$0xf]
        %v591 = vld [vmem:[%s580 + $0x28] sm:$0xf]
        %v592 = vld [vmem:[%s580 + $0x2c] sm:$0xf]
        %v593 = vld [vmem:[%s580 + $0x30] sm:$0xf]
        %v594 = vld [vmem:[%s580 + $0x34] sm:$0xf]
        %v595 = vld [vmem:[%s580 + $0x38] sm:$0xf]
        %v596 = vld [vmem:[%s580 + $0x3c] sm:$0xf]
        %v613 = vunpack.c.l.b16 %v581
        %v614 = vunpack.c.l.b16 %v582
        %v615 = vunpack.c.l.b16 %v583
        %v616 = vunpack.c.l.b16 %v584
        %v617 = vunpack.c.l.b16 %v585
        %v618 = vunpack.c.l.b16 %v586
        %v619 = vunpack.c.l.b16 %v587
        %v620 = vunpack.c.l.b16 %v588
        %v621 = vunpack.c.l.b16 %v589
        %v622 = vunpack.c.l.b16 %v590
        %v623 = vunpack.c.l.b16 %v591
        %v624 = vunpack.c.l.b16 %v592
        %v625 = vunpack.c.l.b16 %v593
        %v626 = vunpack.c.l.b16 %v594
        %v627 = vunpack.c.l.b16 %v595
        %v628 = vunpack.c.l.b16 %v596
        %v629 = vpack.c.b16 %v614, %v613
        %v630 = vpack.c.b16 %v616, %v615
        %v631 = vpack.c.b16 %v618, %v617
        %v632 = vpack.c.b16 %v620, %v619
        %v633 = vpack.c.b16 %v622, %v621
        %v634 = vpack.c.b16 %v624, %v623
        %v635 = vpack.c.b16 %v626, %v625
        %v636 = vpack.c.b16 %v628, %v627
        %645 = vmatpush.bf16.msra.mxu0 %v636
        %646 = vmatpush.bf16.msra.mxu0 %v635
        %647 = vmatpush.bf16.msra.mxu0 %v634
        %648 = vmatpush.bf16.msra.mxu0 %v633
        %649 = vmatpush.bf16.msra.mxu0 %v632
        %650 = vmatpush.bf16.msra.mxu0 %v631
        %651 = vmatpush.bf16.msra.mxu0 %v630
        %652 = vmatpush.bf16.msra.mxu0 %v629
        %653 = vmatmul.bf16.gmra.mxu0 %v576
        %v654 = vpop.f32.mrf.mxu0
        %v655 = vadd.f32 0.0, %v654
        %v656 = vpop.f32.mrf.mxu0
        %v657 = vadd.f32 0.0, %v656
        %658 = vmatmul.bf16.gmra.mxu0 %v577
        %v659 = vpop.f32.mrf.mxu0
        %v660 = vadd.f32 0.0, %v659
        %v661 = vpop.f32.mrf.mxu0
        %v662 = vadd.f32 0.0, %v661
        %663 = vmatmul.bf16.gmra.mxu0 %v578
        %v664 = vpop.f32.mrf.mxu0
        %v665 = vadd.f32 0.0, %v664
        %v666 = vpop.f32.mrf.mxu0
        %v667 = vadd.f32 0.0, %v666
        %668 = vmatmul.bf16.gmra.mxu0 %v579
        %v669 = vpop.f32.mrf.mxu0
        %v670 = vadd.f32 0.0, %v669
        %v671 = vpop.f32.mrf.mxu0
        %v672 = vadd.f32 0.0, %v671
        %673 = vdwg.mxu0
        %v674 = vadd.f32 %v549, %v655
        %v675 = vadd.f32 %v551, %v657
        %v676 = vadd.f32 %v554, %v660
        %v677 = vadd.f32 %v556, %v662
        %v678 = vadd.f32 %v559, %v665
        %v679 = vadd.f32 %v561, %v667
        %v680 = vadd.f32 %v564, %v670
        %v681 = vadd.f32 %v566, %v672
        %s682 = scalar_lea.vmem %s356, 16
        %v683 = vld [vmem:[%s682] sm:$0xff]
        %v684 = vld [vmem:[%s682 + $0x10] sm:$0xff]
        %v685 = vld [vmem:[%s682 + $0x20] sm:$0xff]
        %v686 = vld [vmem:[%s682 + $0x30] sm:$0xff]
        %v687 = vld [vmem:[%s682 + $0x40] sm:$0xff]
        %v688 = vld [vmem:[%s682 + $0x50] sm:$0xff]
        %v689 = vld [vmem:[%s682 + $0x60] sm:$0xff]
        %v690 = vld [vmem:[%s682 + $0x70] sm:$0xff]
        %v691 = vpack.c.bf16 %v684, %v683
        %v692 = vpack.c.bf16 %v686, %v685
        %v693 = vpack.c.bf16 %v688, %v687
        %v694 = vpack.c.bf16 %v690, %v689
        %s695 = scalar_lea.vmem %s1, 192
        %v696 = vld [vmem:[%s695] sm:$0xf]
        %v697 = vld [vmem:[%s695 + $0x4] sm:$0xf]
        %v698 = vld [vmem:[%s695 + $0x8] sm:$0xf]
        %v699 = vld [vmem:[%s695 + $0xc] sm:$0xf]
        %v700 = vld [vmem:[%s695 + $0x10] sm:$0xf]
        %v701 = vld [vmem:[%s695 + $0x14] sm:$0xf]
        %v702 = vld [vmem:[%s695 + $0x18] sm:$0xf]
        %v703 = vld [vmem:[%s695 + $0x1c] sm:$0xf]
        %v704 = vld [vmem:[%s695 + $0x20] sm:$0xf]
        %v705 = vld [vmem:[%s695 + $0x24] sm:$0xf]
        %v706 = vld [vmem:[%s695 + $0x28] sm:$0xf]
        %v707 = vld [vmem:[%s695 + $0x2c] sm:$0xf]
        %v708 = vld [vmem:[%s695 + $0x30] sm:$0xf]
        %v709 = vld [vmem:[%s695 + $0x34] sm:$0xf]
        %v710 = vld [vmem:[%s695 + $0x38] sm:$0xf]
        %v711 = vld [vmem:[%s695 + $0x3c] sm:$0xf]
        %v728 = vunpack.c.l.b16 %v696
        %v729 = vunpack.c.l.b16 %v697
        %v730 = vunpack.c.l.b16 %v698
        %v731 = vunpack.c.l.b16 %v699
        %v732 = vunpack.c.l.b16 %v700
        %v733 = vunpack.c.l.b16 %v701
        %v734 = vunpack.c.l.b16 %v702
        %v735 = vunpack.c.l.b16 %v703
        %v736 = vunpack.c.l.b16 %v704
        %v737 = vunpack.c.l.b16 %v705
        %v738 = vunpack.c.l.b16 %v706
        %v739 = vunpack.c.l.b16 %v707
        %v740 = vunpack.c.l.b16 %v708
        %v741 = vunpack.c.l.b16 %v709
        %v742 = vunpack.c.l.b16 %v710
        %v743 = vunpack.c.l.b16 %v711
        %v744 = vpack.c.b16 %v729, %v728
        %v745 = vpack.c.b16 %v731, %v730
        %v746 = vpack.c.b16 %v733, %v732
        %v747 = vpack.c.b16 %v735, %v734
        %v748 = vpack.c.b16 %v737, %v736
        %v749 = vpack.c.b16 %v739, %v738
        %v750 = vpack.c.b16 %v741, %v740
        %v751 = vpack.c.b16 %v743, %v742
        %760 = vmatpush.bf16.msra.mxu0 %v751
        %761 = vmatpush.bf16.msra.mxu0 %v750
        %762 = vmatpush.bf16.msra.mxu0 %v749
        %763 = vmatpush.bf16.msra.mxu0 %v748
        %764 = vmatpush.bf16.msra.mxu0 %v747
        %765 = vmatpush.bf16.msra.mxu0 %v746
        %766 = vmatpush.bf16.msra.mxu0 %v745
        %767 = vmatpush.bf16.msra.mxu0 %v744
        %768 = vmatmul.bf16.gmra.mxu0 %v691
        %v769 = vpop.f32.mrf.mxu0
        %v770 = vadd.f32 0.0, %v769
        %v771 = vpop.f32.mrf.mxu0
        %v772 = vadd.f32 0.0, %v771
        %773 = vmatmul.bf16.gmra.mxu0 %v692
        %v774 = vpop.f32.mrf.mxu0
        %v775 = vadd.f32 0.0, %v774
        %v776 = vpop.f32.mrf.mxu0
        %v777 = vadd.f32 0.0, %v776
        %778 = vmatmul.bf16.gmra.mxu0 %v693
        %v779 = vpop.f32.mrf.mxu0
        %v780 = vadd.f32 0.0, %v779
        %v781 = vpop.f32.mrf.mxu0
        %v782 = vadd.f32 0.0, %v781
        %783 = vmatmul.bf16.gmra.mxu0 %v694
        %v784 = vpop.f32.mrf.mxu0
        %v785 = vadd.f32 0.0, %v784
        %v786 = vpop.f32.mrf.mxu0
        %v787 = vadd.f32 0.0, %v786
        %788 = vdwg.mxu0
        %v789 = vadd.f32 %v674, %v770
        %v790 = vadd.f32 %v675, %v772
        %v791 = vadd.f32 %v676, %v775
        %v792 = vadd.f32 %v677, %v777
        %v793 = vadd.f32 %v678, %v780
        %v794 = vadd.f32 %v679, %v782
        %v795 = vadd.f32 %v680, %v785
        %v796 = vadd.f32 %v681, %v787
        %v797 = vld [vmem:[%s682 + $0x1] sm:$0xff]
        %v798 = vld [vmem:[%s682 + $0x11] sm:$0xff]
        %v799 = vld [vmem:[%s682 + $0x21] sm:$0xff]
        %v800 = vld [vmem:[%s682 + $0x31] sm:$0xff]
        %v801 = vld [vmem:[%s682 + $0x41] sm:$0xff]
        %v802 = vld [vmem:[%s682 + $0x51] sm:$0xff]
        %v803 = vld [vmem:[%s682 + $0x61] sm:$0xff]
        %v804 = vld [vmem:[%s682 + $0x71] sm:$0xff]
        %v805 = vpack.c.bf16 %v798, %v797
        %v806 = vpack.c.bf16 %v800, %v799
        %v807 = vpack.c.bf16 %v802, %v801
        %v808 = vpack.c.bf16 %v804, %v803
        %s809 = scalar_lea.vmem %s1, 256
        %v810 = vld [vmem:[%s809] sm:$0xf]
        %v811 = vld [vmem:[%s809 + $0x4] sm:$0xf]
        %v812 = vld [vmem:[%s809 + $0x8] sm:$0xf]
        %v813 = vld [vmem:[%s809 + $0xc] sm:$0xf]
        %v814 = vld [vmem:[%s809 + $0x10] sm:$0xf]
        %v815 = vld [vmem:[%s809 + $0x14] sm:$0xf]
        %v816 = vld [vmem:[%s809 + $0x18] sm:$0xf]
        %v817 = vld [vmem:[%s809 + $0x1c] sm:$0xf]
        %v818 = vld [vmem:[%s809 + $0x20] sm:$0xf]
        %v819 = vld [vmem:[%s809 + $0x24] sm:$0xf]
        %v820 = vld [vmem:[%s809 + $0x28] sm:$0xf]
        %v821 = vld [vmem:[%s809 + $0x2c] sm:$0xf]
        %v822 = vld [vmem:[%s809 + $0x30] sm:$0xf]
        %v823 = vld [vmem:[%s809 + $0x34] sm:$0xf]
        %v824 = vld [vmem:[%s809 + $0x38] sm:$0xf]
        %v825 = vld [vmem:[%s809 + $0x3c] sm:$0xf]
        %v842 = vunpack.c.l.b16 %v810
        %v843 = vunpack.c.l.b16 %v811
        %v844 = vunpack.c.l.b16 %v812
        %v845 = vunpack.c.l.b16 %v813
        %v846 = vunpack.c.l.b16 %v814
        %v847 = vunpack.c.l.b16 %v815
        %v848 = vunpack.c.l.b16 %v816
        %v849 = vunpack.c.l.b16 %v817
        %v850 = vunpack.c.l.b16 %v818
        %v851 = vunpack.c.l.b16 %v819
        %v852 = vunpack.c.l.b16 %v820
        %v853 = vunpack.c.l.b16 %v821
        %v854 = vunpack.c.l.b16 %v822
        %v855 = vunpack.c.l.b16 %v823
        %v856 = vunpack.c.l.b16 %v824
        %v857 = vunpack.c.l.b16 %v825
        %v858 = vpack.c.b16 %v843, %v842
        %v859 = vpack.c.b16 %v845, %v844
        %v860 = vpack.c.b16 %v847, %v846
        %v861 = vpack.c.b16 %v849, %v848
        %v862 = vpack.c.b16 %v851, %v850
        %v863 = vpack.c.b16 %v853, %v852
        %v864 = vpack.c.b16 %v855, %v854
        %v865 = vpack.c.b16 %v857, %v856
        %874 = vmatpush.bf16.msra.mxu0 %v865
        %875 = vmatpush.bf16.msra.mxu0 %v864
        %876 = vmatpush.bf16.msra.mxu0 %v863
        %877 = vmatpush.bf16.msra.mxu0 %v862
        %878 = vmatpush.bf16.msra.mxu0 %v861
        %879 = vmatpush.bf16.msra.mxu0 %v860
        %880 = vmatpush.bf16.msra.mxu0 %v859
        %881 = vmatpush.bf16.msra.mxu0 %v858
        %882 = vmatmul.bf16.gmra.mxu0 %v805
        %v883 = vpop.f32.mrf.mxu0
        %v884 = vadd.f32 0.0, %v883
        %v885 = vpop.f32.mrf.mxu0
        %v886 = vadd.f32 0.0, %v885
        %887 = vmatmul.bf16.gmra.mxu0 %v806
        %v888 = vpop.f32.mrf.mxu0
        %v889 = vadd.f32 0.0, %v888
        %v890 = vpop.f32.mrf.mxu0
        %v891 = vadd.f32 0.0, %v890
        %892 = vmatmul.bf16.gmra.mxu0 %v807
        %v893 = vpop.f32.mrf.mxu0
        %v894 = vadd.f32 0.0, %v893
        %v895 = vpop.f32.mrf.mxu0
        %v896 = vadd.f32 0.0, %v895
        %897 = vmatmul.bf16.gmra.mxu0 %v808
        %v898 = vpop.f32.mrf.mxu0
        %v899 = vadd.f32 0.0, %v898
        %v900 = vpop.f32.mrf.mxu0
        %v901 = vadd.f32 0.0, %v900
        %902 = vdwg.mxu0
        %v903 = vadd.f32 %v789, %v884
        %v904 = vadd.f32 %v790, %v886
        %v905 = vadd.f32 %v791, %v889
        %v906 = vadd.f32 %v792, %v891
        %v907 = vadd.f32 %v793, %v894
        %v908 = vadd.f32 %v794, %v896
        %v909 = vadd.f32 %v795, %v899
        %v910 = vadd.f32 %v796, %v901
        %v911 = vld [vmem:[%s682 + $0x2] sm:$0xff]
        %v912 = vld [vmem:[%s682 + $0x12] sm:$0xff]
        %v913 = vld [vmem:[%s682 + $0x22] sm:$0xff]
        %v914 = vld [vmem:[%s682 + $0x32] sm:$0xff]
        %v915 = vld [vmem:[%s682 + $0x42] sm:$0xff]
        %v916 = vld [vmem:[%s682 + $0x52] sm:$0xff]
        %v917 = vld [vmem:[%s682 + $0x62] sm:$0xff]
        %v918 = vld [vmem:[%s682 + $0x72] sm:$0xff]
        %v919 = vpack.c.bf16 %v912, %v911
        %v920 = vpack.c.bf16 %v914, %v913
        %v921 = vpack.c.bf16 %v916, %v915
        %v922 = vpack.c.bf16 %v918, %v917
        %s923 = scalar_lea.vmem %s1, 320
        %v924 = vld [vmem:[%s923] sm:$0xf]
        %v925 = vld [vmem:[%s923 + $0x4] sm:$0xf]
        %v926 = vld [vmem:[%s923 + $0x8] sm:$0xf]
        %v927 = vld [vmem:[%s923 + $0xc] sm:$0xf]
        %v928 = vld [vmem:[%s923 + $0x10] sm:$0xf]
        %v929 = vld [vmem:[%s923 + $0x14] sm:$0xf]
        %v930 = vld [vmem:[%s923 + $0x18] sm:$0xf]
        %v931 = vld [vmem:[%s923 + $0x1c] sm:$0xf]
        %v932 = vld [vmem:[%s923 + $0x20] sm:$0xf]
        %v933 = vld [vmem:[%s923 + $0x24] sm:$0xf]
        %v934 = vld [vmem:[%s923 + $0x28] sm:$0xf]
        %v935 = vld [vmem:[%s923 + $0x2c] sm:$0xf]
        %v936 = vld [vmem:[%s923 + $0x30] sm:$0xf]
        %v937 = vld [vmem:[%s923 + $0x34] sm:$0xf]
        %v938 = vld [vmem:[%s923 + $0x38] sm:$0xf]
        %v939 = vld [vmem:[%s923 + $0x3c] sm:$0xf]
        %v956 = vunpack.c.l.b16 %v924
        %v957 = vunpack.c.l.b16 %v925
        %v958 = vunpack.c.l.b16 %v926
        %v959 = vunpack.c.l.b16 %v927
        %v960 = vunpack.c.l.b16 %v928
        %v961 = vunpack.c.l.b16 %v929
        %v962 = vunpack.c.l.b16 %v930
        %v963 = vunpack.c.l.b16 %v931
        %v964 = vunpack.c.l.b16 %v932
        %v965 = vunpack.c.l.b16 %v933
        %v966 = vunpack.c.l.b16 %v934
        %v967 = vunpack.c.l.b16 %v935
        %v968 = vunpack.c.l.b16 %v936
        %v969 = vunpack.c.l.b16 %v937
        %v970 = vunpack.c.l.b16 %v938
        %v971 = vunpack.c.l.b16 %v939
        %v972 = vpack.c.b16 %v957, %v956
        %v973 = vpack.c.b16 %v959, %v958
        %v974 = vpack.c.b16 %v961, %v960
        %v975 = vpack.c.b16 %v963, %v962
        %v976 = vpack.c.b16 %v965, %v964
        %v977 = vpack.c.b16 %v967, %v966
        %v978 = vpack.c.b16 %v969, %v968
        %v979 = vpack.c.b16 %v971, %v970
        %988 = vmatpush.bf16.msra.mxu0 %v979
        %989 = vmatpush.bf16.msra.mxu0 %v978
        %990 = vmatpush.bf16.msra.mxu0 %v977
        %991 = vmatpush.bf16.msra.mxu0 %v976
        %992 = vmatpush.bf16.msra.mxu0 %v975
        %993 = vmatpush.bf16.msra.mxu0 %v974
        %994 = vmatpush.bf16.msra.mxu0 %v973
        %995 = vmatpush.bf16.msra.mxu0 %v972
        %996 = vmatmul.bf16.gmra.mxu0 %v919
        %v997 = vpop.f32.mrf.mxu0
        %v998 = vadd.f32 0.0, %v997
        %v999 = vpop.f32.mrf.mxu0
        %v1000 = vadd.f32 0.0, %v999
        %1001 = vmatmul.bf16.gmra.mxu0 %v920
        %v1002 = vpop.f32.mrf.mxu0
        %v1003 = vadd.f32 0.0, %v1002
        %v1004 = vpop.f32.mrf.mxu0
        %v1005 = vadd.f32 0.0, %v1004
        %1006 = vmatmul.bf16.gmra.mxu0 %v921
        %v1007 = vpop.f32.mrf.mxu0
        %v1008 = vadd.f32 0.0, %v1007
        %v1009 = vpop.f32.mrf.mxu0
        %v1010 = vadd.f32 0.0, %v1009
        %1011 = vmatmul.bf16.gmra.mxu0 %v922
        %v1012 = vpop.f32.mrf.mxu0
        %v1013 = vadd.f32 0.0, %v1012
        %v1014 = vpop.f32.mrf.mxu0
        %v1015 = vadd.f32 0.0, %v1014
        %1016 = vdwg.mxu0
        %v1017 = vadd.f32 %v903, %v998
        %v1018 = vadd.f32 %v904, %v1000
        %v1019 = vadd.f32 %v905, %v1003
        %v1020 = vadd.f32 %v906, %v1005
        %v1021 = vadd.f32 %v907, %v1008
        %v1022 = vadd.f32 %v908, %v1010
        %v1023 = vadd.f32 %v909, %v1013
        %v1024 = vadd.f32 %v910, %v1015
        %s1025 = scalar_lea.vmem %s356, 32
        %v1026 = vld [vmem:[%s1025] sm:$0xff]
        %v1027 = vld [vmem:[%s1025 + $0x10] sm:$0xff]
        %v1028 = vld [vmem:[%s1025 + $0x20] sm:$0xff]
        %v1029 = vld [vmem:[%s1025 + $0x30] sm:$0xff]
        %v1030 = vld [vmem:[%s1025 + $0x40] sm:$0xff]
        %v1031 = vld [vmem:[%s1025 + $0x50] sm:$0xff]
        %v1032 = vld [vmem:[%s1025 + $0x60] sm:$0xff]
        %v1033 = vld [vmem:[%s1025 + $0x70] sm:$0xff]
        %v1034 = vpack.c.bf16 %v1027, %v1026
        %v1035 = vpack.c.bf16 %v1029, %v1028
        %v1036 = vpack.c.bf16 %v1031, %v1030
        %v1037 = vpack.c.bf16 %v1033, %v1032
        %s1038 = scalar_lea.vmem %s1, 384
        %v1039 = vld [vmem:[%s1038] sm:$0xf]
        %v1040 = vld [vmem:[%s1038 + $0x4] sm:$0xf]
        %v1041 = vld [vmem:[%s1038 + $0x8] sm:$0xf]
        %v1042 = vld [vmem:[%s1038 + $0xc] sm:$0xf]
        %v1043 = vld [vmem:[%s1038 + $0x10] sm:$0xf]
        %v1044 = vld [vmem:[%s1038 + $0x14] sm:$0xf]
        %v1045 = vld [vmem:[%s1038 + $0x18] sm:$0xf]
        %v1046 = vld [vmem:[%s1038 + $0x1c] sm:$0xf]
        %v1047 = vld [vmem:[%s1038 + $0x20] sm:$0xf]
        %v1048 = vld [vmem:[%s1038 + $0x24] sm:$0xf]
        %v1049 = vld [vmem:[%s1038 + $0x28] sm:$0xf]
        %v1050 = vld [vmem:[%s1038 + $0x2c] sm:$0xf]
        %v1051 = vld [vmem:[%s1038 + $0x30] sm:$0xf]
        %v1052 = vld [vmem:[%s1038 + $0x34] sm:$0xf]
        %v1053 = vld [vmem:[%s1038 + $0x38] sm:$0xf]
        %v1054 = vld [vmem:[%s1038 + $0x3c] sm:$0xf]
        %v1071 = vunpack.c.l.b16 %v1039
        %v1072 = vunpack.c.l.b16 %v1040
        %v1073 = vunpack.c.l.b16 %v1041
        %v1074 = vunpack.c.l.b16 %v1042
        %v1075 = vunpack.c.l.b16 %v1043
        %v1076 = vunpack.c.l.b16 %v1044
        %v1077 = vunpack.c.l.b16 %v1045
        %v1078 = vunpack.c.l.b16 %v1046
        %v1079 = vunpack.c.l.b16 %v1047
        %v1080 = vunpack.c.l.b16 %v1048
        %v1081 = vunpack.c.l.b16 %v1049
        %v1082 = vunpack.c.l.b16 %v1050
        %v1083 = vunpack.c.l.b16 %v1051
        %v1084 = vunpack.c.l.b16 %v1052
        %v1085 = vunpack.c.l.b16 %v1053
        %v1086 = vunpack.c.l.b16 %v1054
        %v1087 = vpack.c.b16 %v1072, %v1071
        %v1088 = vpack.c.b16 %v1074, %v1073
        %v1089 = vpack.c.b16 %v1076, %v1075
        %v1090 = vpack.c.b16 %v1078, %v1077
        %v1091 = vpack.c.b16 %v1080, %v1079
        %v1092 = vpack.c.b16 %v1082, %v1081
        %v1093 = vpack.c.b16 %v1084, %v1083
        %v1094 = vpack.c.b16 %v1086, %v1085
        %1103 = vmatpush.bf16.msra.mxu0 %v1094
        %1104 = vmatpush.bf16.msra.mxu0 %v1093
        %1105 = vmatpush.bf16.msra.mxu0 %v1092
        %1106 = vmatpush.bf16.msra.mxu0 %v1091
        %1107 = vmatpush.bf16.msra.mxu0 %v1090
        %1108 = vmatpush.bf16.msra.mxu0 %v1089
        %1109 = vmatpush.bf16.msra.mxu0 %v1088
        %1110 = vmatpush.bf16.msra.mxu0 %v1087
        %1111 = vmatmul.bf16.gmra.mxu0 %v1034
        %v1112 = vpop.f32.mrf.mxu0
        %v1113 = vadd.f32 0.0, %v1112
        %v1114 = vpop.f32.mrf.mxu0
        %v1115 = vadd.f32 0.0, %v1114
        %1116 = vmatmul.bf16.gmra.mxu0 %v1035
        %v1117 = vpop.f32.mrf.mxu0
        %v1118 = vadd.f32 0.0, %v1117
        %v1119 = vpop.f32.mrf.mxu0
        %v1120 = vadd.f32 0.0, %v1119
        %1121 = vmatmul.bf16.gmra.mxu0 %v1036
        %v1122 = vpop.f32.mrf.mxu0
        %v1123 = vadd.f32 0.0, %v1122
        %v1124 = vpop.f32.mrf.mxu0
        %v1125 = vadd.f32 0.0, %v1124
        %1126 = vmatmul.bf16.gmra.mxu0 %v1037
        %v1127 = vpop.f32.mrf.mxu0
        %v1128 = vadd.f32 0.0, %v1127
        %v1129 = vpop.f32.mrf.mxu0
        %v1130 = vadd.f32 0.0, %v1129
        %1131 = vdwg.mxu0
        %v1132 = vadd.f32 %v1017, %v1113
        %v1133 = vadd.f32 %v1018, %v1115
        %v1134 = vadd.f32 %v1019, %v1118
        %v1135 = vadd.f32 %v1020, %v1120
        %v1136 = vadd.f32 %v1021, %v1123
        %v1137 = vadd.f32 %v1022, %v1125
        %v1138 = vadd.f32 %v1023, %v1128
        %v1139 = vadd.f32 %v1024, %v1130
        %v1140 = vld [vmem:[%s1025 + $0x1] sm:$0xff]
        %v1141 = vld [vmem:[%s1025 + $0x11] sm:$0xff]
        %v1142 = vld [vmem:[%s1025 + $0x21] sm:$0xff]
        %v1143 = vld [vmem:[%s1025 + $0x31] sm:$0xff]
        %v1144 = vld [vmem:[%s1025 + $0x41] sm:$0xff]
        %v1145 = vld [vmem:[%s1025 + $0x51] sm:$0xff]
        %v1146 = vld [vmem:[%s1025 + $0x61] sm:$0xff]
        %v1147 = vld [vmem:[%s1025 + $0x71] sm:$0xff]
        %v1148 = vpack.c.bf16 %v1141, %v1140
        %v1149 = vpack.c.bf16 %v1143, %v1142
        %v1150 = vpack.c.bf16 %v1145, %v1144
        %v1151 = vpack.c.bf16 %v1147, %v1146
        %s1152 = scalar_lea.vmem %s1, 448
        %v1153 = vld [vmem:[%s1152] sm:$0xf]
        %v1154 = vld [vmem:[%s1152 + $0x4] sm:$0xf]
        %v1155 = vld [vmem:[%s1152 + $0x8] sm:$0xf]
        %v1156 = vld [vmem:[%s1152 + $0xc] sm:$0xf]
        %v1157 = vld [vmem:[%s1152 + $0x10] sm:$0xf]
        %v1158 = vld [vmem:[%s1152 + $0x14] sm:$0xf]
        %v1159 = vld [vmem:[%s1152 + $0x18] sm:$0xf]
        %v1160 = vld [vmem:[%s1152 + $0x1c] sm:$0xf]
        %v1161 = vld [vmem:[%s1152 + $0x20] sm:$0xf]
        %v1162 = vld [vmem:[%s1152 + $0x24] sm:$0xf]
        %v1163 = vld [vmem:[%s1152 + $0x28] sm:$0xf]
        %v1164 = vld [vmem:[%s1152 + $0x2c] sm:$0xf]
        %v1165 = vld [vmem:[%s1152 + $0x30] sm:$0xf]
        %v1166 = vld [vmem:[%s1152 + $0x34] sm:$0xf]
        %v1167 = vld [vmem:[%s1152 + $0x38] sm:$0xf]
        %v1168 = vld [vmem:[%s1152 + $0x3c] sm:$0xf]
        %v1185 = vunpack.c.l.b16 %v1153
        %v1186 = vunpack.c.l.b16 %v1154
        %v1187 = vunpack.c.l.b16 %v1155
        %v1188 = vunpack.c.l.b16 %v1156
        %v1189 = vunpack.c.l.b16 %v1157
        %v1190 = vunpack.c.l.b16 %v1158
        %v1191 = vunpack.c.l.b16 %v1159
        %v1192 = vunpack.c.l.b16 %v1160
        %v1193 = vunpack.c.l.b16 %v1161
        %v1194 = vunpack.c.l.b16 %v1162
        %v1195 = vunpack.c.l.b16 %v1163
        %v1196 = vunpack.c.l.b16 %v1164
        %v1197 = vunpack.c.l.b16 %v1165
        %v1198 = vunpack.c.l.b16 %v1166
        %v1199 = vunpack.c.l.b16 %v1167
        %v1200 = vunpack.c.l.b16 %v1168
        %v1201 = vpack.c.b16 %v1186, %v1185
        %v1202 = vpack.c.b16 %v1188, %v1187
        %v1203 = vpack.c.b16 %v1190, %v1189
        %v1204 = vpack.c.b16 %v1192, %v1191
        %v1205 = vpack.c.b16 %v1194, %v1193
        %v1206 = vpack.c.b16 %v1196, %v1195
        %v1207 = vpack.c.b16 %v1198, %v1197
        %v1208 = vpack.c.b16 %v1200, %v1199
        %1217 = vmatpush.bf16.msra.mxu0 %v1208
        %1218 = vmatpush.bf16.msra.mxu0 %v1207
        %1219 = vmatpush.bf16.msra.mxu0 %v1206
        %1220 = vmatpush.bf16.msra.mxu0 %v1205
        %1221 = vmatpush.bf16.msra.mxu0 %v1204
        %1222 = vmatpush.bf16.msra.mxu0 %v1203
        %1223 = vmatpush.bf16.msra.mxu0 %v1202
        %1224 = vmatpush.bf16.msra.mxu0 %v1201
        %1225 = vmatmul.bf16.gmra.mxu0 %v1148
        %v1226 = vpop.f32.mrf.mxu0
        %v1227 = vadd.f32 0.0, %v1226
        %v1228 = vpop.f32.mrf.mxu0
        %v1229 = vadd.f32 0.0, %v1228
        %1230 = vmatmul.bf16.gmra.mxu0 %v1149
        %v1231 = vpop.f32.mrf.mxu0
        %v1232 = vadd.f32 0.0, %v1231
        %v1233 = vpop.f32.mrf.mxu0
        %v1234 = vadd.f32 0.0, %v1233
        %1235 = vmatmul.bf16.gmra.mxu0 %v1150
        %v1236 = vpop.f32.mrf.mxu0
        %v1237 = vadd.f32 0.0, %v1236
        %v1238 = vpop.f32.mrf.mxu0
        %v1239 = vadd.f32 0.0, %v1238
        %1240 = vmatmul.bf16.gmra.mxu0 %v1151
        %v1241 = vpop.f32.mrf.mxu0
        %v1242 = vadd.f32 0.0, %v1241
        %v1243 = vpop.f32.mrf.mxu0
        %v1244 = vadd.f32 0.0, %v1243
        %1245 = vdwg.mxu0
        %v1246 = vadd.f32 %v1132, %v1227
        %v1247 = vadd.f32 %v1133, %v1229
        %v1248 = vadd.f32 %v1134, %v1232
        %v1249 = vadd.f32 %v1135, %v1234
        %v1250 = vadd.f32 %v1136, %v1237
        %v1251 = vadd.f32 %v1137, %v1239
        %v1252 = vadd.f32 %v1138, %v1242
        %v1253 = vadd.f32 %v1139, %v1244
        %v1254 = vld [vmem:[%s1025 + $0x2] sm:$0xff]
        %v1255 = vld [vmem:[%s1025 + $0x12] sm:$0xff]
        %v1256 = vld [vmem:[%s1025 + $0x22] sm:$0xff]
        %v1257 = vld [vmem:[%s1025 + $0x32] sm:$0xff]
        %v1258 = vld [vmem:[%s1025 + $0x42] sm:$0xff]
        %v1259 = vld [vmem:[%s1025 + $0x52] sm:$0xff]
        %v1260 = vld [vmem:[%s1025 + $0x62] sm:$0xff]
        %v1261 = vld [vmem:[%s1025 + $0x72] sm:$0xff]
        %v1262 = vpack.c.bf16 %v1255, %v1254
        %v1263 = vpack.c.bf16 %v1257, %v1256
        %v1264 = vpack.c.bf16 %v1259, %v1258
        %v1265 = vpack.c.bf16 %v1261, %v1260
        %s1266 = scalar_lea.vmem %s1, 512
        %v1267 = vld [vmem:[%s1266] sm:$0xf]
        %v1268 = vld [vmem:[%s1266 + $0x4] sm:$0xf]
        %v1269 = vld [vmem:[%s1266 + $0x8] sm:$0xf]
        %v1270 = vld [vmem:[%s1266 + $0xc] sm:$0xf]
        %v1271 = vld [vmem:[%s1266 + $0x10] sm:$0xf]
        %v1272 = vld [vmem:[%s1266 + $0x14] sm:$0xf]
        %v1273 = vld [vmem:[%s1266 + $0x18] sm:$0xf]
        %v1274 = vld [vmem:[%s1266 + $0x1c] sm:$0xf]
        %v1275 = vld [vmem:[%s1266 + $0x20] sm:$0xf]
        %v1276 = vld [vmem:[%s1266 + $0x24] sm:$0xf]
        %v1277 = vld [vmem:[%s1266 + $0x28] sm:$0xf]
        %v1278 = vld [vmem:[%s1266 + $0x2c] sm:$0xf]
        %v1279 = vld [vmem:[%s1266 + $0x30] sm:$0xf]
        %v1280 = vld [vmem:[%s1266 + $0x34] sm:$0xf]
        %v1281 = vld [vmem:[%s1266 + $0x38] sm:$0xf]
        %v1282 = vld [vmem:[%s1266 + $0x3c] sm:$0xf]
        %v1299 = vunpack.c.l.b16 %v1267
        %v1300 = vunpack.c.l.b16 %v1268
        %v1301 = vunpack.c.l.b16 %v1269
        %v1302 = vunpack.c.l.b16 %v1270
        %v1303 = vunpack.c.l.b16 %v1271
        %v1304 = vunpack.c.l.b16 %v1272
        %v1305 = vunpack.c.l.b16 %v1273
        %v1306 = vunpack.c.l.b16 %v1274
        %v1307 = vunpack.c.l.b16 %v1275
        %v1308 = vunpack.c.l.b16 %v1276
        %v1309 = vunpack.c.l.b16 %v1277
        %v1310 = vunpack.c.l.b16 %v1278
        %v1311 = vunpack.c.l.b16 %v1279
        %v1312 = vunpack.c.l.b16 %v1280
        %v1313 = vunpack.c.l.b16 %v1281
        %v1314 = vunpack.c.l.b16 %v1282
        %v1315 = vpack.c.b16 %v1300, %v1299
        %v1316 = vpack.c.b16 %v1302, %v1301
        %v1317 = vpack.c.b16 %v1304, %v1303
        %v1318 = vpack.c.b16 %v1306, %v1305
        %v1319 = vpack.c.b16 %v1308, %v1307
        %v1320 = vpack.c.b16 %v1310, %v1309
        %v1321 = vpack.c.b16 %v1312, %v1311
        %v1322 = vpack.c.b16 %v1314, %v1313
        %1331 = vmatpush.bf16.msra.mxu0 %v1322
        %1332 = vmatpush.bf16.msra.mxu0 %v1321
        %1333 = vmatpush.bf16.msra.mxu0 %v1320
        %1334 = vmatpush.bf16.msra.mxu0 %v1319
        %1335 = vmatpush.bf16.msra.mxu0 %v1318
        %1336 = vmatpush.bf16.msra.mxu0 %v1317
        %1337 = vmatpush.bf16.msra.mxu0 %v1316
        %1338 = vmatpush.bf16.msra.mxu0 %v1315
        %1339 = vmatmul.bf16.gmra.mxu0 %v1262
        %v1340 = vpop.f32.mrf.mxu0
        %v1341 = vadd.f32 0.0, %v1340
        %v1342 = vpop.f32.mrf.mxu0
        %v1343 = vadd.f32 0.0, %v1342
        %1344 = vmatmul.bf16.gmra.mxu0 %v1263
        %v1345 = vpop.f32.mrf.mxu0
        %v1346 = vadd.f32 0.0, %v1345
        %v1347 = vpop.f32.mrf.mxu0
        %v1348 = vadd.f32 0.0, %v1347
        %1349 = vmatmul.bf16.gmra.mxu0 %v1264
        %v1350 = vpop.f32.mrf.mxu0
        %v1351 = vadd.f32 0.0, %v1350
        %v1352 = vpop.f32.mrf.mxu0
        %v1353 = vadd.f32 0.0, %v1352
        %1354 = vmatmul.bf16.gmra.mxu0 %v1265
        %v1355 = vpop.f32.mrf.mxu0
        %v1356 = vadd.f32 0.0, %v1355
        %v1357 = vpop.f32.mrf.mxu0
        %v1358 = vadd.f32 0.0, %v1357
        %1359 = vdwg.mxu0
        %v1360 = vadd.f32 %v1246, %v1341
        %v1361 = vadd.f32 %v1247, %v1343
        %v1362 = vadd.f32 %v1248, %v1346
        %v1363 = vadd.f32 %v1249, %v1348
        %v1364 = vadd.f32 %v1250, %v1351
        %v1365 = vadd.f32 %v1251, %v1353
        %v1366 = vadd.f32 %v1252, %v1356
        %v1367 = vadd.f32 %v1253, %v1358
        %v1368 = vld [vmem:[%s2] sm:$0x1]
        %v1370 = vperm.slane %v1368, 0
        %v1372 = vmul.f32 %v1360, %v1370
        %v1373 = vmul.f32 %v1361, %v1370
        %v1374 = vmul.f32 %v1362, %v1370
        %v1375 = vmul.f32 %v1363, %v1370
        %v1376 = vmul.f32 %v1364, %v1370
        %v1377 = vmul.f32 %v1365, %v1370
        %v1378 = vmul.f32 %v1366, %v1370
        %v1379 = vmul.f32 %v1367, %v1370
        %v1380 = vld [vmem:[%s3] sm:$0x1]
        %v1382 = vperm.slane %v1380, 0
        %v1384 = vadd.f32 %v1372, %v1382
        %v1385 = vadd.f32 %v1373, %v1382
        %v1386 = vadd.f32 %v1374, %v1382
        %v1387 = vadd.f32 %v1375, %v1382
        %v1388 = vadd.f32 %v1376, %v1382
        %v1389 = vadd.f32 %v1377, %v1382
        %v1390 = vadd.f32 %v1378, %v1382
        %v1391 = vadd.f32 %v1379, %v1382
        %v1392 = vmax.f32 %v1384, 0.0
        %v1393 = vmax.f32 %v1385, 0.0
        %v1394 = vmax.f32 %v1386, 0.0
        %v1395 = vmax.f32 %v1387, 0.0
        %v1396 = vmax.f32 %v1388, 0.0
        %v1397 = vmax.f32 %v1389, 0.0
        %v1398 = vmax.f32 %v1390, 0.0
        %v1399 = vmax.f32 %v1391, 0.0
        %1400 = vst [vmem:[#allocation2] sm:$0xff] 0.0
        %1401 = vst [vmem:[#allocation2 + $0x8] sm:$0x3] 0.0
        %1402 = vst [vmem:[#allocation2 + $0x10] sm:$0xff] 0.0
        %1403 = vst [vmem:[#allocation2 + $0x18] sm:$0x3] 0.0
        %1404 = vst [vmem:[#allocation2 + $0x20] sm:$0xff] 0.0
        %1405 = vst [vmem:[#allocation2 + $0x28] sm:$0x3] 0.0
        %1406 = vst [vmem:[#allocation2 + $0x30] sm:$0xff] 0.0
        %1407 = vst [vmem:[#allocation2 + $0x38] sm:$0x3] 0.0
        %1408 = vst [vmem:[#allocation2 + $0x40] sm:$0xff] 0.0
        %1409 = vst [vmem:[#allocation2 + $0x48] sm:$0x3] 0.0
        %1410 = vst [vmem:[#allocation2 + $0x50] sm:$0xff] 0.0
        %1411 = vst [vmem:[#allocation2 + $0x58] sm:$0x3] 0.0
        %1412 = vst [vmem:[#allocation2 + $0x60] sm:$0xff] 0.0
        %1413 = vst [vmem:[#allocation2 + $0x68] sm:$0x3] 0.0
        %1414 = vst [vmem:[#allocation2 + $0x70] sm:$0xff] 0.0
        %1415 = vst [vmem:[#allocation2 + $0x78] sm:$0x3] 0.0
        %1416 = vst [vmem:[#allocation2 + $0x80] sm:$0xff] 0.0
        %1417 = vst [vmem:[#allocation2 + $0x88] sm:$0x3] 0.0
        %1418 = vst [vmem:[#allocation2 + $0x90] sm:$0xff] 0.0
        %1419 = vst [vmem:[#allocation2 + $0x98] sm:$0x3] 0.0
        %s1420 = scalar_lea.vmem [#allocation2], 16
        %1421 = vst [vmem:[%s1420 + $0x1] sm:$0xff] %v1392
        %1422 = vst [vmem:[%s1420 + $0x11] sm:$0xff] %v1393
        %1423 = vst [vmem:[%s1420 + $0x21] sm:$0xff] %v1394
        %1424 = vst [vmem:[%s1420 + $0x31] sm:$0xff] %v1395
        %1425 = vst [vmem:[%s1420 + $0x41] sm:$0xff] %v1396
        %1426 = vst [vmem:[%s1420 + $0x51] sm:$0xff] %v1397
        %1427 = vst [vmem:[%s1420 + $0x61] sm:$0xff] %v1398
        %1428 = vst [vmem:[%s1420 + $0x71] sm:$0xff] %v1399
        %v1429 = vld [vmem:[#allocation2] sm:$0xff]
        %v1430 = vld [vmem:[#allocation2 + $0x10] sm:$0xff]
        %v1431 = vld [vmem:[#allocation2 + $0x20] sm:$0xff]
        %v1432 = vld [vmem:[#allocation2 + $0x30] sm:$0xff]
        %v1433 = vld [vmem:[#allocation2 + $0x40] sm:$0xff]
        %v1434 = vld [vmem:[#allocation2 + $0x50] sm:$0xff]
        %v1435 = vld [vmem:[#allocation2 + $0x60] sm:$0xff]
        %v1436 = vld [vmem:[#allocation2 + $0x70] sm:$0xff]
        %v1437 = vpack.c.bf16 %v1430, %v1429
        %v1438 = vpack.c.bf16 %v1432, %v1431
        %v1439 = vpack.c.bf16 %v1434, %v1433
        %v1440 = vpack.c.bf16 %v1436, %v1435
        %v1441 = vld [vmem:[%s4] sm:$0xf]
        %v1442 = vld [vmem:[%s4 + $0x4] sm:$0xf]
        %v1443 = vld [vmem:[%s4 + $0x8] sm:$0xf]
        %v1444 = vld [vmem:[%s4 + $0xc] sm:$0xf]
        %v1445 = vld [vmem:[%s4 + $0x10] sm:$0xf]
        %v1446 = vld [vmem:[%s4 + $0x14] sm:$0xf]
        %v1447 = vld [vmem:[%s4 + $0x18] sm:$0xf]
        %v1448 = vld [vmem:[%s4 + $0x1c] sm:$0xf]
        %v1449 = vld [vmem:[%s4 + $0x20] sm:$0xf]
        %v1450 = vld [vmem:[%s4 + $0x24] sm:$0xf]
        %v1451 = vld [vmem:[%s4 + $0x28] sm:$0xf]
        %v1452 = vld [vmem:[%s4 + $0x2c] sm:$0xf]
        %v1453 = vld [vmem:[%s4 + $0x30] sm:$0xf]
        %v1454 = vld [vmem:[%s4 + $0x34] sm:$0xf]
        %v1455 = vld [vmem:[%s4 + $0x38] sm:$0xf]
        %v1456 = vld [vmem:[%s4 + $0x3c] sm:$0xf]
        %v1457 = vld [vmem:[#allocation2 + $0x1] sm:$0xff]
        %v1458 = vld [vmem:[#allocation2 + $0x11] sm:$0xff]
        %v1459 = vld [vmem:[#allocation2 + $0x21] sm:$0xff]
        %v1460 = vld [vmem:[#allocation2 + $0x31] sm:$0xff]
        %v1461 = vld [vmem:[#allocation2 + $0x41] sm:$0xff]
        %v1462 = vld [vmem:[#allocation2 + $0x51] sm:$0xff]
        %v1463 = vld [vmem:[#allocation2 + $0x61] sm:$0xff]
        %v1464 = vld [vmem:[#allocation2 + $0x71] sm:$0xff]
        %v1465 = vpack.c.bf16 %v1458, %v1457
        %v1466 = vpack.c.bf16 %v1460, %v1459
        %v1467 = vpack.c.bf16 %v1462, %v1461
        %v1468 = vpack.c.bf16 %v1464, %v1463
        %s1469 = scalar_lea.vmem %s4, 64
        %v1470 = vld [vmem:[%s1469] sm:$0xf]
        %v1471 = vld [vmem:[%s1469 + $0x4] sm:$0xf]
        %v1472 = vld [vmem:[%s1469 + $0x8] sm:$0xf]
        %v1473 = vld [vmem:[%s1469 + $0xc] sm:$0xf]
        %v1474 = vld [vmem:[%s1469 + $0x10] sm:$0xf]
        %v1475 = vld [vmem:[%s1469 + $0x14] sm:$0xf]
        %v1476 = vld [vmem:[%s1469 + $0x18] sm:$0xf]
        %v1477 = vld [vmem:[%s1469 + $0x1c] sm:$0xf]
        %v1478 = vld [vmem:[%s1469 + $0x20] sm:$0xf]
        %v1479 = vld [vmem:[%s1469 + $0x24] sm:$0xf]
        %v1480 = vld [vmem:[%s1469 + $0x28] sm:$0xf]
        %v1481 = vld [vmem:[%s1469 + $0x2c] sm:$0xf]
        %v1482 = vld [vmem:[%s1469 + $0x30] sm:$0xf]
        %v1483 = vld [vmem:[%s1469 + $0x34] sm:$0xf]
        %v1484 = vld [vmem:[%s1469 + $0x38] sm:$0xf]
        %v1485 = vld [vmem:[%s1469 + $0x3c] sm:$0xf]
        %v1502 = vunpack.c.l.b16 %v1470
        %v1503 = vunpack.c.l.b16 %v1471
        %v1504 = vunpack.c.l.b16 %v1472
        %v1505 = vunpack.c.l.b16 %v1473
        %v1506 = vunpack.c.l.b16 %v1474
        %v1507 = vunpack.c.l.b16 %v1475
        %v1508 = vunpack.c.l.b16 %v1476
        %v1509 = vunpack.c.l.b16 %v1477
        %v1510 = vunpack.c.l.b16 %v1478
        %v1511 = vunpack.c.l.b16 %v1479
        %v1512 = vunpack.c.l.b16 %v1480
        %v1513 = vunpack.c.l.b16 %v1481
        %v1514 = vunpack.c.l.b16 %v1482
        %v1515 = vunpack.c.l.b16 %v1483
        %v1516 = vunpack.c.l.b16 %v1484
        %v1517 = vunpack.c.l.b16 %v1485
        %v1518 = vpack.c.b16 %v1503, %v1502
        %v1519 = vpack.c.b16 %v1505, %v1504
        %v1520 = vpack.c.b16 %v1507, %v1506
        %v1521 = vpack.c.b16 %v1509, %v1508
        %v1522 = vpack.c.b16 %v1511, %v1510
        %v1523 = vpack.c.b16 %v1513, %v1512
        %v1524 = vpack.c.b16 %v1515, %v1514
        %v1525 = vpack.c.b16 %v1517, %v1516
        %1534 = vmatpush.bf16.msra.mxu0 %v1525
        %1535 = vmatpush.bf16.msra.mxu0 %v1524
        %1536 = vmatpush.bf16.msra.mxu0 %v1523
        %1537 = vmatpush.bf16.msra.mxu0 %v1522
        %1538 = vmatpush.bf16.msra.mxu0 %v1521
        %1539 = vmatpush.bf16.msra.mxu0 %v1520
        %1540 = vmatpush.bf16.msra.mxu0 %v1519
        %1541 = vmatpush.bf16.msra.mxu0 %v1518
        %1542 = vmatmul.bf16.gmra.mxu0 %v1465
        %v1543 = vpop.f32.mrf.mxu0
        %v1544 = vadd.f32 0.0, %v1543
        %v1545 = vpop.f32.mrf.mxu0
        %v1546 = vadd.f32 0.0, %v1545
        %1547 = vmatmul.bf16.gmra.mxu0 %v1466
        %v1548 = vpop.f32.mrf.mxu0
        %v1549 = vadd.f32 0.0, %v1548
        %v1550 = vpop.f32.mrf.mxu0
        %v1551 = vadd.f32 0.0, %v1550
        %1552 = vmatmul.bf16.gmra.mxu0 %v1467
        %v1553 = vpop.f32.mrf.mxu0
        %v1554 = vadd.f32 0.0, %v1553
        %v1555 = vpop.f32.mrf.mxu0
        %v1556 = vadd.f32 0.0, %v1555
        %1557 = vmatmul.bf16.gmra.mxu0 %v1468
        %v1558 = vpop.f32.mrf.mxu0
        %v1559 = vadd.f32 0.0, %v1558
        %v1560 = vpop.f32.mrf.mxu0
        %v1561 = vadd.f32 0.0, %v1560
        %1562 = vdwg.mxu0
        %v1579 = vunpack.c.l.b16 %v1441
        %v1580 = vunpack.c.l.b16 %v1442
        %v1581 = vunpack.c.l.b16 %v1443
        %v1582 = vunpack.c.l.b16 %v1444
        %v1583 = vunpack.c.l.b16 %v1445
        %v1584 = vunpack.c.l.b16 %v1446
        %v1585 = vunpack.c.l.b16 %v1447
        %v1586 = vunpack.c.l.b16 %v1448
        %v1587 = vunpack.c.l.b16 %v1449
        %v1588 = vunpack.c.l.b16 %v1450
        %v1589 = vunpack.c.l.b16 %v1451
        %v1590 = vunpack.c.l.b16 %v1452
        %v1591 = vunpack.c.l.b16 %v1453
        %v1592 = vunpack.c.l.b16 %v1454
        %v1593 = vunpack.c.l.b16 %v1455
        %v1594 = vunpack.c.l.b16 %v1456
        %v1595 = vpack.c.b16 %v1580, %v1579
        %v1596 = vpack.c.b16 %v1582, %v1581
        %v1597 = vpack.c.b16 %v1584, %v1583
        %v1598 = vpack.c.b16 %v1586, %v1585
        %v1599 = vpack.c.b16 %v1588, %v1587
        %v1600 = vpack.c.b16 %v1590, %v1589
        %v1601 = vpack.c.b16 %v1592, %v1591
        %v1602 = vpack.c.b16 %v1594, %v1593
        %1611 = vmatpush.bf16.msra.mxu0 %v1602
        %1612 = vmatpush.bf16.msra.mxu0 %v1601
        %1613 = vmatpush.bf16.msra.mxu0 %v1600
        %1614 = vmatpush.bf16.msra.mxu0 %v1599
        %1615 = vmatpush.bf16.msra.mxu0 %v1598
        %1616 = vmatpush.bf16.msra.mxu0 %v1597
        %1617 = vmatpush.bf16.msra.mxu0 %v1596
        %1618 = vmatpush.bf16.msra.mxu0 %v1595
        %1619 = vmatmul.bf16.gmra.mxu0 %v1437
        %v1620 = vpop.f32.mrf.mxu0
        %v1621 = vadd.f32 %v1544, %v1620
        %v1622 = vpop.f32.mrf.mxu0
        %v1623 = vadd.f32 %v1546, %v1622
        %1624 = vmatmul.bf16.gmra.mxu0 %v1438
        %v1625 = vpop.f32.mrf.mxu0
        %v1626 = vadd.f32 %v1549, %v1625
        %v1627 = vpop.f32.mrf.mxu0
        %v1628 = vadd.f32 %v1551, %v1627
        %1629 = vmatmul.bf16.gmra.mxu0 %v1439
        %v1630 = vpop.f32.mrf.mxu0
        %v1631 = vadd.f32 %v1554, %v1630
        %v1632 = vpop.f32.mrf.mxu0
        %v1633 = vadd.f32 %v1556, %v1632
        %1634 = vmatmul.bf16.gmra.mxu0 %v1440
        %v1635 = vpop.f32.mrf.mxu0
        %v1636 = vadd.f32 %v1559, %v1635
        %v1637 = vpop.f32.mrf.mxu0
        %v1638 = vadd.f32 %v1561, %v1637
        %1639 = vdwg.mxu0
        %v1640 = vld [vmem:[#allocation2 + $0x2] sm:$0xff]
        %v1641 = vld [vmem:[#allocation2 + $0x12] sm:$0xff]
        %v1642 = vld [vmem:[#allocation2 + $0x22] sm:$0xff]
        %v1643 = vld [vmem:[#allocation2 + $0x32] sm:$0xff]
        %v1644 = vld [vmem:[#allocation2 + $0x42] sm:$0xff]
        %v1645 = vld [vmem:[#allocation2 + $0x52] sm:$0xff]
        %v1646 = vld [vmem:[#allocation2 + $0x62] sm:$0xff]
        %v1647 = vld [vmem:[#allocation2 + $0x72] sm:$0xff]
        %v1648 = vpack.c.bf16 %v1641, %v1640
        %v1649 = vpack.c.bf16 %v1643, %v1642
        %v1650 = vpack.c.bf16 %v1645, %v1644
        %v1651 = vpack.c.bf16 %v1647, %v1646
        %s1652 = scalar_lea.vmem %s4, 128
        %v1653 = vld [vmem:[%s1652] sm:$0xf]
        %v1654 = vld [vmem:[%s1652 + $0x4] sm:$0xf]
        %v1655 = vld [vmem:[%s1652 + $0x8] sm:$0xf]
        %v1656 = vld [vmem:[%s1652 + $0xc] sm:$0xf]
        %v1657 = vld [vmem:[%s1652 + $0x10] sm:$0xf]
        %v1658 = vld [vmem:[%s1652 + $0x14] sm:$0xf]
        %v1659 = vld [vmem:[%s1652 + $0x18] sm:$0xf]
        %v1660 = vld [vmem:[%s1652 + $0x1c] sm:$0xf]
        %v1661 = vld [vmem:[%s1652 + $0x20] sm:$0xf]
        %v1662 = vld [vmem:[%s1652 + $0x24] sm:$0xf]
        %v1663 = vld [vmem:[%s1652 + $0x28] sm:$0xf]
        %v1664 = vld [vmem:[%s1652 + $0x2c] sm:$0xf]
        %v1665 = vld [vmem:[%s1652 + $0x30] sm:$0xf]
        %v1666 = vld [vmem:[%s1652 + $0x34] sm:$0xf]
        %v1667 = vld [vmem:[%s1652 + $0x38] sm:$0xf]
        %v1668 = vld [vmem:[%s1652 + $0x3c] sm:$0xf]
        %v1685 = vunpack.c.l.b16 %v1653
        %v1686 = vunpack.c.l.b16 %v1654
        %v1687 = vunpack.c.l.b16 %v1655
        %v1688 = vunpack.c.l.b16 %v1656
        %v1689 = vunpack.c.l.b16 %v1657
        %v1690 = vunpack.c.l.b16 %v1658
        %v1691 = vunpack.c.l.b16 %v1659
        %v1692 = vunpack.c.l.b16 %v1660
        %v1693 = vunpack.c.l.b16 %v1661
        %v1694 = vunpack.c.l.b16 %v1662
        %v1695 = vunpack.c.l.b16 %v1663
        %v1696 = vunpack.c.l.b16 %v1664
        %v1697 = vunpack.c.l.b16 %v1665
        %v1698 = vunpack.c.l.b16 %v1666
        %v1699 = vunpack.c.l.b16 %v1667
        %v1700 = vunpack.c.l.b16 %v1668
        %v1701 = vpack.c.b16 %v1686, %v1685
        %v1702 = vpack.c.b16 %v1688, %v1687
        %v1703 = vpack.c.b16 %v1690, %v1689
        %v1704 = vpack.c.b16 %v1692, %v1691
        %v1705 = vpack.c.b16 %v1694, %v1693
        %v1706 = vpack.c.b16 %v1696, %v1695
        %v1707 = vpack.c.b16 %v1698, %v1697
        %v1708 = vpack.c.b16 %v1700, %v1699
        %1717 = vmatpush.bf16.msra.mxu0 %v1708
        %1718 = vmatpush.bf16.msra.mxu0 %v1707
        %1719 = vmatpush.bf16.msra.mxu0 %v1706
        %1720 = vmatpush.bf16.msra.mxu0 %v1705
        %1721 = vmatpush.bf16.msra.mxu0 %v1704
        %1722 = vmatpush.bf16.msra.mxu0 %v1703
        %1723 = vmatpush.bf16.msra.mxu0 %v1702
        %1724 = vmatpush.bf16.msra.mxu0 %v1701
        %1725 = vmatmul.bf16.gmra.mxu0 %v1648
        %v1726 = vpop.f32.mrf.mxu0
        %v1727 = vadd.f32 0.0, %v1726
        %v1728 = vpop.f32.mrf.mxu0
        %v1729 = vadd.f32 0.0, %v1728
        %1730 = vmatmul.bf16.gmra.mxu0 %v1649
        %v1731 = vpop.f32.mrf.mxu0
        %v1732 = vadd.f32 0.0, %v1731
        %v1733 = vpop.f32.mrf.mxu0
        %v1734 = vadd.f32 0.0, %v1733
        %1735 = vmatmul.bf16.gmra.mxu0 %v1650
        %v1736 = vpop.f32.mrf.mxu0
        %v1737 = vadd.f32 0.0, %v1736
        %v1738 = vpop.f32.mrf.mxu0
        %v1739 = vadd.f32 0.0, %v1738
        %1740 = vmatmul.bf16.gmra.mxu0 %v1651
        %v1741 = vpop.f32.mrf.mxu0
        %v1742 = vadd.f32 0.0, %v1741
        %v1743 = vpop.f32.mrf.mxu0
        %v1744 = vadd.f32 0.0, %v1743
        %1745 = vdwg.mxu0
        %v1746 = vadd.f32 %v1621, %v1727
        %v1747 = vadd.f32 %v1623, %v1729
        %v1748 = vadd.f32 %v1626, %v1732
        %v1749 = vadd.f32 %v1628, %v1734
        %v1750 = vadd.f32 %v1631, %v1737
        %v1751 = vadd.f32 %v1633, %v1739
        %v1752 = vadd.f32 %v1636, %v1742
        %v1753 = vadd.f32 %v1638, %v1744
        %v1754 = vld [vmem:[%s1420] sm:$0xff]
        %v1755 = vld [vmem:[%s1420 + $0x10] sm:$0xff]
        %v1756 = vld [vmem:[%s1420 + $0x20] sm:$0xff]
        %v1757 = vld [vmem:[%s1420 + $0x30] sm:$0xff]
        %v1758 = vld [vmem:[%s1420 + $0x40] sm:$0xff]
        %v1759 = vld [vmem:[%s1420 + $0x50] sm:$0xff]
        %v1760 = vld [vmem:[%s1420 + $0x60] sm:$0xff]
        %v1761 = vld [vmem:[%s1420 + $0x70] sm:$0xff]
        %v1762 = vpack.c.bf16 %v1755, %v1754
        %v1763 = vpack.c.bf16 %v1757, %v1756
        %v1764 = vpack.c.bf16 %v1759, %v1758
        %v1765 = vpack.c.bf16 %v1761, %v1760
        %s1766 = scalar_lea.vmem %s4, 192
        %v1767 = vld [vmem:[%s1766] sm:$0xf]
        %v1768 = vld [vmem:[%s1766 + $0x4] sm:$0xf]
        %v1769 = vld [vmem:[%s1766 + $0x8] sm:$0xf]
        %v1770 = vld [vmem:[%s1766 + $0xc] sm:$0xf]
        %v1771 = vld [vmem:[%s1766 + $0x10] sm:$0xf]
        %v1772 = vld [vmem:[%s1766 + $0x14] sm:$0xf]
        %v1773 = vld [vmem:[%s1766 + $0x18] sm:$0xf]
        %v1774 = vld [vmem:[%s1766 + $0x1c] sm:$0xf]
        %v1775 = vld [vmem:[%s1766 + $0x20] sm:$0xf]
        %v1776 = vld [vmem:[%s1766 + $0x24] sm:$0xf]
        %v1777 = vld [vmem:[%s1766 + $0x28] sm:$0xf]
        %v1778 = vld [vmem:[%s1766 + $0x2c] sm:$0xf]
        %v1779 = vld [vmem:[%s1766 + $0x30] sm:$0xf]
        %v1780 = vld [vmem:[%s1766 + $0x34] sm:$0xf]
        %v1781 = vld [vmem:[%s1766 + $0x38] sm:$0xf]
        %v1782 = vld [vmem:[%s1766 + $0x3c] sm:$0xf]
        %v1799 = vunpack.c.l.b16 %v1767
        %v1800 = vunpack.c.l.b16 %v1768
        %v1801 = vunpack.c.l.b16 %v1769
        %v1802 = vunpack.c.l.b16 %v1770
        %v1803 = vunpack.c.l.b16 %v1771
        %v1804 = vunpack.c.l.b16 %v1772
        %v1805 = vunpack.c.l.b16 %v1773
        %v1806 = vunpack.c.l.b16 %v1774
        %v1807 = vunpack.c.l.b16 %v1775
        %v1808 = vunpack.c.l.b16 %v1776
        %v1809 = vunpack.c.l.b16 %v1777
        %v1810 = vunpack.c.l.b16 %v1778
        %v1811 = vunpack.c.l.b16 %v1779
        %v1812 = vunpack.c.l.b16 %v1780
        %v1813 = vunpack.c.l.b16 %v1781
        %v1814 = vunpack.c.l.b16 %v1782
        %v1815 = vpack.c.b16 %v1800, %v1799
        %v1816 = vpack.c.b16 %v1802, %v1801
        %v1817 = vpack.c.b16 %v1804, %v1803
        %v1818 = vpack.c.b16 %v1806, %v1805
        %v1819 = vpack.c.b16 %v1808, %v1807
        %v1820 = vpack.c.b16 %v1810, %v1809
        %v1821 = vpack.c.b16 %v1812, %v1811
        %v1822 = vpack.c.b16 %v1814, %v1813
        %1831 = vmatpush.bf16.msra.mxu0 %v1822
        %1832 = vmatpush.bf16.msra.mxu0 %v1821
        %1833 = vmatpush.bf16.msra.mxu0 %v1820
        %1834 = vmatpush.bf16.msra.mxu0 %v1819
        %1835 = vmatpush.bf16.msra.mxu0 %v1818
        %1836 = vmatpush.bf16.msra.mxu0 %v1817
        %1837 = vmatpush.bf16.msra.mxu0 %v1816
        %1838 = vmatpush.bf16.msra.mxu0 %v1815
        %1839 = vmatmul.bf16.gmra.mxu0 %v1762
        %v1840 = vpop.f32.mrf.mxu0
        %v1841 = vadd.f32 0.0, %v1840
        %v1842 = vpop.f32.mrf.mxu0
        %v1843 = vadd.f32 0.0, %v1842
        %1844 = vmatmul.bf16.gmra.mxu0 %v1763
        %v1845 = vpop.f32.mrf.mxu0
        %v1846 = vadd.f32 0.0, %v1845
        %v1847 = vpop.f32.mrf.mxu0
        %v1848 = vadd.f32 0.0, %v1847
        %1849 = vmatmul.bf16.gmra.mxu0 %v1764
        %v1850 = vpop.f32.mrf.mxu0
        %v1851 = vadd.f32 0.0, %v1850
        %v1852 = vpop.f32.mrf.mxu0
        %v1853 = vadd.f32 0.0, %v1852
        %1854 = vmatmul.bf16.gmra.mxu0 %v1765
        %v1855 = vpop.f32.mrf.mxu0
        %v1856 = vadd.f32 0.0, %v1855
        %v1857 = vpop.f32.mrf.mxu0
        %v1858 = vadd.f32 0.0, %v1857
        %1859 = vdwg.mxu0
        %v1860 = vadd.f32 %v1746, %v1841
        %v1861 = vadd.f32 %v1747, %v1843
        %v1862 = vadd.f32 %v1748, %v1846
        %v1863 = vadd.f32 %v1749, %v1848
        %v1864 = vadd.f32 %v1750, %v1851
        %v1865 = vadd.f32 %v1751, %v1853
        %v1866 = vadd.f32 %v1752, %v1856
        %v1867 = vadd.f32 %v1753, %v1858
        %v1868 = vld [vmem:[%s1420 + $0x1] sm:$0xff]
        %v1869 = vld [vmem:[%s1420 + $0x11] sm:$0xff]
        %v1870 = vld [vmem:[%s1420 + $0x21] sm:$0xff]
        %v1871 = vld [vmem:[%s1420 + $0x31] sm:$0xff]
        %v1872 = vld [vmem:[%s1420 + $0x41] sm:$0xff]
        %v1873 = vld [vmem:[%s1420 + $0x51] sm:$0xff]
        %v1874 = vld [vmem:[%s1420 + $0x61] sm:$0xff]
        %v1875 = vld [vmem:[%s1420 + $0x71] sm:$0xff]
        %v1876 = vpack.c.bf16 %v1869, %v1868
        %v1877 = vpack.c.bf16 %v1871, %v1870
        %v1878 = vpack.c.bf16 %v1873, %v1872
        %v1879 = vpack.c.bf16 %v1875, %v1874
        %s1880 = scalar_lea.vmem %s4, 256
        %v1881 = vld [vmem:[%s1880] sm:$0xf]
        %v1882 = vld [vmem:[%s1880 + $0x4] sm:$0xf]
        %v1883 = vld [vmem:[%s1880 + $0x8] sm:$0xf]
        %v1884 = vld [vmem:[%s1880 + $0xc] sm:$0xf]
        %v1885 = vld [vmem:[%s1880 + $0x10] sm:$0xf]
        %v1886 = vld [vmem:[%s1880 + $0x14] sm:$0xf]
        %v1887 = vld [vmem:[%s1880 + $0x18] sm:$0xf]
        %v1888 = vld [vmem:[%s1880 + $0x1c] sm:$0xf]
        %v1889 = vld [vmem:[%s1880 + $0x20] sm:$0xf]
        %v1890 = vld [vmem:[%s1880 + $0x24] sm:$0xf]
        %v1891 = vld [vmem:[%s1880 + $0x28] sm:$0xf]
        %v1892 = vld [vmem:[%s1880 + $0x2c] sm:$0xf]
        %v1893 = vld [vmem:[%s1880 + $0x30] sm:$0xf]
        %v1894 = vld [vmem:[%s1880 + $0x34] sm:$0xf]
        %v1895 = vld [vmem:[%s1880 + $0x38] sm:$0xf]
        %v1896 = vld [vmem:[%s1880 + $0x3c] sm:$0xf]
        %v1913 = vunpack.c.l.b16 %v1881
        %v1914 = vunpack.c.l.b16 %v1882
        %v1915 = vunpack.c.l.b16 %v1883
        %v1916 = vunpack.c.l.b16 %v1884
        %v1917 = vunpack.c.l.b16 %v1885
        %v1918 = vunpack.c.l.b16 %v1886
        %v1919 = vunpack.c.l.b16 %v1887
        %v1920 = vunpack.c.l.b16 %v1888
        %v1921 = vunpack.c.l.b16 %v1889
        %v1922 = vunpack.c.l.b16 %v1890
        %v1923 = vunpack.c.l.b16 %v1891
        %v1924 = vunpack.c.l.b16 %v1892
        %v1925 = vunpack.c.l.b16 %v1893
        %v1926 = vunpack.c.l.b16 %v1894
        %v1927 = vunpack.c.l.b16 %v1895
        %v1928 = vunpack.c.l.b16 %v1896
        %v1929 = vpack.c.b16 %v1914, %v1913
        %v1930 = vpack.c.b16 %v1916, %v1915
        %v1931 = vpack.c.b16 %v1918, %v1917
        %v1932 = vpack.c.b16 %v1920, %v1919
        %v1933 = vpack.c.b16 %v1922, %v1921
        %v1934 = vpack.c.b16 %v1924, %v1923
        %v1935 = vpack.c.b16 %v1926, %v1925
        %v1936 = vpack.c.b16 %v1928, %v1927
        %1945 = vmatpush.bf16.msra.mxu0 %v1936
        %1946 = vmatpush.bf16.msra.mxu0 %v1935
        %1947 = vmatpush.bf16.msra.mxu0 %v1934
        %1948 = vmatpush.bf16.msra.mxu0 %v1933
        %1949 = vmatpush.bf16.msra.mxu0 %v1932
        %1950 = vmatpush.bf16.msra.mxu0 %v1931
        %1951 = vmatpush.bf16.msra.mxu0 %v1930
        %1952 = vmatpush.bf16.msra.mxu0 %v1929
        %1953 = vmatmul.bf16.gmra.mxu0 %v1876
        %v1954 = vpop.f32.mrf.mxu0
        %v1955 = vadd.f32 0.0, %v1954
        %v1956 = vpop.f32.mrf.mxu0
        %v1957 = vadd.f32 0.0, %v1956
        %1958 = vmatmul.bf16.gmra.mxu0 %v1877
        %v1959 = vpop.f32.mrf.mxu0
        %v1960 = vadd.f32 0.0, %v1959
        %v1961 = vpop.f32.mrf.mxu0
        %v1962 = vadd.f32 0.0, %v1961
        %1963 = vmatmul.bf16.gmra.mxu0 %v1878
        %v1964 = vpop.f32.mrf.mxu0
        %v1965 = vadd.f32 0.0, %v1964
        %v1966 = vpop.f32.mrf.mxu0
        %v1967 = vadd.f32 0.0, %v1966
        %1968 = vmatmul.bf16.gmra.mxu0 %v1879
        %v1969 = vpop.f32.mrf.mxu0
        %v1970 = vadd.f32 0.0, %v1969
        %v1971 = vpop.f32.mrf.mxu0
        %v1972 = vadd.f32 0.0, %v1971
        %1973 = vdwg.mxu0
        %v1974 = vadd.f32 %v1860, %v1955
        %v1975 = vadd.f32 %v1861, %v1957
        %v1976 = vadd.f32 %v1862, %v1960
        %v1977 = vadd.f32 %v1863, %v1962
        %v1978 = vadd.f32 %v1864, %v1965
        %v1979 = vadd.f32 %v1865, %v1967
        %v1980 = vadd.f32 %v1866, %v1970
        %v1981 = vadd.f32 %v1867, %v1972
        %v1982 = vld [vmem:[%s1420 + $0x2] sm:$0xff]
        %v1983 = vld [vmem:[%s1420 + $0x12] sm:$0xff]
        %v1984 = vld [vmem:[%s1420 + $0x22] sm:$0xff]
        %v1985 = vld [vmem:[%s1420 + $0x32] sm:$0xff]
        %v1986 = vld [vmem:[%s1420 + $0x42] sm:$0xff]
        %v1987 = vld [vmem:[%s1420 + $0x52] sm:$0xff]
        %v1988 = vld [vmem:[%s1420 + $0x62] sm:$0xff]
        %v1989 = vld [vmem:[%s1420 + $0x72] sm:$0xff]
        %v1990 = vpack.c.bf16 %v1983, %v1982
        %v1991 = vpack.c.bf16 %v1985, %v1984
        %v1992 = vpack.c.bf16 %v1987, %v1986
        %v1993 = vpack.c.bf16 %v1989, %v1988
        %s1994 = scalar_lea.vmem %s4, 320
        %v1995 = vld [vmem:[%s1994] sm:$0xf]
        %v1996 = vld [vmem:[%s1994 + $0x4] sm:$0xf]
        %v1997 = vld [vmem:[%s1994 + $0x8] sm:$0xf]
        %v1998 = vld [vmem:[%s1994 + $0xc] sm:$0xf]
        %v1999 = vld [vmem:[%s1994 + $0x10] sm:$0xf]
        %v2000 = vld [vmem:[%s1994 + $0x14] sm:$0xf]
        %v2001 = vld [vmem:[%s1994 + $0x18] sm:$0xf]
        %v2002 = vld [vmem:[%s1994 + $0x1c] sm:$0xf]
        %v2003 = vld [vmem:[%s1994 + $0x20] sm:$0xf]
        %v2004 = vld [vmem:[%s1994 + $0x24] sm:$0xf]
        %v2005 = vld [vmem:[%s1994 + $0x28] sm:$0xf]
        %v2006 = vld [vmem:[%s1994 + $0x2c] sm:$0xf]
        %v2007 = vld [vmem:[%s1994 + $0x30] sm:$0xf]
        %v2008 = vld [vmem:[%s1994 + $0x34] sm:$0xf]
        %v2009 = vld [vmem:[%s1994 + $0x38] sm:$0xf]
        %v2010 = vld [vmem:[%s1994 + $0x3c] sm:$0xf]
        %v2027 = vunpack.c.l.b16 %v1995
        %v2028 = vunpack.c.l.b16 %v1996
        %v2029 = vunpack.c.l.b16 %v1997
        %v2030 = vunpack.c.l.b16 %v1998
        %v2031 = vunpack.c.l.b16 %v1999
        %v2032 = vunpack.c.l.b16 %v2000
        %v2033 = vunpack.c.l.b16 %v2001
        %v2034 = vunpack.c.l.b16 %v2002
        %v2035 = vunpack.c.l.b16 %v2003
        %v2036 = vunpack.c.l.b16 %v2004
        %v2037 = vunpack.c.l.b16 %v2005
        %v2038 = vunpack.c.l.b16 %v2006
        %v2039 = vunpack.c.l.b16 %v2007
        %v2040 = vunpack.c.l.b16 %v2008
        %v2041 = vunpack.c.l.b16 %v2009
        %v2042 = vunpack.c.l.b16 %v2010
        %v2043 = vpack.c.b16 %v2028, %v2027
        %v2044 = vpack.c.b16 %v2030, %v2029
        %v2045 = vpack.c.b16 %v2032, %v2031
        %v2046 = vpack.c.b16 %v2034, %v2033
        %v2047 = vpack.c.b16 %v2036, %v2035
        %v2048 = vpack.c.b16 %v2038, %v2037
        %v2049 = vpack.c.b16 %v2040, %v2039
        %v2050 = vpack.c.b16 %v2042, %v2041
        %2059 = vmatpush.bf16.msra.mxu0 %v2050
        %2060 = vmatpush.bf16.msra.mxu0 %v2049
        %2061 = vmatpush.bf16.msra.mxu0 %v2048
        %2062 = vmatpush.bf16.msra.mxu0 %v2047
        %2063 = vmatpush.bf16.msra.mxu0 %v2046
        %2064 = vmatpush.bf16.msra.mxu0 %v2045
        %2065 = vmatpush.bf16.msra.mxu0 %v2044
        %2066 = vmatpush.bf16.msra.mxu0 %v2043
        %2067 = vmatmul.bf16.gmra.mxu0 %v1990
        %v2068 = vpop.f32.mrf.mxu0
        %v2069 = vadd.f32 0.0, %v2068
        %v2070 = vpop.f32.mrf.mxu0
        %v2071 = vadd.f32 0.0, %v2070
        %2072 = vmatmul.bf16.gmra.mxu0 %v1991
        %v2073 = vpop.f32.mrf.mxu0
        %v2074 = vadd.f32 0.0, %v2073
        %v2075 = vpop.f32.mrf.mxu0
        %v2076 = vadd.f32 0.0, %v2075
        %2077 = vmatmul.bf16.gmra.mxu0 %v1992
        %v2078 = vpop.f32.mrf.mxu0
        %v2079 = vadd.f32 0.0, %v2078
        %v2080 = vpop.f32.mrf.mxu0
        %v2081 = vadd.f32 0.0, %v2080
        %2082 = vmatmul.bf16.gmra.mxu0 %v1993
        %v2083 = vpop.f32.mrf.mxu0
        %v2084 = vadd.f32 0.0, %v2083
        %v2085 = vpop.f32.mrf.mxu0
        %v2086 = vadd.f32 0.0, %v2085
        %2087 = vdwg.mxu0
        %v2088 = vadd.f32 %v1974, %v2069
        %v2089 = vadd.f32 %v1975, %v2071
        %v2090 = vadd.f32 %v1976, %v2074
        %v2091 = vadd.f32 %v1977, %v2076
        %v2092 = vadd.f32 %v1978, %v2079
        %v2093 = vadd.f32 %v1979, %v2081
        %v2094 = vadd.f32 %v1980, %v2084
        %v2095 = vadd.f32 %v1981, %v2086
        %s2096 = scalar_lea.vmem [#allocation2], 32
        %v2097 = vld [vmem:[%s2096] sm:$0xff]
        %v2098 = vld [vmem:[%s2096 + $0x10] sm:$0xff]
        %v2099 = vld [vmem:[%s2096 + $0x20] sm:$0xff]
        %v2100 = vld [vmem:[%s2096 + $0x30] sm:$0xff]
        %v2101 = vld [vmem:[%s2096 + $0x40] sm:$0xff]
        %v2102 = vld [vmem:[%s2096 + $0x50] sm:$0xff]
        %v2103 = vld [vmem:[%s2096 + $0x60] sm:$0xff]
        %v2104 = vld [vmem:[%s2096 + $0x70] sm:$0xff]
        %v2105 = vpack.c.bf16 %v2098, %v2097
        %v2106 = vpack.c.bf16 %v2100, %v2099
        %v2107 = vpack.c.bf16 %v2102, %v2101
        %v2108 = vpack.c.bf16 %v2104, %v2103
        %s2109 = scalar_lea.vmem %s4, 384
        %v2110 = vld [vmem:[%s2109] sm:$0xf]
        %v2111 = vld [vmem:[%s2109 + $0x4] sm:$0xf]
        %v2112 = vld [vmem:[%s2109 + $0x8] sm:$0xf]
        %v2113 = vld [vmem:[%s2109 + $0xc] sm:$0xf]
        %v2114 = vld [vmem:[%s2109 + $0x10] sm:$0xf]
        %v2115 = vld [vmem:[%s2109 + $0x14] sm:$0xf]
        %v2116 = vld [vmem:[%s2109 + $0x18] sm:$0xf]
        %v2117 = vld [vmem:[%s2109 + $0x1c] sm:$0xf]
        %v2118 = vld [vmem:[%s2109 + $0x20] sm:$0xf]
        %v2119 = vld [vmem:[%s2109 + $0x24] sm:$0xf]
        %v2120 = vld [vmem:[%s2109 + $0x28] sm:$0xf]
        %v2121 = vld [vmem:[%s2109 + $0x2c] sm:$0xf]
        %v2122 = vld [vmem:[%s2109 + $0x30] sm:$0xf]
        %v2123 = vld [vmem:[%s2109 + $0x34] sm:$0xf]
        %v2124 = vld [vmem:[%s2109 + $0x38] sm:$0xf]
        %v2125 = vld [vmem:[%s2109 + $0x3c] sm:$0xf]
        %v2142 = vunpack.c.l.b16 %v2110
        %v2143 = vunpack.c.l.b16 %v2111
        %v2144 = vunpack.c.l.b16 %v2112
        %v2145 = vunpack.c.l.b16 %v2113
        %v2146 = vunpack.c.l.b16 %v2114
        %v2147 = vunpack.c.l.b16 %v2115
        %v2148 = vunpack.c.l.b16 %v2116
        %v2149 = vunpack.c.l.b16 %v2117
        %v2150 = vunpack.c.l.b16 %v2118
        %v2151 = vunpack.c.l.b16 %v2119
        %v2152 = vunpack.c.l.b16 %v2120
        %v2153 = vunpack.c.l.b16 %v2121
        %v2154 = vunpack.c.l.b16 %v2122
        %v2155 = vunpack.c.l.b16 %v2123
        %v2156 = vunpack.c.l.b16 %v2124
        %v2157 = vunpack.c.l.b16 %v2125
        %v2158 = vpack.c.b16 %v2143, %v2142
        %v2159 = vpack.c.b16 %v2145, %v2144
        %v2160 = vpack.c.b16 %v2147, %v2146
        %v2161 = vpack.c.b16 %v2149, %v2148
        %v2162 = vpack.c.b16 %v2151, %v2150
        %v2163 = vpack.c.b16 %v2153, %v2152
        %v2164 = vpack.c.b16 %v2155, %v2154
        %v2165 = vpack.c.b16 %v2157, %v2156
        %2174 = vmatpush.bf16.msra.mxu0 %v2165
        %2175 = vmatpush.bf16.msra.mxu0 %v2164
        %2176 = vmatpush.bf16.msra.mxu0 %v2163
        %2177 = vmatpush.bf16.msra.mxu0 %v2162
        %2178 = vmatpush.bf16.msra.mxu0 %v2161
        %2179 = vmatpush.bf16.msra.mxu0 %v2160
        %2180 = vmatpush.bf16.msra.mxu0 %v2159
        %2181 = vmatpush.bf16.msra.mxu0 %v2158
        %2182 = vmatmul.bf16.gmra.mxu0 %v2105
        %v2183 = vpop.f32.mrf.mxu0
        %v2184 = vadd.f32 0.0, %v2183
        %v2185 = vpop.f32.mrf.mxu0
        %v2186 = vadd.f32 0.0, %v2185
        %2187 = vmatmul.bf16.gmra.mxu0 %v2106
        %v2188 = vpop.f32.mrf.mxu0
        %v2189 = vadd.f32 0.0, %v2188
        %v2190 = vpop.f32.mrf.mxu0
        %v2191 = vadd.f32 0.0, %v2190
        %2192 = vmatmul.bf16.gmra.mxu0 %v2107
        %v2193 = vpop.f32.mrf.mxu0
        %v2194 = vadd.f32 0.0, %v2193
        %v2195 = vpop.f32.mrf.mxu0
        %v2196 = vadd.f32 0.0, %v2195
        %2197 = vmatmul.bf16.gmra.mxu0 %v2108
        %v2198 = vpop.f32.mrf.mxu0
        %v2199 = vadd.f32 0.0, %v2198
        %v2200 = vpop.f32.mrf.mxu0
        %v2201 = vadd.f32 0.0, %v2200
        %2202 = vdwg.mxu0
        %v2203 = vadd.f32 %v2088, %v2184
        %v2204 = vadd.f32 %v2089, %v2186
        %v2205 = vadd.f32 %v2090, %v2189
        %v2206 = vadd.f32 %v2091, %v2191
        %v2207 = vadd.f32 %v2092, %v2194
        %v2208 = vadd.f32 %v2093, %v2196
        %v2209 = vadd.f32 %v2094, %v2199
        %v2210 = vadd.f32 %v2095, %v2201
        %v2211 = vld [vmem:[%s2096 + $0x1] sm:$0xff]
        %v2212 = vld [vmem:[%s2096 + $0x11] sm:$0xff]
        %v2213 = vld [vmem:[%s2096 + $0x21] sm:$0xff]
        %v2214 = vld [vmem:[%s2096 + $0x31] sm:$0xff]
        %v2215 = vld [vmem:[%s2096 + $0x41] sm:$0xff]
        %v2216 = vld [vmem:[%s2096 + $0x51] sm:$0xff]
        %v2217 = vld [vmem:[%s2096 + $0x61] sm:$0xff]
        %v2218 = vld [vmem:[%s2096 + $0x71] sm:$0xff]
        %v2219 = vpack.c.bf16 %v2212, %v2211
        %v2220 = vpack.c.bf16 %v2214, %v2213
        %v2221 = vpack.c.bf16 %v2216, %v2215
        %v2222 = vpack.c.bf16 %v2218, %v2217
        %s2223 = scalar_lea.vmem %s4, 448
        %v2224 = vld [vmem:[%s2223] sm:$0xf]
        %v2225 = vld [vmem:[%s2223 + $0x4] sm:$0xf]
        %v2226 = vld [vmem:[%s2223 + $0x8] sm:$0xf]
        %v2227 = vld [vmem:[%s2223 + $0xc] sm:$0xf]
        %v2228 = vld [vmem:[%s2223 + $0x10] sm:$0xf]
        %v2229 = vld [vmem:[%s2223 + $0x14] sm:$0xf]
        %v2230 = vld [vmem:[%s2223 + $0x18] sm:$0xf]
        %v2231 = vld [vmem:[%s2223 + $0x1c] sm:$0xf]
        %v2232 = vld [vmem:[%s2223 + $0x20] sm:$0xf]
        %v2233 = vld [vmem:[%s2223 + $0x24] sm:$0xf]
        %v2234 = vld [vmem:[%s2223 + $0x28] sm:$0xf]
        %v2235 = vld [vmem:[%s2223 + $0x2c] sm:$0xf]
        %v2236 = vld [vmem:[%s2223 + $0x30] sm:$0xf]
        %v2237 = vld [vmem:[%s2223 + $0x34] sm:$0xf]
        %v2238 = vld [vmem:[%s2223 + $0x38] sm:$0xf]
        %v2239 = vld [vmem:[%s2223 + $0x3c] sm:$0xf]
        %v2256 = vunpack.c.l.b16 %v2224
        %v2257 = vunpack.c.l.b16 %v2225
        %v2258 = vunpack.c.l.b16 %v2226
        %v2259 = vunpack.c.l.b16 %v2227
        %v2260 = vunpack.c.l.b16 %v2228
        %v2261 = vunpack.c.l.b16 %v2229
        %v2262 = vunpack.c.l.b16 %v2230
        %v2263 = vunpack.c.l.b16 %v2231
        %v2264 = vunpack.c.l.b16 %v2232
        %v2265 = vunpack.c.l.b16 %v2233
        %v2266 = vunpack.c.l.b16 %v2234
        %v2267 = vunpack.c.l.b16 %v2235
        %v2268 = vunpack.c.l.b16 %v2236
        %v2269 = vunpack.c.l.b16 %v2237
        %v2270 = vunpack.c.l.b16 %v2238
        %v2271 = vunpack.c.l.b16 %v2239
        %v2272 = vpack.c.b16 %v2257, %v2256
        %v2273 = vpack.c.b16 %v2259, %v2258
        %v2274 = vpack.c.b16 %v2261, %v2260
        %v2275 = vpack.c.b16 %v2263, %v2262
        %v2276 = vpack.c.b16 %v2265, %v2264
        %v2277 = vpack.c.b16 %v2267, %v2266
        %v2278 = vpack.c.b16 %v2269, %v2268
        %v2279 = vpack.c.b16 %v2271, %v2270
        %2288 = vmatpush.bf16.msra.mxu0 %v2279
        %2289 = vmatpush.bf16.msra.mxu0 %v2278
        %2290 = vmatpush.bf16.msra.mxu0 %v2277
        %2291 = vmatpush.bf16.msra.mxu0 %v2276
        %2292 = vmatpush.bf16.msra.mxu0 %v2275
        %2293 = vmatpush.bf16.msra.mxu0 %v2274
        %2294 = vmatpush.bf16.msra.mxu0 %v2273
        %2295 = vmatpush.bf16.msra.mxu0 %v2272
        %2296 = vmatmul.bf16.gmra.mxu0 %v2219
        %v2297 = vpop.f32.mrf.mxu0
        %v2298 = vadd.f32 0.0, %v2297
        %v2299 = vpop.f32.mrf.mxu0
        %v2300 = vadd.f32 0.0, %v2299
        %2301 = vmatmul.bf16.gmra.mxu0 %v2220
        %v2302 = vpop.f32.mrf.mxu0
        %v2303 = vadd.f32 0.0, %v2302
        %v2304 = vpop.f32.mrf.mxu0
        %v2305 = vadd.f32 0.0, %v2304
        %2306 = vmatmul.bf16.gmra.mxu0 %v2221
        %v2307 = vpop.f32.mrf.mxu0
        %v2308 = vadd.f32 0.0, %v2307
        %v2309 = vpop.f32.mrf.mxu0
        %v2310 = vadd.f32 0.0, %v2309
        %2311 = vmatmul.bf16.gmra.mxu0 %v2222
        %v2312 = vpop.f32.mrf.mxu0
        %v2313 = vadd.f32 0.0, %v2312
        %v2314 = vpop.f32.mrf.mxu0
        %v2315 = vadd.f32 0.0, %v2314
        %2316 = vdwg.mxu0
        %v2317 = vadd.f32 %v2203, %v2298
        %v2318 = vadd.f32 %v2204, %v2300
        %v2319 = vadd.f32 %v2205, %v2303
        %v2320 = vadd.f32 %v2206, %v2305
        %v2321 = vadd.f32 %v2207, %v2308
        %v2322 = vadd.f32 %v2208, %v2310
        %v2323 = vadd.f32 %v2209, %v2313
        %v2324 = vadd.f32 %v2210, %v2315
        %v2325 = vld [vmem:[%s2096 + $0x2] sm:$0xff]
        %v2326 = vld [vmem:[%s2096 + $0x12] sm:$0xff]
        %v2327 = vld [vmem:[%s2096 + $0x22] sm:$0xff]
        %v2328 = vld [vmem:[%s2096 + $0x32] sm:$0xff]
        %v2329 = vld [vmem:[%s2096 + $0x42] sm:$0xff]
        %v2330 = vld [vmem:[%s2096 + $0x52] sm:$0xff]
        %v2331 = vld [vmem:[%s2096 + $0x62] sm:$0xff]
        %v2332 = vld [vmem:[%s2096 + $0x72] sm:$0xff]
        %v2333 = vpack.c.bf16 %v2326, %v2325
        %v2334 = vpack.c.bf16 %v2328, %v2327
        %v2335 = vpack.c.bf16 %v2330, %v2329
        %v2336 = vpack.c.bf16 %v2332, %v2331
        %s2337 = scalar_lea.vmem %s4, 512
        %v2338 = vld [vmem:[%s2337] sm:$0xf]
        %v2339 = vld [vmem:[%s2337 + $0x4] sm:$0xf]
        %v2340 = vld [vmem:[%s2337 + $0x8] sm:$0xf]
        %v2341 = vld [vmem:[%s2337 + $0xc] sm:$0xf]
        %v2342 = vld [vmem:[%s2337 + $0x10] sm:$0xf]
        %v2343 = vld [vmem:[%s2337 + $0x14] sm:$0xf]
        %v2344 = vld [vmem:[%s2337 + $0x18] sm:$0xf]
        %v2345 = vld [vmem:[%s2337 + $0x1c] sm:$0xf]
        %v2346 = vld [vmem:[%s2337 + $0x20] sm:$0xf]
        %v2347 = vld [vmem:[%s2337 + $0x24] sm:$0xf]
        %v2348 = vld [vmem:[%s2337 + $0x28] sm:$0xf]
        %v2349 = vld [vmem:[%s2337 + $0x2c] sm:$0xf]
        %v2350 = vld [vmem:[%s2337 + $0x30] sm:$0xf]
        %v2351 = vld [vmem:[%s2337 + $0x34] sm:$0xf]
        %v2352 = vld [vmem:[%s2337 + $0x38] sm:$0xf]
        %v2353 = vld [vmem:[%s2337 + $0x3c] sm:$0xf]
        %v2370 = vunpack.c.l.b16 %v2338
        %v2371 = vunpack.c.l.b16 %v2339
        %v2372 = vunpack.c.l.b16 %v2340
        %v2373 = vunpack.c.l.b16 %v2341
        %v2374 = vunpack.c.l.b16 %v2342
        %v2375 = vunpack.c.l.b16 %v2343
        %v2376 = vunpack.c.l.b16 %v2344
        %v2377 = vunpack.c.l.b16 %v2345
        %v2378 = vunpack.c.l.b16 %v2346
        %v2379 = vunpack.c.l.b16 %v2347
        %v2380 = vunpack.c.l.b16 %v2348
        %v2381 = vunpack.c.l.b16 %v2349
        %v2382 = vunpack.c.l.b16 %v2350
        %v2383 = vunpack.c.l.b16 %v2351
        %v2384 = vunpack.c.l.b16 %v2352
        %v2385 = vunpack.c.l.b16 %v2353
        %v2386 = vpack.c.b16 %v2371, %v2370
        %v2387 = vpack.c.b16 %v2373, %v2372
        %v2388 = vpack.c.b16 %v2375, %v2374
        %v2389 = vpack.c.b16 %v2377, %v2376
        %v2390 = vpack.c.b16 %v2379, %v2378
        %v2391 = vpack.c.b16 %v2381, %v2380
        %v2392 = vpack.c.b16 %v2383, %v2382
        %v2393 = vpack.c.b16 %v2385, %v2384
        %2402 = vmatpush.bf16.msra.mxu0 %v2393
        %2403 = vmatpush.bf16.msra.mxu0 %v2392
        %2404 = vmatpush.bf16.msra.mxu0 %v2391
        %2405 = vmatpush.bf16.msra.mxu0 %v2390
        %2406 = vmatpush.bf16.msra.mxu0 %v2389
        %2407 = vmatpush.bf16.msra.mxu0 %v2388
        %2408 = vmatpush.bf16.msra.mxu0 %v2387
        %2409 = vmatpush.bf16.msra.mxu0 %v2386
        %2410 = vmatmul.bf16.gmra.mxu0 %v2333
        %v2411 = vpop.f32.mrf.mxu0
        %v2412 = vadd.f32 0.0, %v2411
        %v2413 = vpop.f32.mrf.mxu0
        %v2414 = vadd.f32 0.0, %v2413
        %2415 = vmatmul.bf16.gmra.mxu0 %v2334
        %v2416 = vpop.f32.mrf.mxu0
        %v2417 = vadd.f32 0.0, %v2416
        %v2418 = vpop.f32.mrf.mxu0
        %v2419 = vadd.f32 0.0, %v2418
        %2420 = vmatmul.bf16.gmra.mxu0 %v2335
        %v2421 = vpop.f32.mrf.mxu0
        %v2422 = vadd.f32 0.0, %v2421
        %v2423 = vpop.f32.mrf.mxu0
        %v2424 = vadd.f32 0.0, %v2423
        %2425 = vmatmul.bf16.gmra.mxu0 %v2336
        %v2426 = vpop.f32.mrf.mxu0
        %v2427 = vadd.f32 0.0, %v2426
        %v2428 = vpop.f32.mrf.mxu0
        %v2429 = vadd.f32 0.0, %v2428
        %2430 = vdwg.mxu0
        %v2431 = vadd.f32 %v2317, %v2412
        %v2432 = vadd.f32 %v2318, %v2414
        %v2433 = vadd.f32 %v2319, %v2417
        %v2434 = vadd.f32 %v2320, %v2419
        %v2435 = vadd.f32 %v2321, %v2422
        %v2436 = vadd.f32 %v2322, %v2424
        %v2437 = vadd.f32 %v2323, %v2427
        %v2438 = vadd.f32 %v2324, %v2429
        %v2439 = vld [vmem:[%s5] sm:$0x1]
        %v2441 = vperm.slane %v2439, 0
        %v2443 = vmul.f32 %v2431, %v2441
        %v2444 = vmul.f32 %v2432, %v2441
        %v2445 = vmul.f32 %v2433, %v2441
        %v2446 = vmul.f32 %v2434, %v2441
        %v2447 = vmul.f32 %v2435, %v2441
        %v2448 = vmul.f32 %v2436, %v2441
        %v2449 = vmul.f32 %v2437, %v2441
        %v2450 = vmul.f32 %v2438, %v2441
        %v2451 = vld [vmem:[%s6] sm:$0x1]
        %v2453 = vperm.slane %v2451, 0
        %v2455 = vadd.f32 %v2443, %v2453
        %v2456 = vadd.f32 %v2444, %v2453
        %v2457 = vadd.f32 %v2445, %v2453
        %v2458 = vadd.f32 %v2446, %v2453
        %v2459 = vadd.f32 %v2447, %v2453
        %v2460 = vadd.f32 %v2448, %v2453
        %v2461 = vadd.f32 %v2449, %v2453
        %v2462 = vadd.f32 %v2450, %v2453
        %v2463 = vld [vmem:[%s682 + $0x1] sm:$0xff]
        %v2464 = vld [vmem:[%s682 + $0x11] sm:$0xff]
        %v2465 = vld [vmem:[%s682 + $0x21] sm:$0xff]
        %v2466 = vld [vmem:[%s682 + $0x31] sm:$0xff]
        %v2467 = vld [vmem:[%s682 + $0x41] sm:$0xff]
        %v2468 = vld [vmem:[%s682 + $0x51] sm:$0xff]
        %v2469 = vld [vmem:[%s682 + $0x61] sm:$0xff]
        %v2470 = vld [vmem:[%s682 + $0x71] sm:$0xff]
        %v2471 = vpack.c.bf16 %v2464, %v2463
        %v2472 = vpack.c.bf16 %v2466, %v2465
        %v2473 = vpack.c.bf16 %v2468, %v2467
        %v2474 = vpack.c.bf16 %v2470, %v2469
        %v2475 = vld [vmem:[%s7] sm:$0xf]
        %v2476 = vld [vmem:[%s7 + $0x4] sm:$0xf]
        %v2477 = vld [vmem:[%s7 + $0x8] sm:$0xf]
        %v2478 = vld [vmem:[%s7 + $0xc] sm:$0xf]
        %v2479 = vld [vmem:[%s7 + $0x10] sm:$0xf]
        %v2480 = vld [vmem:[%s7 + $0x14] sm:$0xf]
        %v2481 = vld [vmem:[%s7 + $0x18] sm:$0xf]
        %v2482 = vld [vmem:[%s7 + $0x1c] sm:$0xf]
        %v2483 = vld [vmem:[%s7 + $0x20] sm:$0xf]
        %v2484 = vld [vmem:[%s7 + $0x24] sm:$0xf]
        %v2485 = vld [vmem:[%s7 + $0x28] sm:$0xf]
        %v2486 = vld [vmem:[%s7 + $0x2c] sm:$0xf]
        %v2487 = vld [vmem:[%s7 + $0x30] sm:$0xf]
        %v2488 = vld [vmem:[%s7 + $0x34] sm:$0xf]
        %v2489 = vld [vmem:[%s7 + $0x38] sm:$0xf]
        %v2490 = vld [vmem:[%s7 + $0x3c] sm:$0xf]
        %v2507 = vunpack.c.l.b16 %v2475
        %v2508 = vunpack.c.l.b16 %v2476
        %v2509 = vunpack.c.l.b16 %v2477
        %v2510 = vunpack.c.l.b16 %v2478
        %v2511 = vunpack.c.l.b16 %v2479
        %v2512 = vunpack.c.l.b16 %v2480
        %v2513 = vunpack.c.l.b16 %v2481
        %v2514 = vunpack.c.l.b16 %v2482
        %v2515 = vunpack.c.l.b16 %v2483
        %v2516 = vunpack.c.l.b16 %v2484
        %v2517 = vunpack.c.l.b16 %v2485
        %v2518 = vunpack.c.l.b16 %v2486
        %v2519 = vunpack.c.l.b16 %v2487
        %v2520 = vunpack.c.l.b16 %v2488
        %v2521 = vunpack.c.l.b16 %v2489
        %v2522 = vunpack.c.l.b16 %v2490
        %v2523 = vpack.c.b16 %v2508, %v2507
        %v2524 = vpack.c.b16 %v2510, %v2509
        %v2525 = vpack.c.b16 %v2512, %v2511
        %v2526 = vpack.c.b16 %v2514, %v2513
        %v2527 = vpack.c.b16 %v2516, %v2515
        %v2528 = vpack.c.b16 %v2518, %v2517
        %v2529 = vpack.c.b16 %v2520, %v2519
        %v2530 = vpack.c.b16 %v2522, %v2521
        %2539 = vmatpush.bf16.msra.mxu0 %v2530
        %2540 = vmatpush.bf16.msra.mxu0 %v2529
        %2541 = vmatpush.bf16.msra.mxu0 %v2528
        %2542 = vmatpush.bf16.msra.mxu0 %v2527
        %2543 = vmatpush.bf16.msra.mxu0 %v2526
        %2544 = vmatpush.bf16.msra.mxu0 %v2525
        %2545 = vmatpush.bf16.msra.mxu0 %v2524
        %2546 = vmatpush.bf16.msra.mxu0 %v2523
        %2547 = vmatmul.bf16.gmra.mxu0 %v2471
        %v2548 = vpop.f32.mrf.mxu0
        %v2549 = vadd.f32 0.0, %v2548
        %v2550 = vpop.f32.mrf.mxu0
        %v2551 = vadd.f32 0.0, %v2550
        %2552 = vmatmul.bf16.gmra.mxu0 %v2472
        %v2553 = vpop.f32.mrf.mxu0
        %v2554 = vadd.f32 0.0, %v2553
        %v2555 = vpop.f32.mrf.mxu0
        %v2556 = vadd.f32 0.0, %v2555
        %2557 = vmatmul.bf16.gmra.mxu0 %v2473
        %v2558 = vpop.f32.mrf.mxu0
        %v2559 = vadd.f32 0.0, %v2558
        %v2560 = vpop.f32.mrf.mxu0
        %v2561 = vadd.f32 0.0, %v2560
        %2562 = vmatmul.bf16.gmra.mxu0 %v2474
        %v2563 = vpop.f32.mrf.mxu0
        %v2564 = vadd.f32 0.0, %v2563
        %v2565 = vpop.f32.mrf.mxu0
        %v2566 = vadd.f32 0.0, %v2565
        %2567 = vdwg.mxu0
        %v2568 = vld [vmem:[%s8] sm:$0x1]
        %v2570 = vperm.slane %v2568, 0
        %v2572 = vmul.f32 %v2549, %v2570
        %v2573 = vmul.f32 %v2551, %v2570
        %v2574 = vmul.f32 %v2554, %v2570
        %v2575 = vmul.f32 %v2556, %v2570
        %v2576 = vmul.f32 %v2559, %v2570
        %v2577 = vmul.f32 %v2561, %v2570
        %v2578 = vmul.f32 %v2564, %v2570
        %v2579 = vmul.f32 %v2566, %v2570
        %v2580 = vld [vmem:[%s9] sm:$0x1]
        %v2582 = vperm.slane %v2580, 0
        %v2584 = vadd.f32 %v2572, %v2582
        %v2585 = vadd.f32 %v2573, %v2582
        %v2586 = vadd.f32 %v2574, %v2582
        %v2587 = vadd.f32 %v2575, %v2582
        %v2588 = vadd.f32 %v2576, %v2582
        %v2589 = vadd.f32 %v2577, %v2582
        %v2590 = vadd.f32 %v2578, %v2582
        %v2591 = vadd.f32 %v2579, %v2582
        %v2592 = vadd.f32 %v2455, %v2584
        %v2593 = vadd.f32 %v2456, %v2585
        %v2594 = vadd.f32 %v2457, %v2586
        %v2595 = vadd.f32 %v2458, %v2587
        %v2596 = vadd.f32 %v2459, %v2588
        %v2597 = vadd.f32 %v2460, %v2589
        %v2598 = vadd.f32 %v2461, %v2590
        %v2599 = vadd.f32 %v2462, %v2591
        %v2600 = vmax.f32 %v2592, 0.0
        %v2601 = vmax.f32 %v2593, 0.0
        %v2602 = vmax.f32 %v2594, 0.0
        %v2603 = vmax.f32 %v2595, 0.0
        %v2604 = vmax.f32 %v2596, 0.0
        %v2605 = vmax.f32 %v2597, 0.0
        %v2606 = vmax.f32 %v2598, 0.0
        %v2607 = vmax.f32 %v2599, 0.0
        %v2608 = vadd.f32 %v2600, %v2601
        %v2609 = vadd.f32 %v2608, %v2602
        %v2610 = vadd.f32 %v2609, %v2603
        %v2611 = vadd.f32 %v2610, %v2604
        %v2612 = vadd.f32 %v2611, %v2605
        %v2613 = vadd.f32 %v2612, %v2606
        %v2614 = vadd.f32 %v2613, %v2607
        %v2615 = vrot.slane %v2614, 4
        %v2616 = vadd.f32 %v2614, %v2615
        %v2617 = vrot.slane %v2616, 2
        %v2618 = vadd.f32 %v2616, %v2617
        %v2619 = vrot.slane %v2618, 1
        %v2620 = vadd.f32 %v2618, %v2619
        %v2621 = vmul.f32 %v2620, 0.015625
        %2622 = vst [vmem:[%s351] sm:$0x1] %v2621
        %s2623 = sand.u32 %s247, 1
        %s2624 = scalar_lea.sflag [#allocation4], %s2623
        %s2625 = sand.u32 %s247, 1
        %s2626 = scalar_lea.vmem [#allocation3], %s2625
        // Predicated region
        $region61: #{resnet_forward_pallas.7} parent=59 // pred_check
          %p2627 = pneg %p257
        $region62: #{resnet_forward_pallas.7} parent=59 // pred_check_branch
          %2629 = sbr.rel (%p2627) target = $region64
        $region63: #{resnet_forward_pallas.7} parent=59 // pred_region
          %2631 = vsyncadd %s2624, 0
          %s2632 = scalar_lea.hbm %s10, %s24
          %s2634 = sshll.u32 %s2626, 4
          %s2635 = int_to_ptr.vmem [resolvable:$true] %s2634
          %s2636 = sshll.u32 %s2632, 4
          %s2637 = int_to_ptr.hbm [resolvable:$true] %s2636
          %2639 = dma.vmem_to_hbm [thread:$0]  %s2635, 16, %s2637, %s2624
        $region64: #{resnet_forward_pallas.7} parent=59 // pred_fallthru
          _
      $region60: #{resnet_forward_pallas.7} parent=5 // pred_fallthru
        _
      %p2640 = scmp.le.s32.totalorder 2, %s19
      // Predicated region
      $region65: #{resnet_forward_pallas.7} parent=5 // pred_check
        %p2641 = pneg %p2640
      $region66: #{resnet_forward_pallas.7} parent=5 // pred_check_branch
        %2643 = sbr.rel (%p2641) target = $region68
      $region67: #{resnet_forward_pallas.7} parent=5 // pred_region
        %s2644 = ssub.s32 %s19, 2
        // Predicated region
        $region69: #{resnet_forward_pallas.7} parent=67 // pred_check
          %p2645 = pneg %p263
        $region70: #{resnet_forward_pallas.7} parent=67 // pred_check_branch
          %2647 = sbr.rel (%p2645) target = $region72
        $region71: #{resnet_forward_pallas.7} parent=67 // pred_region
          %s2648 = sand.u32 %s248, 1
          %s2649 = scalar_lea.sflag [#allocation4], %s2648
          %s2650 = sand.u32 %s248, 1
          %s2651 = scalar_lea.vmem [#allocation3], %s2650
          %2653 = dma.done %s2649, 16
        $region72: #{resnet_forward_pallas.7} parent=67 // pred_fallthru
          _
      $region68: #{resnet_forward_pallas.7} parent=5 // pred_fallthru
        _
    $region6: #{resnet_forward_pallas.7} parent=1 // loop_footer
      %s23 = sadd.s32 1, %s19
    $region7: #{resnet_forward_pallas.7} parent=1 // loop_footer_branch
      %18 = sbr.rel target = $region3
    $region8: #{resnet_forward_pallas.7} parent=1 // loop_exit
      _
    %2654 = vsyncpa [#allocation4], 1
    %s2655 = scalar_lea.sflag [#allocation4], 1
    %2656 = vsyncpa %s2655, 1

</llo_original>
